<compile_context>
chip_gen: v7x
topology: tpu7x:2x2x1
jax: 0.10.0
libtpu: 0.0.40
codegen_flags: <defaults>
</compile_context>

<pallas_src>
import jax
import jax.numpy as jnp
from jax.experimental import pallas as pl
from jax.experimental.pallas import tpu as pltpu

IN_F = 2048
HID_F = 4096
OUT_F = 256
BN_EPS = 1e-5

TILE_H = 1024                       # hidden-dim tile (portable default)
N_TILES = HID_F // TILE_H           # 4
assert HID_F % TILE_H == 0


def proj_mlp_kernel(x_ref, w1_ref, gamma_ref, beta_ref, w2_ref, b2_ref,
                    out_ref):
    j = pl.program_id(0)            # reduction over hidden tiles

    @pl.when(j == 0)
    def _():
        out_ref[...] = jnp.zeros_like(out_ref)

    # fc1 for this hidden tile: bf16 MXU matmul, f32 accumulation.
    # fc1 bias is omitted: training-mode BN's mean subtraction cancels it.
    x_bf16 = x_ref[...].astype(jnp.bfloat16)
    h = jnp.dot(x_bf16, w1_ref[...], preferred_element_type=jnp.float32)

    # BatchNorm1d (training mode): per-feature batch mean / biased variance
    # (two-pass form for robustness), affine transform in f32.
    mean = jnp.mean(h, axis=0, keepdims=True)
    d = h - mean
    var = jnp.mean(d * d, axis=0, keepdims=True)
    h = d * jax.lax.rsqrt(var + BN_EPS)
    h = h * gamma_ref[...] + beta_ref[...]

    # ReLU, then fc2 partial product for this tile, accumulated directly into
    # the resident f32 output block (output block index is constant along j).
    h_act = jnp.maximum(h, 0.0).astype(jnp.bfloat16)
    out_ref[...] += jnp.dot(h_act, w2_ref[...],
                            preferred_element_type=jnp.float32)

    # Finalize on the last reduction step: fold in the fc2 bias in-kernel so
    # the wrapper needs no epilogue fusion.
    @pl.when(j == pl.num_programs(0) - 1)
    def _():
        out_ref[...] += b2_ref[...]


def pack_params(w1, b1, gamma, beta, w2, b2):
    """One-time parameter packing (do this at load time, not per call).

    w1: (IN_F, HID_F) f32 -> (N_TILES, IN_F, TILE_H) bf16, contiguous per tile
    w2: (HID_F, OUT_F) f32 -> bf16
    gamma/beta: (1, HID_F) f32, tiled per step via BlockSpec
    b2: (1, OUT_F) f32, added in-kernel on the last step
    b1 is dropped: it is exactly cancelled by training-mode BN mean subtraction.
    """
    del b1  # mathematically a no-op under training-mode BatchNorm
    w1_p = w1.astype(jnp.bfloat16).reshape(IN_F, N_TILES, TILE_H)
    w1_p = jnp.transpose(w1_p, (1, 0, 2))
    return dict(
        w1=w1_p,
        gamma=gamma,
        beta=beta,
        w2=w2.astype(jnp.bfloat16),
        b2=b2,
    )


@jax.jit
def proj_mlp(x, params):
    B = x.shape[0]

    grid_spec = pltpu.PrefetchScalarGridSpec(
        num_scalar_prefetch=0,
        grid=(N_TILES,),
        in_specs=[
            pl.BlockSpec((B, IN_F), lambda j: (0, 0)),              # x (resident)
            pl.BlockSpec((None, IN_F, TILE_H), lambda j: (j, 0, 0)),  # w1 tile
            pl.BlockSpec((1, TILE_H), lambda j: (0, j)),            # gamma tile
            pl.BlockSpec((1, TILE_H), lambda j: (0, j)),            # beta tile
            pl.BlockSpec((TILE_H, OUT_F), lambda j: (j, 0)),        # w2 tile
            pl.BlockSpec((1, OUT_F), lambda j: (0, 0)),             # b2 (resident)
        ],
        out_specs=pl.BlockSpec((B, OUT_F), lambda j: (0, 0)),       # resident acc
    )

    return pl.pallas_call(
        proj_mlp_kernel,
        out_shape=jax.ShapeDtypeStruct((B, OUT_F), jnp.float32),
        grid_spec=grid_spec,
        compiler_params=pltpu.CompilerParams(
            dimension_semantics=("arbitrary",),   # reduction axis
            vmem_limit_bytes=24 << 20,            # ~10 MiB actual use + headroom
        ),
    )(x, params["w1"], params["gamma"], params["beta"], params["w2"],
      params["b2"])


def proj_mlp_ref_f32(x, w1, b1, gamma, beta, w2, b2):
    """Full-f32 reference (semantics of the PyTorch module in training mode)."""
    h = x @ w1 + b1
    mean = jnp.mean(h, axis=0, keepdims=True)
    var = jnp.mean((h - mean) ** 2, axis=0, keepdims=True)
    h = (h - mean) * jax.lax.rsqrt(var + BN_EPS) * gamma + beta
    h = jnp.maximum(h, 0.0)
    return h @ w2 + b2


def proj_mlp_ref_bf16(x, w1, gamma, beta, w2, b2):
    """Reference mirroring the kernel's bf16 quantization and no-b1 identity."""
    h = jnp.dot(x.astype(jnp.bfloat16), w1.astype(jnp.bfloat16),
                preferred_element_type=jnp.float32)
    mean = jnp.mean(h, axis=0, keepdims=True)
    d = h - mean
    var = jnp.mean(d * d, axis=0, keepdims=True)
    h = d * jax.lax.rsqrt(var + BN_EPS) * gamma + beta
    h = jnp.maximum(h, 0.0)
    return jnp.dot(h.astype(jnp.bfloat16), w2.astype(jnp.bfloat16),
                   preferred_element_type=jnp.float32) + b2


if __name__ == "__main__":
    key = jax.random.PRNGKey(0)
    kx, kw1, kb1, kw2, kb2 = jax.random.split(key, 5)

    B = 8  # multiple of 8 keeps the sublane dim friendly; BN needs batch > 1
    x = jax.random.normal(kx, (B, IN_F), dtype=jnp.float32)

    # Deterministic parameter init (PyTorch-style uniform bounds).
    bound1 = 1.0 / (IN_F ** 0.5)
    w1 = jax.random.uniform(kw1, (IN_F, HID_F), jnp.float32, -bound1, bound1)
    b1 = jax.random.uniform(kb1, (1, HID_F), jnp.float32, -bound1, bound1)
    gamma = jnp.ones((1, HID_F), jnp.float32)   # BN weight init
    beta = jnp.zeros((1, HID_F), jnp.float32)   # BN bias init
    bound2 = 1.0 / (HID_F ** 0.5)
    w2 = jax.random.uniform(kw2, (HID_F, OUT_F), jnp.float32, -bound2, bound2)
    b2 = jax.random.uniform(kb2, (1, OUT_F), jnp.float32, -bound2, bound2)

    params = pack_params(w1, b1, gamma, beta, w2, b2)
    out = jax.block_until_ready(proj_mlp(x, params))
    assert out.shape == (B, OUT_F)

    # Tight check against a reference using the same bf16 quantization.
    ref_q = proj_mlp_ref_bf16(x, w1, gamma, beta, w2, b2)
    assert jnp.allclose(out, ref_q, atol=1e-3, rtol=1e-3), "mismatch vs bf16 ref"

    # Looser check against the full-f32 module semantics (with b1); bf16 weight
    # storage is a deliberate perf tradeoff, and b1 cancels under training BN.
    ref = proj_mlp_ref_f32(x, w1, b1, gamma, beta, w2, b2)
    assert jnp.allclose(out, ref, atol=5e-2, rtol=5e-2), "mismatch vs f32 ref"

    print("KERNEL_OK")
</pallas_src>

<mosaic_0001>
module attributes {stable_mosaic.version = 11 : i64} {
  func.func @proj_mlp_kernel(%arg0: i32, %arg1: memref<8x2048xf32, #tpu.memory_space<vmem>>, %arg2: memref<1x2048x1024xbf16, #tpu.memory_space<vmem>>, %arg3: memref<1x1024xf32, #tpu.memory_space<vmem>>, %arg4: memref<1x1024xf32, #tpu.memory_space<vmem>>, %arg5: memref<1024x256xbf16, #tpu.memory_space<vmem>>, %arg6: memref<1x256xf32, #tpu.memory_space<vmem>>, %arg7: memref<8x256xf32, #tpu.memory_space<vmem>>) attributes {dimension_semantics = [#tpu.dimension_semantics<arbitrary>], iteration_bounds = array<i64: 4>, scalar_prefetch = 0 : i64, scratch_operands = 0 : i64, tpu.core_type = #tpu.core_type<tc>, window_params = [{pipeline_mode = #tpu.pipeline_mode<synchronous>, transform_indices = @transform_0, window_bounds = array<i64: 8, 2048>}, {transform_indices = @transform_1, window_bounds = array<i64: 1, 2048, 1024>}, {transform_indices = @transform_2, window_bounds = array<i64: 1, 1024>}, {transform_indices = @transform_3, window_bounds = array<i64: 1, 1024>}, {transform_indices = @transform_4, window_bounds = array<i64: 1024, 256>}, {pipeline_mode = #tpu.pipeline_mode<synchronous>, transform_indices = @transform_5, window_bounds = array<i64: 1, 256>}, {pipeline_mode = #tpu.pipeline_mode<synchronous>, transform_indices = @transform_6, window_bounds = array<i64: 8, 256>}]} {
    %c0_i32 = arith.constant 0 : i32
    %0 = arith.cmpi eq, %arg0, %c0_i32 : i32
    %1 = arith.extui %0 : i1 to i32
    %c0_i32_0 = arith.constant 0 : i32
    %2 = arith.cmpi ne, %1, %c0_i32_0 : i32
    scf.if %2 {
      %cst_23 = arith.constant 0.000000e+00 : f32
      %41 = vector.broadcast %cst_23 : f32 to vector<8x256xf32>
      %c0_24 = arith.constant 0 : index
      %c0_25 = arith.constant 0 : index
      %42 = vector.load %arg7[%c0_24, %c0_25] : memref<8x256xf32, #tpu.memory_space<vmem>>, vector<8x256xf32>
      tpu.vector_store %arg7[%c0_24, %c0_25], %41 {strides = array<i32>} : memref<8x256xf32, #tpu.memory_space<vmem>>, vector<8x256xf32>,
    } else {
    }
    %c0 = arith.constant 0 : index
    %c0_1 = arith.constant 0 : index
    %3 = vector.load %arg1[%c0, %c0_1] : memref<8x2048xf32, #tpu.memory_space<vmem>>, vector<8x2048xf32>
    %4 = arith.truncf %3 : vector<8x2048xf32> to vector<8x2048xbf16>
    %c0_2 = arith.constant 0 : index
    %c0_3 = arith.constant 0 : index
    %c0_4 = arith.constant 0 : index
    %5 = vector.load %arg2[%c0_2, %c0_3, %c0_4] : memref<1x2048x1024xbf16, #tpu.memory_space<vmem>>, vector<1x2048x1024xbf16>
    %6 = vector.shape_cast %5 : vector<1x2048x1024xbf16> to vector<2048x1024xbf16>
    %cst = arith.constant dense<0.000000e+00> : vector<8x1024xf32>
    %7 = tpu.matmul %4, %6, %cst {dimension_numbers = #tpu.dot_dimension_numbers<[1], [0], [0], [1], [0, 0, 1, 1], [], []>} : vector<8x2048xbf16>, vector<2048x1024xbf16>, vector<8x1024xf32> -> vector<8x1024xf32>
    %cst_5 = arith.constant dense<0.000000e+00> : vector<1024xf32>
    %8 = vector.multi_reduction <add>, %7, %cst_5 [0] : vector<8x1024xf32> to vector<1024xf32>
    %9 = vector.shape_cast %8 : vector<1024xf32> to vector<1x1024xf32>
    %cst_6 = arith.constant 8.000000e+00 : f32
    %10 = vector.broadcast %cst_6 : f32 to vector<1x1024xf32>
    %11 = arith.divf %9, %10 : vector<1x1024xf32>
    %12 = vector.broadcast %11 : vector<1x1024xf32> to vector<8x1024xf32>
    %13 = arith.subf %7, %12 : vector<8x1024xf32>
    %14 = arith.mulf %13, %13 : vector<8x1024xf32>
    %cst_7 = arith.constant dense<0.000000e+00> : vector<1024xf32>
    %15 = vector.multi_reduction <add>, %14, %cst_7 [0] : vector<8x1024xf32> to vector<1024xf32>
    %16 = vector.shape_cast %15 : vector<1024xf32> to vector<1x1024xf32>
    %cst_8 = arith.constant 8.000000e+00 : f32
    %17 = vector.broadcast %cst_8 : f32 to vector<1x1024xf32>
    %18 = arith.divf %16, %17 : vector<1x1024xf32>
    %cst_9 = arith.constant 9.99999974E-6 : f32
    %19 = vector.broadcast %cst_9 : f32 to vector<1x1024xf32>
    %20 = arith.addf %18, %19 : vector<1x1024xf32>
    %21 = math.rsqrt %20 : vector<1x1024xf32>
    %22 = vector.broadcast %21 : vector<1x1024xf32> to vector<8x1024xf32>
    %23 = arith.mulf %13, %22 : vector<8x1024xf32>
    %c0_10 = arith.constant 0 : index
    %c0_11 = arith.constant 0 : index
    %24 = vector.load %arg3[%c0_10, %c0_11] : memref<1x1024xf32, #tpu.memory_space<vmem>>, vector<1x1024xf32>
    %25 = vector.broadcast %24 : vector<1x1024xf32> to vector<8x1024xf32>
    %26 = arith.mulf %23, %25 : vector<8x1024xf32>
    %c0_12 = arith.constant 0 : index
    %c0_13 = arith.constant 0 : index
    %27 = vector.load %arg4[%c0_12, %c0_13] : memref<1x1024xf32, #tpu.memory_space<vmem>>, vector<1x1024xf32>
    %28 = vector.broadcast %27 : vector<1x1024xf32> to vector<8x1024xf32>
    %29 = arith.addf %26, %28 : vector<8x1024xf32>
    %cst_14 = arith.constant 0.000000e+00 : f32
    %30 = vector.broadcast %cst_14 : f32 to vector<8x1024xf32>
    %31 = arith.maximumf %29, %30 : vector<8x1024xf32>
    %32 = arith.truncf %31 : vector<8x1024xf32> to vector<8x1024xbf16>
    %c0_15 = arith.constant 0 : index
    %c0_16 = arith.constant 0 : index
    %33 = vector.load %arg7[%c0_15, %c0_16] : memref<8x256xf32, #tpu.memory_space<vmem>>, vector<8x256xf32>
    %c0_17 = arith.constant 0 : index
    %c0_18 = arith.constant 0 : index
    %34 = vector.load %arg5[%c0_17, %c0_18] : memref<1024x256xbf16, #tpu.memory_space<vmem>>, vector<1024x256xbf16>
    %cst_19 = arith.constant dense<0.000000e+00> : vector<8x256xf32>
    %35 = tpu.matmul %32, %34, %cst_19 {dimension_numbers = #tpu.dot_dimension_numbers<[1], [0], [0], [1], [0, 0, 1, 1], [], []>} : vector<8x1024xbf16>, vector<1024x256xbf16>, vector<8x256xf32> -> vector<8x256xf32>
    %36 = arith.addf %33, %35 : vector<8x256xf32>
    %c0_20 = arith.constant 0 : index
    %c0_21 = arith.constant 0 : index
    %37 = vector.load %arg7[%c0_20, %c0_21] : memref<8x256xf32, #tpu.memory_space<vmem>>, vector<8x256xf32>
    tpu.vector_store %arg7[%c0_20, %c0_21], %36 {strides = array<i32>} : memref<8x256xf32, #tpu.memory_space<vmem>>, vector<8x256xf32>,
    %c3_i32 = arith.constant 3 : i32
    %38 = arith.cmpi eq, %arg0, %c3_i32 : i32
    %39 = arith.extui %38 : i1 to i32
    %c0_i32_22 = arith.constant 0 : i32
    %40 = arith.cmpi ne, %39, %c0_i32_22 : i32
    scf.if %40 {
      %c0_23 = arith.constant 0 : index
      %c0_24 = arith.constant 0 : index
      %41 = vector.load %arg7[%c0_23, %c0_24] : memref<8x256xf32, #tpu.memory_space<vmem>>, vector<8x256xf32>
      %c0_25 = arith.constant 0 : index
      %c0_26 = arith.constant 0 : index
      %42 = vector.load %arg6[%c0_25, %c0_26] : memref<1x256xf32, #tpu.memory_space<vmem>>, vector<1x256xf32>
      %43 = vector.broadcast %42 : vector<1x256xf32> to vector<8x256xf32>
      %44 = arith.addf %41, %43 : vector<8x256xf32>
      %c0_27 = arith.constant 0 : index
      %c0_28 = arith.constant 0 : index
      %45 = vector.load %arg7[%c0_27, %c0_28] : memref<8x256xf32, #tpu.memory_space<vmem>>, vector<8x256xf32>
      tpu.vector_store %arg7[%c0_27, %c0_28], %44 {strides = array<i32>} : memref<8x256xf32, #tpu.memory_space<vmem>>, vector<8x256xf32>,
    } else {
    }
    return
  }
  func.func @transform_0(%arg0: i32) -> (i32, i32) {
    %c0_i32 = arith.constant 0 : i32
    %c0_i32_0 = arith.constant 0 : i32
    %c0_i32_1 = arith.constant 0 : i32
    return %c0_i32, %c0_i32_0 : i32, i32
  }
  func.func @transform_1(%arg0: i32) -> (i32, i32, i32) {
    %c0_i32 = arith.constant 0 : i32
    %c0_i32_0 = arith.constant 0 : i32
    %c0_i32_1 = arith.constant 0 : i32
    return %arg0, %c0_i32, %c0_i32_0 : i32, i32, i32
  }
  func.func @transform_2(%arg0: i32) -> (i32, i32) {
    %c0_i32 = arith.constant 0 : i32
    %c0_i32_0 = arith.constant 0 : i32
    return %c0_i32, %arg0 : i32, i32
  }
  func.func @transform_3(%arg0: i32) -> (i32, i32) {
    %c0_i32 = arith.constant 0 : i32
    %c0_i32_0 = arith.constant 0 : i32
    return %c0_i32, %arg0 : i32, i32
  }
  func.func @transform_4(%arg0: i32) -> (i32, i32) {
    %c0_i32 = arith.constant 0 : i32
    %c0_i32_0 = arith.constant 0 : i32
    return %arg0, %c0_i32 : i32, i32
  }
  func.func @transform_5(%arg0: i32) -> (i32, i32) {
    %c0_i32 = arith.constant 0 : i32
    %c0_i32_0 = arith.constant 0 : i32
    %c0_i32_1 = arith.constant 0 : i32
    return %c0_i32, %c0_i32_0 : i32, i32
  }
  func.func @transform_6(%arg0: i32) -> (i32, i32) {
    %c0_i32 = arith.constant 0 : i32
    %c0_i32_0 = arith.constant 0 : i32
    %c0_i32_1 = arith.constant 0 : i32
    return %c0_i32, %c0_i32_0 : i32, i32
  }
}

</mosaic_0001>

<llo_original>
// kernel: proj_mlp.1
$region0: #{proj_mlp.1}
  #allocation0 [shape = 'u32[]', space=smem, size = 0x4, offset = 0x4, fixed_abs, tag = 'smem constant byte address 0x4 - core index']
  #allocation1 [shape = 'u32[144,128]{1,0:T(1,128)}', space=vmem, size = 0x12000, scoped, tag = 'internal scratch']
  %s0 = inlined_call_operand.hbm [shape: f32[8,2048], index: 0, kind: input, shape index: {}]
  %s1 = inlined_call_operand.hbm [shape: bf16[4,2048,1024], index: 1, kind: input, shape index: {}]
  %s2 = inlined_call_operand.hbm [shape: f32[1,4096], index: 2, kind: input, shape index: {}]
  %s3 = inlined_call_operand.hbm [shape: f32[1,4096], index: 3, kind: input, shape index: {}]
  %s4 = inlined_call_operand.hbm [shape: bf16[4096,256], index: 4, kind: input, shape index: {}]
  %s5 = inlined_call_operand.hbm [shape: f32[1,256], index: 5, kind: input, shape index: {}]
  %s6 = inlined_call_operand.hbm [shape: f32[8,256], index: 6, kind: output, shape index: {}]
  %s7 = sld [smem:[#allocation0]]
  $region89: #{proj_mlp.1} parent=0
    _
  %s9 = ssub.s32 1, %s7
  %s10 = scalar_select 0, %s9, %s7
  $region1: #{proj_mlp.1} parent=0
    #allocation2 [shape = 'u8[65536]{0}', space=vmem, size = 0x10000, scoped, tag = 'input window, operand 0, single buffered']
    #allocation3 [shape = 's32[2]{0}', space=sflag, size = 0x8, scoped, tag = 'scoped memory for proj_mlp.1']
    #allocation4 [shape = 's32[2]{0}', space=sflag, size = 0x8, scoped, tag = 'scoped memory for proj_mlp.1']
    #allocation5 [shape = 'u8[8388608]{0}', space=vmem, size = 0x800000, scoped, tag = 'input window, operand 1']
    #allocation6 [shape = 's32[2]{0}', space=sflag, size = 0x8, scoped, tag = 'scoped memory for proj_mlp.1']
    #allocation7 [shape = 'u8[8192]{0}', space=vmem, size = 0x2000, scoped, tag = 'input window, operand 2']
    #allocation8 [shape = 'u8[8192]{0}', space=vmem, size = 0x2000, scoped, tag = 'input window, operand 3']
    #allocation9 [shape = 's32[2]{0}', space=sflag, size = 0x8, scoped, tag = 'scoped memory for proj_mlp.1']
    #allocation10 [shape = 'u8[1048576]{0}', space=vmem, size = 0x100000, scoped, tag = 'input window, operand 4']
    #allocation11 [shape = 'u8[1024]{0}', space=vmem, size = 0x400, scoped, tag = 'input window, operand 5, single buffered']
    #allocation12 [shape = 's32[1]{0}', space=sflag, size = 0x4, scoped, tag = 'scoped memory for proj_mlp.1']
    #allocation13 [shape = 'u8[8192]{0}', space=vmem, size = 0x2000, scoped, tag = 'output window, operand 0, single buffered']
    %11 = vsyncpa [#allocation3], 0
    %12 = vsyncpa [#allocation6], 0
    %s13 = scalar_lea.sflag [#allocation6], 1
    %14 = vsyncpa %s13, 0
    %15 = vsyncpa [#allocation9], 0
    %s16 = scalar_lea.sflag [#allocation9], 1
    %17 = vsyncpa %s16, 0
    %18 = vsyncpa [#allocation12], 0
    %19 = vsyncpa [#allocation4], 0
    loop: start=0, step=1, limit=6
    $region2: #{proj_mlp.1} parent=1 // loop_pre_header
      _
    $region3: #{proj_mlp.1} parent=1 // loop_header
      %s21 = sphi 0, %s25
      %p22 = scmp.ge.s32.totalorder %s21, 6
      %s29 = sphi 0, %s29
      %s31 = sphi 0, %s29
      %s32 = sphi 0, %s31
      %s46 = sphi 0, %s32
      %s52 = sphi 0, %s54
      %s55 = sphi 0, %s52
      %s56 = sphi 0, %s55
      %s72 = sphi 0, %s56
      %s78 = sphi 0, %s80
      %s81 = sphi 0, %s78
      %s82 = sphi 0, %s81
      %s98 = sphi 0, %s82
      %s104 = sphi 0, %s106
      %s107 = sphi 0, %s104
      %s108 = sphi 0, %s107
      %s124 = sphi 0, %s108
      %s130 = sphi 0, %s132
      %s133 = sphi 0, %s130
      %s134 = sphi 0, %s133
      %s150 = sphi 0, %s134
      %s154 = sphi 0, %s154
      %s156 = sphi 0, %s154
      %s157 = sphi 0, %s156
      %s171 = sphi 0, %s157
      %s175 = sphi 0, %s175
      %s177 = sphi 0, %s175
      %s178 = sphi 0, %s177
      %s192 = sphi 0, %s178
    $region4: #{proj_mlp.1} parent=1 // loop_header_branch
      %24 = sbr.rel (%p22) target = $region8
    $region5: #{proj_mlp.1} parent=1 // loop_body
      %s26 = ssub.s32 %s21, 1
      %s27 = ssub.s32 %s21, 2
      %s28 = sadd.s32 %s21, 1
      %s30 = sadd.s32 %s29, 1
      %p33 = scmp.eq.s32.totalorder %s21, 3
      %p34 = scmp.ne.s32.totalorder %s29, %s31
      %p35 = scmp.eq.s32.totalorder %s21, 0
      %p36 = por %p34, %p35
      %p37 = scmp.ne.s32.totalorder %s29, %s31
      %p38 = scmp.eq.s32.totalorder %s26, 3
      %p39 = por %p37, %p38
      %p40 = scmp.ne.s32.totalorder %s31, %s32
      %p41 = scmp.eq.s32.totalorder %s26, 0
      %p42 = por %p40, %p41
      %p43 = scmp.ne.s32.totalorder %s31, %s32
      %p44 = scmp.eq.s32.totalorder %s27, 3
      %p45 = por %p43, %p44
      %p47 = scmp.ne.s32.totalorder %s32, %s46
      %p48 = scmp.eq.s32.totalorder %s27, 0
      %p49 = por %p47, %p48
      %s50 = ssub.s32 %s21, %s28
      %p51 = scmp.eq.s32.totalorder %s50, 0
      %s53 = sadd.s32 %s52, 1
      %s54 = scalar_select %p51, %s52, %s53
      %p57 = pneg %p51
      %p58 = scmp.eq.s32.totalorder %s21, 3
      %p59 = por %p57, %p58
      %p60 = scmp.ne.s32.totalorder %s52, %s55
      %p61 = scmp.eq.s32.totalorder %s21, 0
      %p62 = por %p60, %p61
      %p63 = scmp.ne.s32.totalorder %s52, %s55
      %p64 = scmp.eq.s32.totalorder %s26, 3
      %p65 = por %p63, %p64
      %p66 = scmp.ne.s32.totalorder %s55, %s56
      %p67 = scmp.eq.s32.totalorder %s26, 0
      %p68 = por %p66, %p67
      %p69 = scmp.ne.s32.totalorder %s55, %s56
      %p70 = scmp.eq.s32.totalorder %s27, 3
      %p71 = por %p69, %p70
      %p73 = scmp.ne.s32.totalorder %s56, %s72
      %p74 = scmp.eq.s32.totalorder %s27, 0
      %p75 = por %p73, %p74
      %s76 = ssub.s32 %s21, %s28
      %p77 = scmp.eq.s32.totalorder %s76, 0
      %s79 = sadd.s32 %s78, 1
      %s80 = scalar_select %p77, %s78, %s79
      %p83 = pneg %p77
      %p84 = scmp.eq.s32.totalorder %s21, 3
      %p85 = por %p83, %p84
      %p86 = scmp.ne.s32.totalorder %s78, %s81
      %p87 = scmp.eq.s32.totalorder %s21, 0
      %p88 = por %p86, %p87
      %p89 = scmp.ne.s32.totalorder %s78, %s81
      %p90 = scmp.eq.s32.totalorder %s26, 3
      %p91 = por %p89, %p90
      %p92 = scmp.ne.s32.totalorder %s81, %s82
      %p93 = scmp.eq.s32.totalorder %s26, 0
      %p94 = por %p92, %p93
      %p95 = scmp.ne.s32.totalorder %s81, %s82
      %p96 = scmp.eq.s32.totalorder %s27, 3
      %p97 = por %p95, %p96
      %p99 = scmp.ne.s32.totalorder %s82, %s98
      %p100 = scmp.eq.s32.totalorder %s27, 0
      %p101 = por %p99, %p100
      %s102 = ssub.s32 %s21, %s28
      %p103 = scmp.eq.s32.totalorder %s102, 0
      %s105 = sadd.s32 %s104, 1
      %s106 = scalar_select %p103, %s104, %s105
      %p109 = pneg %p103
      %p110 = scmp.eq.s32.totalorder %s21, 3
      %p111 = por %p109, %p110
      %p112 = scmp.ne.s32.totalorder %s104, %s107
      %p113 = scmp.eq.s32.totalorder %s21, 0
      %p114 = por %p112, %p113
      %p115 = scmp.ne.s32.totalorder %s104, %s107
      %p116 = scmp.eq.s32.totalorder %s26, 3
      %p117 = por %p115, %p116
      %p118 = scmp.ne.s32.totalorder %s107, %s108
      %p119 = scmp.eq.s32.totalorder %s26, 0
      %p120 = por %p118, %p119
      %p121 = scmp.ne.s32.totalorder %s107, %s108
      %p122 = scmp.eq.s32.totalorder %s27, 3
      %p123 = por %p121, %p122
      %p125 = scmp.ne.s32.totalorder %s108, %s124
      %p126 = scmp.eq.s32.totalorder %s27, 0
      %p127 = por %p125, %p126
      %s128 = ssub.s32 %s21, %s28
      %p129 = scmp.eq.s32.totalorder %s128, 0
      %s131 = sadd.s32 %s130, 1
      %s132 = scalar_select %p129, %s130, %s131
      %p135 = pneg %p129
      %p136 = scmp.eq.s32.totalorder %s21, 3
      %p137 = por %p135, %p136
      %p138 = scmp.ne.s32.totalorder %s130, %s133
      %p139 = scmp.eq.s32.totalorder %s21, 0
      %p140 = por %p138, %p139
      %p141 = scmp.ne.s32.totalorder %s130, %s133
      %p142 = scmp.eq.s32.totalorder %s26, 3
      %p143 = por %p141, %p142
      %p144 = scmp.ne.s32.totalorder %s133, %s134
      %p145 = scmp.eq.s32.totalorder %s26, 0
      %p146 = por %p144, %p145
      %p147 = scmp.ne.s32.totalorder %s133, %s134
      %p148 = scmp.eq.s32.totalorder %s27, 3
      %p149 = por %p147, %p148
      %p151 = scmp.ne.s32.totalorder %s134, %s150
      %p152 = scmp.eq.s32.totalorder %s27, 0
      %p153 = por %p151, %p152
      %s155 = sadd.s32 %s154, 1
      %p158 = scmp.eq.s32.totalorder %s21, 3
      %p159 = scmp.ne.s32.totalorder %s154, %s156
      %p160 = scmp.eq.s32.totalorder %s21, 0
      %p161 = por %p159, %p160
      %p162 = scmp.ne.s32.totalorder %s154, %s156
      %p163 = scmp.eq.s32.totalorder %s26, 3
      %p164 = por %p162, %p163
      %p165 = scmp.ne.s32.totalorder %s156, %s157
      %p166 = scmp.eq.s32.totalorder %s26, 0
      %p167 = por %p165, %p166
      %p168 = scmp.ne.s32.totalorder %s156, %s157
      %p169 = scmp.eq.s32.totalorder %s27, 3
      %p170 = por %p168, %p169
      %p172 = scmp.ne.s32.totalorder %s157, %s171
      %p173 = scmp.eq.s32.totalorder %s27, 0
      %p174 = por %p172, %p173
      %s176 = sadd.s32 %s175, 1
      %p179 = scmp.eq.s32.totalorder %s21, 3
      %p180 = scmp.ne.s32.totalorder %s175, %s177
      %p181 = scmp.eq.s32.totalorder %s21, 0
      %p182 = por %p180, %p181
      %p183 = scmp.ne.s32.totalorder %s175, %s177
      %p184 = scmp.eq.s32.totalorder %s26, 3
      %p185 = por %p183, %p184
      %p186 = scmp.ne.s32.totalorder %s177, %s178
      %p187 = scmp.eq.s32.totalorder %s26, 0
      %p188 = por %p186, %p187
      %p189 = scmp.ne.s32.totalorder %s177, %s178
      %p190 = scmp.eq.s32.totalorder %s27, 3
      %p191 = por %p189, %p190
      %p193 = scmp.ne.s32.totalorder %s178, %s192
      %p194 = scmp.eq.s32.totalorder %s27, 0
      %p195 = por %p193, %p194
      %p196 = scmp.le.s32.totalorder 1, %s21
      %p197 = scmp.lt.s32.totalorder %s21, 5
      %p198 = pnand %p196, %p197
      %p199 = pneg %p198
      // Predicated region
      $region9: #{proj_mlp.1} parent=5 // pred_check
        _
      $region10: #{proj_mlp.1} parent=5 // pred_check_branch
        %201 = sbr.rel (%p198) target = $region12
      $region11: #{proj_mlp.1} parent=5 // pred_region
        %s202 = ssub.s32 %s21, 1
        // Predicated region
        $region13: #{proj_mlp.1} parent=11 // pred_check
          %p203 = pneg %p42
        $region14: #{proj_mlp.1} parent=11 // pred_check_branch
          %205 = sbr.rel (%p203) target = $region16
        $region15: #{proj_mlp.1} parent=11 // pred_region
          %s207 = ssub.s32 2048, 2048
          %208 = vsyncadd [#allocation3], %s207
          %s210 = sshll.u32 [#allocation2], 4
          %s211 = int_to_ptr.vmem [resolvable:$true] %s210
          %213 = dma.hbm_to_vmem [thread:$0]  %s0, 2048, %s211, [#allocation3]
        $region16: #{proj_mlp.1} parent=11 // pred_fallthru
          _
        // Predicated region
        $region17: #{proj_mlp.1} parent=11 // pred_check
          %p214 = pneg %p167
        $region18: #{proj_mlp.1} parent=11 // pred_check_branch
          %216 = sbr.rel (%p214) target = $region20
        $region19: #{proj_mlp.1} parent=11 // pred_region
          %s218 = ssub.s32 32, 32
          %219 = vsyncadd [#allocation12], %s218
          %s221 = sshll.u32 [#allocation11], 4
          %s222 = int_to_ptr.vmem [resolvable:$true] %s221
          %224 = dma.hbm_to_vmem [thread:$0]  %s5, 32, %s222, [#allocation12]
        $region20: #{proj_mlp.1} parent=11 // pred_fallthru
          _
      $region12: #{proj_mlp.1} parent=5 // pred_fallthru
        _
      %p225 = scmp.lt.s32.totalorder %s21, 4
      // Predicated region
      $region21: #{proj_mlp.1} parent=5 // pred_check
        %p226 = pneg %p225
      $region22: #{proj_mlp.1} parent=5 // pred_check_branch
        %228 = sbr.rel (%p226) target = $region24
      $region23: #{proj_mlp.1} parent=5 // pred_region
        // Predicated region
        $region25: #{proj_mlp.1} parent=23 // pred_check
          %p229 = pneg %p62
        $region26: #{proj_mlp.1} parent=23 // pred_check_branch
          %231 = sbr.rel (%p229) target = $region28
        $region27: #{proj_mlp.1} parent=23 // pred_region
          %s232 = sand.u32 %s21, 1
          %s233 = scalar_lea.sflag [#allocation6], %s232
          %s234 = sand.u32 %s52, 1
          %s235 = smul.addr %s234, 8192
          %s236 = scalar_lea.vmem [#allocation5], %s235
          %s238 = ssub.s32 131072, 131072
          %239 = vsyncadd %s233, %s238
          %s240 = smul.addr %s21, 2048
          %s241 = smul.addr %s240, 64
          %s242 = scalar_lea.hbm %s1, %s241
          %s243 = sshll.u32 %s236, 4
          %s244 = int_to_ptr.vmem [resolvable:$true] %s243
          %249 = dma.hbm_to_vmem [thread:$0]  %s242, 131072, %s244, %s233, 512, 512, 32
        $region28: #{proj_mlp.1} parent=23 // pred_fallthru
          _
        // Predicated region
        $region29: #{proj_mlp.1} parent=23 // pred_check
          %p250 = pneg %p88
        $region30: #{proj_mlp.1} parent=23 // pred_check_branch
          %252 = sbr.rel (%p250) target = $region32
        $region31: #{proj_mlp.1} parent=23 // pred_region
          %s253 = sand.u32 %s21, 1
          %s254 = scalar_lea.sflag [#allocation6], %s253
          %s255 = sand.u32 %s78, 1
          %s256 = smul.addr %s255, 8
          %s257 = scalar_lea.vmem [#allocation7], %s256
          %s258 = smul.u32 8, %s21
          %s260 = ssub.s32 128, 128
          %261 = vsyncadd %s254, %s260
          %s262 = smul.addr %s258, 16
          %s263 = scalar_lea.hbm %s2, %s262
          %s265 = sshll.u32 %s257, 4
          %s266 = int_to_ptr.vmem [resolvable:$true] %s265
          %268 = dma.hbm_to_vmem [thread:$0]  %s263, 128, %s266, %s254
        $region32: #{proj_mlp.1} parent=23 // pred_fallthru
          _
        // Predicated region
        $region33: #{proj_mlp.1} parent=23 // pred_check
          %p269 = pneg %p114
        $region34: #{proj_mlp.1} parent=23 // pred_check_branch
          %271 = sbr.rel (%p269) target = $region36
        $region35: #{proj_mlp.1} parent=23 // pred_region
          %s272 = sand.u32 %s21, 1
          %s273 = scalar_lea.sflag [#allocation9], %s272
          %s274 = sand.u32 %s104, 1
          %s275 = smul.addr %s274, 8
          %s276 = scalar_lea.vmem [#allocation8], %s275
          %s277 = smul.u32 8, %s21
          %s279 = ssub.s32 128, 128
          %280 = vsyncadd %s273, %s279
          %s281 = smul.addr %s277, 16
          %s282 = scalar_lea.hbm %s3, %s281
          %s284 = sshll.u32 %s276, 4
          %s285 = int_to_ptr.vmem [resolvable:$true] %s284
          %287 = dma.hbm_to_vmem [thread:$0]  %s282, 128, %s285, %s273
        $region36: #{proj_mlp.1} parent=23 // pred_fallthru
          _
        // Predicated region
        $region37: #{proj_mlp.1} parent=23 // pred_check
          %p288 = pneg %p140
        $region38: #{proj_mlp.1} parent=23 // pred_check_branch
          %290 = sbr.rel (%p288) target = $region40
        $region39: #{proj_mlp.1} parent=23 // pred_region
          %s291 = sand.u32 %s21, 1
          %s292 = scalar_lea.sflag [#allocation9], %s291
          %s293 = sand.u32 %s130, 1
          %s294 = smul.addr %s293, 1024
          %s295 = scalar_lea.vmem [#allocation10], %s294
          %s296 = smul.u32 128, %s21
          %s298 = ssub.s32 16384, 16384
          %299 = vsyncadd %s292, %s298
          %s300 = smul.addr %s296, 2
          %s301 = smul.addr %s300, 64
          %s302 = scalar_lea.hbm %s4, %s301
          %s303 = sshll.u32 %s295, 4
          %s304 = int_to_ptr.vmem [resolvable:$true] %s303
          %309 = dma.hbm_to_vmem [thread:$0]  %s302, 16384, %s304, %s292, 128, 128, 8
        $region40: #{proj_mlp.1} parent=23 // pred_fallthru
          _
      $region24: #{proj_mlp.1} parent=5 // pred_fallthru
        _
      %p310 = scmp.le.s32.totalorder 1, %s21
      %p311 = scmp.lt.s32.totalorder %s21, 5
      %p312 = pnand %p310, %p311
      %p313 = pneg %p312
      // Predicated region
      $region41: #{proj_mlp.1} parent=5 // pred_check
        _
      $region42: #{proj_mlp.1} parent=5 // pred_check_branch
        %315 = sbr.rel (%p312) target = $region44
      $region43: #{proj_mlp.1} parent=5 // pred_region
        %s316 = ssub.s32 %s21, 1
        // Predicated region
        $region45: #{proj_mlp.1} parent=43 // pred_check
          %p317 = pneg %p42
        $region46: #{proj_mlp.1} parent=43 // pred_check_branch
          %319 = sbr.rel (%p317) target = $region48
        $region47: #{proj_mlp.1} parent=43 // pred_region
          %320 = dma.done [#allocation3], 2048
        $region48: #{proj_mlp.1} parent=43 // pred_fallthru
          _
        %s321 = sand.u32 %s26, 1
        %s322 = scalar_lea.sflag [#allocation6], %s321
        %s323 = sand.u32 %s55, 1
        %s324 = smul.addr %s323, 8192
        %s325 = scalar_lea.vmem [#allocation5], %s324
        // Predicated region
        $region49: #{proj_mlp.1} parent=43 // pred_check
          %p326 = pneg %p68
        $region50: #{proj_mlp.1} parent=43 // pred_check_branch
          %328 = sbr.rel (%p326) target = $region52
        $region51: #{proj_mlp.1} parent=43 // pred_region
          %329 = dma.done %s322, 131072
        $region52: #{proj_mlp.1} parent=43 // pred_fallthru
          _
        %s330 = sand.u32 %s26, 1
        %s331 = scalar_lea.sflag [#allocation6], %s330
        %s332 = sand.u32 %s81, 1
        %s333 = smul.addr %s332, 8
        %s334 = scalar_lea.vmem [#allocation7], %s333
        // Predicated region
        $region53: #{proj_mlp.1} parent=43 // pred_check
          %p335 = pneg %p94
        $region54: #{proj_mlp.1} parent=43 // pred_check_branch
          %337 = sbr.rel (%p335) target = $region56
        $region55: #{proj_mlp.1} parent=43 // pred_region
          %338 = dma.done %s331, 128
        $region56: #{proj_mlp.1} parent=43 // pred_fallthru
          _
        %s339 = sand.u32 %s26, 1
        %s340 = scalar_lea.sflag [#allocation9], %s339
        %s341 = sand.u32 %s107, 1
        %s342 = smul.addr %s341, 8
        %s343 = scalar_lea.vmem [#allocation8], %s342
        // Predicated region
        $region57: #{proj_mlp.1} parent=43 // pred_check
          %p344 = pneg %p120
        $region58: #{proj_mlp.1} parent=43 // pred_check_branch
          %346 = sbr.rel (%p344) target = $region60
        $region59: #{proj_mlp.1} parent=43 // pred_region
          %347 = dma.done %s340, 128
        $region60: #{proj_mlp.1} parent=43 // pred_fallthru
          _
        %s348 = sand.u32 %s26, 1
        %s349 = scalar_lea.sflag [#allocation9], %s348
        %s350 = sand.u32 %s133, 1
        %s351 = smul.addr %s350, 1024
        %s352 = scalar_lea.vmem [#allocation10], %s351
        // Predicated region
        $region61: #{proj_mlp.1} parent=43 // pred_check
          %p353 = pneg %p146
        $region62: #{proj_mlp.1} parent=43 // pred_check_branch
          %355 = sbr.rel (%p353) target = $region64
        $region63: #{proj_mlp.1} parent=43 // pred_region
          %356 = dma.done %s349, 16384
        $region64: #{proj_mlp.1} parent=43 // pred_fallthru
          _
        // Predicated region
        $region65: #{proj_mlp.1} parent=43 // pred_check
          %p357 = pneg %p167
        $region66: #{proj_mlp.1} parent=43 // pred_check_branch
          %359 = sbr.rel (%p357) target = $region68
        $region67: #{proj_mlp.1} parent=43 // pred_region
          %360 = dma.done [#allocation12], 32
        $region68: #{proj_mlp.1} parent=43 // pred_fallthru
          _
        %p361 = pneg %p42
        %p362 = pneg %p39
        %s363 = sand.u32 %s26, 1
        %s364 = scalar_lea.sflag [#allocation6], %s363
        %s365 = sand.u32 %s55, 1
        %s366 = smul.addr %s365, 8192
        %s367 = scalar_lea.vmem [#allocation5], %s366
        %p368 = pneg %p68
        %p369 = pneg %p65
        %s370 = sand.u32 %s26, 1
        %s371 = scalar_lea.sflag [#allocation6], %s370
        %s372 = sand.u32 %s81, 1
        %s373 = smul.addr %s372, 8
        %s374 = scalar_lea.vmem [#allocation7], %s373
        %p375 = pneg %p94
        %p376 = pneg %p91
        %s377 = sand.u32 %s26, 1
        %s378 = scalar_lea.sflag [#allocation9], %s377
        %s379 = sand.u32 %s107, 1
        %s380 = smul.addr %s379, 8
        %s381 = scalar_lea.vmem [#allocation8], %s380
        %p382 = pneg %p120
        %p383 = pneg %p117
        %s384 = sand.u32 %s26, 1
        %s385 = scalar_lea.sflag [#allocation9], %s384
        %s386 = sand.u32 %s133, 1
        %s387 = smul.addr %s386, 1024
        %s388 = scalar_lea.vmem [#allocation10], %s387
        %p389 = pneg %p146
        %p390 = pneg %p143
        %p391 = pneg %p167
        %p392 = pneg %p164
        %p393 = pneg %p188
        %p394 = pneg %p185
        %s395 = smul.u32 8, %s26
        %s396 = smul.u32 8, %s26
        %s397 = smul.u32 128, %s26
        %p398 = scmp.eq.s32.totalorder %s26, 0
        // Predicated region
        $region69: #{proj_mlp.1} parent=43 // pred_check
          %p399 = pneg %p398
        $region70: #{proj_mlp.1} parent=43 // pred_check_branch
          %401 = sbr.rel (%p399) target = $region72
        $region71: #{proj_mlp.1} parent=43 // pred_region
          %402 = vst [vmem:[#allocation13] sm:$0xff] 0.0
          %403 = vst [vmem:[#allocation13 + $0x8] sm:$0xff] 0.0
        $region72: #{proj_mlp.1} parent=43 // pred_fallthru
          _
        %v404 = vld [vmem:[#allocation2] sm:$0xff]
        %v405 = vld [vmem:[#allocation2 + $0x8] sm:$0xff]
        %v406 = vld [vmem:[#allocation2 + $0x10] sm:$0xff]
        %v407 = vld [vmem:[#allocation2 + $0x18] sm:$0xff]
        %v408 = vld [vmem:[#allocation2 + $0x20] sm:$0xff]
        %v409 = vld [vmem:[#allocation2 + $0x28] sm:$0xff]
        %v410 = vld [vmem:[#allocation2 + $0x30] sm:$0xff]
        %v411 = vld [vmem:[#allocation2 + $0x38] sm:$0xff]
        %v412 = vld [vmem:[#allocation2 + $0x40] sm:$0xff]
        %v413 = vld [vmem:[#allocation2 + $0x48] sm:$0xff]
        %v414 = vld [vmem:[#allocation2 + $0x50] sm:$0xff]
        %v415 = vld [vmem:[#allocation2 + $0x58] sm:$0xff]
        %v416 = vld [vmem:[#allocation2 + $0x60] sm:$0xff]
        %v417 = vld [vmem:[#allocation2 + $0x68] sm:$0xff]
        %v418 = vld [vmem:[#allocation2 + $0x70] sm:$0xff]
        %v419 = vld [vmem:[#allocation2 + $0x78] sm:$0xff]
        %v420 = vpack.c.bf16 %v404, %v404
        %v421 = vpack.c.bf16 %v405, %v405
        %v422 = vpack.c.bf16 %v406, %v406
        %v423 = vpack.c.bf16 %v407, %v407
        %v424 = vpack.c.bf16 %v408, %v408
        %v425 = vpack.c.bf16 %v409, %v409
        %v426 = vpack.c.bf16 %v410, %v410
        %v427 = vpack.c.bf16 %v411, %v411
        %v428 = vpack.c.bf16 %v412, %v412
        %v429 = vpack.c.bf16 %v413, %v413
        %v430 = vpack.c.bf16 %v414, %v414
        %v431 = vpack.c.bf16 %v415, %v415
        %v432 = vpack.c.bf16 %v416, %v416
        %v433 = vpack.c.bf16 %v417, %v417
        %v434 = vpack.c.bf16 %v418, %v418
        %v435 = vpack.c.bf16 %v419, %v419
        %v436 = vld [vmem:[%s325] sm:$0xff]
        %v437 = vld [vmem:[%s325 + $0x8] sm:$0xff]
        %v438 = vld [vmem:[%s325 + $0x10] sm:$0xff]
        %v439 = vld [vmem:[%s325 + $0x18] sm:$0xff]
        %v440 = vld [vmem:[%s325 + $0x20] sm:$0xff]
        %v441 = vld [vmem:[%s325 + $0x28] sm:$0xff]
        %v442 = vld [vmem:[%s325 + $0x30] sm:$0xff]
        %v443 = vld [vmem:[%s325 + $0x38] sm:$0xff]
        %v444 = vld [vmem:[%s325 + $0x40] sm:$0xff]
        %v445 = vld [vmem:[%s325 + $0x48] sm:$0xff]
        %v446 = vld [vmem:[%s325 + $0x50] sm:$0xff]
        %v447 = vld [vmem:[%s325 + $0x58] sm:$0xff]
        %v448 = vld [vmem:[%s325 + $0x60] sm:$0xff]
        %v449 = vld [vmem:[%s325 + $0x68] sm:$0xff]
        %v450 = vld [vmem:[%s325 + $0x70] sm:$0xff]
        %v451 = vld [vmem:[%s325 + $0x78] sm:$0xff]
        %v452 = vld [vmem:[%s325 + $0x80] sm:$0xff]
        %v453 = vld [vmem:[%s325 + $0x88] sm:$0xff]
        %v454 = vld [vmem:[%s325 + $0x90] sm:$0xff]
        %v455 = vld [vmem:[%s325 + $0x98] sm:$0xff]
        %v456 = vld [vmem:[%s325 + $0xa0] sm:$0xff]
        %v457 = vld [vmem:[%s325 + $0xa8] sm:$0xff]
        %v458 = vld [vmem:[%s325 + $0xb0] sm:$0xff]
        %v459 = vld [vmem:[%s325 + $0xb8] sm:$0xff]
        %v460 = vld [vmem:[%s325 + $0xc0] sm:$0xff]
        %v461 = vld [vmem:[%s325 + $0xc8] sm:$0xff]
        %v462 = vld [vmem:[%s325 + $0xd0] sm:$0xff]
        %v463 = vld [vmem:[%s325 + $0xd8] sm:$0xff]
        %v464 = vld [vmem:[%s325 + $0xe0] sm:$0xff]
        %v465 = vld [vmem:[%s325 + $0xe8] sm:$0xff]
        %v466 = vld [vmem:[%s325 + $0xf0] sm:$0xff]
        %v467 = vld [vmem:[%s325 + $0xf8] sm:$0xff]
        %v468 = vld [vmem:[%s325 + $0x100] sm:$0xff]
        %v469 = vld [vmem:[%s325 + $0x108] sm:$0xff]
        %v470 = vld [vmem:[%s325 + $0x110] sm:$0xff]
        %v471 = vld [vmem:[%s325 + $0x118] sm:$0xff]
        %v472 = vld [vmem:[%s325 + $0x120] sm:$0xff]
        %v473 = vld [vmem:[%s325 + $0x128] sm:$0xff]
        %v474 = vld [vmem:[%s325 + $0x130] sm:$0xff]
        %v475 = vld [vmem:[%s325 + $0x138] sm:$0xff]
        %v476 = vld [vmem:[%s325 + $0x140] sm:$0xff]
        %v477 = vld [vmem:[%s325 + $0x148] sm:$0xff]
        %v478 = vld [vmem:[%s325 + $0x150] sm:$0xff]
        %v479 = vld [vmem:[%s325 + $0x158] sm:$0xff]
        %v480 = vld [vmem:[%s325 + $0x160] sm:$0xff]
        %v481 = vld [vmem:[%s325 + $0x168] sm:$0xff]
        %v482 = vld [vmem:[%s325 + $0x170] sm:$0xff]
        %v483 = vld [vmem:[%s325 + $0x178] sm:$0xff]
        %v484 = vld [vmem:[%s325 + $0x180] sm:$0xff]
        %v485 = vld [vmem:[%s325 + $0x188] sm:$0xff]
        %v486 = vld [vmem:[%s325 + $0x190] sm:$0xff]
        %v487 = vld [vmem:[%s325 + $0x198] sm:$0xff]
        %v488 = vld [vmem:[%s325 + $0x1a0] sm:$0xff]
        %v489 = vld [vmem:[%s325 + $0x1a8] sm:$0xff]
        %v490 = vld [vmem:[%s325 + $0x1b0] sm:$0xff]
        %v491 = vld [vmem:[%s325 + $0x1b8] sm:$0xff]
        %v492 = vld [vmem:[%s325 + $0x1c0] sm:$0xff]
        %v493 = vld [vmem:[%s325 + $0x1c8] sm:$0xff]
        %v494 = vld [vmem:[%s325 + $0x1d0] sm:$0xff]
        %v495 = vld [vmem:[%s325 + $0x1d8] sm:$0xff]
        %v496 = vld [vmem:[%s325 + $0x1e0] sm:$0xff]
        %v497 = vld [vmem:[%s325 + $0x1e8] sm:$0xff]
        %v498 = vld [vmem:[%s325 + $0x1f0] sm:$0xff]
        %v499 = vld [vmem:[%s325 + $0x1f8] sm:$0xff]
        %v500 = vld [vmem:[%s325 + $0x200] sm:$0xff]
        %v501 = vld [vmem:[%s325 + $0x208] sm:$0xff]
        %v502 = vld [vmem:[%s325 + $0x210] sm:$0xff]
        %v503 = vld [vmem:[%s325 + $0x218] sm:$0xff]
        %v504 = vld [vmem:[%s325 + $0x220] sm:$0xff]
        %v505 = vld [vmem:[%s325 + $0x228] sm:$0xff]
        %v506 = vld [vmem:[%s325 + $0x230] sm:$0xff]
        %v507 = vld [vmem:[%s325 + $0x238] sm:$0xff]
        %v508 = vld [vmem:[%s325 + $0x240] sm:$0xff]
        %v509 = vld [vmem:[%s325 + $0x248] sm:$0xff]
        %v510 = vld [vmem:[%s325 + $0x250] sm:$0xff]
        %v511 = vld [vmem:[%s325 + $0x258] sm:$0xff]
        %v512 = vld [vmem:[%s325 + $0x260] sm:$0xff]
        %v513 = vld [vmem:[%s325 + $0x268] sm:$0xff]
        %v514 = vld [vmem:[%s325 + $0x270] sm:$0xff]
        %v515 = vld [vmem:[%s325 + $0x278] sm:$0xff]
        %v516 = vld [vmem:[%s325 + $0x280] sm:$0xff]
        %v517 = vld [vmem:[%s325 + $0x288] sm:$0xff]
        %v518 = vld [vmem:[%s325 + $0x290] sm:$0xff]
        %v519 = vld [vmem:[%s325 + $0x298] sm:$0xff]
        %v520 = vld [vmem:[%s325 + $0x2a0] sm:$0xff]
        %v521 = vld [vmem:[%s325 + $0x2a8] sm:$0xff]
        %v522 = vld [vmem:[%s325 + $0x2b0] sm:$0xff]
        %v523 = vld [vmem:[%s325 + $0x2b8] sm:$0xff]
        %v524 = vld [vmem:[%s325 + $0x2c0] sm:$0xff]
        %v525 = vld [vmem:[%s325 + $0x2c8] sm:$0xff]
        %v526 = vld [vmem:[%s325 + $0x2d0] sm:$0xff]
        %v527 = vld [vmem:[%s325 + $0x2d8] sm:$0xff]
        %v528 = vld [vmem:[%s325 + $0x2e0] sm:$0xff]
        %v529 = vld [vmem:[%s325 + $0x2e8] sm:$0xff]
        %v530 = vld [vmem:[%s325 + $0x2f0] sm:$0xff]
        %v531 = vld [vmem:[%s325 + $0x2f8] sm:$0xff]
        %v532 = vld [vmem:[%s325 + $0x300] sm:$0xff]
        %v533 = vld [vmem:[%s325 + $0x308] sm:$0xff]
        %v534 = vld [vmem:[%s325 + $0x310] sm:$0xff]
        %v535 = vld [vmem:[%s325 + $0x318] sm:$0xff]
        %v536 = vld [vmem:[%s325 + $0x320] sm:$0xff]
        %v537 = vld [vmem:[%s325 + $0x328] sm:$0xff]
        %v538 = vld [vmem:[%s325 + $0x330] sm:$0xff]
        %v539 = vld [vmem:[%s325 + $0x338] sm:$0xff]
        %v540 = vld [vmem:[%s325 + $0x340] sm:$0xff]
        %v541 = vld [vmem:[%s325 + $0x348] sm:$0xff]
        %v542 = vld [vmem:[%s325 + $0x350] sm:$0xff]
        %v543 = vld [vmem:[%s325 + $0x358] sm:$0xff]
        %v544 = vld [vmem:[%s325 + $0x360] sm:$0xff]
        %v545 = vld [vmem:[%s325 + $0x368] sm:$0xff]
        %v546 = vld [vmem:[%s325 + $0x370] sm:$0xff]
        %v547 = vld [vmem:[%s325 + $0x378] sm:$0xff]
        %v548 = vld [vmem:[%s325 + $0x380] sm:$0xff]
        %v549 = vld [vmem:[%s325 + $0x388] sm:$0xff]
        %v550 = vld [vmem:[%s325 + $0x390] sm:$0xff]
        %v551 = vld [vmem:[%s325 + $0x398] sm:$0xff]
        %v552 = vld [vmem:[%s325 + $0x3a0] sm:$0xff]
        %v553 = vld [vmem:[%s325 + $0x3a8] sm:$0xff]
        %v554 = vld [vmem:[%s325 + $0x3b0] sm:$0xff]
        %v555 = vld [vmem:[%s325 + $0x3b8] sm:$0xff]
        %v556 = vld [vmem:[%s325 + $0x3c0] sm:$0xff]
        %v557 = vld [vmem:[%s325 + $0x3c8] sm:$0xff]
        %v558 = vld [vmem:[%s325 + $0x3d0] sm:$0xff]
        %v559 = vld [vmem:[%s325 + $0x3d8] sm:$0xff]
        %v560 = vld [vmem:[%s325 + $0x3e0] sm:$0xff]
        %v561 = vld [vmem:[%s325 + $0x3e8] sm:$0xff]
        %v562 = vld [vmem:[%s325 + $0x3f0] sm:$0xff]
        %v563 = vld [vmem:[%s325 + $0x3f8] sm:$0xff]
        %v564 = vld [vmem:[%s325 + $0x400] sm:$0xff]
        %v565 = vld [vmem:[%s325 + $0x408] sm:$0xff]
        %v566 = vld [vmem:[%s325 + $0x410] sm:$0xff]
        %v567 = vld [vmem:[%s325 + $0x418] sm:$0xff]
        %v568 = vld [vmem:[%s325 + $0x420] sm:$0xff]
        %v569 = vld [vmem:[%s325 + $0x428] sm:$0xff]
        %v570 = vld [vmem:[%s325 + $0x430] sm:$0xff]
        %v571 = vld [vmem:[%s325 + $0x438] sm:$0xff]
        %v572 = vld [vmem:[%s325 + $0x440] sm:$0xff]
        %v573 = vld [vmem:[%s325 + $0x448] sm:$0xff]
        %v574 = vld [vmem:[%s325 + $0x450] sm:$0xff]
        %v575 = vld [vmem:[%s325 + $0x458] sm:$0xff]
        %v576 = vld [vmem:[%s325 + $0x460] sm:$0xff]
        %v577 = vld [vmem:[%s325 + $0x468] sm:$0xff]
        %v578 = vld [vmem:[%s325 + $0x470] sm:$0xff]
        %v579 = vld [vmem:[%s325 + $0x478] sm:$0xff]
        %v580 = vld [vmem:[%s325 + $0x480] sm:$0xff]
        %v581 = vld [vmem:[%s325 + $0x488] sm:$0xff]
        %v582 = vld [vmem:[%s325 + $0x490] sm:$0xff]
        %v583 = vld [vmem:[%s325 + $0x498] sm:$0xff]
        %v584 = vld [vmem:[%s325 + $0x4a0] sm:$0xff]
        %v585 = vld [vmem:[%s325 + $0x4a8] sm:$0xff]
        %v586 = vld [vmem:[%s325 + $0x4b0] sm:$0xff]
        %v587 = vld [vmem:[%s325 + $0x4b8] sm:$0xff]
        %v588 = vld [vmem:[%s325 + $0x4c0] sm:$0xff]
        %v589 = vld [vmem:[%s325 + $0x4c8] sm:$0xff]
        %v590 = vld [vmem:[%s325 + $0x4d0] sm:$0xff]
        %v591 = vld [vmem:[%s325 + $0x4d8] sm:$0xff]
        %v592 = vld [vmem:[%s325 + $0x4e0] sm:$0xff]
        %v593 = vld [vmem:[%s325 + $0x4e8] sm:$0xff]
        %v594 = vld [vmem:[%s325 + $0x4f0] sm:$0xff]
        %v595 = vld [vmem:[%s325 + $0x4f8] sm:$0xff]
        %v596 = vld [vmem:[%s325 + $0x500] sm:$0xff]
        %v597 = vld [vmem:[%s325 + $0x508] sm:$0xff]
        %v598 = vld [vmem:[%s325 + $0x510] sm:$0xff]
        %v599 = vld [vmem:[%s325 + $0x518] sm:$0xff]
        %v600 = vld [vmem:[%s325 + $0x520] sm:$0xff]
        %v601 = vld [vmem:[%s325 + $0x528] sm:$0xff]
        %v602 = vld [vmem:[%s325 + $0x530] sm:$0xff]
        %v603 = vld [vmem:[%s325 + $0x538] sm:$0xff]
        %v604 = vld [vmem:[%s325 + $0x540] sm:$0xff]
        %v605 = vld [vmem:[%s325 + $0x548] sm:$0xff]
        %v606 = vld [vmem:[%s325 + $0x550] sm:$0xff]
        %v607 = vld [vmem:[%s325 + $0x558] sm:$0xff]
        %v608 = vld [vmem:[%s325 + $0x560] sm:$0xff]
        %v609 = vld [vmem:[%s325 + $0x568] sm:$0xff]
        %v610 = vld [vmem:[%s325 + $0x570] sm:$0xff]
        %v611 = vld [vmem:[%s325 + $0x578] sm:$0xff]
        %v612 = vld [vmem:[%s325 + $0x580] sm:$0xff]
        %v613 = vld [vmem:[%s325 + $0x588] sm:$0xff]
        %v614 = vld [vmem:[%s325 + $0x590] sm:$0xff]
        %v615 = vld [vmem:[%s325 + $0x598] sm:$0xff]
        %v616 = vld [vmem:[%s325 + $0x5a0] sm:$0xff]
        %v617 = vld [vmem:[%s325 + $0x5a8] sm:$0xff]
        %v618 = vld [vmem:[%s325 + $0x5b0] sm:$0xff]
        %v619 = vld [vmem:[%s325 + $0x5b8] sm:$0xff]
        %v620 = vld [vmem:[%s325 + $0x5c0] sm:$0xff]
        %v621 = vld [vmem:[%s325 + $0x5c8] sm:$0xff]
        %v622 = vld [vmem:[%s325 + $0x5d0] sm:$0xff]
        %v623 = vld [vmem:[%s325 + $0x5d8] sm:$0xff]
        %v624 = vld [vmem:[%s325 + $0x5e0] sm:$0xff]
        %v625 = vld [vmem:[%s325 + $0x5e8] sm:$0xff]
        %v626 = vld [vmem:[%s325 + $0x5f0] sm:$0xff]
        %v627 = vld [vmem:[%s325 + $0x5f8] sm:$0xff]
        %v628 = vld [vmem:[%s325 + $0x600] sm:$0xff]
        %v629 = vld [vmem:[%s325 + $0x608] sm:$0xff]
        %v630 = vld [vmem:[%s325 + $0x610] sm:$0xff]
        %v631 = vld [vmem:[%s325 + $0x618] sm:$0xff]
        %v632 = vld [vmem:[%s325 + $0x620] sm:$0xff]
        %v633 = vld [vmem:[%s325 + $0x628] sm:$0xff]
        %v634 = vld [vmem:[%s325 + $0x630] sm:$0xff]
        %v635 = vld [vmem:[%s325 + $0x638] sm:$0xff]
        %v636 = vld [vmem:[%s325 + $0x640] sm:$0xff]
        %v637 = vld [vmem:[%s325 + $0x648] sm:$0xff]
        %v638 = vld [vmem:[%s325 + $0x650] sm:$0xff]
        %v639 = vld [vmem:[%s325 + $0x658] sm:$0xff]
        %v640 = vld [vmem:[%s325 + $0x660] sm:$0xff]
        %v641 = vld [vmem:[%s325 + $0x668] sm:$0xff]
        %v642 = vld [vmem:[%s325 + $0x670] sm:$0xff]
        %v643 = vld [vmem:[%s325 + $0x678] sm:$0xff]
        %v644 = vld [vmem:[%s325 + $0x680] sm:$0xff]
        %v645 = vld [vmem:[%s325 + $0x688] sm:$0xff]
        %v646 = vld [vmem:[%s325 + $0x690] sm:$0xff]
        %v647 = vld [vmem:[%s325 + $0x698] sm:$0xff]
        %v648 = vld [vmem:[%s325 + $0x6a0] sm:$0xff]
        %v649 = vld [vmem:[%s325 + $0x6a8] sm:$0xff]
        %v650 = vld [vmem:[%s325 + $0x6b0] sm:$0xff]
        %v651 = vld [vmem:[%s325 + $0x6b8] sm:$0xff]
        %v652 = vld [vmem:[%s325 + $0x6c0] sm:$0xff]
        %v653 = vld [vmem:[%s325 + $0x6c8] sm:$0xff]
        %v654 = vld [vmem:[%s325 + $0x6d0] sm:$0xff]
        %v655 = vld [vmem:[%s325 + $0x6d8] sm:$0xff]
        %v656 = vld [vmem:[%s325 + $0x6e0] sm:$0xff]
        %v657 = vld [vmem:[%s325 + $0x6e8] sm:$0xff]
        %v658 = vld [vmem:[%s325 + $0x6f0] sm:$0xff]
        %v659 = vld [vmem:[%s325 + $0x6f8] sm:$0xff]
        %v660 = vld [vmem:[%s325 + $0x700] sm:$0xff]
        %v661 = vld [vmem:[%s325 + $0x708] sm:$0xff]
        %v662 = vld [vmem:[%s325 + $0x710] sm:$0xff]
        %v663 = vld [vmem:[%s325 + $0x718] sm:$0xff]
        %v664 = vld [vmem:[%s325 + $0x720] sm:$0xff]
        %v665 = vld [vmem:[%s325 + $0x728] sm:$0xff]
        %v666 = vld [vmem:[%s325 + $0x730] sm:$0xff]
        %v667 = vld [vmem:[%s325 + $0x738] sm:$0xff]
        %v668 = vld [vmem:[%s325 + $0x740] sm:$0xff]
        %v669 = vld [vmem:[%s325 + $0x748] sm:$0xff]
        %v670 = vld [vmem:[%s325 + $0x750] sm:$0xff]
        %v671 = vld [vmem:[%s325 + $0x758] sm:$0xff]
        %v672 = vld [vmem:[%s325 + $0x760] sm:$0xff]
        %v673 = vld [vmem:[%s325 + $0x768] sm:$0xff]
        %v674 = vld [vmem:[%s325 + $0x770] sm:$0xff]
        %v675 = vld [vmem:[%s325 + $0x778] sm:$0xff]
        %v676 = vld [vmem:[%s325 + $0x780] sm:$0xff]
        %v677 = vld [vmem:[%s325 + $0x788] sm:$0xff]
        %v678 = vld [vmem:[%s325 + $0x790] sm:$0xff]
        %v679 = vld [vmem:[%s325 + $0x798] sm:$0xff]
        %v680 = vld [vmem:[%s325 + $0x7a0] sm:$0xff]
        %v681 = vld [vmem:[%s325 + $0x7a8] sm:$0xff]
        %v682 = vld [vmem:[%s325 + $0x7b0] sm:$0xff]
        %v683 = vld [vmem:[%s325 + $0x7b8] sm:$0xff]
        %v684 = vld [vmem:[%s325 + $0x7c0] sm:$0xff]
        %v685 = vld [vmem:[%s325 + $0x7c8] sm:$0xff]
        %v686 = vld [vmem:[%s325 + $0x7d0] sm:$0xff]
        %v687 = vld [vmem:[%s325 + $0x7d8] sm:$0xff]
        %v688 = vld [vmem:[%s325 + $0x7e0] sm:$0xff]
        %v689 = vld [vmem:[%s325 + $0x7e8] sm:$0xff]
        %v690 = vld [vmem:[%s325 + $0x7f0] sm:$0xff]
        %v691 = vld [vmem:[%s325 + $0x7f8] sm:$0xff]
        %v692 = vld [vmem:[%s325 + $0x800] sm:$0xff]
        %v693 = vld [vmem:[%s325 + $0x808] sm:$0xff]
        %v694 = vld [vmem:[%s325 + $0x810] sm:$0xff]
        %v695 = vld [vmem:[%s325 + $0x818] sm:$0xff]
        %v696 = vld [vmem:[%s325 + $0x820] sm:$0xff]
        %v697 = vld [vmem:[%s325 + $0x828] sm:$0xff]
        %v698 = vld [vmem:[%s325 + $0x830] sm:$0xff]
        %v699 = vld [vmem:[%s325 + $0x838] sm:$0xff]
        %v700 = vld [vmem:[%s325 + $0x840] sm:$0xff]
        %v701 = vld [vmem:[%s325 + $0x848] sm:$0xff]
        %v702 = vld [vmem:[%s325 + $0x850] sm:$0xff]
        %v703 = vld [vmem:[%s325 + $0x858] sm:$0xff]
        %v704 = vld [vmem:[%s325 + $0x860] sm:$0xff]
        %v705 = vld [vmem:[%s325 + $0x868] sm:$0xff]
        %v706 = vld [vmem:[%s325 + $0x870] sm:$0xff]
        %v707 = vld [vmem:[%s325 + $0x878] sm:$0xff]
        %v708 = vld [vmem:[%s325 + $0x880] sm:$0xff]
        %v709 = vld [vmem:[%s325 + $0x888] sm:$0xff]
        %v710 = vld [vmem:[%s325 + $0x890] sm:$0xff]
        %v711 = vld [vmem:[%s325 + $0x898] sm:$0xff]
        %v712 = vld [vmem:[%s325 + $0x8a0] sm:$0xff]
        %v713 = vld [vmem:[%s325 + $0x8a8] sm:$0xff]
        %v714 = vld [vmem:[%s325 + $0x8b0] sm:$0xff]
        %v715 = vld [vmem:[%s325 + $0x8b8] sm:$0xff]
        %v716 = vld [vmem:[%s325 + $0x8c0] sm:$0xff]
        %v717 = vld [vmem:[%s325 + $0x8c8] sm:$0xff]
        %v718 = vld [vmem:[%s325 + $0x8d0] sm:$0xff]
        %v719 = vld [vmem:[%s325 + $0x8d8] sm:$0xff]
        %v720 = vld [vmem:[%s325 + $0x8e0] sm:$0xff]
        %v721 = vld [vmem:[%s325 + $0x8e8] sm:$0xff]
        %v722 = vld [vmem:[%s325 + $0x8f0] sm:$0xff]
        %v723 = vld [vmem:[%s325 + $0x8f8] sm:$0xff]
        %v724 = vld [vmem:[%s325 + $0x900] sm:$0xff]
        %v725 = vld [vmem:[%s325 + $0x908] sm:$0xff]
        %v726 = vld [vmem:[%s325 + $0x910] sm:$0xff]
        %v727 = vld [vmem:[%s325 + $0x918] sm:$0xff]
        %v728 = vld [vmem:[%s325 + $0x920] sm:$0xff]
        %v729 = vld [vmem:[%s325 + $0x928] sm:$0xff]
        %v730 = vld [vmem:[%s325 + $0x930] sm:$0xff]
        %v731 = vld [vmem:[%s325 + $0x938] sm:$0xff]
        %v732 = vld [vmem:[%s325 + $0x940] sm:$0xff]
        %v733 = vld [vmem:[%s325 + $0x948] sm:$0xff]
        %v734 = vld [vmem:[%s325 + $0x950] sm:$0xff]
        %v735 = vld [vmem:[%s325 + $0x958] sm:$0xff]
        %v736 = vld [vmem:[%s325 + $0x960] sm:$0xff]
        %v737 = vld [vmem:[%s325 + $0x968] sm:$0xff]
        %v738 = vld [vmem:[%s325 + $0x970] sm:$0xff]
        %v739 = vld [vmem:[%s325 + $0x978] sm:$0xff]
        %v740 = vld [vmem:[%s325 + $0x980] sm:$0xff]
        %v741 = vld [vmem:[%s325 + $0x988] sm:$0xff]
        %v742 = vld [vmem:[%s325 + $0x990] sm:$0xff]
        %v743 = vld [vmem:[%s325 + $0x998] sm:$0xff]
        %v744 = vld [vmem:[%s325 + $0x9a0] sm:$0xff]
        %v745 = vld [vmem:[%s325 + $0x9a8] sm:$0xff]
        %v746 = vld [vmem:[%s325 + $0x9b0] sm:$0xff]
        %v747 = vld [vmem:[%s325 + $0x9b8] sm:$0xff]
        %v748 = vld [vmem:[%s325 + $0x9c0] sm:$0xff]
        %v749 = vld [vmem:[%s325 + $0x9c8] sm:$0xff]
        %v750 = vld [vmem:[%s325 + $0x9d0] sm:$0xff]
        %v751 = vld [vmem:[%s325 + $0x9d8] sm:$0xff]
        %v752 = vld [vmem:[%s325 + $0x9e0] sm:$0xff]
        %v753 = vld [vmem:[%s325 + $0x9e8] sm:$0xff]
        %v754 = vld [vmem:[%s325 + $0x9f0] sm:$0xff]
        %v755 = vld [vmem:[%s325 + $0x9f8] sm:$0xff]
        %v756 = vld [vmem:[%s325 + $0xa00] sm:$0xff]
        %v757 = vld [vmem:[%s325 + $0xa08] sm:$0xff]
        %v758 = vld [vmem:[%s325 + $0xa10] sm:$0xff]
        %v759 = vld [vmem:[%s325 + $0xa18] sm:$0xff]
        %v760 = vld [vmem:[%s325 + $0xa20] sm:$0xff]
        %v761 = vld [vmem:[%s325 + $0xa28] sm:$0xff]
        %v762 = vld [vmem:[%s325 + $0xa30] sm:$0xff]
        %v763 = vld [vmem:[%s325 + $0xa38] sm:$0xff]
        %v764 = vld [vmem:[%s325 + $0xa40] sm:$0xff]
        %v765 = vld [vmem:[%s325 + $0xa48] sm:$0xff]
        %v766 = vld [vmem:[%s325 + $0xa50] sm:$0xff]
        %v767 = vld [vmem:[%s325 + $0xa58] sm:$0xff]
        %v768 = vld [vmem:[%s325 + $0xa60] sm:$0xff]
        %v769 = vld [vmem:[%s325 + $0xa68] sm:$0xff]
        %v770 = vld [vmem:[%s325 + $0xa70] sm:$0xff]
        %v771 = vld [vmem:[%s325 + $0xa78] sm:$0xff]
        %v772 = vld [vmem:[%s325 + $0xa80] sm:$0xff]
        %v773 = vld [vmem:[%s325 + $0xa88] sm:$0xff]
        %v774 = vld [vmem:[%s325 + $0xa90] sm:$0xff]
        %v775 = vld [vmem:[%s325 + $0xa98] sm:$0xff]
        %v776 = vld [vmem:[%s325 + $0xaa0] sm:$0xff]
        %v777 = vld [vmem:[%s325 + $0xaa8] sm:$0xff]
        %v778 = vld [vmem:[%s325 + $0xab0] sm:$0xff]
        %v779 = vld [vmem:[%s325 + $0xab8] sm:$0xff]
        %v780 = vld [vmem:[%s325 + $0xac0] sm:$0xff]
        %v781 = vld [vmem:[%s325 + $0xac8] sm:$0xff]
        %v782 = vld [vmem:[%s325 + $0xad0] sm:$0xff]
        %v783 = vld [vmem:[%s325 + $0xad8] sm:$0xff]
        %v784 = vld [vmem:[%s325 + $0xae0] sm:$0xff]
        %v785 = vld [vmem:[%s325 + $0xae8] sm:$0xff]
        %v786 = vld [vmem:[%s325 + $0xaf0] sm:$0xff]
        %v787 = vld [vmem:[%s325 + $0xaf8] sm:$0xff]
        %v788 = vld [vmem:[%s325 + $0xb00] sm:$0xff]
        %v789 = vld [vmem:[%s325 + $0xb08] sm:$0xff]
        %v790 = vld [vmem:[%s325 + $0xb10] sm:$0xff]
        %v791 = vld [vmem:[%s325 + $0xb18] sm:$0xff]
        %v792 = vld [vmem:[%s325 + $0xb20] sm:$0xff]
        %v793 = vld [vmem:[%s325 + $0xb28] sm:$0xff]
        %v794 = vld [vmem:[%s325 + $0xb30] sm:$0xff]
        %v795 = vld [vmem:[%s325 + $0xb38] sm:$0xff]
        %v796 = vld [vmem:[%s325 + $0xb40] sm:$0xff]
        %v797 = vld [vmem:[%s325 + $0xb48] sm:$0xff]
        %v798 = vld [vmem:[%s325 + $0xb50] sm:$0xff]
        %v799 = vld [vmem:[%s325 + $0xb58] sm:$0xff]
        %v800 = vld [vmem:[%s325 + $0xb60] sm:$0xff]
        %v801 = vld [vmem:[%s325 + $0xb68] sm:$0xff]
        %v802 = vld [vmem:[%s325 + $0xb70] sm:$0xff]
        %v803 = vld [vmem:[%s325 + $0xb78] sm:$0xff]
        %v804 = vld [vmem:[%s325 + $0xb80] sm:$0xff]
        %v805 = vld [vmem:[%s325 + $0xb88] sm:$0xff]
        %v806 = vld [vmem:[%s325 + $0xb90] sm:$0xff]
        %v807 = vld [vmem:[%s325 + $0xb98] sm:$0xff]
        %v808 = vld [vmem:[%s325 + $0xba0] sm:$0xff]
        %v809 = vld [vmem:[%s325 + $0xba8] sm:$0xff]
        %v810 = vld [vmem:[%s325 + $0xbb0] sm:$0xff]
        %v811 = vld [vmem:[%s325 + $0xbb8] sm:$0xff]
        %v812 = vld [vmem:[%s325 + $0xbc0] sm:$0xff]
        %v813 = vld [vmem:[%s325 + $0xbc8] sm:$0xff]
        %v814 = vld [vmem:[%s325 + $0xbd0] sm:$0xff]
        %v815 = vld [vmem:[%s325 + $0xbd8] sm:$0xff]
        %v816 = vld [vmem:[%s325 + $0xbe0] sm:$0xff]
        %v817 = vld [vmem:[%s325 + $0xbe8] sm:$0xff]
        %v818 = vld [vmem:[%s325 + $0xbf0] sm:$0xff]
        %v819 = vld [vmem:[%s325 + $0xbf8] sm:$0xff]
        %v820 = vld [vmem:[%s325 + $0xc00] sm:$0xff]
        %v821 = vld [vmem:[%s325 + $0xc08] sm:$0xff]
        %v822 = vld [vmem:[%s325 + $0xc10] sm:$0xff]
        %v823 = vld [vmem:[%s325 + $0xc18] sm:$0xff]
        %v824 = vld [vmem:[%s325 + $0xc20] sm:$0xff]
        %v825 = vld [vmem:[%s325 + $0xc28] sm:$0xff]
        %v826 = vld [vmem:[%s325 + $0xc30] sm:$0xff]
        %v827 = vld [vmem:[%s325 + $0xc38] sm:$0xff]
        %v828 = vld [vmem:[%s325 + $0xc40] sm:$0xff]
        %v829 = vld [vmem:[%s325 + $0xc48] sm:$0xff]
        %v830 = vld [vmem:[%s325 + $0xc50] sm:$0xff]
        %v831 = vld [vmem:[%s325 + $0xc58] sm:$0xff]
        %v832 = vld [vmem:[%s325 + $0xc60] sm:$0xff]
        %v833 = vld [vmem:[%s325 + $0xc68] sm:$0xff]
        %v834 = vld [vmem:[%s325 + $0xc70] sm:$0xff]
        %v835 = vld [vmem:[%s325 + $0xc78] sm:$0xff]
        %v836 = vld [vmem:[%s325 + $0xc80] sm:$0xff]
        %v837 = vld [vmem:[%s325 + $0xc88] sm:$0xff]
        %v838 = vld [vmem:[%s325 + $0xc90] sm:$0xff]
        %v839 = vld [vmem:[%s325 + $0xc98] sm:$0xff]
        %v840 = vld [vmem:[%s325 + $0xca0] sm:$0xff]
        %v841 = vld [vmem:[%s325 + $0xca8] sm:$0xff]
        %v842 = vld [vmem:[%s325 + $0xcb0] sm:$0xff]
        %v843 = vld [vmem:[%s325 + $0xcb8] sm:$0xff]
        %v844 = vld [vmem:[%s325 + $0xcc0] sm:$0xff]
        %v845 = vld [vmem:[%s325 + $0xcc8] sm:$0xff]
        %v846 = vld [vmem:[%s325 + $0xcd0] sm:$0xff]
        %v847 = vld [vmem:[%s325 + $0xcd8] sm:$0xff]
        %v848 = vld [vmem:[%s325 + $0xce0] sm:$0xff]
        %v849 = vld [vmem:[%s325 + $0xce8] sm:$0xff]
        %v850 = vld [vmem:[%s325 + $0xcf0] sm:$0xff]
        %v851 = vld [vmem:[%s325 + $0xcf8] sm:$0xff]
        %v852 = vld [vmem:[%s325 + $0xd00] sm:$0xff]
        %v853 = vld [vmem:[%s325 + $0xd08] sm:$0xff]
        %v854 = vld [vmem:[%s325 + $0xd10] sm:$0xff]
        %v855 = vld [vmem:[%s325 + $0xd18] sm:$0xff]
        %v856 = vld [vmem:[%s325 + $0xd20] sm:$0xff]
        %v857 = vld [vmem:[%s325 + $0xd28] sm:$0xff]
        %v858 = vld [vmem:[%s325 + $0xd30] sm:$0xff]
        %v859 = vld [vmem:[%s325 + $0xd38] sm:$0xff]
        %v860 = vld [vmem:[%s325 + $0xd40] sm:$0xff]
        %v861 = vld [vmem:[%s325 + $0xd48] sm:$0xff]
        %v862 = vld [vmem:[%s325 + $0xd50] sm:$0xff]
        %v863 = vld [vmem:[%s325 + $0xd58] sm:$0xff]
        %v864 = vld [vmem:[%s325 + $0xd60] sm:$0xff]
        %v865 = vld [vmem:[%s325 + $0xd68] sm:$0xff]
        %v866 = vld [vmem:[%s325 + $0xd70] sm:$0xff]
        %v867 = vld [vmem:[%s325 + $0xd78] sm:$0xff]
        %v868 = vld [vmem:[%s325 + $0xd80] sm:$0xff]
        %v869 = vld [vmem:[%s325 + $0xd88] sm:$0xff]
        %v870 = vld [vmem:[%s325 + $0xd90] sm:$0xff]
        %v871 = vld [vmem:[%s325 + $0xd98] sm:$0xff]
        %v872 = vld [vmem:[%s325 + $0xda0] sm:$0xff]
        %v873 = vld [vmem:[%s325 + $0xda8] sm:$0xff]
        %v874 = vld [vmem:[%s325 + $0xdb0] sm:$0xff]
        %v875 = vld [vmem:[%s325 + $0xdb8] sm:$0xff]
        %v876 = vld [vmem:[%s325 + $0xdc0] sm:$0xff]
        %v877 = vld [vmem:[%s325 + $0xdc8] sm:$0xff]
        %v878 = vld [vmem:[%s325 + $0xdd0] sm:$0xff]
        %v879 = vld [vmem:[%s325 + $0xdd8] sm:$0xff]
        %v880 = vld [vmem:[%s325 + $0xde0] sm:$0xff]
        %v881 = vld [vmem:[%s325 + $0xde8] sm:$0xff]
        %v882 = vld [vmem:[%s325 + $0xdf0] sm:$0xff]
        %v883 = vld [vmem:[%s325 + $0xdf8] sm:$0xff]
        %v884 = vld [vmem:[%s325 + $0xe00] sm:$0xff]
        %v885 = vld [vmem:[%s325 + $0xe08] sm:$0xff]
        %v886 = vld [vmem:[%s325 + $0xe10] sm:$0xff]
        %v887 = vld [vmem:[%s325 + $0xe18] sm:$0xff]
        %v888 = vld [vmem:[%s325 + $0xe20] sm:$0xff]
        %v889 = vld [vmem:[%s325 + $0xe28] sm:$0xff]
        %v890 = vld [vmem:[%s325 + $0xe30] sm:$0xff]
        %v891 = vld [vmem:[%s325 + $0xe38] sm:$0xff]
        %v892 = vld [vmem:[%s325 + $0xe40] sm:$0xff]
        %v893 = vld [vmem:[%s325 + $0xe48] sm:$0xff]
        %v894 = vld [vmem:[%s325 + $0xe50] sm:$0xff]
        %v895 = vld [vmem:[%s325 + $0xe58] sm:$0xff]
        %v896 = vld [vmem:[%s325 + $0xe60] sm:$0xff]
        %v897 = vld [vmem:[%s325 + $0xe68] sm:$0xff]
        %v898 = vld [vmem:[%s325 + $0xe70] sm:$0xff]
        %v899 = vld [vmem:[%s325 + $0xe78] sm:$0xff]
        %v900 = vld [vmem:[%s325 + $0xe80] sm:$0xff]
        %v901 = vld [vmem:[%s325 + $0xe88] sm:$0xff]
        %v902 = vld [vmem:[%s325 + $0xe90] sm:$0xff]
        %v903 = vld [vmem:[%s325 + $0xe98] sm:$0xff]
        %v904 = vld [vmem:[%s325 + $0xea0] sm:$0xff]
        %v905 = vld [vmem:[%s325 + $0xea8] sm:$0xff]
        %v906 = vld [vmem:[%s325 + $0xeb0] sm:$0xff]
        %v907 = vld [vmem:[%s325 + $0xeb8] sm:$0xff]
        %v908 = vld [vmem:[%s325 + $0xec0] sm:$0xff]
        %v909 = vld [vmem:[%s325 + $0xec8] sm:$0xff]
        %v910 = vld [vmem:[%s325 + $0xed0] sm:$0xff]
        %v911 = vld [vmem:[%s325 + $0xed8] sm:$0xff]
        %v912 = vld [vmem:[%s325 + $0xee0] sm:$0xff]
        %v913 = vld [vmem:[%s325 + $0xee8] sm:$0xff]
        %v914 = vld [vmem:[%s325 + $0xef0] sm:$0xff]
        %v915 = vld [vmem:[%s325 + $0xef8] sm:$0xff]
        %v916 = vld [vmem:[%s325 + $0xf00] sm:$0xff]
        %v917 = vld [vmem:[%s325 + $0xf08] sm:$0xff]
        %v918 = vld [vmem:[%s325 + $0xf10] sm:$0xff]
        %v919 = vld [vmem:[%s325 + $0xf18] sm:$0xff]
        %v920 = vld [vmem:[%s325 + $0xf20] sm:$0xff]
        %v921 = vld [vmem:[%s325 + $0xf28] sm:$0xff]
        %v922 = vld [vmem:[%s325 + $0xf30] sm:$0xff]
        %v923 = vld [vmem:[%s325 + $0xf38] sm:$0xff]
        %v924 = vld [vmem:[%s325 + $0xf40] sm:$0xff]
        %v925 = vld [vmem:[%s325 + $0xf48] sm:$0xff]
        %v926 = vld [vmem:[%s325 + $0xf50] sm:$0xff]
        %v927 = vld [vmem:[%s325 + $0xf58] sm:$0xff]
        %v928 = vld [vmem:[%s325 + $0xf60] sm:$0xff]
        %v929 = vld [vmem:[%s325 + $0xf68] sm:$0xff]
        %v930 = vld [vmem:[%s325 + $0xf70] sm:$0xff]
        %v931 = vld [vmem:[%s325 + $0xf78] sm:$0xff]
        %v932 = vld [vmem:[%s325 + $0xf80] sm:$0xff]
        %v933 = vld [vmem:[%s325 + $0xf88] sm:$0xff]
        %v934 = vld [vmem:[%s325 + $0xf90] sm:$0xff]
        %v935 = vld [vmem:[%s325 + $0xf98] sm:$0xff]
        %v936 = vld [vmem:[%s325 + $0xfa0] sm:$0xff]
        %v937 = vld [vmem:[%s325 + $0xfa8] sm:$0xff]
        %v938 = vld [vmem:[%s325 + $0xfb0] sm:$0xff]
        %v939 = vld [vmem:[%s325 + $0xfb8] sm:$0xff]
        %v940 = vld [vmem:[%s325 + $0xfc0] sm:$0xff]
        %v941 = vld [vmem:[%s325 + $0xfc8] sm:$0xff]
        %v942 = vld [vmem:[%s325 + $0xfd0] sm:$0xff]
        %v943 = vld [vmem:[%s325 + $0xfd8] sm:$0xff]
        %v944 = vld [vmem:[%s325 + $0xfe0] sm:$0xff]
        %v945 = vld [vmem:[%s325 + $0xfe8] sm:$0xff]
        %v946 = vld [vmem:[%s325 + $0xff0] sm:$0xff]
        %v947 = vld [vmem:[%s325 + $0xff8] sm:$0xff]
        %v948 = vld [vmem:[%s325 + $0x1000] sm:$0xff]
        %v949 = vld [vmem:[%s325 + $0x1008] sm:$0xff]
        %v950 = vld [vmem:[%s325 + $0x1010] sm:$0xff]
        %v951 = vld [vmem:[%s325 + $0x1018] sm:$0xff]
        %v952 = vld [vmem:[%s325 + $0x1020] sm:$0xff]
        %v953 = vld [vmem:[%s325 + $0x1028] sm:$0xff]
        %v954 = vld [vmem:[%s325 + $0x1030] sm:$0xff]
        %v955 = vld [vmem:[%s325 + $0x1038] sm:$0xff]
        %v956 = vld [vmem:[%s325 + $0x1040] sm:$0xff]
        %v957 = vld [vmem:[%s325 + $0x1048] sm:$0xff]
        %v958 = vld [vmem:[%s325 + $0x1050] sm:$0xff]
        %v959 = vld [vmem:[%s325 + $0x1058] sm:$0xff]
        %v960 = vld [vmem:[%s325 + $0x1060] sm:$0xff]
        %v961 = vld [vmem:[%s325 + $0x1068] sm:$0xff]
        %v962 = vld [vmem:[%s325 + $0x1070] sm:$0xff]
        %v963 = vld [vmem:[%s325 + $0x1078] sm:$0xff]
        %v964 = vld [vmem:[%s325 + $0x1080] sm:$0xff]
        %v965 = vld [vmem:[%s325 + $0x1088] sm:$0xff]
        %v966 = vld [vmem:[%s325 + $0x1090] sm:$0xff]
        %v967 = vld [vmem:[%s325 + $0x1098] sm:$0xff]
        %v968 = vld [vmem:[%s325 + $0x10a0] sm:$0xff]
        %v969 = vld [vmem:[%s325 + $0x10a8] sm:$0xff]
        %v970 = vld [vmem:[%s325 + $0x10b0] sm:$0xff]
        %v971 = vld [vmem:[%s325 + $0x10b8] sm:$0xff]
        %v972 = vld [vmem:[%s325 + $0x10c0] sm:$0xff]
        %v973 = vld [vmem:[%s325 + $0x10c8] sm:$0xff]
        %v974 = vld [vmem:[%s325 + $0x10d0] sm:$0xff]
        %v975 = vld [vmem:[%s325 + $0x10d8] sm:$0xff]
        %v976 = vld [vmem:[%s325 + $0x10e0] sm:$0xff]
        %v977 = vld [vmem:[%s325 + $0x10e8] sm:$0xff]
        %v978 = vld [vmem:[%s325 + $0x10f0] sm:$0xff]
        %v979 = vld [vmem:[%s325 + $0x10f8] sm:$0xff]
        %v980 = vld [vmem:[%s325 + $0x1100] sm:$0xff]
        %v981 = vld [vmem:[%s325 + $0x1108] sm:$0xff]
        %v982 = vld [vmem:[%s325 + $0x1110] sm:$0xff]
        %v983 = vld [vmem:[%s325 + $0x1118] sm:$0xff]
        %v984 = vld [vmem:[%s325 + $0x1120] sm:$0xff]
        %v985 = vld [vmem:[%s325 + $0x1128] sm:$0xff]
        %v986 = vld [vmem:[%s325 + $0x1130] sm:$0xff]
        %v987 = vld [vmem:[%s325 + $0x1138] sm:$0xff]
        %v988 = vld [vmem:[%s325 + $0x1140] sm:$0xff]
        %v989 = vld [vmem:[%s325 + $0x1148] sm:$0xff]
        %v990 = vld [vmem:[%s325 + $0x1150] sm:$0xff]
        %v991 = vld [vmem:[%s325 + $0x1158] sm:$0xff]
        %v992 = vld [vmem:[%s325 + $0x1160] sm:$0xff]
        %v993 = vld [vmem:[%s325 + $0x1168] sm:$0xff]
        %v994 = vld [vmem:[%s325 + $0x1170] sm:$0xff]
        %v995 = vld [vmem:[%s325 + $0x1178] sm:$0xff]
        %v996 = vld [vmem:[%s325 + $0x1180] sm:$0xff]
        %v997 = vld [vmem:[%s325 + $0x1188] sm:$0xff]
        %v998 = vld [vmem:[%s325 + $0x1190] sm:$0xff]
        %v999 = vld [vmem:[%s325 + $0x1198] sm:$0xff]
        %v1000 = vld [vmem:[%s325 + $0x11a0] sm:$0xff]
        %v1001 = vld [vmem:[%s325 + $0x11a8] sm:$0xff]
        %v1002 = vld [vmem:[%s325 + $0x11b0] sm:$0xff]
        %v1003 = vld [vmem:[%s325 + $0x11b8] sm:$0xff]
        %v1004 = vld [vmem:[%s325 + $0x11c0] sm:$0xff]
        %v1005 = vld [vmem:[%s325 + $0x11c8] sm:$0xff]
        %v1006 = vld [vmem:[%s325 + $0x11d0] sm:$0xff]
        %v1007 = vld [vmem:[%s325 + $0x11d8] sm:$0xff]
        %v1008 = vld [vmem:[%s325 + $0x11e0] sm:$0xff]
        %v1009 = vld [vmem:[%s325 + $0x11e8] sm:$0xff]
        %v1010 = vld [vmem:[%s325 + $0x11f0] sm:$0xff]
        %v1011 = vld [vmem:[%s325 + $0x11f8] sm:$0xff]
        %v1012 = vld [vmem:[%s325 + $0x1200] sm:$0xff]
        %v1013 = vld [vmem:[%s325 + $0x1208] sm:$0xff]
        %v1014 = vld [vmem:[%s325 + $0x1210] sm:$0xff]
        %v1015 = vld [vmem:[%s325 + $0x1218] sm:$0xff]
        %v1016 = vld [vmem:[%s325 + $0x1220] sm:$0xff]
        %v1017 = vld [vmem:[%s325 + $0x1228] sm:$0xff]
        %v1018 = vld [vmem:[%s325 + $0x1230] sm:$0xff]
        %v1019 = vld [vmem:[%s325 + $0x1238] sm:$0xff]
        %v1020 = vld [vmem:[%s325 + $0x1240] sm:$0xff]
        %v1021 = vld [vmem:[%s325 + $0x1248] sm:$0xff]
        %v1022 = vld [vmem:[%s325 + $0x1250] sm:$0xff]
        %v1023 = vld [vmem:[%s325 + $0x1258] sm:$0xff]
        %v1024 = vld [vmem:[%s325 + $0x1260] sm:$0xff]
        %v1025 = vld [vmem:[%s325 + $0x1268] sm:$0xff]
        %v1026 = vld [vmem:[%s325 + $0x1270] sm:$0xff]
        %v1027 = vld [vmem:[%s325 + $0x1278] sm:$0xff]
        %v1028 = vld [vmem:[%s325 + $0x1280] sm:$0xff]
        %v1029 = vld [vmem:[%s325 + $0x1288] sm:$0xff]
        %v1030 = vld [vmem:[%s325 + $0x1290] sm:$0xff]
        %v1031 = vld [vmem:[%s325 + $0x1298] sm:$0xff]
        %v1032 = vld [vmem:[%s325 + $0x12a0] sm:$0xff]
        %v1033 = vld [vmem:[%s325 + $0x12a8] sm:$0xff]
        %v1034 = vld [vmem:[%s325 + $0x12b0] sm:$0xff]
        %v1035 = vld [vmem:[%s325 + $0x12b8] sm:$0xff]
        %v1036 = vld [vmem:[%s325 + $0x12c0] sm:$0xff]
        %v1037 = vld [vmem:[%s325 + $0x12c8] sm:$0xff]
        %v1038 = vld [vmem:[%s325 + $0x12d0] sm:$0xff]
        %v1039 = vld [vmem:[%s325 + $0x12d8] sm:$0xff]
        %v1040 = vld [vmem:[%s325 + $0x12e0] sm:$0xff]
        %v1041 = vld [vmem:[%s325 + $0x12e8] sm:$0xff]
        %v1042 = vld [vmem:[%s325 + $0x12f0] sm:$0xff]
        %v1043 = vld [vmem:[%s325 + $0x12f8] sm:$0xff]
        %v1044 = vld [vmem:[%s325 + $0x1300] sm:$0xff]
        %v1045 = vld [vmem:[%s325 + $0x1308] sm:$0xff]
        %v1046 = vld [vmem:[%s325 + $0x1310] sm:$0xff]
        %v1047 = vld [vmem:[%s325 + $0x1318] sm:$0xff]
        %v1048 = vld [vmem:[%s325 + $0x1320] sm:$0xff]
        %v1049 = vld [vmem:[%s325 + $0x1328] sm:$0xff]
        %v1050 = vld [vmem:[%s325 + $0x1330] sm:$0xff]
        %v1051 = vld [vmem:[%s325 + $0x1338] sm:$0xff]
        %v1052 = vld [vmem:[%s325 + $0x1340] sm:$0xff]
        %v1053 = vld [vmem:[%s325 + $0x1348] sm:$0xff]
        %v1054 = vld [vmem:[%s325 + $0x1350] sm:$0xff]
        %v1055 = vld [vmem:[%s325 + $0x1358] sm:$0xff]
        %v1056 = vld [vmem:[%s325 + $0x1360] sm:$0xff]
        %v1057 = vld [vmem:[%s325 + $0x1368] sm:$0xff]
        %v1058 = vld [vmem:[%s325 + $0x1370] sm:$0xff]
        %v1059 = vld [vmem:[%s325 + $0x1378] sm:$0xff]
        %v1060 = vld [vmem:[%s325 + $0x1380] sm:$0xff]
        %v1061 = vld [vmem:[%s325 + $0x1388] sm:$0xff]
        %v1062 = vld [vmem:[%s325 + $0x1390] sm:$0xff]
        %v1063 = vld [vmem:[%s325 + $0x1398] sm:$0xff]
        %v1064 = vld [vmem:[%s325 + $0x13a0] sm:$0xff]
        %v1065 = vld [vmem:[%s325 + $0x13a8] sm:$0xff]
        %v1066 = vld [vmem:[%s325 + $0x13b0] sm:$0xff]
        %v1067 = vld [vmem:[%s325 + $0x13b8] sm:$0xff]
        %v1068 = vld [vmem:[%s325 + $0x13c0] sm:$0xff]
        %v1069 = vld [vmem:[%s325 + $0x13c8] sm:$0xff]
        %v1070 = vld [vmem:[%s325 + $0x13d0] sm:$0xff]
        %v1071 = vld [vmem:[%s325 + $0x13d8] sm:$0xff]
        %v1072 = vld [vmem:[%s325 + $0x13e0] sm:$0xff]
        %v1073 = vld [vmem:[%s325 + $0x13e8] sm:$0xff]
        %v1074 = vld [vmem:[%s325 + $0x13f0] sm:$0xff]
        %v1075 = vld [vmem:[%s325 + $0x13f8] sm:$0xff]
        %v1076 = vld [vmem:[%s325 + $0x1400] sm:$0xff]
        %v1077 = vld [vmem:[%s325 + $0x1408] sm:$0xff]
        %v1078 = vld [vmem:[%s325 + $0x1410] sm:$0xff]
        %v1079 = vld [vmem:[%s325 + $0x1418] sm:$0xff]
        %v1080 = vld [vmem:[%s325 + $0x1420] sm:$0xff]
        %v1081 = vld [vmem:[%s325 + $0x1428] sm:$0xff]
        %v1082 = vld [vmem:[%s325 + $0x1430] sm:$0xff]
        %v1083 = vld [vmem:[%s325 + $0x1438] sm:$0xff]
        %v1084 = vld [vmem:[%s325 + $0x1440] sm:$0xff]
        %v1085 = vld [vmem:[%s325 + $0x1448] sm:$0xff]
        %v1086 = vld [vmem:[%s325 + $0x1450] sm:$0xff]
        %v1087 = vld [vmem:[%s325 + $0x1458] sm:$0xff]
        %v1088 = vld [vmem:[%s325 + $0x1460] sm:$0xff]
        %v1089 = vld [vmem:[%s325 + $0x1468] sm:$0xff]
        %v1090 = vld [vmem:[%s325 + $0x1470] sm:$0xff]
        %v1091 = vld [vmem:[%s325 + $0x1478] sm:$0xff]
        %v1092 = vld [vmem:[%s325 + $0x1480] sm:$0xff]
        %v1093 = vld [vmem:[%s325 + $0x1488] sm:$0xff]
        %v1094 = vld [vmem:[%s325 + $0x1490] sm:$0xff]
        %v1095 = vld [vmem:[%s325 + $0x1498] sm:$0xff]
        %v1096 = vld [vmem:[%s325 + $0x14a0] sm:$0xff]
        %v1097 = vld [vmem:[%s325 + $0x14a8] sm:$0xff]
        %v1098 = vld [vmem:[%s325 + $0x14b0] sm:$0xff]
        %v1099 = vld [vmem:[%s325 + $0x14b8] sm:$0xff]
        %v1100 = vld [vmem:[%s325 + $0x14c0] sm:$0xff]
        %v1101 = vld [vmem:[%s325 + $0x14c8] sm:$0xff]
        %v1102 = vld [vmem:[%s325 + $0x14d0] sm:$0xff]
        %v1103 = vld [vmem:[%s325 + $0x14d8] sm:$0xff]
        %v1104 = vld [vmem:[%s325 + $0x14e0] sm:$0xff]
        %v1105 = vld [vmem:[%s325 + $0x14e8] sm:$0xff]
        %v1106 = vld [vmem:[%s325 + $0x14f0] sm:$0xff]
        %v1107 = vld [vmem:[%s325 + $0x14f8] sm:$0xff]
        %v1108 = vld [vmem:[%s325 + $0x1500] sm:$0xff]
        %v1109 = vld [vmem:[%s325 + $0x1508] sm:$0xff]
        %v1110 = vld [vmem:[%s325 + $0x1510] sm:$0xff]
        %v1111 = vld [vmem:[%s325 + $0x1518] sm:$0xff]
        %v1112 = vld [vmem:[%s325 + $0x1520] sm:$0xff]
        %v1113 = vld [vmem:[%s325 + $0x1528] sm:$0xff]
        %v1114 = vld [vmem:[%s325 + $0x1530] sm:$0xff]
        %v1115 = vld [vmem:[%s325 + $0x1538] sm:$0xff]
        %v1116 = vld [vmem:[%s325 + $0x1540] sm:$0xff]
        %v1117 = vld [vmem:[%s325 + $0x1548] sm:$0xff]
        %v1118 = vld [vmem:[%s325 + $0x1550] sm:$0xff]
        %v1119 = vld [vmem:[%s325 + $0x1558] sm:$0xff]
        %v1120 = vld [vmem:[%s325 + $0x1560] sm:$0xff]
        %v1121 = vld [vmem:[%s325 + $0x1568] sm:$0xff]
        %v1122 = vld [vmem:[%s325 + $0x1570] sm:$0xff]
        %v1123 = vld [vmem:[%s325 + $0x1578] sm:$0xff]
        %v1124 = vld [vmem:[%s325 + $0x1580] sm:$0xff]
        %v1125 = vld [vmem:[%s325 + $0x1588] sm:$0xff]
        %v1126 = vld [vmem:[%s325 + $0x1590] sm:$0xff]
        %v1127 = vld [vmem:[%s325 + $0x1598] sm:$0xff]
        %v1128 = vld [vmem:[%s325 + $0x15a0] sm:$0xff]
        %v1129 = vld [vmem:[%s325 + $0x15a8] sm:$0xff]
        %v1130 = vld [vmem:[%s325 + $0x15b0] sm:$0xff]
        %v1131 = vld [vmem:[%s325 + $0x15b8] sm:$0xff]
        %v1132 = vld [vmem:[%s325 + $0x15c0] sm:$0xff]
        %v1133 = vld [vmem:[%s325 + $0x15c8] sm:$0xff]
        %v1134 = vld [vmem:[%s325 + $0x15d0] sm:$0xff]
        %v1135 = vld [vmem:[%s325 + $0x15d8] sm:$0xff]
        %v1136 = vld [vmem:[%s325 + $0x15e0] sm:$0xff]
        %v1137 = vld [vmem:[%s325 + $0x15e8] sm:$0xff]
        %v1138 = vld [vmem:[%s325 + $0x15f0] sm:$0xff]
        %v1139 = vld [vmem:[%s325 + $0x15f8] sm:$0xff]
        %v1140 = vld [vmem:[%s325 + $0x1600] sm:$0xff]
        %v1141 = vld [vmem:[%s325 + $0x1608] sm:$0xff]
        %v1142 = vld [vmem:[%s325 + $0x1610] sm:$0xff]
        %v1143 = vld [vmem:[%s325 + $0x1618] sm:$0xff]
        %v1144 = vld [vmem:[%s325 + $0x1620] sm:$0xff]
        %v1145 = vld [vmem:[%s325 + $0x1628] sm:$0xff]
        %v1146 = vld [vmem:[%s325 + $0x1630] sm:$0xff]
        %v1147 = vld [vmem:[%s325 + $0x1638] sm:$0xff]
        %v1148 = vld [vmem:[%s325 + $0x1640] sm:$0xff]
        %v1149 = vld [vmem:[%s325 + $0x1648] sm:$0xff]
        %v1150 = vld [vmem:[%s325 + $0x1650] sm:$0xff]
        %v1151 = vld [vmem:[%s325 + $0x1658] sm:$0xff]
        %v1152 = vld [vmem:[%s325 + $0x1660] sm:$0xff]
        %v1153 = vld [vmem:[%s325 + $0x1668] sm:$0xff]
        %v1154 = vld [vmem:[%s325 + $0x1670] sm:$0xff]
        %v1155 = vld [vmem:[%s325 + $0x1678] sm:$0xff]
        %v1156 = vld [vmem:[%s325 + $0x1680] sm:$0xff]
        %v1157 = vld [vmem:[%s325 + $0x1688] sm:$0xff]
        %v1158 = vld [vmem:[%s325 + $0x1690] sm:$0xff]
        %v1159 = vld [vmem:[%s325 + $0x1698] sm:$0xff]
        %v1160 = vld [vmem:[%s325 + $0x16a0] sm:$0xff]
        %v1161 = vld [vmem:[%s325 + $0x16a8] sm:$0xff]
        %v1162 = vld [vmem:[%s325 + $0x16b0] sm:$0xff]
        %v1163 = vld [vmem:[%s325 + $0x16b8] sm:$0xff]
        %v1164 = vld [vmem:[%s325 + $0x16c0] sm:$0xff]
        %v1165 = vld [vmem:[%s325 + $0x16c8] sm:$0xff]
        %v1166 = vld [vmem:[%s325 + $0x16d0] sm:$0xff]
        %v1167 = vld [vmem:[%s325 + $0x16d8] sm:$0xff]
        %v1168 = vld [vmem:[%s325 + $0x16e0] sm:$0xff]
        %v1169 = vld [vmem:[%s325 + $0x16e8] sm:$0xff]
        %v1170 = vld [vmem:[%s325 + $0x16f0] sm:$0xff]
        %v1171 = vld [vmem:[%s325 + $0x16f8] sm:$0xff]
        %v1172 = vld [vmem:[%s325 + $0x1700] sm:$0xff]
        %v1173 = vld [vmem:[%s325 + $0x1708] sm:$0xff]
        %v1174 = vld [vmem:[%s325 + $0x1710] sm:$0xff]
        %v1175 = vld [vmem:[%s325 + $0x1718] sm:$0xff]
        %v1176 = vld [vmem:[%s325 + $0x1720] sm:$0xff]
        %v1177 = vld [vmem:[%s325 + $0x1728] sm:$0xff]
        %v1178 = vld [vmem:[%s325 + $0x1730] sm:$0xff]
        %v1179 = vld [vmem:[%s325 + $0x1738] sm:$0xff]
        %v1180 = vld [vmem:[%s325 + $0x1740] sm:$0xff]
        %v1181 = vld [vmem:[%s325 + $0x1748] sm:$0xff]
        %v1182 = vld [vmem:[%s325 + $0x1750] sm:$0xff]
        %v1183 = vld [vmem:[%s325 + $0x1758] sm:$0xff]
        %v1184 = vld [vmem:[%s325 + $0x1760] sm:$0xff]
        %v1185 = vld [vmem:[%s325 + $0x1768] sm:$0xff]
        %v1186 = vld [vmem:[%s325 + $0x1770] sm:$0xff]
        %v1187 = vld [vmem:[%s325 + $0x1778] sm:$0xff]
        %v1188 = vld [vmem:[%s325 + $0x1780] sm:$0xff]
        %v1189 = vld [vmem:[%s325 + $0x1788] sm:$0xff]
        %v1190 = vld [vmem:[%s325 + $0x1790] sm:$0xff]
        %v1191 = vld [vmem:[%s325 + $0x1798] sm:$0xff]
        %v1192 = vld [vmem:[%s325 + $0x17a0] sm:$0xff]
        %v1193 = vld [vmem:[%s325 + $0x17a8] sm:$0xff]
        %v1194 = vld [vmem:[%s325 + $0x17b0] sm:$0xff]
        %v1195 = vld [vmem:[%s325 + $0x17b8] sm:$0xff]
        %v1196 = vld [vmem:[%s325 + $0x17c0] sm:$0xff]
        %v1197 = vld [vmem:[%s325 + $0x17c8] sm:$0xff]
        %v1198 = vld [vmem:[%s325 + $0x17d0] sm:$0xff]
        %v1199 = vld [vmem:[%s325 + $0x17d8] sm:$0xff]
        %v1200 = vld [vmem:[%s325 + $0x17e0] sm:$0xff]
        %v1201 = vld [vmem:[%s325 + $0x17e8] sm:$0xff]
        %v1202 = vld [vmem:[%s325 + $0x17f0] sm:$0xff]
        %v1203 = vld [vmem:[%s325 + $0x17f8] sm:$0xff]
        %v1204 = vld [vmem:[%s325 + $0x1800] sm:$0xff]
        %v1205 = vld [vmem:[%s325 + $0x1808] sm:$0xff]
        %v1206 = vld [vmem:[%s325 + $0x1810] sm:$0xff]
        %v1207 = vld [vmem:[%s325 + $0x1818] sm:$0xff]
        %v1208 = vld [vmem:[%s325 + $0x1820] sm:$0xff]
        %v1209 = vld [vmem:[%s325 + $0x1828] sm:$0xff]
        %v1210 = vld [vmem:[%s325 + $0x1830] sm:$0xff]
        %v1211 = vld [vmem:[%s325 + $0x1838] sm:$0xff]
        %v1212 = vld [vmem:[%s325 + $0x1840] sm:$0xff]
        %v1213 = vld [vmem:[%s325 + $0x1848] sm:$0xff]
        %v1214 = vld [vmem:[%s325 + $0x1850] sm:$0xff]
        %v1215 = vld [vmem:[%s325 + $0x1858] sm:$0xff]
        %v1216 = vld [vmem:[%s325 + $0x1860] sm:$0xff]
        %v1217 = vld [vmem:[%s325 + $0x1868] sm:$0xff]
        %v1218 = vld [vmem:[%s325 + $0x1870] sm:$0xff]
        %v1219 = vld [vmem:[%s325 + $0x1878] sm:$0xff]
        %v1220 = vld [vmem:[%s325 + $0x1880] sm:$0xff]
        %v1221 = vld [vmem:[%s325 + $0x1888] sm:$0xff]
        %v1222 = vld [vmem:[%s325 + $0x1890] sm:$0xff]
        %v1223 = vld [vmem:[%s325 + $0x1898] sm:$0xff]
        %v1224 = vld [vmem:[%s325 + $0x18a0] sm:$0xff]
        %v1225 = vld [vmem:[%s325 + $0x18a8] sm:$0xff]
        %v1226 = vld [vmem:[%s325 + $0x18b0] sm:$0xff]
        %v1227 = vld [vmem:[%s325 + $0x18b8] sm:$0xff]
        %v1228 = vld [vmem:[%s325 + $0x18c0] sm:$0xff]
        %v1229 = vld [vmem:[%s325 + $0x18c8] sm:$0xff]
        %v1230 = vld [vmem:[%s325 + $0x18d0] sm:$0xff]
        %v1231 = vld [vmem:[%s325 + $0x18d8] sm:$0xff]
        %v1232 = vld [vmem:[%s325 + $0x18e0] sm:$0xff]
        %v1233 = vld [vmem:[%s325 + $0x18e8] sm:$0xff]
        %v1234 = vld [vmem:[%s325 + $0x18f0] sm:$0xff]
        %v1235 = vld [vmem:[%s325 + $0x18f8] sm:$0xff]
        %v1236 = vld [vmem:[%s325 + $0x1900] sm:$0xff]
        %v1237 = vld [vmem:[%s325 + $0x1908] sm:$0xff]
        %v1238 = vld [vmem:[%s325 + $0x1910] sm:$0xff]
        %v1239 = vld [vmem:[%s325 + $0x1918] sm:$0xff]
        %v1240 = vld [vmem:[%s325 + $0x1920] sm:$0xff]
        %v1241 = vld [vmem:[%s325 + $0x1928] sm:$0xff]
        %v1242 = vld [vmem:[%s325 + $0x1930] sm:$0xff]
        %v1243 = vld [vmem:[%s325 + $0x1938] sm:$0xff]
        %v1244 = vld [vmem:[%s325 + $0x1940] sm:$0xff]
        %v1245 = vld [vmem:[%s325 + $0x1948] sm:$0xff]
        %v1246 = vld [vmem:[%s325 + $0x1950] sm:$0xff]
        %v1247 = vld [vmem:[%s325 + $0x1958] sm:$0xff]
        %v1248 = vld [vmem:[%s325 + $0x1960] sm:$0xff]
        %v1249 = vld [vmem:[%s325 + $0x1968] sm:$0xff]
        %v1250 = vld [vmem:[%s325 + $0x1970] sm:$0xff]
        %v1251 = vld [vmem:[%s325 + $0x1978] sm:$0xff]
        %v1252 = vld [vmem:[%s325 + $0x1980] sm:$0xff]
        %v1253 = vld [vmem:[%s325 + $0x1988] sm:$0xff]
        %v1254 = vld [vmem:[%s325 + $0x1990] sm:$0xff]
        %v1255 = vld [vmem:[%s325 + $0x1998] sm:$0xff]
        %v1256 = vld [vmem:[%s325 + $0x19a0] sm:$0xff]
        %v1257 = vld [vmem:[%s325 + $0x19a8] sm:$0xff]
        %v1258 = vld [vmem:[%s325 + $0x19b0] sm:$0xff]
        %v1259 = vld [vmem:[%s325 + $0x19b8] sm:$0xff]
        %v1260 = vld [vmem:[%s325 + $0x19c0] sm:$0xff]
        %v1261 = vld [vmem:[%s325 + $0x19c8] sm:$0xff]
        %v1262 = vld [vmem:[%s325 + $0x19d0] sm:$0xff]
        %v1263 = vld [vmem:[%s325 + $0x19d8] sm:$0xff]
        %v1264 = vld [vmem:[%s325 + $0x19e0] sm:$0xff]
        %v1265 = vld [vmem:[%s325 + $0x19e8] sm:$0xff]
        %v1266 = vld [vmem:[%s325 + $0x19f0] sm:$0xff]
        %v1267 = vld [vmem:[%s325 + $0x19f8] sm:$0xff]
        %v1268 = vld [vmem:[%s325 + $0x1a00] sm:$0xff]
        %v1269 = vld [vmem:[%s325 + $0x1a08] sm:$0xff]
        %v1270 = vld [vmem:[%s325 + $0x1a10] sm:$0xff]
        %v1271 = vld [vmem:[%s325 + $0x1a18] sm:$0xff]
        %v1272 = vld [vmem:[%s325 + $0x1a20] sm:$0xff]
        %v1273 = vld [vmem:[%s325 + $0x1a28] sm:$0xff]
        %v1274 = vld [vmem:[%s325 + $0x1a30] sm:$0xff]
        %v1275 = vld [vmem:[%s325 + $0x1a38] sm:$0xff]
        %v1276 = vld [vmem:[%s325 + $0x1a40] sm:$0xff]
        %v1277 = vld [vmem:[%s325 + $0x1a48] sm:$0xff]
        %v1278 = vld [vmem:[%s325 + $0x1a50] sm:$0xff]
        %v1279 = vld [vmem:[%s325 + $0x1a58] sm:$0xff]
        %v1280 = vld [vmem:[%s325 + $0x1a60] sm:$0xff]
        %v1281 = vld [vmem:[%s325 + $0x1a68] sm:$0xff]
        %v1282 = vld [vmem:[%s325 + $0x1a70] sm:$0xff]
        %v1283 = vld [vmem:[%s325 + $0x1a78] sm:$0xff]
        %v1284 = vld [vmem:[%s325 + $0x1a80] sm:$0xff]
        %v1285 = vld [vmem:[%s325 + $0x1a88] sm:$0xff]
        %v1286 = vld [vmem:[%s325 + $0x1a90] sm:$0xff]
        %v1287 = vld [vmem:[%s325 + $0x1a98] sm:$0xff]
        %v1288 = vld [vmem:[%s325 + $0x1aa0] sm:$0xff]
        %v1289 = vld [vmem:[%s325 + $0x1aa8] sm:$0xff]
        %v1290 = vld [vmem:[%s325 + $0x1ab0] sm:$0xff]
        %v1291 = vld [vmem:[%s325 + $0x1ab8] sm:$0xff]
        %v1292 = vld [vmem:[%s325 + $0x1ac0] sm:$0xff]
        %v1293 = vld [vmem:[%s325 + $0x1ac8] sm:$0xff]
        %v1294 = vld [vmem:[%s325 + $0x1ad0] sm:$0xff]
        %v1295 = vld [vmem:[%s325 + $0x1ad8] sm:$0xff]
        %v1296 = vld [vmem:[%s325 + $0x1ae0] sm:$0xff]
        %v1297 = vld [vmem:[%s325 + $0x1ae8] sm:$0xff]
        %v1298 = vld [vmem:[%s325 + $0x1af0] sm:$0xff]
        %v1299 = vld [vmem:[%s325 + $0x1af8] sm:$0xff]
        %v1300 = vld [vmem:[%s325 + $0x1b00] sm:$0xff]
        %v1301 = vld [vmem:[%s325 + $0x1b08] sm:$0xff]
        %v1302 = vld [vmem:[%s325 + $0x1b10] sm:$0xff]
        %v1303 = vld [vmem:[%s325 + $0x1b18] sm:$0xff]
        %v1304 = vld [vmem:[%s325 + $0x1b20] sm:$0xff]
        %v1305 = vld [vmem:[%s325 + $0x1b28] sm:$0xff]
        %v1306 = vld [vmem:[%s325 + $0x1b30] sm:$0xff]
        %v1307 = vld [vmem:[%s325 + $0x1b38] sm:$0xff]
        %v1308 = vld [vmem:[%s325 + $0x1b40] sm:$0xff]
        %v1309 = vld [vmem:[%s325 + $0x1b48] sm:$0xff]
        %v1310 = vld [vmem:[%s325 + $0x1b50] sm:$0xff]
        %v1311 = vld [vmem:[%s325 + $0x1b58] sm:$0xff]
        %v1312 = vld [vmem:[%s325 + $0x1b60] sm:$0xff]
        %v1313 = vld [vmem:[%s325 + $0x1b68] sm:$0xff]
        %v1314 = vld [vmem:[%s325 + $0x1b70] sm:$0xff]
        %v1315 = vld [vmem:[%s325 + $0x1b78] sm:$0xff]
        %v1316 = vld [vmem:[%s325 + $0x1b80] sm:$0xff]
        %v1317 = vld [vmem:[%s325 + $0x1b88] sm:$0xff]
        %v1318 = vld [vmem:[%s325 + $0x1b90] sm:$0xff]
        %v1319 = vld [vmem:[%s325 + $0x1b98] sm:$0xff]
        %v1320 = vld [vmem:[%s325 + $0x1ba0] sm:$0xff]
        %v1321 = vld [vmem:[%s325 + $0x1ba8] sm:$0xff]
        %v1322 = vld [vmem:[%s325 + $0x1bb0] sm:$0xff]
        %v1323 = vld [vmem:[%s325 + $0x1bb8] sm:$0xff]
        %v1324 = vld [vmem:[%s325 + $0x1bc0] sm:$0xff]
        %v1325 = vld [vmem:[%s325 + $0x1bc8] sm:$0xff]
        %v1326 = vld [vmem:[%s325 + $0x1bd0] sm:$0xff]
        %v1327 = vld [vmem:[%s325 + $0x1bd8] sm:$0xff]
        %v1328 = vld [vmem:[%s325 + $0x1be0] sm:$0xff]
        %v1329 = vld [vmem:[%s325 + $0x1be8] sm:$0xff]
        %v1330 = vld [vmem:[%s325 + $0x1bf0] sm:$0xff]
        %v1331 = vld [vmem:[%s325 + $0x1bf8] sm:$0xff]
        %v1332 = vld [vmem:[%s325 + $0x1c00] sm:$0xff]
        %v1333 = vld [vmem:[%s325 + $0x1c08] sm:$0xff]
        %v1334 = vld [vmem:[%s325 + $0x1c10] sm:$0xff]
        %v1335 = vld [vmem:[%s325 + $0x1c18] sm:$0xff]
        %v1336 = vld [vmem:[%s325 + $0x1c20] sm:$0xff]
        %v1337 = vld [vmem:[%s325 + $0x1c28] sm:$0xff]
        %v1338 = vld [vmem:[%s325 + $0x1c30] sm:$0xff]
        %v1339 = vld [vmem:[%s325 + $0x1c38] sm:$0xff]
        %v1340 = vld [vmem:[%s325 + $0x1c40] sm:$0xff]
        %v1341 = vld [vmem:[%s325 + $0x1c48] sm:$0xff]
        %v1342 = vld [vmem:[%s325 + $0x1c50] sm:$0xff]
        %v1343 = vld [vmem:[%s325 + $0x1c58] sm:$0xff]
        %v1344 = vld [vmem:[%s325 + $0x1c60] sm:$0xff]
        %v1345 = vld [vmem:[%s325 + $0x1c68] sm:$0xff]
        %v1346 = vld [vmem:[%s325 + $0x1c70] sm:$0xff]
        %v1347 = vld [vmem:[%s325 + $0x1c78] sm:$0xff]
        %v1348 = vld [vmem:[%s325 + $0x1c80] sm:$0xff]
        %v1349 = vld [vmem:[%s325 + $0x1c88] sm:$0xff]
        %v1350 = vld [vmem:[%s325 + $0x1c90] sm:$0xff]
        %v1351 = vld [vmem:[%s325 + $0x1c98] sm:$0xff]
        %v1352 = vld [vmem:[%s325 + $0x1ca0] sm:$0xff]
        %v1353 = vld [vmem:[%s325 + $0x1ca8] sm:$0xff]
        %v1354 = vld [vmem:[%s325 + $0x1cb0] sm:$0xff]
        %v1355 = vld [vmem:[%s325 + $0x1cb8] sm:$0xff]
        %v1356 = vld [vmem:[%s325 + $0x1cc0] sm:$0xff]
        %v1357 = vld [vmem:[%s325 + $0x1cc8] sm:$0xff]
        %v1358 = vld [vmem:[%s325 + $0x1cd0] sm:$0xff]
        %v1359 = vld [vmem:[%s325 + $0x1cd8] sm:$0xff]
        %v1360 = vld [vmem:[%s325 + $0x1ce0] sm:$0xff]
        %v1361 = vld [vmem:[%s325 + $0x1ce8] sm:$0xff]
        %v1362 = vld [vmem:[%s325 + $0x1cf0] sm:$0xff]
        %v1363 = vld [vmem:[%s325 + $0x1cf8] sm:$0xff]
        %v1364 = vld [vmem:[%s325 + $0x1d00] sm:$0xff]
        %v1365 = vld [vmem:[%s325 + $0x1d08] sm:$0xff]
        %v1366 = vld [vmem:[%s325 + $0x1d10] sm:$0xff]
        %v1367 = vld [vmem:[%s325 + $0x1d18] sm:$0xff]
        %v1368 = vld [vmem:[%s325 + $0x1d20] sm:$0xff]
        %v1369 = vld [vmem:[%s325 + $0x1d28] sm:$0xff]
        %v1370 = vld [vmem:[%s325 + $0x1d30] sm:$0xff]
        %v1371 = vld [vmem:[%s325 + $0x1d38] sm:$0xff]
        %v1372 = vld [vmem:[%s325 + $0x1d40] sm:$0xff]
        %v1373 = vld [vmem:[%s325 + $0x1d48] sm:$0xff]
        %v1374 = vld [vmem:[%s325 + $0x1d50] sm:$0xff]
        %v1375 = vld [vmem:[%s325 + $0x1d58] sm:$0xff]
        %v1376 = vld [vmem:[%s325 + $0x1d60] sm:$0xff]
        %v1377 = vld [vmem:[%s325 + $0x1d68] sm:$0xff]
        %v1378 = vld [vmem:[%s325 + $0x1d70] sm:$0xff]
        %v1379 = vld [vmem:[%s325 + $0x1d78] sm:$0xff]
        %v1380 = vld [vmem:[%s325 + $0x1d80] sm:$0xff]
        %v1381 = vld [vmem:[%s325 + $0x1d88] sm:$0xff]
        %v1382 = vld [vmem:[%s325 + $0x1d90] sm:$0xff]
        %v1383 = vld [vmem:[%s325 + $0x1d98] sm:$0xff]
        %v1384 = vld [vmem:[%s325 + $0x1da0] sm:$0xff]
        %v1385 = vld [vmem:[%s325 + $0x1da8] sm:$0xff]
        %v1386 = vld [vmem:[%s325 + $0x1db0] sm:$0xff]
        %v1387 = vld [vmem:[%s325 + $0x1db8] sm:$0xff]
        %v1388 = vld [vmem:[%s325 + $0x1dc0] sm:$0xff]
        %v1389 = vld [vmem:[%s325 + $0x1dc8] sm:$0xff]
        %v1390 = vld [vmem:[%s325 + $0x1dd0] sm:$0xff]
        %v1391 = vld [vmem:[%s325 + $0x1dd8] sm:$0xff]
        %v1392 = vld [vmem:[%s325 + $0x1de0] sm:$0xff]
        %v1393 = vld [vmem:[%s325 + $0x1de8] sm:$0xff]
        %v1394 = vld [vmem:[%s325 + $0x1df0] sm:$0xff]
        %v1395 = vld [vmem:[%s325 + $0x1df8] sm:$0xff]
        %v1396 = vld [vmem:[%s325 + $0x1e00] sm:$0xff]
        %v1397 = vld [vmem:[%s325 + $0x1e08] sm:$0xff]
        %v1398 = vld [vmem:[%s325 + $0x1e10] sm:$0xff]
        %v1399 = vld [vmem:[%s325 + $0x1e18] sm:$0xff]
        %v1400 = vld [vmem:[%s325 + $0x1e20] sm:$0xff]
        %v1401 = vld [vmem:[%s325 + $0x1e28] sm:$0xff]
        %v1402 = vld [vmem:[%s325 + $0x1e30] sm:$0xff]
        %v1403 = vld [vmem:[%s325 + $0x1e38] sm:$0xff]
        %v1404 = vld [vmem:[%s325 + $0x1e40] sm:$0xff]
        %v1405 = vld [vmem:[%s325 + $0x1e48] sm:$0xff]
        %v1406 = vld [vmem:[%s325 + $0x1e50] sm:$0xff]
        %v1407 = vld [vmem:[%s325 + $0x1e58] sm:$0xff]
        %v1408 = vld [vmem:[%s325 + $0x1e60] sm:$0xff]
        %v1409 = vld [vmem:[%s325 + $0x1e68] sm:$0xff]
        %v1410 = vld [vmem:[%s325 + $0x1e70] sm:$0xff]
        %v1411 = vld [vmem:[%s325 + $0x1e78] sm:$0xff]
        %v1412 = vld [vmem:[%s325 + $0x1e80] sm:$0xff]
        %v1413 = vld [vmem:[%s325 + $0x1e88] sm:$0xff]
        %v1414 = vld [vmem:[%s325 + $0x1e90] sm:$0xff]
        %v1415 = vld [vmem:[%s325 + $0x1e98] sm:$0xff]
        %v1416 = vld [vmem:[%s325 + $0x1ea0] sm:$0xff]
        %v1417 = vld [vmem:[%s325 + $0x1ea8] sm:$0xff]
        %v1418 = vld [vmem:[%s325 + $0x1eb0] sm:$0xff]
        %v1419 = vld [vmem:[%s325 + $0x1eb8] sm:$0xff]
        %v1420 = vld [vmem:[%s325 + $0x1ec0] sm:$0xff]
        %v1421 = vld [vmem:[%s325 + $0x1ec8] sm:$0xff]
        %v1422 = vld [vmem:[%s325 + $0x1ed0] sm:$0xff]
        %v1423 = vld [vmem:[%s325 + $0x1ed8] sm:$0xff]
        %v1424 = vld [vmem:[%s325 + $0x1ee0] sm:$0xff]
        %v1425 = vld [vmem:[%s325 + $0x1ee8] sm:$0xff]
        %v1426 = vld [vmem:[%s325 + $0x1ef0] sm:$0xff]
        %v1427 = vld [vmem:[%s325 + $0x1ef8] sm:$0xff]
        %v1428 = vld [vmem:[%s325 + $0x1f00] sm:$0xff]
        %v1429 = vld [vmem:[%s325 + $0x1f08] sm:$0xff]
        %v1430 = vld [vmem:[%s325 + $0x1f10] sm:$0xff]
        %v1431 = vld [vmem:[%s325 + $0x1f18] sm:$0xff]
        %v1432 = vld [vmem:[%s325 + $0x1f20] sm:$0xff]
        %v1433 = vld [vmem:[%s325 + $0x1f28] sm:$0xff]
        %v1434 = vld [vmem:[%s325 + $0x1f30] sm:$0xff]
        %v1435 = vld [vmem:[%s325 + $0x1f38] sm:$0xff]
        %v1436 = vld [vmem:[%s325 + $0x1f40] sm:$0xff]
        %v1437 = vld [vmem:[%s325 + $0x1f48] sm:$0xff]
        %v1438 = vld [vmem:[%s325 + $0x1f50] sm:$0xff]
        %v1439 = vld [vmem:[%s325 + $0x1f58] sm:$0xff]
        %v1440 = vld [vmem:[%s325 + $0x1f60] sm:$0xff]
        %v1441 = vld [vmem:[%s325 + $0x1f68] sm:$0xff]
        %v1442 = vld [vmem:[%s325 + $0x1f70] sm:$0xff]
        %v1443 = vld [vmem:[%s325 + $0x1f78] sm:$0xff]
        %v1444 = vld [vmem:[%s325 + $0x1f80] sm:$0xff]
        %v1445 = vld [vmem:[%s325 + $0x1f88] sm:$0xff]
        %v1446 = vld [vmem:[%s325 + $0x1f90] sm:$0xff]
        %v1447 = vld [vmem:[%s325 + $0x1f98] sm:$0xff]
        %v1448 = vld [vmem:[%s325 + $0x1fa0] sm:$0xff]
        %v1449 = vld [vmem:[%s325 + $0x1fa8] sm:$0xff]
        %v1450 = vld [vmem:[%s325 + $0x1fb0] sm:$0xff]
        %v1451 = vld [vmem:[%s325 + $0x1fb8] sm:$0xff]
        %v1452 = vld [vmem:[%s325 + $0x1fc0] sm:$0xff]
        %v1453 = vld [vmem:[%s325 + $0x1fc8] sm:$0xff]
        %v1454 = vld [vmem:[%s325 + $0x1fd0] sm:$0xff]
        %v1455 = vld [vmem:[%s325 + $0x1fd8] sm:$0xff]
        %v1456 = vld [vmem:[%s325 + $0x1fe0] sm:$0xff]
        %v1457 = vld [vmem:[%s325 + $0x1fe8] sm:$0xff]
        %v1458 = vld [vmem:[%s325 + $0x1ff0] sm:$0xff]
        %v1459 = vld [vmem:[%s325 + $0x1ff8] sm:$0xff]
        %v2484 = vunpack.c.l.b16 %v436
        %v2485 = vunpack.c.h.b16 %v436
        %v2486 = vunpack.c.l.b16 %v437
        %v2487 = vunpack.c.h.b16 %v437
        %v2488 = vunpack.c.l.b16 %v438
        %v2489 = vunpack.c.h.b16 %v438
        %v2490 = vunpack.c.l.b16 %v439
        %v2491 = vunpack.c.h.b16 %v439
        %v2492 = vunpack.c.l.b16 %v440
        %v2493 = vunpack.c.h.b16 %v440
        %v2494 = vunpack.c.l.b16 %v441
        %v2495 = vunpack.c.h.b16 %v441
        %v2496 = vunpack.c.l.b16 %v442
        %v2497 = vunpack.c.h.b16 %v442
        %v2498 = vunpack.c.l.b16 %v443
        %v2499 = vunpack.c.h.b16 %v443
        %v2500 = vunpack.c.l.b16 %v444
        %v2501 = vunpack.c.h.b16 %v444
        %v2502 = vunpack.c.l.b16 %v445
        %v2503 = vunpack.c.h.b16 %v445
        %v2504 = vunpack.c.l.b16 %v446
        %v2505 = vunpack.c.h.b16 %v446
        %v2506 = vunpack.c.l.b16 %v447
        %v2507 = vunpack.c.h.b16 %v447
        %v2508 = vunpack.c.l.b16 %v448
        %v2509 = vunpack.c.h.b16 %v448
        %v2510 = vunpack.c.l.b16 %v449
        %v2511 = vunpack.c.h.b16 %v449
        %v2512 = vunpack.c.l.b16 %v450
        %v2513 = vunpack.c.h.b16 %v450
        %v2514 = vunpack.c.l.b16 %v451
        %v2515 = vunpack.c.h.b16 %v451
        %v2516 = vunpack.c.l.b16 %v452
        %v2517 = vunpack.c.h.b16 %v452
        %v2518 = vunpack.c.l.b16 %v453
        %v2519 = vunpack.c.h.b16 %v453
        %v2520 = vunpack.c.l.b16 %v454
        %v2521 = vunpack.c.h.b16 %v454
        %v2522 = vunpack.c.l.b16 %v455
        %v2523 = vunpack.c.h.b16 %v455
        %v2524 = vunpack.c.l.b16 %v456
        %v2525 = vunpack.c.h.b16 %v456
        %v2526 = vunpack.c.l.b16 %v457
        %v2527 = vunpack.c.h.b16 %v457
        %v2528 = vunpack.c.l.b16 %v458
        %v2529 = vunpack.c.h.b16 %v458
        %v2530 = vunpack.c.l.b16 %v459
        %v2531 = vunpack.c.h.b16 %v459
        %v2532 = vunpack.c.l.b16 %v460
        %v2533 = vunpack.c.h.b16 %v460
        %v2534 = vunpack.c.l.b16 %v461
        %v2535 = vunpack.c.h.b16 %v461
        %v2536 = vunpack.c.l.b16 %v462
        %v2537 = vunpack.c.h.b16 %v462
        %v2538 = vunpack.c.l.b16 %v463
        %v2539 = vunpack.c.h.b16 %v463
        %v2540 = vunpack.c.l.b16 %v464
        %v2541 = vunpack.c.h.b16 %v464
        %v2542 = vunpack.c.l.b16 %v465
        %v2543 = vunpack.c.h.b16 %v465
        %v2544 = vunpack.c.l.b16 %v466
        %v2545 = vunpack.c.h.b16 %v466
        %v2546 = vunpack.c.l.b16 %v467
        %v2547 = vunpack.c.h.b16 %v467
        %v2548 = vunpack.c.l.b16 %v468
        %v2549 = vunpack.c.h.b16 %v468
        %v2550 = vunpack.c.l.b16 %v469
        %v2551 = vunpack.c.h.b16 %v469
        %v2552 = vunpack.c.l.b16 %v470
        %v2553 = vunpack.c.h.b16 %v470
        %v2554 = vunpack.c.l.b16 %v471
        %v2555 = vunpack.c.h.b16 %v471
        %v2556 = vunpack.c.l.b16 %v472
        %v2557 = vunpack.c.h.b16 %v472
        %v2558 = vunpack.c.l.b16 %v473
        %v2559 = vunpack.c.h.b16 %v473
        %v2560 = vunpack.c.l.b16 %v474
        %v2561 = vunpack.c.h.b16 %v474
        %v2562 = vunpack.c.l.b16 %v475
        %v2563 = vunpack.c.h.b16 %v475
        %v2564 = vunpack.c.l.b16 %v476
        %v2565 = vunpack.c.h.b16 %v476
        %v2566 = vunpack.c.l.b16 %v477
        %v2567 = vunpack.c.h.b16 %v477
        %v2568 = vunpack.c.l.b16 %v478
        %v2569 = vunpack.c.h.b16 %v478
        %v2570 = vunpack.c.l.b16 %v479
        %v2571 = vunpack.c.h.b16 %v479
        %v2572 = vunpack.c.l.b16 %v480
        %v2573 = vunpack.c.h.b16 %v480
        %v2574 = vunpack.c.l.b16 %v481
        %v2575 = vunpack.c.h.b16 %v481
        %v2576 = vunpack.c.l.b16 %v482
        %v2577 = vunpack.c.h.b16 %v482
        %v2578 = vunpack.c.l.b16 %v483
        %v2579 = vunpack.c.h.b16 %v483
        %v2580 = vunpack.c.l.b16 %v484
        %v2581 = vunpack.c.h.b16 %v484
        %v2582 = vunpack.c.l.b16 %v485
        %v2583 = vunpack.c.h.b16 %v485
        %v2584 = vunpack.c.l.b16 %v486
        %v2585 = vunpack.c.h.b16 %v486
        %v2586 = vunpack.c.l.b16 %v487
        %v2587 = vunpack.c.h.b16 %v487
        %v2588 = vunpack.c.l.b16 %v488
        %v2589 = vunpack.c.h.b16 %v488
        %v2590 = vunpack.c.l.b16 %v489
        %v2591 = vunpack.c.h.b16 %v489
        %v2592 = vunpack.c.l.b16 %v490
        %v2593 = vunpack.c.h.b16 %v490
        %v2594 = vunpack.c.l.b16 %v491
        %v2595 = vunpack.c.h.b16 %v491
        %v2596 = vunpack.c.l.b16 %v492
        %v2597 = vunpack.c.h.b16 %v492
        %v2598 = vunpack.c.l.b16 %v493
        %v2599 = vunpack.c.h.b16 %v493
        %v2600 = vunpack.c.l.b16 %v494
        %v2601 = vunpack.c.h.b16 %v494
        %v2602 = vunpack.c.l.b16 %v495
        %v2603 = vunpack.c.h.b16 %v495
        %v2604 = vunpack.c.l.b16 %v496
        %v2605 = vunpack.c.h.b16 %v496
        %v2606 = vunpack.c.l.b16 %v497
        %v2607 = vunpack.c.h.b16 %v497
        %v2608 = vunpack.c.l.b16 %v498
        %v2609 = vunpack.c.h.b16 %v498
        %v2610 = vunpack.c.l.b16 %v499
        %v2611 = vunpack.c.h.b16 %v499
        %v2612 = vunpack.c.l.b16 %v500
        %v2613 = vunpack.c.h.b16 %v500
        %v2614 = vunpack.c.l.b16 %v501
        %v2615 = vunpack.c.h.b16 %v501
        %v2616 = vunpack.c.l.b16 %v502
        %v2617 = vunpack.c.h.b16 %v502
        %v2618 = vunpack.c.l.b16 %v503
        %v2619 = vunpack.c.h.b16 %v503
        %v2620 = vunpack.c.l.b16 %v504
        %v2621 = vunpack.c.h.b16 %v504
        %v2622 = vunpack.c.l.b16 %v505
        %v2623 = vunpack.c.h.b16 %v505
        %v2624 = vunpack.c.l.b16 %v506
        %v2625 = vunpack.c.h.b16 %v506
        %v2626 = vunpack.c.l.b16 %v507
        %v2627 = vunpack.c.h.b16 %v507
        %v2628 = vunpack.c.l.b16 %v508
        %v2629 = vunpack.c.h.b16 %v508
        %v2630 = vunpack.c.l.b16 %v509
        %v2631 = vunpack.c.h.b16 %v509
        %v2632 = vunpack.c.l.b16 %v510
        %v2633 = vunpack.c.h.b16 %v510
        %v2634 = vunpack.c.l.b16 %v511
        %v2635 = vunpack.c.h.b16 %v511
        %v2636 = vunpack.c.l.b16 %v512
        %v2637 = vunpack.c.h.b16 %v512
        %v2638 = vunpack.c.l.b16 %v513
        %v2639 = vunpack.c.h.b16 %v513
        %v2640 = vunpack.c.l.b16 %v514
        %v2641 = vunpack.c.h.b16 %v514
        %v2642 = vunpack.c.l.b16 %v515
        %v2643 = vunpack.c.h.b16 %v515
        %v2644 = vunpack.c.l.b16 %v516
        %v2645 = vunpack.c.h.b16 %v516
        %v2646 = vunpack.c.l.b16 %v517
        %v2647 = vunpack.c.h.b16 %v517
        %v2648 = vunpack.c.l.b16 %v518
        %v2649 = vunpack.c.h.b16 %v518
        %v2650 = vunpack.c.l.b16 %v519
        %v2651 = vunpack.c.h.b16 %v519
        %v2652 = vunpack.c.l.b16 %v520
        %v2653 = vunpack.c.h.b16 %v520
        %v2654 = vunpack.c.l.b16 %v521
        %v2655 = vunpack.c.h.b16 %v521
        %v2656 = vunpack.c.l.b16 %v522
        %v2657 = vunpack.c.h.b16 %v522
        %v2658 = vunpack.c.l.b16 %v523
        %v2659 = vunpack.c.h.b16 %v523
        %v2660 = vunpack.c.l.b16 %v524
        %v2661 = vunpack.c.h.b16 %v524
        %v2662 = vunpack.c.l.b16 %v525
        %v2663 = vunpack.c.h.b16 %v525
        %v2664 = vunpack.c.l.b16 %v526
        %v2665 = vunpack.c.h.b16 %v526
        %v2666 = vunpack.c.l.b16 %v527
        %v2667 = vunpack.c.h.b16 %v527
        %v2668 = vunpack.c.l.b16 %v528
        %v2669 = vunpack.c.h.b16 %v528
        %v2670 = vunpack.c.l.b16 %v529
        %v2671 = vunpack.c.h.b16 %v529
        %v2672 = vunpack.c.l.b16 %v530
        %v2673 = vunpack.c.h.b16 %v530
        %v2674 = vunpack.c.l.b16 %v531
        %v2675 = vunpack.c.h.b16 %v531
        %v2676 = vunpack.c.l.b16 %v532
        %v2677 = vunpack.c.h.b16 %v532
        %v2678 = vunpack.c.l.b16 %v533
        %v2679 = vunpack.c.h.b16 %v533
        %v2680 = vunpack.c.l.b16 %v534
        %v2681 = vunpack.c.h.b16 %v534
        %v2682 = vunpack.c.l.b16 %v535
        %v2683 = vunpack.c.h.b16 %v535
        %v2684 = vunpack.c.l.b16 %v536
        %v2685 = vunpack.c.h.b16 %v536
        %v2686 = vunpack.c.l.b16 %v537
        %v2687 = vunpack.c.h.b16 %v537
        %v2688 = vunpack.c.l.b16 %v538
        %v2689 = vunpack.c.h.b16 %v538
        %v2690 = vunpack.c.l.b16 %v539
        %v2691 = vunpack.c.h.b16 %v539
        %v2692 = vunpack.c.l.b16 %v540
        %v2693 = vunpack.c.h.b16 %v540
        %v2694 = vunpack.c.l.b16 %v541
        %v2695 = vunpack.c.h.b16 %v541
        %v2696 = vunpack.c.l.b16 %v542
        %v2697 = vunpack.c.h.b16 %v542
        %v2698 = vunpack.c.l.b16 %v543
        %v2699 = vunpack.c.h.b16 %v543
        %v2700 = vunpack.c.l.b16 %v544
        %v2701 = vunpack.c.h.b16 %v544
        %v2702 = vunpack.c.l.b16 %v545
        %v2703 = vunpack.c.h.b16 %v545
        %v2704 = vunpack.c.l.b16 %v546
        %v2705 = vunpack.c.h.b16 %v546
        %v2706 = vunpack.c.l.b16 %v547
        %v2707 = vunpack.c.h.b16 %v547
        %v2708 = vunpack.c.l.b16 %v548
        %v2709 = vunpack.c.h.b16 %v548
        %v2710 = vunpack.c.l.b16 %v549
        %v2711 = vunpack.c.h.b16 %v549
        %v2712 = vunpack.c.l.b16 %v550
        %v2713 = vunpack.c.h.b16 %v550
        %v2714 = vunpack.c.l.b16 %v551
        %v2715 = vunpack.c.h.b16 %v551
        %v2716 = vunpack.c.l.b16 %v552
        %v2717 = vunpack.c.h.b16 %v552
        %v2718 = vunpack.c.l.b16 %v553
        %v2719 = vunpack.c.h.b16 %v553
        %v2720 = vunpack.c.l.b16 %v554
        %v2721 = vunpack.c.h.b16 %v554
        %v2722 = vunpack.c.l.b16 %v555
        %v2723 = vunpack.c.h.b16 %v555
        %v2724 = vunpack.c.l.b16 %v556
        %v2725 = vunpack.c.h.b16 %v556
        %v2726 = vunpack.c.l.b16 %v557
        %v2727 = vunpack.c.h.b16 %v557
        %v2728 = vunpack.c.l.b16 %v558
        %v2729 = vunpack.c.h.b16 %v558
        %v2730 = vunpack.c.l.b16 %v559
        %v2731 = vunpack.c.h.b16 %v559
        %v2732 = vunpack.c.l.b16 %v560
        %v2733 = vunpack.c.h.b16 %v560
        %v2734 = vunpack.c.l.b16 %v561
        %v2735 = vunpack.c.h.b16 %v561
        %v2736 = vunpack.c.l.b16 %v562
        %v2737 = vunpack.c.h.b16 %v562
        %v2738 = vunpack.c.l.b16 %v563
        %v2739 = vunpack.c.h.b16 %v563
        %v2740 = vunpack.c.l.b16 %v564
        %v2741 = vunpack.c.h.b16 %v564
        %v2742 = vunpack.c.l.b16 %v565
        %v2743 = vunpack.c.h.b16 %v565
        %v2744 = vunpack.c.l.b16 %v566
        %v2745 = vunpack.c.h.b16 %v566
        %v2746 = vunpack.c.l.b16 %v567
        %v2747 = vunpack.c.h.b16 %v567
        %v2748 = vunpack.c.l.b16 %v568
        %v2749 = vunpack.c.h.b16 %v568
        %v2750 = vunpack.c.l.b16 %v569
        %v2751 = vunpack.c.h.b16 %v569
        %v2752 = vunpack.c.l.b16 %v570
        %v2753 = vunpack.c.h.b16 %v570
        %v2754 = vunpack.c.l.b16 %v571
        %v2755 = vunpack.c.h.b16 %v571
        %v2756 = vunpack.c.l.b16 %v572
        %v2757 = vunpack.c.h.b16 %v572
        %v2758 = vunpack.c.l.b16 %v573
        %v2759 = vunpack.c.h.b16 %v573
        %v2760 = vunpack.c.l.b16 %v574
        %v2761 = vunpack.c.h.b16 %v574
        %v2762 = vunpack.c.l.b16 %v575
        %v2763 = vunpack.c.h.b16 %v575
        %v2764 = vunpack.c.l.b16 %v576
        %v2765 = vunpack.c.h.b16 %v576
        %v2766 = vunpack.c.l.b16 %v577
        %v2767 = vunpack.c.h.b16 %v577
        %v2768 = vunpack.c.l.b16 %v578
        %v2769 = vunpack.c.h.b16 %v578
        %v2770 = vunpack.c.l.b16 %v579
        %v2771 = vunpack.c.h.b16 %v579
        %v2772 = vunpack.c.l.b16 %v580
        %v2773 = vunpack.c.h.b16 %v580
        %v2774 = vunpack.c.l.b16 %v581
        %v2775 = vunpack.c.h.b16 %v581
        %v2776 = vunpack.c.l.b16 %v582
        %v2777 = vunpack.c.h.b16 %v582
        %v2778 = vunpack.c.l.b16 %v583
        %v2779 = vunpack.c.h.b16 %v583
        %v2780 = vunpack.c.l.b16 %v584
        %v2781 = vunpack.c.h.b16 %v584
        %v2782 = vunpack.c.l.b16 %v585
        %v2783 = vunpack.c.h.b16 %v585
        %v2784 = vunpack.c.l.b16 %v586
        %v2785 = vunpack.c.h.b16 %v586
        %v2786 = vunpack.c.l.b16 %v587
        %v2787 = vunpack.c.h.b16 %v587
        %v2788 = vunpack.c.l.b16 %v588
        %v2789 = vunpack.c.h.b16 %v588
        %v2790 = vunpack.c.l.b16 %v589
        %v2791 = vunpack.c.h.b16 %v589
        %v2792 = vunpack.c.l.b16 %v590
        %v2793 = vunpack.c.h.b16 %v590
        %v2794 = vunpack.c.l.b16 %v591
        %v2795 = vunpack.c.h.b16 %v591
        %v2796 = vunpack.c.l.b16 %v592
        %v2797 = vunpack.c.h.b16 %v592
        %v2798 = vunpack.c.l.b16 %v593
        %v2799 = vunpack.c.h.b16 %v593
        %v2800 = vunpack.c.l.b16 %v594
        %v2801 = vunpack.c.h.b16 %v594
        %v2802 = vunpack.c.l.b16 %v595
        %v2803 = vunpack.c.h.b16 %v595
        %v2804 = vunpack.c.l.b16 %v596
        %v2805 = vunpack.c.h.b16 %v596
        %v2806 = vunpack.c.l.b16 %v597
        %v2807 = vunpack.c.h.b16 %v597
        %v2808 = vunpack.c.l.b16 %v598
        %v2809 = vunpack.c.h.b16 %v598
        %v2810 = vunpack.c.l.b16 %v599
        %v2811 = vunpack.c.h.b16 %v599
        %v2812 = vunpack.c.l.b16 %v600
        %v2813 = vunpack.c.h.b16 %v600
        %v2814 = vunpack.c.l.b16 %v601
        %v2815 = vunpack.c.h.b16 %v601
        %v2816 = vunpack.c.l.b16 %v602
        %v2817 = vunpack.c.h.b16 %v602
        %v2818 = vunpack.c.l.b16 %v603
        %v2819 = vunpack.c.h.b16 %v603
        %v2820 = vunpack.c.l.b16 %v604
        %v2821 = vunpack.c.h.b16 %v604
        %v2822 = vunpack.c.l.b16 %v605
        %v2823 = vunpack.c.h.b16 %v605
        %v2824 = vunpack.c.l.b16 %v606
        %v2825 = vunpack.c.h.b16 %v606
        %v2826 = vunpack.c.l.b16 %v607
        %v2827 = vunpack.c.h.b16 %v607
        %v2828 = vunpack.c.l.b16 %v608
        %v2829 = vunpack.c.h.b16 %v608
        %v2830 = vunpack.c.l.b16 %v609
        %v2831 = vunpack.c.h.b16 %v609
        %v2832 = vunpack.c.l.b16 %v610
        %v2833 = vunpack.c.h.b16 %v610
        %v2834 = vunpack.c.l.b16 %v611
        %v2835 = vunpack.c.h.b16 %v611
        %v2836 = vunpack.c.l.b16 %v612
        %v2837 = vunpack.c.h.b16 %v612
        %v2838 = vunpack.c.l.b16 %v613
        %v2839 = vunpack.c.h.b16 %v613
        %v2840 = vunpack.c.l.b16 %v614
        %v2841 = vunpack.c.h.b16 %v614
        %v2842 = vunpack.c.l.b16 %v615
        %v2843 = vunpack.c.h.b16 %v615
        %v2844 = vunpack.c.l.b16 %v616
        %v2845 = vunpack.c.h.b16 %v616
        %v2846 = vunpack.c.l.b16 %v617
        %v2847 = vunpack.c.h.b16 %v617
        %v2848 = vunpack.c.l.b16 %v618
        %v2849 = vunpack.c.h.b16 %v618
        %v2850 = vunpack.c.l.b16 %v619
        %v2851 = vunpack.c.h.b16 %v619
        %v2852 = vunpack.c.l.b16 %v620
        %v2853 = vunpack.c.h.b16 %v620
        %v2854 = vunpack.c.l.b16 %v621
        %v2855 = vunpack.c.h.b16 %v621
        %v2856 = vunpack.c.l.b16 %v622
        %v2857 = vunpack.c.h.b16 %v622
        %v2858 = vunpack.c.l.b16 %v623
        %v2859 = vunpack.c.h.b16 %v623
        %v2860 = vunpack.c.l.b16 %v624
        %v2861 = vunpack.c.h.b16 %v624
        %v2862 = vunpack.c.l.b16 %v625
        %v2863 = vunpack.c.h.b16 %v625
        %v2864 = vunpack.c.l.b16 %v626
        %v2865 = vunpack.c.h.b16 %v626
        %v2866 = vunpack.c.l.b16 %v627
        %v2867 = vunpack.c.h.b16 %v627
        %v2868 = vunpack.c.l.b16 %v628
        %v2869 = vunpack.c.h.b16 %v628
        %v2870 = vunpack.c.l.b16 %v629
        %v2871 = vunpack.c.h.b16 %v629
        %v2872 = vunpack.c.l.b16 %v630
        %v2873 = vunpack.c.h.b16 %v630
        %v2874 = vunpack.c.l.b16 %v631
        %v2875 = vunpack.c.h.b16 %v631
        %v2876 = vunpack.c.l.b16 %v632
        %v2877 = vunpack.c.h.b16 %v632
        %v2878 = vunpack.c.l.b16 %v633
        %v2879 = vunpack.c.h.b16 %v633
        %v2880 = vunpack.c.l.b16 %v634
        %v2881 = vunpack.c.h.b16 %v634
        %v2882 = vunpack.c.l.b16 %v635
        %v2883 = vunpack.c.h.b16 %v635
        %v2884 = vunpack.c.l.b16 %v636
        %v2885 = vunpack.c.h.b16 %v636
        %v2886 = vunpack.c.l.b16 %v637
        %v2887 = vunpack.c.h.b16 %v637
        %v2888 = vunpack.c.l.b16 %v638
        %v2889 = vunpack.c.h.b16 %v638
        %v2890 = vunpack.c.l.b16 %v639
        %v2891 = vunpack.c.h.b16 %v639
        %v2892 = vunpack.c.l.b16 %v640
        %v2893 = vunpack.c.h.b16 %v640
        %v2894 = vunpack.c.l.b16 %v641
        %v2895 = vunpack.c.h.b16 %v641
        %v2896 = vunpack.c.l.b16 %v642
        %v2897 = vunpack.c.h.b16 %v642
        %v2898 = vunpack.c.l.b16 %v643
        %v2899 = vunpack.c.h.b16 %v643
        %v2900 = vunpack.c.l.b16 %v644
        %v2901 = vunpack.c.h.b16 %v644
        %v2902 = vunpack.c.l.b16 %v645
        %v2903 = vunpack.c.h.b16 %v645
        %v2904 = vunpack.c.l.b16 %v646
        %v2905 = vunpack.c.h.b16 %v646
        %v2906 = vunpack.c.l.b16 %v647
        %v2907 = vunpack.c.h.b16 %v647
        %v2908 = vunpack.c.l.b16 %v648
        %v2909 = vunpack.c.h.b16 %v648
        %v2910 = vunpack.c.l.b16 %v649
        %v2911 = vunpack.c.h.b16 %v649
        %v2912 = vunpack.c.l.b16 %v650
        %v2913 = vunpack.c.h.b16 %v650
        %v2914 = vunpack.c.l.b16 %v651
        %v2915 = vunpack.c.h.b16 %v651
        %v2916 = vunpack.c.l.b16 %v652
        %v2917 = vunpack.c.h.b16 %v652
        %v2918 = vunpack.c.l.b16 %v653
        %v2919 = vunpack.c.h.b16 %v653
        %v2920 = vunpack.c.l.b16 %v654
        %v2921 = vunpack.c.h.b16 %v654
        %v2922 = vunpack.c.l.b16 %v655
        %v2923 = vunpack.c.h.b16 %v655
        %v2924 = vunpack.c.l.b16 %v656
        %v2925 = vunpack.c.h.b16 %v656
        %v2926 = vunpack.c.l.b16 %v657
        %v2927 = vunpack.c.h.b16 %v657
        %v2928 = vunpack.c.l.b16 %v658
        %v2929 = vunpack.c.h.b16 %v658
        %v2930 = vunpack.c.l.b16 %v659
        %v2931 = vunpack.c.h.b16 %v659
        %v2932 = vunpack.c.l.b16 %v660
        %v2933 = vunpack.c.h.b16 %v660
        %v2934 = vunpack.c.l.b16 %v661
        %v2935 = vunpack.c.h.b16 %v661
        %v2936 = vunpack.c.l.b16 %v662
        %v2937 = vunpack.c.h.b16 %v662
        %v2938 = vunpack.c.l.b16 %v663
        %v2939 = vunpack.c.h.b16 %v663
        %v2940 = vunpack.c.l.b16 %v664
        %v2941 = vunpack.c.h.b16 %v664
        %v2942 = vunpack.c.l.b16 %v665
        %v2943 = vunpack.c.h.b16 %v665
        %v2944 = vunpack.c.l.b16 %v666
        %v2945 = vunpack.c.h.b16 %v666
        %v2946 = vunpack.c.l.b16 %v667
        %v2947 = vunpack.c.h.b16 %v667
        %v2948 = vunpack.c.l.b16 %v668
        %v2949 = vunpack.c.h.b16 %v668
        %v2950 = vunpack.c.l.b16 %v669
        %v2951 = vunpack.c.h.b16 %v669
        %v2952 = vunpack.c.l.b16 %v670
        %v2953 = vunpack.c.h.b16 %v670
        %v2954 = vunpack.c.l.b16 %v671
        %v2955 = vunpack.c.h.b16 %v671
        %v2956 = vunpack.c.l.b16 %v672
        %v2957 = vunpack.c.h.b16 %v672
        %v2958 = vunpack.c.l.b16 %v673
        %v2959 = vunpack.c.h.b16 %v673
        %v2960 = vunpack.c.l.b16 %v674
        %v2961 = vunpack.c.h.b16 %v674
        %v2962 = vunpack.c.l.b16 %v675
        %v2963 = vunpack.c.h.b16 %v675
        %v2964 = vunpack.c.l.b16 %v676
        %v2965 = vunpack.c.h.b16 %v676
        %v2966 = vunpack.c.l.b16 %v677
        %v2967 = vunpack.c.h.b16 %v677
        %v2968 = vunpack.c.l.b16 %v678
        %v2969 = vunpack.c.h.b16 %v678
        %v2970 = vunpack.c.l.b16 %v679
        %v2971 = vunpack.c.h.b16 %v679
        %v2972 = vunpack.c.l.b16 %v680
        %v2973 = vunpack.c.h.b16 %v680
        %v2974 = vunpack.c.l.b16 %v681
        %v2975 = vunpack.c.h.b16 %v681
        %v2976 = vunpack.c.l.b16 %v682
        %v2977 = vunpack.c.h.b16 %v682
        %v2978 = vunpack.c.l.b16 %v683
        %v2979 = vunpack.c.h.b16 %v683
        %v2980 = vunpack.c.l.b16 %v684
        %v2981 = vunpack.c.h.b16 %v684
        %v2982 = vunpack.c.l.b16 %v685
        %v2983 = vunpack.c.h.b16 %v685
        %v2984 = vunpack.c.l.b16 %v686
        %v2985 = vunpack.c.h.b16 %v686
        %v2986 = vunpack.c.l.b16 %v687
        %v2987 = vunpack.c.h.b16 %v687
        %v2988 = vunpack.c.l.b16 %v688
        %v2989 = vunpack.c.h.b16 %v688
        %v2990 = vunpack.c.l.b16 %v689
        %v2991 = vunpack.c.h.b16 %v689
        %v2992 = vunpack.c.l.b16 %v690
        %v2993 = vunpack.c.h.b16 %v690
        %v2994 = vunpack.c.l.b16 %v691
        %v2995 = vunpack.c.h.b16 %v691
        %v2996 = vunpack.c.l.b16 %v692
        %v2997 = vunpack.c.h.b16 %v692
        %v2998 = vunpack.c.l.b16 %v693
        %v2999 = vunpack.c.h.b16 %v693
        %v3000 = vunpack.c.l.b16 %v694
        %v3001 = vunpack.c.h.b16 %v694
        %v3002 = vunpack.c.l.b16 %v695
        %v3003 = vunpack.c.h.b16 %v695
        %v3004 = vunpack.c.l.b16 %v696
        %v3005 = vunpack.c.h.b16 %v696
        %v3006 = vunpack.c.l.b16 %v697
        %v3007 = vunpack.c.h.b16 %v697
        %v3008 = vunpack.c.l.b16 %v698
        %v3009 = vunpack.c.h.b16 %v698
        %v3010 = vunpack.c.l.b16 %v699
        %v3011 = vunpack.c.h.b16 %v699
        %v3012 = vunpack.c.l.b16 %v700
        %v3013 = vunpack.c.h.b16 %v700
        %v3014 = vunpack.c.l.b16 %v701
        %v3015 = vunpack.c.h.b16 %v701
        %v3016 = vunpack.c.l.b16 %v702
        %v3017 = vunpack.c.h.b16 %v702
        %v3018 = vunpack.c.l.b16 %v703
        %v3019 = vunpack.c.h.b16 %v703
        %v3020 = vunpack.c.l.b16 %v704
        %v3021 = vunpack.c.h.b16 %v704
        %v3022 = vunpack.c.l.b16 %v705
        %v3023 = vunpack.c.h.b16 %v705
        %v3024 = vunpack.c.l.b16 %v706
        %v3025 = vunpack.c.h.b16 %v706
        %v3026 = vunpack.c.l.b16 %v707
        %v3027 = vunpack.c.h.b16 %v707
        %v3028 = vunpack.c.l.b16 %v708
        %v3029 = vunpack.c.h.b16 %v708
        %v3030 = vunpack.c.l.b16 %v709
        %v3031 = vunpack.c.h.b16 %v709
        %v3032 = vunpack.c.l.b16 %v710
        %v3033 = vunpack.c.h.b16 %v710
        %v3034 = vunpack.c.l.b16 %v711
        %v3035 = vunpack.c.h.b16 %v711
        %v3036 = vunpack.c.l.b16 %v712
        %v3037 = vunpack.c.h.b16 %v712
        %v3038 = vunpack.c.l.b16 %v713
        %v3039 = vunpack.c.h.b16 %v713
        %v3040 = vunpack.c.l.b16 %v714
        %v3041 = vunpack.c.h.b16 %v714
        %v3042 = vunpack.c.l.b16 %v715
        %v3043 = vunpack.c.h.b16 %v715
        %v3044 = vunpack.c.l.b16 %v716
        %v3045 = vunpack.c.h.b16 %v716
        %v3046 = vunpack.c.l.b16 %v717
        %v3047 = vunpack.c.h.b16 %v717
        %v3048 = vunpack.c.l.b16 %v718
        %v3049 = vunpack.c.h.b16 %v718
        %v3050 = vunpack.c.l.b16 %v719
        %v3051 = vunpack.c.h.b16 %v719
        %v3052 = vunpack.c.l.b16 %v720
        %v3053 = vunpack.c.h.b16 %v720
        %v3054 = vunpack.c.l.b16 %v721
        %v3055 = vunpack.c.h.b16 %v721
        %v3056 = vunpack.c.l.b16 %v722
        %v3057 = vunpack.c.h.b16 %v722
        %v3058 = vunpack.c.l.b16 %v723
        %v3059 = vunpack.c.h.b16 %v723
        %v3060 = vunpack.c.l.b16 %v724
        %v3061 = vunpack.c.h.b16 %v724
        %v3062 = vunpack.c.l.b16 %v725
        %v3063 = vunpack.c.h.b16 %v725
        %v3064 = vunpack.c.l.b16 %v726
        %v3065 = vunpack.c.h.b16 %v726
        %v3066 = vunpack.c.l.b16 %v727
        %v3067 = vunpack.c.h.b16 %v727
        %v3068 = vunpack.c.l.b16 %v728
        %v3069 = vunpack.c.h.b16 %v728
        %v3070 = vunpack.c.l.b16 %v729
        %v3071 = vunpack.c.h.b16 %v729
        %v3072 = vunpack.c.l.b16 %v730
        %v3073 = vunpack.c.h.b16 %v730
        %v3074 = vunpack.c.l.b16 %v731
        %v3075 = vunpack.c.h.b16 %v731
        %v3076 = vunpack.c.l.b16 %v732
        %v3077 = vunpack.c.h.b16 %v732
        %v3078 = vunpack.c.l.b16 %v733
        %v3079 = vunpack.c.h.b16 %v733
        %v3080 = vunpack.c.l.b16 %v734
        %v3081 = vunpack.c.h.b16 %v734
        %v3082 = vunpack.c.l.b16 %v735
        %v3083 = vunpack.c.h.b16 %v735
        %v3084 = vunpack.c.l.b16 %v736
        %v3085 = vunpack.c.h.b16 %v736
        %v3086 = vunpack.c.l.b16 %v737
        %v3087 = vunpack.c.h.b16 %v737
        %v3088 = vunpack.c.l.b16 %v738
        %v3089 = vunpack.c.h.b16 %v738
        %v3090 = vunpack.c.l.b16 %v739
        %v3091 = vunpack.c.h.b16 %v739
        %v3092 = vunpack.c.l.b16 %v740
        %v3093 = vunpack.c.h.b16 %v740
        %v3094 = vunpack.c.l.b16 %v741
        %v3095 = vunpack.c.h.b16 %v741
        %v3096 = vunpack.c.l.b16 %v742
        %v3097 = vunpack.c.h.b16 %v742
        %v3098 = vunpack.c.l.b16 %v743
        %v3099 = vunpack.c.h.b16 %v743
        %v3100 = vunpack.c.l.b16 %v744
        %v3101 = vunpack.c.h.b16 %v744
        %v3102 = vunpack.c.l.b16 %v745
        %v3103 = vunpack.c.h.b16 %v745
        %v3104 = vunpack.c.l.b16 %v746
        %v3105 = vunpack.c.h.b16 %v746
        %v3106 = vunpack.c.l.b16 %v747
        %v3107 = vunpack.c.h.b16 %v747
        %v3108 = vunpack.c.l.b16 %v748
        %v3109 = vunpack.c.h.b16 %v748
        %v3110 = vunpack.c.l.b16 %v749
        %v3111 = vunpack.c.h.b16 %v749
        %v3112 = vunpack.c.l.b16 %v750
        %v3113 = vunpack.c.h.b16 %v750
        %v3114 = vunpack.c.l.b16 %v751
        %v3115 = vunpack.c.h.b16 %v751
        %v3116 = vunpack.c.l.b16 %v752
        %v3117 = vunpack.c.h.b16 %v752
        %v3118 = vunpack.c.l.b16 %v753
        %v3119 = vunpack.c.h.b16 %v753
        %v3120 = vunpack.c.l.b16 %v754
        %v3121 = vunpack.c.h.b16 %v754
        %v3122 = vunpack.c.l.b16 %v755
        %v3123 = vunpack.c.h.b16 %v755
        %v3124 = vunpack.c.l.b16 %v756
        %v3125 = vunpack.c.h.b16 %v756
        %v3126 = vunpack.c.l.b16 %v757
        %v3127 = vunpack.c.h.b16 %v757
        %v3128 = vunpack.c.l.b16 %v758
        %v3129 = vunpack.c.h.b16 %v758
        %v3130 = vunpack.c.l.b16 %v759
        %v3131 = vunpack.c.h.b16 %v759
        %v3132 = vunpack.c.l.b16 %v760
        %v3133 = vunpack.c.h.b16 %v760
        %v3134 = vunpack.c.l.b16 %v761
        %v3135 = vunpack.c.h.b16 %v761
        %v3136 = vunpack.c.l.b16 %v762
        %v3137 = vunpack.c.h.b16 %v762
        %v3138 = vunpack.c.l.b16 %v763
        %v3139 = vunpack.c.h.b16 %v763
        %v3140 = vunpack.c.l.b16 %v764
        %v3141 = vunpack.c.h.b16 %v764
        %v3142 = vunpack.c.l.b16 %v765
        %v3143 = vunpack.c.h.b16 %v765
        %v3144 = vunpack.c.l.b16 %v766
        %v3145 = vunpack.c.h.b16 %v766
        %v3146 = vunpack.c.l.b16 %v767
        %v3147 = vunpack.c.h.b16 %v767
        %v3148 = vunpack.c.l.b16 %v768
        %v3149 = vunpack.c.h.b16 %v768
        %v3150 = vunpack.c.l.b16 %v769
        %v3151 = vunpack.c.h.b16 %v769
        %v3152 = vunpack.c.l.b16 %v770
        %v3153 = vunpack.c.h.b16 %v770
        %v3154 = vunpack.c.l.b16 %v771
        %v3155 = vunpack.c.h.b16 %v771
        %v3156 = vunpack.c.l.b16 %v772
        %v3157 = vunpack.c.h.b16 %v772
        %v3158 = vunpack.c.l.b16 %v773
        %v3159 = vunpack.c.h.b16 %v773
        %v3160 = vunpack.c.l.b16 %v774
        %v3161 = vunpack.c.h.b16 %v774
        %v3162 = vunpack.c.l.b16 %v775
        %v3163 = vunpack.c.h.b16 %v775
        %v3164 = vunpack.c.l.b16 %v776
        %v3165 = vunpack.c.h.b16 %v776
        %v3166 = vunpack.c.l.b16 %v777
        %v3167 = vunpack.c.h.b16 %v777
        %v3168 = vunpack.c.l.b16 %v778
        %v3169 = vunpack.c.h.b16 %v778
        %v3170 = vunpack.c.l.b16 %v779
        %v3171 = vunpack.c.h.b16 %v779
        %v3172 = vunpack.c.l.b16 %v780
        %v3173 = vunpack.c.h.b16 %v780
        %v3174 = vunpack.c.l.b16 %v781
        %v3175 = vunpack.c.h.b16 %v781
        %v3176 = vunpack.c.l.b16 %v782
        %v3177 = vunpack.c.h.b16 %v782
        %v3178 = vunpack.c.l.b16 %v783
        %v3179 = vunpack.c.h.b16 %v783
        %v3180 = vunpack.c.l.b16 %v784
        %v3181 = vunpack.c.h.b16 %v784
        %v3182 = vunpack.c.l.b16 %v785
        %v3183 = vunpack.c.h.b16 %v785
        %v3184 = vunpack.c.l.b16 %v786
        %v3185 = vunpack.c.h.b16 %v786
        %v3186 = vunpack.c.l.b16 %v787
        %v3187 = vunpack.c.h.b16 %v787
        %v3188 = vunpack.c.l.b16 %v788
        %v3189 = vunpack.c.h.b16 %v788
        %v3190 = vunpack.c.l.b16 %v789
        %v3191 = vunpack.c.h.b16 %v789
        %v3192 = vunpack.c.l.b16 %v790
        %v3193 = vunpack.c.h.b16 %v790
        %v3194 = vunpack.c.l.b16 %v791
        %v3195 = vunpack.c.h.b16 %v791
        %v3196 = vunpack.c.l.b16 %v792
        %v3197 = vunpack.c.h.b16 %v792
        %v3198 = vunpack.c.l.b16 %v793
        %v3199 = vunpack.c.h.b16 %v793
        %v3200 = vunpack.c.l.b16 %v794
        %v3201 = vunpack.c.h.b16 %v794
        %v3202 = vunpack.c.l.b16 %v795
        %v3203 = vunpack.c.h.b16 %v795
        %v3204 = vunpack.c.l.b16 %v796
        %v3205 = vunpack.c.h.b16 %v796
        %v3206 = vunpack.c.l.b16 %v797
        %v3207 = vunpack.c.h.b16 %v797
        %v3208 = vunpack.c.l.b16 %v798
        %v3209 = vunpack.c.h.b16 %v798
        %v3210 = vunpack.c.l.b16 %v799
        %v3211 = vunpack.c.h.b16 %v799
        %v3212 = vunpack.c.l.b16 %v800
        %v3213 = vunpack.c.h.b16 %v800
        %v3214 = vunpack.c.l.b16 %v801
        %v3215 = vunpack.c.h.b16 %v801
        %v3216 = vunpack.c.l.b16 %v802
        %v3217 = vunpack.c.h.b16 %v802
        %v3218 = vunpack.c.l.b16 %v803
        %v3219 = vunpack.c.h.b16 %v803
        %v3220 = vunpack.c.l.b16 %v804
        %v3221 = vunpack.c.h.b16 %v804
        %v3222 = vunpack.c.l.b16 %v805
        %v3223 = vunpack.c.h.b16 %v805
        %v3224 = vunpack.c.l.b16 %v806
        %v3225 = vunpack.c.h.b16 %v806
        %v3226 = vunpack.c.l.b16 %v807
        %v3227 = vunpack.c.h.b16 %v807
        %v3228 = vunpack.c.l.b16 %v808
        %v3229 = vunpack.c.h.b16 %v808
        %v3230 = vunpack.c.l.b16 %v809
        %v3231 = vunpack.c.h.b16 %v809
        %v3232 = vunpack.c.l.b16 %v810
        %v3233 = vunpack.c.h.b16 %v810
        %v3234 = vunpack.c.l.b16 %v811
        %v3235 = vunpack.c.h.b16 %v811
        %v3236 = vunpack.c.l.b16 %v812
        %v3237 = vunpack.c.h.b16 %v812
        %v3238 = vunpack.c.l.b16 %v813
        %v3239 = vunpack.c.h.b16 %v813
        %v3240 = vunpack.c.l.b16 %v814
        %v3241 = vunpack.c.h.b16 %v814
        %v3242 = vunpack.c.l.b16 %v815
        %v3243 = vunpack.c.h.b16 %v815
        %v3244 = vunpack.c.l.b16 %v816
        %v3245 = vunpack.c.h.b16 %v816
        %v3246 = vunpack.c.l.b16 %v817
        %v3247 = vunpack.c.h.b16 %v817
        %v3248 = vunpack.c.l.b16 %v818
        %v3249 = vunpack.c.h.b16 %v818
        %v3250 = vunpack.c.l.b16 %v819
        %v3251 = vunpack.c.h.b16 %v819
        %v3252 = vunpack.c.l.b16 %v820
        %v3253 = vunpack.c.h.b16 %v820
        %v3254 = vunpack.c.l.b16 %v821
        %v3255 = vunpack.c.h.b16 %v821
        %v3256 = vunpack.c.l.b16 %v822
        %v3257 = vunpack.c.h.b16 %v822
        %v3258 = vunpack.c.l.b16 %v823
        %v3259 = vunpack.c.h.b16 %v823
        %v3260 = vunpack.c.l.b16 %v824
        %v3261 = vunpack.c.h.b16 %v824
        %v3262 = vunpack.c.l.b16 %v825
        %v3263 = vunpack.c.h.b16 %v825
        %v3264 = vunpack.c.l.b16 %v826
        %v3265 = vunpack.c.h.b16 %v826
        %v3266 = vunpack.c.l.b16 %v827
        %v3267 = vunpack.c.h.b16 %v827
        %v3268 = vunpack.c.l.b16 %v828
        %v3269 = vunpack.c.h.b16 %v828
        %v3270 = vunpack.c.l.b16 %v829
        %v3271 = vunpack.c.h.b16 %v829
        %v3272 = vunpack.c.l.b16 %v830
        %v3273 = vunpack.c.h.b16 %v830
        %v3274 = vunpack.c.l.b16 %v831
        %v3275 = vunpack.c.h.b16 %v831
        %v3276 = vunpack.c.l.b16 %v832
        %v3277 = vunpack.c.h.b16 %v832
        %v3278 = vunpack.c.l.b16 %v833
        %v3279 = vunpack.c.h.b16 %v833
        %v3280 = vunpack.c.l.b16 %v834
        %v3281 = vunpack.c.h.b16 %v834
        %v3282 = vunpack.c.l.b16 %v835
        %v3283 = vunpack.c.h.b16 %v835
        %v3284 = vunpack.c.l.b16 %v836
        %v3285 = vunpack.c.h.b16 %v836
        %v3286 = vunpack.c.l.b16 %v837
        %v3287 = vunpack.c.h.b16 %v837
        %v3288 = vunpack.c.l.b16 %v838
        %v3289 = vunpack.c.h.b16 %v838
        %v3290 = vunpack.c.l.b16 %v839
        %v3291 = vunpack.c.h.b16 %v839
        %v3292 = vunpack.c.l.b16 %v840
        %v3293 = vunpack.c.h.b16 %v840
        %v3294 = vunpack.c.l.b16 %v841
        %v3295 = vunpack.c.h.b16 %v841
        %v3296 = vunpack.c.l.b16 %v842
        %v3297 = vunpack.c.h.b16 %v842
        %v3298 = vunpack.c.l.b16 %v843
        %v3299 = vunpack.c.h.b16 %v843
        %v3300 = vunpack.c.l.b16 %v844
        %v3301 = vunpack.c.h.b16 %v844
        %v3302 = vunpack.c.l.b16 %v845
        %v3303 = vunpack.c.h.b16 %v845
        %v3304 = vunpack.c.l.b16 %v846
        %v3305 = vunpack.c.h.b16 %v846
        %v3306 = vunpack.c.l.b16 %v847
        %v3307 = vunpack.c.h.b16 %v847
        %v3308 = vunpack.c.l.b16 %v848
        %v3309 = vunpack.c.h.b16 %v848
        %v3310 = vunpack.c.l.b16 %v849
        %v3311 = vunpack.c.h.b16 %v849
        %v3312 = vunpack.c.l.b16 %v850
        %v3313 = vunpack.c.h.b16 %v850
        %v3314 = vunpack.c.l.b16 %v851
        %v3315 = vunpack.c.h.b16 %v851
        %v3316 = vunpack.c.l.b16 %v852
        %v3317 = vunpack.c.h.b16 %v852
        %v3318 = vunpack.c.l.b16 %v853
        %v3319 = vunpack.c.h.b16 %v853
        %v3320 = vunpack.c.l.b16 %v854
        %v3321 = vunpack.c.h.b16 %v854
        %v3322 = vunpack.c.l.b16 %v855
        %v3323 = vunpack.c.h.b16 %v855
        %v3324 = vunpack.c.l.b16 %v856
        %v3325 = vunpack.c.h.b16 %v856
        %v3326 = vunpack.c.l.b16 %v857
        %v3327 = vunpack.c.h.b16 %v857
        %v3328 = vunpack.c.l.b16 %v858
        %v3329 = vunpack.c.h.b16 %v858
        %v3330 = vunpack.c.l.b16 %v859
        %v3331 = vunpack.c.h.b16 %v859
        %v3332 = vunpack.c.l.b16 %v860
        %v3333 = vunpack.c.h.b16 %v860
        %v3334 = vunpack.c.l.b16 %v861
        %v3335 = vunpack.c.h.b16 %v861
        %v3336 = vunpack.c.l.b16 %v862
        %v3337 = vunpack.c.h.b16 %v862
        %v3338 = vunpack.c.l.b16 %v863
        %v3339 = vunpack.c.h.b16 %v863
        %v3340 = vunpack.c.l.b16 %v864
        %v3341 = vunpack.c.h.b16 %v864
        %v3342 = vunpack.c.l.b16 %v865
        %v3343 = vunpack.c.h.b16 %v865
        %v3344 = vunpack.c.l.b16 %v866
        %v3345 = vunpack.c.h.b16 %v866
        %v3346 = vunpack.c.l.b16 %v867
        %v3347 = vunpack.c.h.b16 %v867
        %v3348 = vunpack.c.l.b16 %v868
        %v3349 = vunpack.c.h.b16 %v868
        %v3350 = vunpack.c.l.b16 %v869
        %v3351 = vunpack.c.h.b16 %v869
        %v3352 = vunpack.c.l.b16 %v870
        %v3353 = vunpack.c.h.b16 %v870
        %v3354 = vunpack.c.l.b16 %v871
        %v3355 = vunpack.c.h.b16 %v871
        %v3356 = vunpack.c.l.b16 %v872
        %v3357 = vunpack.c.h.b16 %v872
        %v3358 = vunpack.c.l.b16 %v873
        %v3359 = vunpack.c.h.b16 %v873
        %v3360 = vunpack.c.l.b16 %v874
        %v3361 = vunpack.c.h.b16 %v874
        %v3362 = vunpack.c.l.b16 %v875
        %v3363 = vunpack.c.h.b16 %v875
        %v3364 = vunpack.c.l.b16 %v876
        %v3365 = vunpack.c.h.b16 %v876
        %v3366 = vunpack.c.l.b16 %v877
        %v3367 = vunpack.c.h.b16 %v877
        %v3368 = vunpack.c.l.b16 %v878
        %v3369 = vunpack.c.h.b16 %v878
        %v3370 = vunpack.c.l.b16 %v879
        %v3371 = vunpack.c.h.b16 %v879
        %v3372 = vunpack.c.l.b16 %v880
        %v3373 = vunpack.c.h.b16 %v880
        %v3374 = vunpack.c.l.b16 %v881
        %v3375 = vunpack.c.h.b16 %v881
        %v3376 = vunpack.c.l.b16 %v882
        %v3377 = vunpack.c.h.b16 %v882
        %v3378 = vunpack.c.l.b16 %v883
        %v3379 = vunpack.c.h.b16 %v883
        %v3380 = vunpack.c.l.b16 %v884
        %v3381 = vunpack.c.h.b16 %v884
        %v3382 = vunpack.c.l.b16 %v885
        %v3383 = vunpack.c.h.b16 %v885
        %v3384 = vunpack.c.l.b16 %v886
        %v3385 = vunpack.c.h.b16 %v886
        %v3386 = vunpack.c.l.b16 %v887
        %v3387 = vunpack.c.h.b16 %v887
        %v3388 = vunpack.c.l.b16 %v888
        %v3389 = vunpack.c.h.b16 %v888
        %v3390 = vunpack.c.l.b16 %v889
        %v3391 = vunpack.c.h.b16 %v889
        %v3392 = vunpack.c.l.b16 %v890
        %v3393 = vunpack.c.h.b16 %v890
        %v3394 = vunpack.c.l.b16 %v891
        %v3395 = vunpack.c.h.b16 %v891
        %v3396 = vunpack.c.l.b16 %v892
        %v3397 = vunpack.c.h.b16 %v892
        %v3398 = vunpack.c.l.b16 %v893
        %v3399 = vunpack.c.h.b16 %v893
        %v3400 = vunpack.c.l.b16 %v894
        %v3401 = vunpack.c.h.b16 %v894
        %v3402 = vunpack.c.l.b16 %v895
        %v3403 = vunpack.c.h.b16 %v895
        %v3404 = vunpack.c.l.b16 %v896
        %v3405 = vunpack.c.h.b16 %v896
        %v3406 = vunpack.c.l.b16 %v897
        %v3407 = vunpack.c.h.b16 %v897
        %v3408 = vunpack.c.l.b16 %v898
        %v3409 = vunpack.c.h.b16 %v898
        %v3410 = vunpack.c.l.b16 %v899
        %v3411 = vunpack.c.h.b16 %v899
        %v3412 = vunpack.c.l.b16 %v900
        %v3413 = vunpack.c.h.b16 %v900
        %v3414 = vunpack.c.l.b16 %v901
        %v3415 = vunpack.c.h.b16 %v901
        %v3416 = vunpack.c.l.b16 %v902
        %v3417 = vunpack.c.h.b16 %v902
        %v3418 = vunpack.c.l.b16 %v903
        %v3419 = vunpack.c.h.b16 %v903
        %v3420 = vunpack.c.l.b16 %v904
        %v3421 = vunpack.c.h.b16 %v904
        %v3422 = vunpack.c.l.b16 %v905
        %v3423 = vunpack.c.h.b16 %v905
        %v3424 = vunpack.c.l.b16 %v906
        %v3425 = vunpack.c.h.b16 %v906
        %v3426 = vunpack.c.l.b16 %v907
        %v3427 = vunpack.c.h.b16 %v907
        %v3428 = vunpack.c.l.b16 %v908
        %v3429 = vunpack.c.h.b16 %v908
        %v3430 = vunpack.c.l.b16 %v909
        %v3431 = vunpack.c.h.b16 %v909
        %v3432 = vunpack.c.l.b16 %v910
        %v3433 = vunpack.c.h.b16 %v910
        %v3434 = vunpack.c.l.b16 %v911
        %v3435 = vunpack.c.h.b16 %v911
        %v3436 = vunpack.c.l.b16 %v912
        %v3437 = vunpack.c.h.b16 %v912
        %v3438 = vunpack.c.l.b16 %v913
        %v3439 = vunpack.c.h.b16 %v913
        %v3440 = vunpack.c.l.b16 %v914
        %v3441 = vunpack.c.h.b16 %v914
        %v3442 = vunpack.c.l.b16 %v915
        %v3443 = vunpack.c.h.b16 %v915
        %v3444 = vunpack.c.l.b16 %v916
        %v3445 = vunpack.c.h.b16 %v916
        %v3446 = vunpack.c.l.b16 %v917
        %v3447 = vunpack.c.h.b16 %v917
        %v3448 = vunpack.c.l.b16 %v918
        %v3449 = vunpack.c.h.b16 %v918
        %v3450 = vunpack.c.l.b16 %v919
        %v3451 = vunpack.c.h.b16 %v919
        %v3452 = vunpack.c.l.b16 %v920
        %v3453 = vunpack.c.h.b16 %v920
        %v3454 = vunpack.c.l.b16 %v921
        %v3455 = vunpack.c.h.b16 %v921
        %v3456 = vunpack.c.l.b16 %v922
        %v3457 = vunpack.c.h.b16 %v922
        %v3458 = vunpack.c.l.b16 %v923
        %v3459 = vunpack.c.h.b16 %v923
        %v3460 = vunpack.c.l.b16 %v924
        %v3461 = vunpack.c.h.b16 %v924
        %v3462 = vunpack.c.l.b16 %v925
        %v3463 = vunpack.c.h.b16 %v925
        %v3464 = vunpack.c.l.b16 %v926
        %v3465 = vunpack.c.h.b16 %v926
        %v3466 = vunpack.c.l.b16 %v927
        %v3467 = vunpack.c.h.b16 %v927
        %v3468 = vunpack.c.l.b16 %v928
        %v3469 = vunpack.c.h.b16 %v928
        %v3470 = vunpack.c.l.b16 %v929
        %v3471 = vunpack.c.h.b16 %v929
        %v3472 = vunpack.c.l.b16 %v930
        %v3473 = vunpack.c.h.b16 %v930
        %v3474 = vunpack.c.l.b16 %v931
        %v3475 = vunpack.c.h.b16 %v931
        %v3476 = vunpack.c.l.b16 %v932
        %v3477 = vunpack.c.h.b16 %v932
        %v3478 = vunpack.c.l.b16 %v933
        %v3479 = vunpack.c.h.b16 %v933
        %v3480 = vunpack.c.l.b16 %v934
        %v3481 = vunpack.c.h.b16 %v934
        %v3482 = vunpack.c.l.b16 %v935
        %v3483 = vunpack.c.h.b16 %v935
        %v3484 = vunpack.c.l.b16 %v936
        %v3485 = vunpack.c.h.b16 %v936
        %v3486 = vunpack.c.l.b16 %v937
        %v3487 = vunpack.c.h.b16 %v937
        %v3488 = vunpack.c.l.b16 %v938
        %v3489 = vunpack.c.h.b16 %v938
        %v3490 = vunpack.c.l.b16 %v939
        %v3491 = vunpack.c.h.b16 %v939
        %v3492 = vunpack.c.l.b16 %v940
        %v3493 = vunpack.c.h.b16 %v940
        %v3494 = vunpack.c.l.b16 %v941
        %v3495 = vunpack.c.h.b16 %v941
        %v3496 = vunpack.c.l.b16 %v942
        %v3497 = vunpack.c.h.b16 %v942
        %v3498 = vunpack.c.l.b16 %v943
        %v3499 = vunpack.c.h.b16 %v943
        %v3500 = vunpack.c.l.b16 %v944
        %v3501 = vunpack.c.h.b16 %v944
        %v3502 = vunpack.c.l.b16 %v945
        %v3503 = vunpack.c.h.b16 %v945
        %v3504 = vunpack.c.l.b16 %v946
        %v3505 = vunpack.c.h.b16 %v946
        %v3506 = vunpack.c.l.b16 %v947
        %v3507 = vunpack.c.h.b16 %v947
        %v3508 = vunpack.c.l.b16 %v948
        %v3509 = vunpack.c.h.b16 %v948
        %v3510 = vunpack.c.l.b16 %v949
        %v3511 = vunpack.c.h.b16 %v949
        %v3512 = vunpack.c.l.b16 %v950
        %v3513 = vunpack.c.h.b16 %v950
        %v3514 = vunpack.c.l.b16 %v951
        %v3515 = vunpack.c.h.b16 %v951
        %v3516 = vunpack.c.l.b16 %v952
        %v3517 = vunpack.c.h.b16 %v952
        %v3518 = vunpack.c.l.b16 %v953
        %v3519 = vunpack.c.h.b16 %v953
        %v3520 = vunpack.c.l.b16 %v954
        %v3521 = vunpack.c.h.b16 %v954
        %v3522 = vunpack.c.l.b16 %v955
        %v3523 = vunpack.c.h.b16 %v955
        %v3524 = vunpack.c.l.b16 %v956
        %v3525 = vunpack.c.h.b16 %v956
        %v3526 = vunpack.c.l.b16 %v957
        %v3527 = vunpack.c.h.b16 %v957
        %v3528 = vunpack.c.l.b16 %v958
        %v3529 = vunpack.c.h.b16 %v958
        %v3530 = vunpack.c.l.b16 %v959
        %v3531 = vunpack.c.h.b16 %v959
        %v3532 = vunpack.c.l.b16 %v960
        %v3533 = vunpack.c.h.b16 %v960
        %v3534 = vunpack.c.l.b16 %v961
        %v3535 = vunpack.c.h.b16 %v961
        %v3536 = vunpack.c.l.b16 %v962
        %v3537 = vunpack.c.h.b16 %v962
        %v3538 = vunpack.c.l.b16 %v963
        %v3539 = vunpack.c.h.b16 %v963
        %v3540 = vunpack.c.l.b16 %v964
        %v3541 = vunpack.c.h.b16 %v964
        %v3542 = vunpack.c.l.b16 %v965
        %v3543 = vunpack.c.h.b16 %v965
        %v3544 = vunpack.c.l.b16 %v966
        %v3545 = vunpack.c.h.b16 %v966
        %v3546 = vunpack.c.l.b16 %v967
        %v3547 = vunpack.c.h.b16 %v967
        %v3548 = vunpack.c.l.b16 %v968
        %v3549 = vunpack.c.h.b16 %v968
        %v3550 = vunpack.c.l.b16 %v969
        %v3551 = vunpack.c.h.b16 %v969
        %v3552 = vunpack.c.l.b16 %v970
        %v3553 = vunpack.c.h.b16 %v970
        %v3554 = vunpack.c.l.b16 %v971
        %v3555 = vunpack.c.h.b16 %v971
        %v3556 = vunpack.c.l.b16 %v972
        %v3557 = vunpack.c.h.b16 %v972
        %v3558 = vunpack.c.l.b16 %v973
        %v3559 = vunpack.c.h.b16 %v973
        %v3560 = vunpack.c.l.b16 %v974
        %v3561 = vunpack.c.h.b16 %v974
        %v3562 = vunpack.c.l.b16 %v975
        %v3563 = vunpack.c.h.b16 %v975
        %v3564 = vunpack.c.l.b16 %v976
        %v3565 = vunpack.c.h.b16 %v976
        %v3566 = vunpack.c.l.b16 %v977
        %v3567 = vunpack.c.h.b16 %v977
        %v3568 = vunpack.c.l.b16 %v978
        %v3569 = vunpack.c.h.b16 %v978
        %v3570 = vunpack.c.l.b16 %v979
        %v3571 = vunpack.c.h.b16 %v979
        %v3572 = vunpack.c.l.b16 %v980
        %v3573 = vunpack.c.h.b16 %v980
        %v3574 = vunpack.c.l.b16 %v981
        %v3575 = vunpack.c.h.b16 %v981
        %v3576 = vunpack.c.l.b16 %v982
        %v3577 = vunpack.c.h.b16 %v982
        %v3578 = vunpack.c.l.b16 %v983
        %v3579 = vunpack.c.h.b16 %v983
        %v3580 = vunpack.c.l.b16 %v984
        %v3581 = vunpack.c.h.b16 %v984
        %v3582 = vunpack.c.l.b16 %v985
        %v3583 = vunpack.c.h.b16 %v985
        %v3584 = vunpack.c.l.b16 %v986
        %v3585 = vunpack.c.h.b16 %v986
        %v3586 = vunpack.c.l.b16 %v987
        %v3587 = vunpack.c.h.b16 %v987
        %v3588 = vunpack.c.l.b16 %v988
        %v3589 = vunpack.c.h.b16 %v988
        %v3590 = vunpack.c.l.b16 %v989
        %v3591 = vunpack.c.h.b16 %v989
        %v3592 = vunpack.c.l.b16 %v990
        %v3593 = vunpack.c.h.b16 %v990
        %v3594 = vunpack.c.l.b16 %v991
        %v3595 = vunpack.c.h.b16 %v991
        %v3596 = vunpack.c.l.b16 %v992
        %v3597 = vunpack.c.h.b16 %v992
        %v3598 = vunpack.c.l.b16 %v993
        %v3599 = vunpack.c.h.b16 %v993
        %v3600 = vunpack.c.l.b16 %v994
        %v3601 = vunpack.c.h.b16 %v994
        %v3602 = vunpack.c.l.b16 %v995
        %v3603 = vunpack.c.h.b16 %v995
        %v3604 = vunpack.c.l.b16 %v996
        %v3605 = vunpack.c.h.b16 %v996
        %v3606 = vunpack.c.l.b16 %v997
        %v3607 = vunpack.c.h.b16 %v997
        %v3608 = vunpack.c.l.b16 %v998
        %v3609 = vunpack.c.h.b16 %v998
        %v3610 = vunpack.c.l.b16 %v999
        %v3611 = vunpack.c.h.b16 %v999
        %v3612 = vunpack.c.l.b16 %v1000
        %v3613 = vunpack.c.h.b16 %v1000
        %v3614 = vunpack.c.l.b16 %v1001
        %v3615 = vunpack.c.h.b16 %v1001
        %v3616 = vunpack.c.l.b16 %v1002
        %v3617 = vunpack.c.h.b16 %v1002
        %v3618 = vunpack.c.l.b16 %v1003
        %v3619 = vunpack.c.h.b16 %v1003
        %v3620 = vunpack.c.l.b16 %v1004
        %v3621 = vunpack.c.h.b16 %v1004
        %v3622 = vunpack.c.l.b16 %v1005
        %v3623 = vunpack.c.h.b16 %v1005
        %v3624 = vunpack.c.l.b16 %v1006
        %v3625 = vunpack.c.h.b16 %v1006
        %v3626 = vunpack.c.l.b16 %v1007
        %v3627 = vunpack.c.h.b16 %v1007
        %v3628 = vunpack.c.l.b16 %v1008
        %v3629 = vunpack.c.h.b16 %v1008
        %v3630 = vunpack.c.l.b16 %v1009
        %v3631 = vunpack.c.h.b16 %v1009
        %v3632 = vunpack.c.l.b16 %v1010
        %v3633 = vunpack.c.h.b16 %v1010
        %v3634 = vunpack.c.l.b16 %v1011
        %v3635 = vunpack.c.h.b16 %v1011
        %v3636 = vunpack.c.l.b16 %v1012
        %v3637 = vunpack.c.h.b16 %v1012
        %v3638 = vunpack.c.l.b16 %v1013
        %v3639 = vunpack.c.h.b16 %v1013
        %v3640 = vunpack.c.l.b16 %v1014
        %v3641 = vunpack.c.h.b16 %v1014
        %v3642 = vunpack.c.l.b16 %v1015
        %v3643 = vunpack.c.h.b16 %v1015
        %v3644 = vunpack.c.l.b16 %v1016
        %v3645 = vunpack.c.h.b16 %v1016
        %v3646 = vunpack.c.l.b16 %v1017
        %v3647 = vunpack.c.h.b16 %v1017
        %v3648 = vunpack.c.l.b16 %v1018
        %v3649 = vunpack.c.h.b16 %v1018
        %v3650 = vunpack.c.l.b16 %v1019
        %v3651 = vunpack.c.h.b16 %v1019
        %v3652 = vunpack.c.l.b16 %v1020
        %v3653 = vunpack.c.h.b16 %v1020
        %v3654 = vunpack.c.l.b16 %v1021
        %v3655 = vunpack.c.h.b16 %v1021
        %v3656 = vunpack.c.l.b16 %v1022
        %v3657 = vunpack.c.h.b16 %v1022
        %v3658 = vunpack.c.l.b16 %v1023
        %v3659 = vunpack.c.h.b16 %v1023
        %v3660 = vunpack.c.l.b16 %v1024
        %v3661 = vunpack.c.h.b16 %v1024
        %v3662 = vunpack.c.l.b16 %v1025
        %v3663 = vunpack.c.h.b16 %v1025
        %v3664 = vunpack.c.l.b16 %v1026
        %v3665 = vunpack.c.h.b16 %v1026
        %v3666 = vunpack.c.l.b16 %v1027
        %v3667 = vunpack.c.h.b16 %v1027
        %v3668 = vunpack.c.l.b16 %v1028
        %v3669 = vunpack.c.h.b16 %v1028
        %v3670 = vunpack.c.l.b16 %v1029
        %v3671 = vunpack.c.h.b16 %v1029
        %v3672 = vunpack.c.l.b16 %v1030
        %v3673 = vunpack.c.h.b16 %v1030
        %v3674 = vunpack.c.l.b16 %v1031
        %v3675 = vunpack.c.h.b16 %v1031
        %v3676 = vunpack.c.l.b16 %v1032
        %v3677 = vunpack.c.h.b16 %v1032
        %v3678 = vunpack.c.l.b16 %v1033
        %v3679 = vunpack.c.h.b16 %v1033
        %v3680 = vunpack.c.l.b16 %v1034
        %v3681 = vunpack.c.h.b16 %v1034
        %v3682 = vunpack.c.l.b16 %v1035
        %v3683 = vunpack.c.h.b16 %v1035
        %v3684 = vunpack.c.l.b16 %v1036
        %v3685 = vunpack.c.h.b16 %v1036
        %v3686 = vunpack.c.l.b16 %v1037
        %v3687 = vunpack.c.h.b16 %v1037
        %v3688 = vunpack.c.l.b16 %v1038
        %v3689 = vunpack.c.h.b16 %v1038
        %v3690 = vunpack.c.l.b16 %v1039
        %v3691 = vunpack.c.h.b16 %v1039
        %v3692 = vunpack.c.l.b16 %v1040
        %v3693 = vunpack.c.h.b16 %v1040
        %v3694 = vunpack.c.l.b16 %v1041
        %v3695 = vunpack.c.h.b16 %v1041
        %v3696 = vunpack.c.l.b16 %v1042
        %v3697 = vunpack.c.h.b16 %v1042
        %v3698 = vunpack.c.l.b16 %v1043
        %v3699 = vunpack.c.h.b16 %v1043
        %v3700 = vunpack.c.l.b16 %v1044
        %v3701 = vunpack.c.h.b16 %v1044
        %v3702 = vunpack.c.l.b16 %v1045
        %v3703 = vunpack.c.h.b16 %v1045
        %v3704 = vunpack.c.l.b16 %v1046
        %v3705 = vunpack.c.h.b16 %v1046
        %v3706 = vunpack.c.l.b16 %v1047
        %v3707 = vunpack.c.h.b16 %v1047
        %v3708 = vunpack.c.l.b16 %v1048
        %v3709 = vunpack.c.h.b16 %v1048
        %v3710 = vunpack.c.l.b16 %v1049
        %v3711 = vunpack.c.h.b16 %v1049
        %v3712 = vunpack.c.l.b16 %v1050
        %v3713 = vunpack.c.h.b16 %v1050
        %v3714 = vunpack.c.l.b16 %v1051
        %v3715 = vunpack.c.h.b16 %v1051
        %v3716 = vunpack.c.l.b16 %v1052
        %v3717 = vunpack.c.h.b16 %v1052
        %v3718 = vunpack.c.l.b16 %v1053
        %v3719 = vunpack.c.h.b16 %v1053
        %v3720 = vunpack.c.l.b16 %v1054
        %v3721 = vunpack.c.h.b16 %v1054
        %v3722 = vunpack.c.l.b16 %v1055
        %v3723 = vunpack.c.h.b16 %v1055
        %v3724 = vunpack.c.l.b16 %v1056
        %v3725 = vunpack.c.h.b16 %v1056
        %v3726 = vunpack.c.l.b16 %v1057
        %v3727 = vunpack.c.h.b16 %v1057
        %v3728 = vunpack.c.l.b16 %v1058
        %v3729 = vunpack.c.h.b16 %v1058
        %v3730 = vunpack.c.l.b16 %v1059
        %v3731 = vunpack.c.h.b16 %v1059
        %v3732 = vunpack.c.l.b16 %v1060
        %v3733 = vunpack.c.h.b16 %v1060
        %v3734 = vunpack.c.l.b16 %v1061
        %v3735 = vunpack.c.h.b16 %v1061
        %v3736 = vunpack.c.l.b16 %v1062
        %v3737 = vunpack.c.h.b16 %v1062
        %v3738 = vunpack.c.l.b16 %v1063
        %v3739 = vunpack.c.h.b16 %v1063
        %v3740 = vunpack.c.l.b16 %v1064
        %v3741 = vunpack.c.h.b16 %v1064
        %v3742 = vunpack.c.l.b16 %v1065
        %v3743 = vunpack.c.h.b16 %v1065
        %v3744 = vunpack.c.l.b16 %v1066
        %v3745 = vunpack.c.h.b16 %v1066
        %v3746 = vunpack.c.l.b16 %v1067
        %v3747 = vunpack.c.h.b16 %v1067
        %v3748 = vunpack.c.l.b16 %v1068
        %v3749 = vunpack.c.h.b16 %v1068
        %v3750 = vunpack.c.l.b16 %v1069
        %v3751 = vunpack.c.h.b16 %v1069
        %v3752 = vunpack.c.l.b16 %v1070
        %v3753 = vunpack.c.h.b16 %v1070
        %v3754 = vunpack.c.l.b16 %v1071
        %v3755 = vunpack.c.h.b16 %v1071
        %v3756 = vunpack.c.l.b16 %v1072
        %v3757 = vunpack.c.h.b16 %v1072
        %v3758 = vunpack.c.l.b16 %v1073
        %v3759 = vunpack.c.h.b16 %v1073
        %v3760 = vunpack.c.l.b16 %v1074
        %v3761 = vunpack.c.h.b16 %v1074
        %v3762 = vunpack.c.l.b16 %v1075
        %v3763 = vunpack.c.h.b16 %v1075
        %v3764 = vunpack.c.l.b16 %v1076
        %v3765 = vunpack.c.h.b16 %v1076
        %v3766 = vunpack.c.l.b16 %v1077
        %v3767 = vunpack.c.h.b16 %v1077
        %v3768 = vunpack.c.l.b16 %v1078
        %v3769 = vunpack.c.h.b16 %v1078
        %v3770 = vunpack.c.l.b16 %v1079
        %v3771 = vunpack.c.h.b16 %v1079
        %v3772 = vunpack.c.l.b16 %v1080
        %v3773 = vunpack.c.h.b16 %v1080
        %v3774 = vunpack.c.l.b16 %v1081
        %v3775 = vunpack.c.h.b16 %v1081
        %v3776 = vunpack.c.l.b16 %v1082
        %v3777 = vunpack.c.h.b16 %v1082
        %v3778 = vunpack.c.l.b16 %v1083
        %v3779 = vunpack.c.h.b16 %v1083
        %v3780 = vunpack.c.l.b16 %v1084
        %v3781 = vunpack.c.h.b16 %v1084
        %v3782 = vunpack.c.l.b16 %v1085
        %v3783 = vunpack.c.h.b16 %v1085
        %v3784 = vunpack.c.l.b16 %v1086
        %v3785 = vunpack.c.h.b16 %v1086
        %v3786 = vunpack.c.l.b16 %v1087
        %v3787 = vunpack.c.h.b16 %v1087
        %v3788 = vunpack.c.l.b16 %v1088
        %v3789 = vunpack.c.h.b16 %v1088
        %v3790 = vunpack.c.l.b16 %v1089
        %v3791 = vunpack.c.h.b16 %v1089
        %v3792 = vunpack.c.l.b16 %v1090
        %v3793 = vunpack.c.h.b16 %v1090
        %v3794 = vunpack.c.l.b16 %v1091
        %v3795 = vunpack.c.h.b16 %v1091
        %v3796 = vunpack.c.l.b16 %v1092
        %v3797 = vunpack.c.h.b16 %v1092
        %v3798 = vunpack.c.l.b16 %v1093
        %v3799 = vunpack.c.h.b16 %v1093
        %v3800 = vunpack.c.l.b16 %v1094
        %v3801 = vunpack.c.h.b16 %v1094
        %v3802 = vunpack.c.l.b16 %v1095
        %v3803 = vunpack.c.h.b16 %v1095
        %v3804 = vunpack.c.l.b16 %v1096
        %v3805 = vunpack.c.h.b16 %v1096
        %v3806 = vunpack.c.l.b16 %v1097
        %v3807 = vunpack.c.h.b16 %v1097
        %v3808 = vunpack.c.l.b16 %v1098
        %v3809 = vunpack.c.h.b16 %v1098
        %v3810 = vunpack.c.l.b16 %v1099
        %v3811 = vunpack.c.h.b16 %v1099
        %v3812 = vunpack.c.l.b16 %v1100
        %v3813 = vunpack.c.h.b16 %v1100
        %v3814 = vunpack.c.l.b16 %v1101
        %v3815 = vunpack.c.h.b16 %v1101
        %v3816 = vunpack.c.l.b16 %v1102
        %v3817 = vunpack.c.h.b16 %v1102
        %v3818 = vunpack.c.l.b16 %v1103
        %v3819 = vunpack.c.h.b16 %v1103
        %v3820 = vunpack.c.l.b16 %v1104
        %v3821 = vunpack.c.h.b16 %v1104
        %v3822 = vunpack.c.l.b16 %v1105
        %v3823 = vunpack.c.h.b16 %v1105
        %v3824 = vunpack.c.l.b16 %v1106
        %v3825 = vunpack.c.h.b16 %v1106
        %v3826 = vunpack.c.l.b16 %v1107
        %v3827 = vunpack.c.h.b16 %v1107
        %v3828 = vunpack.c.l.b16 %v1108
        %v3829 = vunpack.c.h.b16 %v1108
        %v3830 = vunpack.c.l.b16 %v1109
        %v3831 = vunpack.c.h.b16 %v1109
        %v3832 = vunpack.c.l.b16 %v1110
        %v3833 = vunpack.c.h.b16 %v1110
        %v3834 = vunpack.c.l.b16 %v1111
        %v3835 = vunpack.c.h.b16 %v1111
        %v3836 = vunpack.c.l.b16 %v1112
        %v3837 = vunpack.c.h.b16 %v1112
        %v3838 = vunpack.c.l.b16 %v1113
        %v3839 = vunpack.c.h.b16 %v1113
        %v3840 = vunpack.c.l.b16 %v1114
        %v3841 = vunpack.c.h.b16 %v1114
        %v3842 = vunpack.c.l.b16 %v1115
        %v3843 = vunpack.c.h.b16 %v1115
        %v3844 = vunpack.c.l.b16 %v1116
        %v3845 = vunpack.c.h.b16 %v1116
        %v3846 = vunpack.c.l.b16 %v1117
        %v3847 = vunpack.c.h.b16 %v1117
        %v3848 = vunpack.c.l.b16 %v1118
        %v3849 = vunpack.c.h.b16 %v1118
        %v3850 = vunpack.c.l.b16 %v1119
        %v3851 = vunpack.c.h.b16 %v1119
        %v3852 = vunpack.c.l.b16 %v1120
        %v3853 = vunpack.c.h.b16 %v1120
        %v3854 = vunpack.c.l.b16 %v1121
        %v3855 = vunpack.c.h.b16 %v1121
        %v3856 = vunpack.c.l.b16 %v1122
        %v3857 = vunpack.c.h.b16 %v1122
        %v3858 = vunpack.c.l.b16 %v1123
        %v3859 = vunpack.c.h.b16 %v1123
        %v3860 = vunpack.c.l.b16 %v1124
        %v3861 = vunpack.c.h.b16 %v1124
        %v3862 = vunpack.c.l.b16 %v1125
        %v3863 = vunpack.c.h.b16 %v1125
        %v3864 = vunpack.c.l.b16 %v1126
        %v3865 = vunpack.c.h.b16 %v1126
        %v3866 = vunpack.c.l.b16 %v1127
        %v3867 = vunpack.c.h.b16 %v1127
        %v3868 = vunpack.c.l.b16 %v1128
        %v3869 = vunpack.c.h.b16 %v1128
        %v3870 = vunpack.c.l.b16 %v1129
        %v3871 = vunpack.c.h.b16 %v1129
        %v3872 = vunpack.c.l.b16 %v1130
        %v3873 = vunpack.c.h.b16 %v1130
        %v3874 = vunpack.c.l.b16 %v1131
        %v3875 = vunpack.c.h.b16 %v1131
        %v3876 = vunpack.c.l.b16 %v1132
        %v3877 = vunpack.c.h.b16 %v1132
        %v3878 = vunpack.c.l.b16 %v1133
        %v3879 = vunpack.c.h.b16 %v1133
        %v3880 = vunpack.c.l.b16 %v1134
        %v3881 = vunpack.c.h.b16 %v1134
        %v3882 = vunpack.c.l.b16 %v1135
        %v3883 = vunpack.c.h.b16 %v1135
        %v3884 = vunpack.c.l.b16 %v1136
        %v3885 = vunpack.c.h.b16 %v1136
        %v3886 = vunpack.c.l.b16 %v1137
        %v3887 = vunpack.c.h.b16 %v1137
        %v3888 = vunpack.c.l.b16 %v1138
        %v3889 = vunpack.c.h.b16 %v1138
        %v3890 = vunpack.c.l.b16 %v1139
        %v3891 = vunpack.c.h.b16 %v1139
        %v3892 = vunpack.c.l.b16 %v1140
        %v3893 = vunpack.c.h.b16 %v1140
        %v3894 = vunpack.c.l.b16 %v1141
        %v3895 = vunpack.c.h.b16 %v1141
        %v3896 = vunpack.c.l.b16 %v1142
        %v3897 = vunpack.c.h.b16 %v1142
        %v3898 = vunpack.c.l.b16 %v1143
        %v3899 = vunpack.c.h.b16 %v1143
        %v3900 = vunpack.c.l.b16 %v1144
        %v3901 = vunpack.c.h.b16 %v1144
        %v3902 = vunpack.c.l.b16 %v1145
        %v3903 = vunpack.c.h.b16 %v1145
        %v3904 = vunpack.c.l.b16 %v1146
        %v3905 = vunpack.c.h.b16 %v1146
        %v3906 = vunpack.c.l.b16 %v1147
        %v3907 = vunpack.c.h.b16 %v1147
        %v3908 = vunpack.c.l.b16 %v1148
        %v3909 = vunpack.c.h.b16 %v1148
        %v3910 = vunpack.c.l.b16 %v1149
        %v3911 = vunpack.c.h.b16 %v1149
        %v3912 = vunpack.c.l.b16 %v1150
        %v3913 = vunpack.c.h.b16 %v1150
        %v3914 = vunpack.c.l.b16 %v1151
        %v3915 = vunpack.c.h.b16 %v1151
        %v3916 = vunpack.c.l.b16 %v1152
        %v3917 = vunpack.c.h.b16 %v1152
        %v3918 = vunpack.c.l.b16 %v1153
        %v3919 = vunpack.c.h.b16 %v1153
        %v3920 = vunpack.c.l.b16 %v1154
        %v3921 = vunpack.c.h.b16 %v1154
        %v3922 = vunpack.c.l.b16 %v1155
        %v3923 = vunpack.c.h.b16 %v1155
        %v3924 = vunpack.c.l.b16 %v1156
        %v3925 = vunpack.c.h.b16 %v1156
        %v3926 = vunpack.c.l.b16 %v1157
        %v3927 = vunpack.c.h.b16 %v1157
        %v3928 = vunpack.c.l.b16 %v1158
        %v3929 = vunpack.c.h.b16 %v1158
        %v3930 = vunpack.c.l.b16 %v1159
        %v3931 = vunpack.c.h.b16 %v1159
        %v3932 = vunpack.c.l.b16 %v1160
        %v3933 = vunpack.c.h.b16 %v1160
        %v3934 = vunpack.c.l.b16 %v1161
        %v3935 = vunpack.c.h.b16 %v1161
        %v3936 = vunpack.c.l.b16 %v1162
        %v3937 = vunpack.c.h.b16 %v1162
        %v3938 = vunpack.c.l.b16 %v1163
        %v3939 = vunpack.c.h.b16 %v1163
        %v3940 = vunpack.c.l.b16 %v1164
        %v3941 = vunpack.c.h.b16 %v1164
        %v3942 = vunpack.c.l.b16 %v1165
        %v3943 = vunpack.c.h.b16 %v1165
        %v3944 = vunpack.c.l.b16 %v1166
        %v3945 = vunpack.c.h.b16 %v1166
        %v3946 = vunpack.c.l.b16 %v1167
        %v3947 = vunpack.c.h.b16 %v1167
        %v3948 = vunpack.c.l.b16 %v1168
        %v3949 = vunpack.c.h.b16 %v1168
        %v3950 = vunpack.c.l.b16 %v1169
        %v3951 = vunpack.c.h.b16 %v1169
        %v3952 = vunpack.c.l.b16 %v1170
        %v3953 = vunpack.c.h.b16 %v1170
        %v3954 = vunpack.c.l.b16 %v1171
        %v3955 = vunpack.c.h.b16 %v1171
        %v3956 = vunpack.c.l.b16 %v1172
        %v3957 = vunpack.c.h.b16 %v1172
        %v3958 = vunpack.c.l.b16 %v1173
        %v3959 = vunpack.c.h.b16 %v1173
        %v3960 = vunpack.c.l.b16 %v1174
        %v3961 = vunpack.c.h.b16 %v1174
        %v3962 = vunpack.c.l.b16 %v1175
        %v3963 = vunpack.c.h.b16 %v1175
        %v3964 = vunpack.c.l.b16 %v1176
        %v3965 = vunpack.c.h.b16 %v1176
        %v3966 = vunpack.c.l.b16 %v1177
        %v3967 = vunpack.c.h.b16 %v1177
        %v3968 = vunpack.c.l.b16 %v1178
        %v3969 = vunpack.c.h.b16 %v1178
        %v3970 = vunpack.c.l.b16 %v1179
        %v3971 = vunpack.c.h.b16 %v1179
        %v3972 = vunpack.c.l.b16 %v1180
        %v3973 = vunpack.c.h.b16 %v1180
        %v3974 = vunpack.c.l.b16 %v1181
        %v3975 = vunpack.c.h.b16 %v1181
        %v3976 = vunpack.c.l.b16 %v1182
        %v3977 = vunpack.c.h.b16 %v1182
        %v3978 = vunpack.c.l.b16 %v1183
        %v3979 = vunpack.c.h.b16 %v1183
        %v3980 = vunpack.c.l.b16 %v1184
        %v3981 = vunpack.c.h.b16 %v1184
        %v3982 = vunpack.c.l.b16 %v1185
        %v3983 = vunpack.c.h.b16 %v1185
        %v3984 = vunpack.c.l.b16 %v1186
        %v3985 = vunpack.c.h.b16 %v1186
        %v3986 = vunpack.c.l.b16 %v1187
        %v3987 = vunpack.c.h.b16 %v1187
        %v3988 = vunpack.c.l.b16 %v1188
        %v3989 = vunpack.c.h.b16 %v1188
        %v3990 = vunpack.c.l.b16 %v1189
        %v3991 = vunpack.c.h.b16 %v1189
        %v3992 = vunpack.c.l.b16 %v1190
        %v3993 = vunpack.c.h.b16 %v1190
        %v3994 = vunpack.c.l.b16 %v1191
        %v3995 = vunpack.c.h.b16 %v1191
        %v3996 = vunpack.c.l.b16 %v1192
        %v3997 = vunpack.c.h.b16 %v1192
        %v3998 = vunpack.c.l.b16 %v1193
        %v3999 = vunpack.c.h.b16 %v1193
        %v4000 = vunpack.c.l.b16 %v1194
        %v4001 = vunpack.c.h.b16 %v1194
        %v4002 = vunpack.c.l.b16 %v1195
        %v4003 = vunpack.c.h.b16 %v1195
        %v4004 = vunpack.c.l.b16 %v1196
        %v4005 = vunpack.c.h.b16 %v1196
        %v4006 = vunpack.c.l.b16 %v1197
        %v4007 = vunpack.c.h.b16 %v1197
        %v4008 = vunpack.c.l.b16 %v1198
        %v4009 = vunpack.c.h.b16 %v1198
        %v4010 = vunpack.c.l.b16 %v1199
        %v4011 = vunpack.c.h.b16 %v1199
        %v4012 = vunpack.c.l.b16 %v1200
        %v4013 = vunpack.c.h.b16 %v1200
        %v4014 = vunpack.c.l.b16 %v1201
        %v4015 = vunpack.c.h.b16 %v1201
        %v4016 = vunpack.c.l.b16 %v1202
        %v4017 = vunpack.c.h.b16 %v1202
        %v4018 = vunpack.c.l.b16 %v1203
        %v4019 = vunpack.c.h.b16 %v1203
        %v4020 = vunpack.c.l.b16 %v1204
        %v4021 = vunpack.c.h.b16 %v1204
        %v4022 = vunpack.c.l.b16 %v1205
        %v4023 = vunpack.c.h.b16 %v1205
        %v4024 = vunpack.c.l.b16 %v1206
        %v4025 = vunpack.c.h.b16 %v1206
        %v4026 = vunpack.c.l.b16 %v1207
        %v4027 = vunpack.c.h.b16 %v1207
        %v4028 = vunpack.c.l.b16 %v1208
        %v4029 = vunpack.c.h.b16 %v1208
        %v4030 = vunpack.c.l.b16 %v1209
        %v4031 = vunpack.c.h.b16 %v1209
        %v4032 = vunpack.c.l.b16 %v1210
        %v4033 = vunpack.c.h.b16 %v1210
        %v4034 = vunpack.c.l.b16 %v1211
        %v4035 = vunpack.c.h.b16 %v1211
        %v4036 = vunpack.c.l.b16 %v1212
        %v4037 = vunpack.c.h.b16 %v1212
        %v4038 = vunpack.c.l.b16 %v1213
        %v4039 = vunpack.c.h.b16 %v1213
        %v4040 = vunpack.c.l.b16 %v1214
        %v4041 = vunpack.c.h.b16 %v1214
        %v4042 = vunpack.c.l.b16 %v1215
        %v4043 = vunpack.c.h.b16 %v1215
        %v4044 = vunpack.c.l.b16 %v1216
        %v4045 = vunpack.c.h.b16 %v1216
        %v4046 = vunpack.c.l.b16 %v1217
        %v4047 = vunpack.c.h.b16 %v1217
        %v4048 = vunpack.c.l.b16 %v1218
        %v4049 = vunpack.c.h.b16 %v1218
        %v4050 = vunpack.c.l.b16 %v1219
        %v4051 = vunpack.c.h.b16 %v1219
        %v4052 = vunpack.c.l.b16 %v1220
        %v4053 = vunpack.c.h.b16 %v1220
        %v4054 = vunpack.c.l.b16 %v1221
        %v4055 = vunpack.c.h.b16 %v1221
        %v4056 = vunpack.c.l.b16 %v1222
        %v4057 = vunpack.c.h.b16 %v1222
        %v4058 = vunpack.c.l.b16 %v1223
        %v4059 = vunpack.c.h.b16 %v1223
        %v4060 = vunpack.c.l.b16 %v1224
        %v4061 = vunpack.c.h.b16 %v1224
        %v4062 = vunpack.c.l.b16 %v1225
        %v4063 = vunpack.c.h.b16 %v1225
        %v4064 = vunpack.c.l.b16 %v1226
        %v4065 = vunpack.c.h.b16 %v1226
        %v4066 = vunpack.c.l.b16 %v1227
        %v4067 = vunpack.c.h.b16 %v1227
        %v4068 = vunpack.c.l.b16 %v1228
        %v4069 = vunpack.c.h.b16 %v1228
        %v4070 = vunpack.c.l.b16 %v1229
        %v4071 = vunpack.c.h.b16 %v1229
        %v4072 = vunpack.c.l.b16 %v1230
        %v4073 = vunpack.c.h.b16 %v1230
        %v4074 = vunpack.c.l.b16 %v1231
        %v4075 = vunpack.c.h.b16 %v1231
        %v4076 = vunpack.c.l.b16 %v1232
        %v4077 = vunpack.c.h.b16 %v1232
        %v4078 = vunpack.c.l.b16 %v1233
        %v4079 = vunpack.c.h.b16 %v1233
        %v4080 = vunpack.c.l.b16 %v1234
        %v4081 = vunpack.c.h.b16 %v1234
        %v4082 = vunpack.c.l.b16 %v1235
        %v4083 = vunpack.c.h.b16 %v1235
        %v4084 = vunpack.c.l.b16 %v1236
        %v4085 = vunpack.c.h.b16 %v1236
        %v4086 = vunpack.c.l.b16 %v1237
        %v4087 = vunpack.c.h.b16 %v1237
        %v4088 = vunpack.c.l.b16 %v1238
        %v4089 = vunpack.c.h.b16 %v1238
        %v4090 = vunpack.c.l.b16 %v1239
        %v4091 = vunpack.c.h.b16 %v1239
        %v4092 = vunpack.c.l.b16 %v1240
        %v4093 = vunpack.c.h.b16 %v1240
        %v4094 = vunpack.c.l.b16 %v1241
        %v4095 = vunpack.c.h.b16 %v1241
        %v4096 = vunpack.c.l.b16 %v1242
        %v4097 = vunpack.c.h.b16 %v1242
        %v4098 = vunpack.c.l.b16 %v1243
        %v4099 = vunpack.c.h.b16 %v1243
        %v4100 = vunpack.c.l.b16 %v1244
        %v4101 = vunpack.c.h.b16 %v1244
        %v4102 = vunpack.c.l.b16 %v1245
        %v4103 = vunpack.c.h.b16 %v1245
        %v4104 = vunpack.c.l.b16 %v1246
        %v4105 = vunpack.c.h.b16 %v1246
        %v4106 = vunpack.c.l.b16 %v1247
        %v4107 = vunpack.c.h.b16 %v1247
        %v4108 = vunpack.c.l.b16 %v1248
        %v4109 = vunpack.c.h.b16 %v1248
        %v4110 = vunpack.c.l.b16 %v1249
        %v4111 = vunpack.c.h.b16 %v1249
        %v4112 = vunpack.c.l.b16 %v1250
        %v4113 = vunpack.c.h.b16 %v1250
        %v4114 = vunpack.c.l.b16 %v1251
        %v4115 = vunpack.c.h.b16 %v1251
        %v4116 = vunpack.c.l.b16 %v1252
        %v4117 = vunpack.c.h.b16 %v1252
        %v4118 = vunpack.c.l.b16 %v1253
        %v4119 = vunpack.c.h.b16 %v1253
        %v4120 = vunpack.c.l.b16 %v1254
        %v4121 = vunpack.c.h.b16 %v1254
        %v4122 = vunpack.c.l.b16 %v1255
        %v4123 = vunpack.c.h.b16 %v1255
        %v4124 = vunpack.c.l.b16 %v1256
        %v4125 = vunpack.c.h.b16 %v1256
        %v4126 = vunpack.c.l.b16 %v1257
        %v4127 = vunpack.c.h.b16 %v1257
        %v4128 = vunpack.c.l.b16 %v1258
        %v4129 = vunpack.c.h.b16 %v1258
        %v4130 = vunpack.c.l.b16 %v1259
        %v4131 = vunpack.c.h.b16 %v1259
        %v4132 = vunpack.c.l.b16 %v1260
        %v4133 = vunpack.c.h.b16 %v1260
        %v4134 = vunpack.c.l.b16 %v1261
        %v4135 = vunpack.c.h.b16 %v1261
        %v4136 = vunpack.c.l.b16 %v1262
        %v4137 = vunpack.c.h.b16 %v1262
        %v4138 = vunpack.c.l.b16 %v1263
        %v4139 = vunpack.c.h.b16 %v1263
        %v4140 = vunpack.c.l.b16 %v1264
        %v4141 = vunpack.c.h.b16 %v1264
        %v4142 = vunpack.c.l.b16 %v1265
        %v4143 = vunpack.c.h.b16 %v1265
        %v4144 = vunpack.c.l.b16 %v1266
        %v4145 = vunpack.c.h.b16 %v1266
        %v4146 = vunpack.c.l.b16 %v1267
        %v4147 = vunpack.c.h.b16 %v1267
        %v4148 = vunpack.c.l.b16 %v1268
        %v4149 = vunpack.c.h.b16 %v1268
        %v4150 = vunpack.c.l.b16 %v1269
        %v4151 = vunpack.c.h.b16 %v1269
        %v4152 = vunpack.c.l.b16 %v1270
        %v4153 = vunpack.c.h.b16 %v1270
        %v4154 = vunpack.c.l.b16 %v1271
        %v4155 = vunpack.c.h.b16 %v1271
        %v4156 = vunpack.c.l.b16 %v1272
        %v4157 = vunpack.c.h.b16 %v1272
        %v4158 = vunpack.c.l.b16 %v1273
        %v4159 = vunpack.c.h.b16 %v1273
        %v4160 = vunpack.c.l.b16 %v1274
        %v4161 = vunpack.c.h.b16 %v1274
        %v4162 = vunpack.c.l.b16 %v1275
        %v4163 = vunpack.c.h.b16 %v1275
        %v4164 = vunpack.c.l.b16 %v1276
        %v4165 = vunpack.c.h.b16 %v1276
        %v4166 = vunpack.c.l.b16 %v1277
        %v4167 = vunpack.c.h.b16 %v1277
        %v4168 = vunpack.c.l.b16 %v1278
        %v4169 = vunpack.c.h.b16 %v1278
        %v4170 = vunpack.c.l.b16 %v1279
        %v4171 = vunpack.c.h.b16 %v1279
        %v4172 = vunpack.c.l.b16 %v1280
        %v4173 = vunpack.c.h.b16 %v1280
        %v4174 = vunpack.c.l.b16 %v1281
        %v4175 = vunpack.c.h.b16 %v1281
        %v4176 = vunpack.c.l.b16 %v1282
        %v4177 = vunpack.c.h.b16 %v1282
        %v4178 = vunpack.c.l.b16 %v1283
        %v4179 = vunpack.c.h.b16 %v1283
        %v4180 = vunpack.c.l.b16 %v1284
        %v4181 = vunpack.c.h.b16 %v1284
        %v4182 = vunpack.c.l.b16 %v1285
        %v4183 = vunpack.c.h.b16 %v1285
        %v4184 = vunpack.c.l.b16 %v1286
        %v4185 = vunpack.c.h.b16 %v1286
        %v4186 = vunpack.c.l.b16 %v1287
        %v4187 = vunpack.c.h.b16 %v1287
        %v4188 = vunpack.c.l.b16 %v1288
        %v4189 = vunpack.c.h.b16 %v1288
        %v4190 = vunpack.c.l.b16 %v1289
        %v4191 = vunpack.c.h.b16 %v1289
        %v4192 = vunpack.c.l.b16 %v1290
        %v4193 = vunpack.c.h.b16 %v1290
        %v4194 = vunpack.c.l.b16 %v1291
        %v4195 = vunpack.c.h.b16 %v1291
        %v4196 = vunpack.c.l.b16 %v1292
        %v4197 = vunpack.c.h.b16 %v1292
        %v4198 = vunpack.c.l.b16 %v1293
        %v4199 = vunpack.c.h.b16 %v1293
        %v4200 = vunpack.c.l.b16 %v1294
        %v4201 = vunpack.c.h.b16 %v1294
        %v4202 = vunpack.c.l.b16 %v1295
        %v4203 = vunpack.c.h.b16 %v1295
        %v4204 = vunpack.c.l.b16 %v1296
        %v4205 = vunpack.c.h.b16 %v1296
        %v4206 = vunpack.c.l.b16 %v1297
        %v4207 = vunpack.c.h.b16 %v1297
        %v4208 = vunpack.c.l.b16 %v1298
        %v4209 = vunpack.c.h.b16 %v1298
        %v4210 = vunpack.c.l.b16 %v1299
        %v4211 = vunpack.c.h.b16 %v1299
        %v4212 = vunpack.c.l.b16 %v1300
        %v4213 = vunpack.c.h.b16 %v1300
        %v4214 = vunpack.c.l.b16 %v1301
        %v4215 = vunpack.c.h.b16 %v1301
        %v4216 = vunpack.c.l.b16 %v1302
        %v4217 = vunpack.c.h.b16 %v1302
        %v4218 = vunpack.c.l.b16 %v1303
        %v4219 = vunpack.c.h.b16 %v1303
        %v4220 = vunpack.c.l.b16 %v1304
        %v4221 = vunpack.c.h.b16 %v1304
        %v4222 = vunpack.c.l.b16 %v1305
        %v4223 = vunpack.c.h.b16 %v1305
        %v4224 = vunpack.c.l.b16 %v1306
        %v4225 = vunpack.c.h.b16 %v1306
        %v4226 = vunpack.c.l.b16 %v1307
        %v4227 = vunpack.c.h.b16 %v1307
        %v4228 = vunpack.c.l.b16 %v1308
        %v4229 = vunpack.c.h.b16 %v1308
        %v4230 = vunpack.c.l.b16 %v1309
        %v4231 = vunpack.c.h.b16 %v1309
        %v4232 = vunpack.c.l.b16 %v1310
        %v4233 = vunpack.c.h.b16 %v1310
        %v4234 = vunpack.c.l.b16 %v1311
        %v4235 = vunpack.c.h.b16 %v1311
        %v4236 = vunpack.c.l.b16 %v1312
        %v4237 = vunpack.c.h.b16 %v1312
        %v4238 = vunpack.c.l.b16 %v1313
        %v4239 = vunpack.c.h.b16 %v1313
        %v4240 = vunpack.c.l.b16 %v1314
        %v4241 = vunpack.c.h.b16 %v1314
        %v4242 = vunpack.c.l.b16 %v1315
        %v4243 = vunpack.c.h.b16 %v1315
        %v4244 = vunpack.c.l.b16 %v1316
        %v4245 = vunpack.c.h.b16 %v1316
        %v4246 = vunpack.c.l.b16 %v1317
        %v4247 = vunpack.c.h.b16 %v1317
        %v4248 = vunpack.c.l.b16 %v1318
        %v4249 = vunpack.c.h.b16 %v1318
        %v4250 = vunpack.c.l.b16 %v1319
        %v4251 = vunpack.c.h.b16 %v1319
        %v4252 = vunpack.c.l.b16 %v1320
        %v4253 = vunpack.c.h.b16 %v1320
        %v4254 = vunpack.c.l.b16 %v1321
        %v4255 = vunpack.c.h.b16 %v1321
        %v4256 = vunpack.c.l.b16 %v1322
        %v4257 = vunpack.c.h.b16 %v1322
        %v4258 = vunpack.c.l.b16 %v1323
        %v4259 = vunpack.c.h.b16 %v1323
        %v4260 = vunpack.c.l.b16 %v1324
        %v4261 = vunpack.c.h.b16 %v1324
        %v4262 = vunpack.c.l.b16 %v1325
        %v4263 = vunpack.c.h.b16 %v1325
        %v4264 = vunpack.c.l.b16 %v1326
        %v4265 = vunpack.c.h.b16 %v1326
        %v4266 = vunpack.c.l.b16 %v1327
        %v4267 = vunpack.c.h.b16 %v1327
        %v4268 = vunpack.c.l.b16 %v1328
        %v4269 = vunpack.c.h.b16 %v1328
        %v4270 = vunpack.c.l.b16 %v1329
        %v4271 = vunpack.c.h.b16 %v1329
        %v4272 = vunpack.c.l.b16 %v1330
        %v4273 = vunpack.c.h.b16 %v1330
        %v4274 = vunpack.c.l.b16 %v1331
        %v4275 = vunpack.c.h.b16 %v1331
        %v4276 = vunpack.c.l.b16 %v1332
        %v4277 = vunpack.c.h.b16 %v1332
        %v4278 = vunpack.c.l.b16 %v1333
        %v4279 = vunpack.c.h.b16 %v1333
        %v4280 = vunpack.c.l.b16 %v1334
        %v4281 = vunpack.c.h.b16 %v1334
        %v4282 = vunpack.c.l.b16 %v1335
        %v4283 = vunpack.c.h.b16 %v1335
        %v4284 = vunpack.c.l.b16 %v1336
        %v4285 = vunpack.c.h.b16 %v1336
        %v4286 = vunpack.c.l.b16 %v1337
        %v4287 = vunpack.c.h.b16 %v1337
        %v4288 = vunpack.c.l.b16 %v1338
        %v4289 = vunpack.c.h.b16 %v1338
        %v4290 = vunpack.c.l.b16 %v1339
        %v4291 = vunpack.c.h.b16 %v1339
        %v4292 = vunpack.c.l.b16 %v1340
        %v4293 = vunpack.c.h.b16 %v1340
        %v4294 = vunpack.c.l.b16 %v1341
        %v4295 = vunpack.c.h.b16 %v1341
        %v4296 = vunpack.c.l.b16 %v1342
        %v4297 = vunpack.c.h.b16 %v1342
        %v4298 = vunpack.c.l.b16 %v1343
        %v4299 = vunpack.c.h.b16 %v1343
        %v4300 = vunpack.c.l.b16 %v1344
        %v4301 = vunpack.c.h.b16 %v1344
        %v4302 = vunpack.c.l.b16 %v1345
        %v4303 = vunpack.c.h.b16 %v1345
        %v4304 = vunpack.c.l.b16 %v1346
        %v4305 = vunpack.c.h.b16 %v1346
        %v4306 = vunpack.c.l.b16 %v1347
        %v4307 = vunpack.c.h.b16 %v1347
        %v4308 = vunpack.c.l.b16 %v1348
        %v4309 = vunpack.c.h.b16 %v1348
        %v4310 = vunpack.c.l.b16 %v1349
        %v4311 = vunpack.c.h.b16 %v1349
        %v4312 = vunpack.c.l.b16 %v1350
        %v4313 = vunpack.c.h.b16 %v1350
        %v4314 = vunpack.c.l.b16 %v1351
        %v4315 = vunpack.c.h.b16 %v1351
        %v4316 = vunpack.c.l.b16 %v1352
        %v4317 = vunpack.c.h.b16 %v1352
        %v4318 = vunpack.c.l.b16 %v1353
        %v4319 = vunpack.c.h.b16 %v1353
        %v4320 = vunpack.c.l.b16 %v1354
        %v4321 = vunpack.c.h.b16 %v1354
        %v4322 = vunpack.c.l.b16 %v1355
        %v4323 = vunpack.c.h.b16 %v1355
        %v4324 = vunpack.c.l.b16 %v1356
        %v4325 = vunpack.c.h.b16 %v1356
        %v4326 = vunpack.c.l.b16 %v1357
        %v4327 = vunpack.c.h.b16 %v1357
        %v4328 = vunpack.c.l.b16 %v1358
        %v4329 = vunpack.c.h.b16 %v1358
        %v4330 = vunpack.c.l.b16 %v1359
        %v4331 = vunpack.c.h.b16 %v1359
        %v4332 = vunpack.c.l.b16 %v1360
        %v4333 = vunpack.c.h.b16 %v1360
        %v4334 = vunpack.c.l.b16 %v1361
        %v4335 = vunpack.c.h.b16 %v1361
        %v4336 = vunpack.c.l.b16 %v1362
        %v4337 = vunpack.c.h.b16 %v1362
        %v4338 = vunpack.c.l.b16 %v1363
        %v4339 = vunpack.c.h.b16 %v1363
        %v4340 = vunpack.c.l.b16 %v1364
        %v4341 = vunpack.c.h.b16 %v1364
        %v4342 = vunpack.c.l.b16 %v1365
        %v4343 = vunpack.c.h.b16 %v1365
        %v4344 = vunpack.c.l.b16 %v1366
        %v4345 = vunpack.c.h.b16 %v1366
        %v4346 = vunpack.c.l.b16 %v1367
        %v4347 = vunpack.c.h.b16 %v1367
        %v4348 = vunpack.c.l.b16 %v1368
        %v4349 = vunpack.c.h.b16 %v1368
        %v4350 = vunpack.c.l.b16 %v1369
        %v4351 = vunpack.c.h.b16 %v1369
        %v4352 = vunpack.c.l.b16 %v1370
        %v4353 = vunpack.c.h.b16 %v1370
        %v4354 = vunpack.c.l.b16 %v1371
        %v4355 = vunpack.c.h.b16 %v1371
        %v4356 = vunpack.c.l.b16 %v1372
        %v4357 = vunpack.c.h.b16 %v1372
        %v4358 = vunpack.c.l.b16 %v1373
        %v4359 = vunpack.c.h.b16 %v1373
        %v4360 = vunpack.c.l.b16 %v1374
        %v4361 = vunpack.c.h.b16 %v1374
        %v4362 = vunpack.c.l.b16 %v1375
        %v4363 = vunpack.c.h.b16 %v1375
        %v4364 = vunpack.c.l.b16 %v1376
        %v4365 = vunpack.c.h.b16 %v1376
        %v4366 = vunpack.c.l.b16 %v1377
        %v4367 = vunpack.c.h.b16 %v1377
        %v4368 = vunpack.c.l.b16 %v1378
        %v4369 = vunpack.c.h.b16 %v1378
        %v4370 = vunpack.c.l.b16 %v1379
        %v4371 = vunpack.c.h.b16 %v1379
        %v4372 = vunpack.c.l.b16 %v1380
        %v4373 = vunpack.c.h.b16 %v1380
        %v4374 = vunpack.c.l.b16 %v1381
        %v4375 = vunpack.c.h.b16 %v1381
        %v4376 = vunpack.c.l.b16 %v1382
        %v4377 = vunpack.c.h.b16 %v1382
        %v4378 = vunpack.c.l.b16 %v1383
        %v4379 = vunpack.c.h.b16 %v1383
        %v4380 = vunpack.c.l.b16 %v1384
        %v4381 = vunpack.c.h.b16 %v1384
        %v4382 = vunpack.c.l.b16 %v1385
        %v4383 = vunpack.c.h.b16 %v1385
        %v4384 = vunpack.c.l.b16 %v1386
        %v4385 = vunpack.c.h.b16 %v1386
        %v4386 = vunpack.c.l.b16 %v1387
        %v4387 = vunpack.c.h.b16 %v1387
        %v4388 = vunpack.c.l.b16 %v1388
        %v4389 = vunpack.c.h.b16 %v1388
        %v4390 = vunpack.c.l.b16 %v1389
        %v4391 = vunpack.c.h.b16 %v1389
        %v4392 = vunpack.c.l.b16 %v1390
        %v4393 = vunpack.c.h.b16 %v1390
        %v4394 = vunpack.c.l.b16 %v1391
        %v4395 = vunpack.c.h.b16 %v1391
        %v4396 = vunpack.c.l.b16 %v1392
        %v4397 = vunpack.c.h.b16 %v1392
        %v4398 = vunpack.c.l.b16 %v1393
        %v4399 = vunpack.c.h.b16 %v1393
        %v4400 = vunpack.c.l.b16 %v1394
        %v4401 = vunpack.c.h.b16 %v1394
        %v4402 = vunpack.c.l.b16 %v1395
        %v4403 = vunpack.c.h.b16 %v1395
        %v4404 = vunpack.c.l.b16 %v1396
        %v4405 = vunpack.c.h.b16 %v1396
        %v4406 = vunpack.c.l.b16 %v1397
        %v4407 = vunpack.c.h.b16 %v1397
        %v4408 = vunpack.c.l.b16 %v1398
        %v4409 = vunpack.c.h.b16 %v1398
        %v4410 = vunpack.c.l.b16 %v1399
        %v4411 = vunpack.c.h.b16 %v1399
        %v4412 = vunpack.c.l.b16 %v1400
        %v4413 = vunpack.c.h.b16 %v1400
        %v4414 = vunpack.c.l.b16 %v1401
        %v4415 = vunpack.c.h.b16 %v1401
        %v4416 = vunpack.c.l.b16 %v1402
        %v4417 = vunpack.c.h.b16 %v1402
        %v4418 = vunpack.c.l.b16 %v1403
        %v4419 = vunpack.c.h.b16 %v1403
        %v4420 = vunpack.c.l.b16 %v1404
        %v4421 = vunpack.c.h.b16 %v1404
        %v4422 = vunpack.c.l.b16 %v1405
        %v4423 = vunpack.c.h.b16 %v1405
        %v4424 = vunpack.c.l.b16 %v1406
        %v4425 = vunpack.c.h.b16 %v1406
        %v4426 = vunpack.c.l.b16 %v1407
        %v4427 = vunpack.c.h.b16 %v1407
        %v4428 = vunpack.c.l.b16 %v1408
        %v4429 = vunpack.c.h.b16 %v1408
        %v4430 = vunpack.c.l.b16 %v1409
        %v4431 = vunpack.c.h.b16 %v1409
        %v4432 = vunpack.c.l.b16 %v1410
        %v4433 = vunpack.c.h.b16 %v1410
        %v4434 = vunpack.c.l.b16 %v1411
        %v4435 = vunpack.c.h.b16 %v1411
        %v4436 = vunpack.c.l.b16 %v1412
        %v4437 = vunpack.c.h.b16 %v1412
        %v4438 = vunpack.c.l.b16 %v1413
        %v4439 = vunpack.c.h.b16 %v1413
        %v4440 = vunpack.c.l.b16 %v1414
        %v4441 = vunpack.c.h.b16 %v1414
        %v4442 = vunpack.c.l.b16 %v1415
        %v4443 = vunpack.c.h.b16 %v1415
        %v4444 = vunpack.c.l.b16 %v1416
        %v4445 = vunpack.c.h.b16 %v1416
        %v4446 = vunpack.c.l.b16 %v1417
        %v4447 = vunpack.c.h.b16 %v1417
        %v4448 = vunpack.c.l.b16 %v1418
        %v4449 = vunpack.c.h.b16 %v1418
        %v4450 = vunpack.c.l.b16 %v1419
        %v4451 = vunpack.c.h.b16 %v1419
        %v4452 = vunpack.c.l.b16 %v1420
        %v4453 = vunpack.c.h.b16 %v1420
        %v4454 = vunpack.c.l.b16 %v1421
        %v4455 = vunpack.c.h.b16 %v1421
        %v4456 = vunpack.c.l.b16 %v1422
        %v4457 = vunpack.c.h.b16 %v1422
        %v4458 = vunpack.c.l.b16 %v1423
        %v4459 = vunpack.c.h.b16 %v1423
        %v4460 = vunpack.c.l.b16 %v1424
        %v4461 = vunpack.c.h.b16 %v1424
        %v4462 = vunpack.c.l.b16 %v1425
        %v4463 = vunpack.c.h.b16 %v1425
        %v4464 = vunpack.c.l.b16 %v1426
        %v4465 = vunpack.c.h.b16 %v1426
        %v4466 = vunpack.c.l.b16 %v1427
        %v4467 = vunpack.c.h.b16 %v1427
        %v4468 = vunpack.c.l.b16 %v1428
        %v4469 = vunpack.c.h.b16 %v1428
        %v4470 = vunpack.c.l.b16 %v1429
        %v4471 = vunpack.c.h.b16 %v1429
        %v4472 = vunpack.c.l.b16 %v1430
        %v4473 = vunpack.c.h.b16 %v1430
        %v4474 = vunpack.c.l.b16 %v1431
        %v4475 = vunpack.c.h.b16 %v1431
        %v4476 = vunpack.c.l.b16 %v1432
        %v4477 = vunpack.c.h.b16 %v1432
        %v4478 = vunpack.c.l.b16 %v1433
        %v4479 = vunpack.c.h.b16 %v1433
        %v4480 = vunpack.c.l.b16 %v1434
        %v4481 = vunpack.c.h.b16 %v1434
        %v4482 = vunpack.c.l.b16 %v1435
        %v4483 = vunpack.c.h.b16 %v1435
        %v4484 = vunpack.c.l.b16 %v1436
        %v4485 = vunpack.c.h.b16 %v1436
        %v4486 = vunpack.c.l.b16 %v1437
        %v4487 = vunpack.c.h.b16 %v1437
        %v4488 = vunpack.c.l.b16 %v1438
        %v4489 = vunpack.c.h.b16 %v1438
        %v4490 = vunpack.c.l.b16 %v1439
        %v4491 = vunpack.c.h.b16 %v1439
        %v4492 = vunpack.c.l.b16 %v1440
        %v4493 = vunpack.c.h.b16 %v1440
        %v4494 = vunpack.c.l.b16 %v1441
        %v4495 = vunpack.c.h.b16 %v1441
        %v4496 = vunpack.c.l.b16 %v1442
        %v4497 = vunpack.c.h.b16 %v1442
        %v4498 = vunpack.c.l.b16 %v1443
        %v4499 = vunpack.c.h.b16 %v1443
        %v4500 = vunpack.c.l.b16 %v1444
        %v4501 = vunpack.c.h.b16 %v1444
        %v4502 = vunpack.c.l.b16 %v1445
        %v4503 = vunpack.c.h.b16 %v1445
        %v4504 = vunpack.c.l.b16 %v1446
        %v4505 = vunpack.c.h.b16 %v1446
        %v4506 = vunpack.c.l.b16 %v1447
        %v4507 = vunpack.c.h.b16 %v1447
        %v4508 = vunpack.c.l.b16 %v1448
        %v4509 = vunpack.c.h.b16 %v1448
        %v4510 = vunpack.c.l.b16 %v1449
        %v4511 = vunpack.c.h.b16 %v1449
        %v4512 = vunpack.c.l.b16 %v1450
        %v4513 = vunpack.c.h.b16 %v1450
        %v4514 = vunpack.c.l.b16 %v1451
        %v4515 = vunpack.c.h.b16 %v1451
        %v4516 = vunpack.c.l.b16 %v1452
        %v4517 = vunpack.c.h.b16 %v1452
        %v4518 = vunpack.c.l.b16 %v1453
        %v4519 = vunpack.c.h.b16 %v1453
        %v4520 = vunpack.c.l.b16 %v1454
        %v4521 = vunpack.c.h.b16 %v1454
        %v4522 = vunpack.c.l.b16 %v1455
        %v4523 = vunpack.c.h.b16 %v1455
        %v4524 = vunpack.c.l.b16 %v1456
        %v4525 = vunpack.c.h.b16 %v1456
        %v4526 = vunpack.c.l.b16 %v1457
        %v4527 = vunpack.c.h.b16 %v1457
        %v4528 = vunpack.c.l.b16 %v1458
        %v4529 = vunpack.c.h.b16 %v1458
        %v4530 = vunpack.c.l.b16 %v1459
        %v4531 = vunpack.c.h.b16 %v1459
        %v4532 = vpack.c.b16 %v2492, %v2484
        %v4533 = vpack.c.b16 %v2493, %v2485
        %v4534 = vpack.c.b16 %v2494, %v2486
        %v4535 = vpack.c.b16 %v2495, %v2487
        %v4536 = vpack.c.b16 %v2496, %v2488
        %v4537 = vpack.c.b16 %v2497, %v2489
        %v4538 = vpack.c.b16 %v2498, %v2490
        %v4539 = vpack.c.b16 %v2499, %v2491
        %v4540 = vpack.c.b16 %v2508, %v2500
        %v4541 = vpack.c.b16 %v2509, %v2501
        %v4542 = vpack.c.b16 %v2510, %v2502
        %v4543 = vpack.c.b16 %v2511, %v2503
        %v4544 = vpack.c.b16 %v2512, %v2504
        %v4545 = vpack.c.b16 %v2513, %v2505
        %v4546 = vpack.c.b16 %v2514, %v2506
        %v4547 = vpack.c.b16 %v2515, %v2507
        %v4548 = vpack.c.b16 %v2524, %v2516
        %v4549 = vpack.c.b16 %v2525, %v2517
        %v4550 = vpack.c.b16 %v2526, %v2518
        %v4551 = vpack.c.b16 %v2527, %v2519
        %v4552 = vpack.c.b16 %v2528, %v2520
        %v4553 = vpack.c.b16 %v2529, %v2521
        %v4554 = vpack.c.b16 %v2530, %v2522
        %v4555 = vpack.c.b16 %v2531, %v2523
        %v4556 = vpack.c.b16 %v2540, %v2532
        %v4557 = vpack.c.b16 %v2541, %v2533
        %v4558 = vpack.c.b16 %v2542, %v2534
        %v4559 = vpack.c.b16 %v2543, %v2535
        %v4560 = vpack.c.b16 %v2544, %v2536
        %v4561 = vpack.c.b16 %v2545, %v2537
        %v4562 = vpack.c.b16 %v2546, %v2538
        %v4563 = vpack.c.b16 %v2547, %v2539
        %v4564 = vpack.c.b16 %v2556, %v2548
        %v4565 = vpack.c.b16 %v2557, %v2549
        %v4566 = vpack.c.b16 %v2558, %v2550
        %v4567 = vpack.c.b16 %v2559, %v2551
        %v4568 = vpack.c.b16 %v2560, %v2552
        %v4569 = vpack.c.b16 %v2561, %v2553
        %v4570 = vpack.c.b16 %v2562, %v2554
        %v4571 = vpack.c.b16 %v2563, %v2555
        %v4572 = vpack.c.b16 %v2572, %v2564
        %v4573 = vpack.c.b16 %v2573, %v2565
        %v4574 = vpack.c.b16 %v2574, %v2566
        %v4575 = vpack.c.b16 %v2575, %v2567
        %v4576 = vpack.c.b16 %v2576, %v2568
        %v4577 = vpack.c.b16 %v2577, %v2569
        %v4578 = vpack.c.b16 %v2578, %v2570
        %v4579 = vpack.c.b16 %v2579, %v2571
        %v4580 = vpack.c.b16 %v2588, %v2580
        %v4581 = vpack.c.b16 %v2589, %v2581
        %v4582 = vpack.c.b16 %v2590, %v2582
        %v4583 = vpack.c.b16 %v2591, %v2583
        %v4584 = vpack.c.b16 %v2592, %v2584
        %v4585 = vpack.c.b16 %v2593, %v2585
        %v4586 = vpack.c.b16 %v2594, %v2586
        %v4587 = vpack.c.b16 %v2595, %v2587
        %v4588 = vpack.c.b16 %v2604, %v2596
        %v4589 = vpack.c.b16 %v2605, %v2597
        %v4590 = vpack.c.b16 %v2606, %v2598
        %v4591 = vpack.c.b16 %v2607, %v2599
        %v4592 = vpack.c.b16 %v2608, %v2600
        %v4593 = vpack.c.b16 %v2609, %v2601
        %v4594 = vpack.c.b16 %v2610, %v2602
        %v4595 = vpack.c.b16 %v2611, %v2603
        %v4596 = vpack.c.b16 %v2620, %v2612
        %v4597 = vpack.c.b16 %v2621, %v2613
        %v4598 = vpack.c.b16 %v2622, %v2614
        %v4599 = vpack.c.b16 %v2623, %v2615
        %v4600 = vpack.c.b16 %v2624, %v2616
        %v4601 = vpack.c.b16 %v2625, %v2617
        %v4602 = vpack.c.b16 %v2626, %v2618
        %v4603 = vpack.c.b16 %v2627, %v2619
        %v4604 = vpack.c.b16 %v2636, %v2628
        %v4605 = vpack.c.b16 %v2637, %v2629
        %v4606 = vpack.c.b16 %v2638, %v2630
        %v4607 = vpack.c.b16 %v2639, %v2631
        %v4608 = vpack.c.b16 %v2640, %v2632
        %v4609 = vpack.c.b16 %v2641, %v2633
        %v4610 = vpack.c.b16 %v2642, %v2634
        %v4611 = vpack.c.b16 %v2643, %v2635
        %v4612 = vpack.c.b16 %v2652, %v2644
        %v4613 = vpack.c.b16 %v2653, %v2645
        %v4614 = vpack.c.b16 %v2654, %v2646
        %v4615 = vpack.c.b16 %v2655, %v2647
        %v4616 = vpack.c.b16 %v2656, %v2648
        %v4617 = vpack.c.b16 %v2657, %v2649
        %v4618 = vpack.c.b16 %v2658, %v2650
        %v4619 = vpack.c.b16 %v2659, %v2651
        %v4620 = vpack.c.b16 %v2668, %v2660
        %v4621 = vpack.c.b16 %v2669, %v2661
        %v4622 = vpack.c.b16 %v2670, %v2662
        %v4623 = vpack.c.b16 %v2671, %v2663
        %v4624 = vpack.c.b16 %v2672, %v2664
        %v4625 = vpack.c.b16 %v2673, %v2665
        %v4626 = vpack.c.b16 %v2674, %v2666
        %v4627 = vpack.c.b16 %v2675, %v2667
        %v4628 = vpack.c.b16 %v2684, %v2676
        %v4629 = vpack.c.b16 %v2685, %v2677
        %v4630 = vpack.c.b16 %v2686, %v2678
        %v4631 = vpack.c.b16 %v2687, %v2679
        %v4632 = vpack.c.b16 %v2688, %v2680
        %v4633 = vpack.c.b16 %v2689, %v2681
        %v4634 = vpack.c.b16 %v2690, %v2682
        %v4635 = vpack.c.b16 %v2691, %v2683
        %v4636 = vpack.c.b16 %v2700, %v2692
        %v4637 = vpack.c.b16 %v2701, %v2693
        %v4638 = vpack.c.b16 %v2702, %v2694
        %v4639 = vpack.c.b16 %v2703, %v2695
        %v4640 = vpack.c.b16 %v2704, %v2696
        %v4641 = vpack.c.b16 %v2705, %v2697
        %v4642 = vpack.c.b16 %v2706, %v2698
        %v4643 = vpack.c.b16 %v2707, %v2699
        %v4644 = vpack.c.b16 %v2716, %v2708
        %v4645 = vpack.c.b16 %v2717, %v2709
        %v4646 = vpack.c.b16 %v2718, %v2710
        %v4647 = vpack.c.b16 %v2719, %v2711
        %v4648 = vpack.c.b16 %v2720, %v2712
        %v4649 = vpack.c.b16 %v2721, %v2713
        %v4650 = vpack.c.b16 %v2722, %v2714
        %v4651 = vpack.c.b16 %v2723, %v2715
        %v4652 = vpack.c.b16 %v2732, %v2724
        %v4653 = vpack.c.b16 %v2733, %v2725
        %v4654 = vpack.c.b16 %v2734, %v2726
        %v4655 = vpack.c.b16 %v2735, %v2727
        %v4656 = vpack.c.b16 %v2736, %v2728
        %v4657 = vpack.c.b16 %v2737, %v2729
        %v4658 = vpack.c.b16 %v2738, %v2730
        %v4659 = vpack.c.b16 %v2739, %v2731
        %v4660 = vpack.c.b16 %v2748, %v2740
        %v4661 = vpack.c.b16 %v2749, %v2741
        %v4662 = vpack.c.b16 %v2750, %v2742
        %v4663 = vpack.c.b16 %v2751, %v2743
        %v4664 = vpack.c.b16 %v2752, %v2744
        %v4665 = vpack.c.b16 %v2753, %v2745
        %v4666 = vpack.c.b16 %v2754, %v2746
        %v4667 = vpack.c.b16 %v2755, %v2747
        %v4668 = vpack.c.b16 %v2764, %v2756
        %v4669 = vpack.c.b16 %v2765, %v2757
        %v4670 = vpack.c.b16 %v2766, %v2758
        %v4671 = vpack.c.b16 %v2767, %v2759
        %v4672 = vpack.c.b16 %v2768, %v2760
        %v4673 = vpack.c.b16 %v2769, %v2761
        %v4674 = vpack.c.b16 %v2770, %v2762
        %v4675 = vpack.c.b16 %v2771, %v2763
        %v4676 = vpack.c.b16 %v2780, %v2772
        %v4677 = vpack.c.b16 %v2781, %v2773
        %v4678 = vpack.c.b16 %v2782, %v2774
        %v4679 = vpack.c.b16 %v2783, %v2775
        %v4680 = vpack.c.b16 %v2784, %v2776
        %v4681 = vpack.c.b16 %v2785, %v2777
        %v4682 = vpack.c.b16 %v2786, %v2778
        %v4683 = vpack.c.b16 %v2787, %v2779
        %v4684 = vpack.c.b16 %v2796, %v2788
        %v4685 = vpack.c.b16 %v2797, %v2789
        %v4686 = vpack.c.b16 %v2798, %v2790
        %v4687 = vpack.c.b16 %v2799, %v2791
        %v4688 = vpack.c.b16 %v2800, %v2792
        %v4689 = vpack.c.b16 %v2801, %v2793
        %v4690 = vpack.c.b16 %v2802, %v2794
        %v4691 = vpack.c.b16 %v2803, %v2795
        %v4692 = vpack.c.b16 %v2812, %v2804
        %v4693 = vpack.c.b16 %v2813, %v2805
        %v4694 = vpack.c.b16 %v2814, %v2806
        %v4695 = vpack.c.b16 %v2815, %v2807
        %v4696 = vpack.c.b16 %v2816, %v2808
        %v4697 = vpack.c.b16 %v2817, %v2809
        %v4698 = vpack.c.b16 %v2818, %v2810
        %v4699 = vpack.c.b16 %v2819, %v2811
        %v4700 = vpack.c.b16 %v2828, %v2820
        %v4701 = vpack.c.b16 %v2829, %v2821
        %v4702 = vpack.c.b16 %v2830, %v2822
        %v4703 = vpack.c.b16 %v2831, %v2823
        %v4704 = vpack.c.b16 %v2832, %v2824
        %v4705 = vpack.c.b16 %v2833, %v2825
        %v4706 = vpack.c.b16 %v2834, %v2826
        %v4707 = vpack.c.b16 %v2835, %v2827
        %v4708 = vpack.c.b16 %v2844, %v2836
        %v4709 = vpack.c.b16 %v2845, %v2837
        %v4710 = vpack.c.b16 %v2846, %v2838
        %v4711 = vpack.c.b16 %v2847, %v2839
        %v4712 = vpack.c.b16 %v2848, %v2840
        %v4713 = vpack.c.b16 %v2849, %v2841
        %v4714 = vpack.c.b16 %v2850, %v2842
        %v4715 = vpack.c.b16 %v2851, %v2843
        %v4716 = vpack.c.b16 %v2860, %v2852
        %v4717 = vpack.c.b16 %v2861, %v2853
        %v4718 = vpack.c.b16 %v2862, %v2854
        %v4719 = vpack.c.b16 %v2863, %v2855
        %v4720 = vpack.c.b16 %v2864, %v2856
        %v4721 = vpack.c.b16 %v2865, %v2857
        %v4722 = vpack.c.b16 %v2866, %v2858
        %v4723 = vpack.c.b16 %v2867, %v2859
        %v4724 = vpack.c.b16 %v2876, %v2868
        %v4725 = vpack.c.b16 %v2877, %v2869
        %v4726 = vpack.c.b16 %v2878, %v2870
        %v4727 = vpack.c.b16 %v2879, %v2871
        %v4728 = vpack.c.b16 %v2880, %v2872
        %v4729 = vpack.c.b16 %v2881, %v2873
        %v4730 = vpack.c.b16 %v2882, %v2874
        %v4731 = vpack.c.b16 %v2883, %v2875
        %v4732 = vpack.c.b16 %v2892, %v2884
        %v4733 = vpack.c.b16 %v2893, %v2885
        %v4734 = vpack.c.b16 %v2894, %v2886
        %v4735 = vpack.c.b16 %v2895, %v2887
        %v4736 = vpack.c.b16 %v2896, %v2888
        %v4737 = vpack.c.b16 %v2897, %v2889
        %v4738 = vpack.c.b16 %v2898, %v2890
        %v4739 = vpack.c.b16 %v2899, %v2891
        %v4740 = vpack.c.b16 %v2908, %v2900
        %v4741 = vpack.c.b16 %v2909, %v2901
        %v4742 = vpack.c.b16 %v2910, %v2902
        %v4743 = vpack.c.b16 %v2911, %v2903
        %v4744 = vpack.c.b16 %v2912, %v2904
        %v4745 = vpack.c.b16 %v2913, %v2905
        %v4746 = vpack.c.b16 %v2914, %v2906
        %v4747 = vpack.c.b16 %v2915, %v2907
        %v4748 = vpack.c.b16 %v2924, %v2916
        %v4749 = vpack.c.b16 %v2925, %v2917
        %v4750 = vpack.c.b16 %v2926, %v2918
        %v4751 = vpack.c.b16 %v2927, %v2919
        %v4752 = vpack.c.b16 %v2928, %v2920
        %v4753 = vpack.c.b16 %v2929, %v2921
        %v4754 = vpack.c.b16 %v2930, %v2922
        %v4755 = vpack.c.b16 %v2931, %v2923
        %v4756 = vpack.c.b16 %v2940, %v2932
        %v4757 = vpack.c.b16 %v2941, %v2933
        %v4758 = vpack.c.b16 %v2942, %v2934
        %v4759 = vpack.c.b16 %v2943, %v2935
        %v4760 = vpack.c.b16 %v2944, %v2936
        %v4761 = vpack.c.b16 %v2945, %v2937
        %v4762 = vpack.c.b16 %v2946, %v2938
        %v4763 = vpack.c.b16 %v2947, %v2939
        %v4764 = vpack.c.b16 %v2956, %v2948
        %v4765 = vpack.c.b16 %v2957, %v2949
        %v4766 = vpack.c.b16 %v2958, %v2950
        %v4767 = vpack.c.b16 %v2959, %v2951
        %v4768 = vpack.c.b16 %v2960, %v2952
        %v4769 = vpack.c.b16 %v2961, %v2953
        %v4770 = vpack.c.b16 %v2962, %v2954
        %v4771 = vpack.c.b16 %v2963, %v2955
        %v4772 = vpack.c.b16 %v2972, %v2964
        %v4773 = vpack.c.b16 %v2973, %v2965
        %v4774 = vpack.c.b16 %v2974, %v2966
        %v4775 = vpack.c.b16 %v2975, %v2967
        %v4776 = vpack.c.b16 %v2976, %v2968
        %v4777 = vpack.c.b16 %v2977, %v2969
        %v4778 = vpack.c.b16 %v2978, %v2970
        %v4779 = vpack.c.b16 %v2979, %v2971
        %v4780 = vpack.c.b16 %v2988, %v2980
        %v4781 = vpack.c.b16 %v2989, %v2981
        %v4782 = vpack.c.b16 %v2990, %v2982
        %v4783 = vpack.c.b16 %v2991, %v2983
        %v4784 = vpack.c.b16 %v2992, %v2984
        %v4785 = vpack.c.b16 %v2993, %v2985
        %v4786 = vpack.c.b16 %v2994, %v2986
        %v4787 = vpack.c.b16 %v2995, %v2987
        %v4788 = vpack.c.b16 %v3004, %v2996
        %v4789 = vpack.c.b16 %v3005, %v2997
        %v4790 = vpack.c.b16 %v3006, %v2998
        %v4791 = vpack.c.b16 %v3007, %v2999
        %v4792 = vpack.c.b16 %v3008, %v3000
        %v4793 = vpack.c.b16 %v3009, %v3001
        %v4794 = vpack.c.b16 %v3010, %v3002
        %v4795 = vpack.c.b16 %v3011, %v3003
        %v4796 = vpack.c.b16 %v3020, %v3012
        %v4797 = vpack.c.b16 %v3021, %v3013
        %v4798 = vpack.c.b16 %v3022, %v3014
        %v4799 = vpack.c.b16 %v3023, %v3015
        %v4800 = vpack.c.b16 %v3024, %v3016
        %v4801 = vpack.c.b16 %v3025, %v3017
        %v4802 = vpack.c.b16 %v3026, %v3018
        %v4803 = vpack.c.b16 %v3027, %v3019
        %v4804 = vpack.c.b16 %v3036, %v3028
        %v4805 = vpack.c.b16 %v3037, %v3029
        %v4806 = vpack.c.b16 %v3038, %v3030
        %v4807 = vpack.c.b16 %v3039, %v3031
        %v4808 = vpack.c.b16 %v3040, %v3032
        %v4809 = vpack.c.b16 %v3041, %v3033
        %v4810 = vpack.c.b16 %v3042, %v3034
        %v4811 = vpack.c.b16 %v3043, %v3035
        %v4812 = vpack.c.b16 %v3052, %v3044
        %v4813 = vpack.c.b16 %v3053, %v3045
        %v4814 = vpack.c.b16 %v3054, %v3046
        %v4815 = vpack.c.b16 %v3055, %v3047
        %v4816 = vpack.c.b16 %v3056, %v3048
        %v4817 = vpack.c.b16 %v3057, %v3049
        %v4818 = vpack.c.b16 %v3058, %v3050
        %v4819 = vpack.c.b16 %v3059, %v3051
        %v4820 = vpack.c.b16 %v3068, %v3060
        %v4821 = vpack.c.b16 %v3069, %v3061
        %v4822 = vpack.c.b16 %v3070, %v3062
        %v4823 = vpack.c.b16 %v3071, %v3063
        %v4824 = vpack.c.b16 %v3072, %v3064
        %v4825 = vpack.c.b16 %v3073, %v3065
        %v4826 = vpack.c.b16 %v3074, %v3066
        %v4827 = vpack.c.b16 %v3075, %v3067
        %v4828 = vpack.c.b16 %v3084, %v3076
        %v4829 = vpack.c.b16 %v3085, %v3077
        %v4830 = vpack.c.b16 %v3086, %v3078
        %v4831 = vpack.c.b16 %v3087, %v3079
        %v4832 = vpack.c.b16 %v3088, %v3080
        %v4833 = vpack.c.b16 %v3089, %v3081
        %v4834 = vpack.c.b16 %v3090, %v3082
        %v4835 = vpack.c.b16 %v3091, %v3083
        %v4836 = vpack.c.b16 %v3100, %v3092
        %v4837 = vpack.c.b16 %v3101, %v3093
        %v4838 = vpack.c.b16 %v3102, %v3094
        %v4839 = vpack.c.b16 %v3103, %v3095
        %v4840 = vpack.c.b16 %v3104, %v3096
        %v4841 = vpack.c.b16 %v3105, %v3097
        %v4842 = vpack.c.b16 %v3106, %v3098
        %v4843 = vpack.c.b16 %v3107, %v3099
        %v4844 = vpack.c.b16 %v3116, %v3108
        %v4845 = vpack.c.b16 %v3117, %v3109
        %v4846 = vpack.c.b16 %v3118, %v3110
        %v4847 = vpack.c.b16 %v3119, %v3111
        %v4848 = vpack.c.b16 %v3120, %v3112
        %v4849 = vpack.c.b16 %v3121, %v3113
        %v4850 = vpack.c.b16 %v3122, %v3114
        %v4851 = vpack.c.b16 %v3123, %v3115
        %v4852 = vpack.c.b16 %v3132, %v3124
        %v4853 = vpack.c.b16 %v3133, %v3125
        %v4854 = vpack.c.b16 %v3134, %v3126
        %v4855 = vpack.c.b16 %v3135, %v3127
        %v4856 = vpack.c.b16 %v3136, %v3128
        %v4857 = vpack.c.b16 %v3137, %v3129
        %v4858 = vpack.c.b16 %v3138, %v3130
        %v4859 = vpack.c.b16 %v3139, %v3131
        %v4860 = vpack.c.b16 %v3148, %v3140
        %v4861 = vpack.c.b16 %v3149, %v3141
        %v4862 = vpack.c.b16 %v3150, %v3142
        %v4863 = vpack.c.b16 %v3151, %v3143
        %v4864 = vpack.c.b16 %v3152, %v3144
        %v4865 = vpack.c.b16 %v3153, %v3145
        %v4866 = vpack.c.b16 %v3154, %v3146
        %v4867 = vpack.c.b16 %v3155, %v3147
        %v4868 = vpack.c.b16 %v3164, %v3156
        %v4869 = vpack.c.b16 %v3165, %v3157
        %v4870 = vpack.c.b16 %v3166, %v3158
        %v4871 = vpack.c.b16 %v3167, %v3159
        %v4872 = vpack.c.b16 %v3168, %v3160
        %v4873 = vpack.c.b16 %v3169, %v3161
        %v4874 = vpack.c.b16 %v3170, %v3162
        %v4875 = vpack.c.b16 %v3171, %v3163
        %v4876 = vpack.c.b16 %v3180, %v3172
        %v4877 = vpack.c.b16 %v3181, %v3173
        %v4878 = vpack.c.b16 %v3182, %v3174
        %v4879 = vpack.c.b16 %v3183, %v3175
        %v4880 = vpack.c.b16 %v3184, %v3176
        %v4881 = vpack.c.b16 %v3185, %v3177
        %v4882 = vpack.c.b16 %v3186, %v3178
        %v4883 = vpack.c.b16 %v3187, %v3179
        %v4884 = vpack.c.b16 %v3196, %v3188
        %v4885 = vpack.c.b16 %v3197, %v3189
        %v4886 = vpack.c.b16 %v3198, %v3190
        %v4887 = vpack.c.b16 %v3199, %v3191
        %v4888 = vpack.c.b16 %v3200, %v3192
        %v4889 = vpack.c.b16 %v3201, %v3193
        %v4890 = vpack.c.b16 %v3202, %v3194
        %v4891 = vpack.c.b16 %v3203, %v3195
        %v4892 = vpack.c.b16 %v3212, %v3204
        %v4893 = vpack.c.b16 %v3213, %v3205
        %v4894 = vpack.c.b16 %v3214, %v3206
        %v4895 = vpack.c.b16 %v3215, %v3207
        %v4896 = vpack.c.b16 %v3216, %v3208
        %v4897 = vpack.c.b16 %v3217, %v3209
        %v4898 = vpack.c.b16 %v3218, %v3210
        %v4899 = vpack.c.b16 %v3219, %v3211
        %v4900 = vpack.c.b16 %v3228, %v3220
        %v4901 = vpack.c.b16 %v3229, %v3221
        %v4902 = vpack.c.b16 %v3230, %v3222
        %v4903 = vpack.c.b16 %v3231, %v3223
        %v4904 = vpack.c.b16 %v3232, %v3224
        %v4905 = vpack.c.b16 %v3233, %v3225
        %v4906 = vpack.c.b16 %v3234, %v3226
        %v4907 = vpack.c.b16 %v3235, %v3227
        %v4908 = vpack.c.b16 %v3244, %v3236
        %v4909 = vpack.c.b16 %v3245, %v3237
        %v4910 = vpack.c.b16 %v3246, %v3238
        %v4911 = vpack.c.b16 %v3247, %v3239
        %v4912 = vpack.c.b16 %v3248, %v3240
        %v4913 = vpack.c.b16 %v3249, %v3241
        %v4914 = vpack.c.b16 %v3250, %v3242
        %v4915 = vpack.c.b16 %v3251, %v3243
        %v4916 = vpack.c.b16 %v3260, %v3252
        %v4917 = vpack.c.b16 %v3261, %v3253
        %v4918 = vpack.c.b16 %v3262, %v3254
        %v4919 = vpack.c.b16 %v3263, %v3255
        %v4920 = vpack.c.b16 %v3264, %v3256
        %v4921 = vpack.c.b16 %v3265, %v3257
        %v4922 = vpack.c.b16 %v3266, %v3258
        %v4923 = vpack.c.b16 %v3267, %v3259
        %v4924 = vpack.c.b16 %v3276, %v3268
        %v4925 = vpack.c.b16 %v3277, %v3269
        %v4926 = vpack.c.b16 %v3278, %v3270
        %v4927 = vpack.c.b16 %v3279, %v3271
        %v4928 = vpack.c.b16 %v3280, %v3272
        %v4929 = vpack.c.b16 %v3281, %v3273
        %v4930 = vpack.c.b16 %v3282, %v3274
        %v4931 = vpack.c.b16 %v3283, %v3275
        %v4932 = vpack.c.b16 %v3292, %v3284
        %v4933 = vpack.c.b16 %v3293, %v3285
        %v4934 = vpack.c.b16 %v3294, %v3286
        %v4935 = vpack.c.b16 %v3295, %v3287
        %v4936 = vpack.c.b16 %v3296, %v3288
        %v4937 = vpack.c.b16 %v3297, %v3289
        %v4938 = vpack.c.b16 %v3298, %v3290
        %v4939 = vpack.c.b16 %v3299, %v3291
        %v4940 = vpack.c.b16 %v3308, %v3300
        %v4941 = vpack.c.b16 %v3309, %v3301
        %v4942 = vpack.c.b16 %v3310, %v3302
        %v4943 = vpack.c.b16 %v3311, %v3303
        %v4944 = vpack.c.b16 %v3312, %v3304
        %v4945 = vpack.c.b16 %v3313, %v3305
        %v4946 = vpack.c.b16 %v3314, %v3306
        %v4947 = vpack.c.b16 %v3315, %v3307
        %v4948 = vpack.c.b16 %v3324, %v3316
        %v4949 = vpack.c.b16 %v3325, %v3317
        %v4950 = vpack.c.b16 %v3326, %v3318
        %v4951 = vpack.c.b16 %v3327, %v3319
        %v4952 = vpack.c.b16 %v3328, %v3320
        %v4953 = vpack.c.b16 %v3329, %v3321
        %v4954 = vpack.c.b16 %v3330, %v3322
        %v4955 = vpack.c.b16 %v3331, %v3323
        %v4956 = vpack.c.b16 %v3340, %v3332
        %v4957 = vpack.c.b16 %v3341, %v3333
        %v4958 = vpack.c.b16 %v3342, %v3334
        %v4959 = vpack.c.b16 %v3343, %v3335
        %v4960 = vpack.c.b16 %v3344, %v3336
        %v4961 = vpack.c.b16 %v3345, %v3337
        %v4962 = vpack.c.b16 %v3346, %v3338
        %v4963 = vpack.c.b16 %v3347, %v3339
        %v4964 = vpack.c.b16 %v3356, %v3348
        %v4965 = vpack.c.b16 %v3357, %v3349
        %v4966 = vpack.c.b16 %v3358, %v3350
        %v4967 = vpack.c.b16 %v3359, %v3351
        %v4968 = vpack.c.b16 %v3360, %v3352
        %v4969 = vpack.c.b16 %v3361, %v3353
        %v4970 = vpack.c.b16 %v3362, %v3354
        %v4971 = vpack.c.b16 %v3363, %v3355
        %v4972 = vpack.c.b16 %v3372, %v3364
        %v4973 = vpack.c.b16 %v3373, %v3365
        %v4974 = vpack.c.b16 %v3374, %v3366
        %v4975 = vpack.c.b16 %v3375, %v3367
        %v4976 = vpack.c.b16 %v3376, %v3368
        %v4977 = vpack.c.b16 %v3377, %v3369
        %v4978 = vpack.c.b16 %v3378, %v3370
        %v4979 = vpack.c.b16 %v3379, %v3371
        %v4980 = vpack.c.b16 %v3388, %v3380
        %v4981 = vpack.c.b16 %v3389, %v3381
        %v4982 = vpack.c.b16 %v3390, %v3382
        %v4983 = vpack.c.b16 %v3391, %v3383
        %v4984 = vpack.c.b16 %v3392, %v3384
        %v4985 = vpack.c.b16 %v3393, %v3385
        %v4986 = vpack.c.b16 %v3394, %v3386
        %v4987 = vpack.c.b16 %v3395, %v3387
        %v4988 = vpack.c.b16 %v3404, %v3396
        %v4989 = vpack.c.b16 %v3405, %v3397
        %v4990 = vpack.c.b16 %v3406, %v3398
        %v4991 = vpack.c.b16 %v3407, %v3399
        %v4992 = vpack.c.b16 %v3408, %v3400
        %v4993 = vpack.c.b16 %v3409, %v3401
        %v4994 = vpack.c.b16 %v3410, %v3402
        %v4995 = vpack.c.b16 %v3411, %v3403
        %v4996 = vpack.c.b16 %v3420, %v3412
        %v4997 = vpack.c.b16 %v3421, %v3413
        %v4998 = vpack.c.b16 %v3422, %v3414
        %v4999 = vpack.c.b16 %v3423, %v3415
        %v5000 = vpack.c.b16 %v3424, %v3416
        %v5001 = vpack.c.b16 %v3425, %v3417
        %v5002 = vpack.c.b16 %v3426, %v3418
        %v5003 = vpack.c.b16 %v3427, %v3419
        %v5004 = vpack.c.b16 %v3436, %v3428
        %v5005 = vpack.c.b16 %v3437, %v3429
        %v5006 = vpack.c.b16 %v3438, %v3430
        %v5007 = vpack.c.b16 %v3439, %v3431
        %v5008 = vpack.c.b16 %v3440, %v3432
        %v5009 = vpack.c.b16 %v3441, %v3433
        %v5010 = vpack.c.b16 %v3442, %v3434
        %v5011 = vpack.c.b16 %v3443, %v3435
        %v5012 = vpack.c.b16 %v3452, %v3444
        %v5013 = vpack.c.b16 %v3453, %v3445
        %v5014 = vpack.c.b16 %v3454, %v3446
        %v5015 = vpack.c.b16 %v3455, %v3447
        %v5016 = vpack.c.b16 %v3456, %v3448
        %v5017 = vpack.c.b16 %v3457, %v3449
        %v5018 = vpack.c.b16 %v3458, %v3450
        %v5019 = vpack.c.b16 %v3459, %v3451
        %v5020 = vpack.c.b16 %v3468, %v3460
        %v5021 = vpack.c.b16 %v3469, %v3461
        %v5022 = vpack.c.b16 %v3470, %v3462
        %v5023 = vpack.c.b16 %v3471, %v3463
        %v5024 = vpack.c.b16 %v3472, %v3464
        %v5025 = vpack.c.b16 %v3473, %v3465
        %v5026 = vpack.c.b16 %v3474, %v3466
        %v5027 = vpack.c.b16 %v3475, %v3467
        %v5028 = vpack.c.b16 %v3484, %v3476
        %v5029 = vpack.c.b16 %v3485, %v3477
        %v5030 = vpack.c.b16 %v3486, %v3478
        %v5031 = vpack.c.b16 %v3487, %v3479
        %v5032 = vpack.c.b16 %v3488, %v3480
        %v5033 = vpack.c.b16 %v3489, %v3481
        %v5034 = vpack.c.b16 %v3490, %v3482
        %v5035 = vpack.c.b16 %v3491, %v3483
        %v5036 = vpack.c.b16 %v3500, %v3492
        %v5037 = vpack.c.b16 %v3501, %v3493
        %v5038 = vpack.c.b16 %v3502, %v3494
        %v5039 = vpack.c.b16 %v3503, %v3495
        %v5040 = vpack.c.b16 %v3504, %v3496
        %v5041 = vpack.c.b16 %v3505, %v3497
        %v5042 = vpack.c.b16 %v3506, %v3498
        %v5043 = vpack.c.b16 %v3507, %v3499
        %v5044 = vpack.c.b16 %v3516, %v3508
        %v5045 = vpack.c.b16 %v3517, %v3509
        %v5046 = vpack.c.b16 %v3518, %v3510
        %v5047 = vpack.c.b16 %v3519, %v3511
        %v5048 = vpack.c.b16 %v3520, %v3512
        %v5049 = vpack.c.b16 %v3521, %v3513
        %v5050 = vpack.c.b16 %v3522, %v3514
        %v5051 = vpack.c.b16 %v3523, %v3515
        %v5052 = vpack.c.b16 %v3532, %v3524
        %v5053 = vpack.c.b16 %v3533, %v3525
        %v5054 = vpack.c.b16 %v3534, %v3526
        %v5055 = vpack.c.b16 %v3535, %v3527
        %v5056 = vpack.c.b16 %v3536, %v3528
        %v5057 = vpack.c.b16 %v3537, %v3529
        %v5058 = vpack.c.b16 %v3538, %v3530
        %v5059 = vpack.c.b16 %v3539, %v3531
        %v5060 = vpack.c.b16 %v3548, %v3540
        %v5061 = vpack.c.b16 %v3549, %v3541
        %v5062 = vpack.c.b16 %v3550, %v3542
        %v5063 = vpack.c.b16 %v3551, %v3543
        %v5064 = vpack.c.b16 %v3552, %v3544
        %v5065 = vpack.c.b16 %v3553, %v3545
        %v5066 = vpack.c.b16 %v3554, %v3546
        %v5067 = vpack.c.b16 %v3555, %v3547
        %v5068 = vpack.c.b16 %v3564, %v3556
        %v5069 = vpack.c.b16 %v3565, %v3557
        %v5070 = vpack.c.b16 %v3566, %v3558
        %v5071 = vpack.c.b16 %v3567, %v3559
        %v5072 = vpack.c.b16 %v3568, %v3560
        %v5073 = vpack.c.b16 %v3569, %v3561
        %v5074 = vpack.c.b16 %v3570, %v3562
        %v5075 = vpack.c.b16 %v3571, %v3563
        %v5076 = vpack.c.b16 %v3580, %v3572
        %v5077 = vpack.c.b16 %v3581, %v3573
        %v5078 = vpack.c.b16 %v3582, %v3574
        %v5079 = vpack.c.b16 %v3583, %v3575
        %v5080 = vpack.c.b16 %v3584, %v3576
        %v5081 = vpack.c.b16 %v3585, %v3577
        %v5082 = vpack.c.b16 %v3586, %v3578
        %v5083 = vpack.c.b16 %v3587, %v3579
        %v5084 = vpack.c.b16 %v3596, %v3588
        %v5085 = vpack.c.b16 %v3597, %v3589
        %v5086 = vpack.c.b16 %v3598, %v3590
        %v5087 = vpack.c.b16 %v3599, %v3591
        %v5088 = vpack.c.b16 %v3600, %v3592
        %v5089 = vpack.c.b16 %v3601, %v3593
        %v5090 = vpack.c.b16 %v3602, %v3594
        %v5091 = vpack.c.b16 %v3603, %v3595
        %v5092 = vpack.c.b16 %v3612, %v3604
        %v5093 = vpack.c.b16 %v3613, %v3605
        %v5094 = vpack.c.b16 %v3614, %v3606
        %v5095 = vpack.c.b16 %v3615, %v3607
        %v5096 = vpack.c.b16 %v3616, %v3608
        %v5097 = vpack.c.b16 %v3617, %v3609
        %v5098 = vpack.c.b16 %v3618, %v3610
        %v5099 = vpack.c.b16 %v3619, %v3611
        %v5100 = vpack.c.b16 %v3628, %v3620
        %v5101 = vpack.c.b16 %v3629, %v3621
        %v5102 = vpack.c.b16 %v3630, %v3622
        %v5103 = vpack.c.b16 %v3631, %v3623
        %v5104 = vpack.c.b16 %v3632, %v3624
        %v5105 = vpack.c.b16 %v3633, %v3625
        %v5106 = vpack.c.b16 %v3634, %v3626
        %v5107 = vpack.c.b16 %v3635, %v3627
        %v5108 = vpack.c.b16 %v3644, %v3636
        %v5109 = vpack.c.b16 %v3645, %v3637
        %v5110 = vpack.c.b16 %v3646, %v3638
        %v5111 = vpack.c.b16 %v3647, %v3639
        %v5112 = vpack.c.b16 %v3648, %v3640
        %v5113 = vpack.c.b16 %v3649, %v3641
        %v5114 = vpack.c.b16 %v3650, %v3642
        %v5115 = vpack.c.b16 %v3651, %v3643
        %v5116 = vpack.c.b16 %v3660, %v3652
        %v5117 = vpack.c.b16 %v3661, %v3653
        %v5118 = vpack.c.b16 %v3662, %v3654
        %v5119 = vpack.c.b16 %v3663, %v3655
        %v5120 = vpack.c.b16 %v3664, %v3656
        %v5121 = vpack.c.b16 %v3665, %v3657
        %v5122 = vpack.c.b16 %v3666, %v3658
        %v5123 = vpack.c.b16 %v3667, %v3659
        %v5124 = vpack.c.b16 %v3676, %v3668
        %v5125 = vpack.c.b16 %v3677, %v3669
        %v5126 = vpack.c.b16 %v3678, %v3670
        %v5127 = vpack.c.b16 %v3679, %v3671
        %v5128 = vpack.c.b16 %v3680, %v3672
        %v5129 = vpack.c.b16 %v3681, %v3673
        %v5130 = vpack.c.b16 %v3682, %v3674
        %v5131 = vpack.c.b16 %v3683, %v3675
        %v5132 = vpack.c.b16 %v3692, %v3684
        %v5133 = vpack.c.b16 %v3693, %v3685
        %v5134 = vpack.c.b16 %v3694, %v3686
        %v5135 = vpack.c.b16 %v3695, %v3687
        %v5136 = vpack.c.b16 %v3696, %v3688
        %v5137 = vpack.c.b16 %v3697, %v3689
        %v5138 = vpack.c.b16 %v3698, %v3690
        %v5139 = vpack.c.b16 %v3699, %v3691
        %v5140 = vpack.c.b16 %v3708, %v3700
        %v5141 = vpack.c.b16 %v3709, %v3701
        %v5142 = vpack.c.b16 %v3710, %v3702
        %v5143 = vpack.c.b16 %v3711, %v3703
        %v5144 = vpack.c.b16 %v3712, %v3704
        %v5145 = vpack.c.b16 %v3713, %v3705
        %v5146 = vpack.c.b16 %v3714, %v3706
        %v5147 = vpack.c.b16 %v3715, %v3707
        %v5148 = vpack.c.b16 %v3724, %v3716
        %v5149 = vpack.c.b16 %v3725, %v3717
        %v5150 = vpack.c.b16 %v3726, %v3718
        %v5151 = vpack.c.b16 %v3727, %v3719
        %v5152 = vpack.c.b16 %v3728, %v3720
        %v5153 = vpack.c.b16 %v3729, %v3721
        %v5154 = vpack.c.b16 %v3730, %v3722
        %v5155 = vpack.c.b16 %v3731, %v3723
        %v5156 = vpack.c.b16 %v3740, %v3732
        %v5157 = vpack.c.b16 %v3741, %v3733
        %v5158 = vpack.c.b16 %v3742, %v3734
        %v5159 = vpack.c.b16 %v3743, %v3735
        %v5160 = vpack.c.b16 %v3744, %v3736
        %v5161 = vpack.c.b16 %v3745, %v3737
        %v5162 = vpack.c.b16 %v3746, %v3738
        %v5163 = vpack.c.b16 %v3747, %v3739
        %v5164 = vpack.c.b16 %v3756, %v3748
        %v5165 = vpack.c.b16 %v3757, %v3749
        %v5166 = vpack.c.b16 %v3758, %v3750
        %v5167 = vpack.c.b16 %v3759, %v3751
        %v5168 = vpack.c.b16 %v3760, %v3752
        %v5169 = vpack.c.b16 %v3761, %v3753
        %v5170 = vpack.c.b16 %v3762, %v3754
        %v5171 = vpack.c.b16 %v3763, %v3755
        %v5172 = vpack.c.b16 %v3772, %v3764
        %v5173 = vpack.c.b16 %v3773, %v3765
        %v5174 = vpack.c.b16 %v3774, %v3766
        %v5175 = vpack.c.b16 %v3775, %v3767
        %v5176 = vpack.c.b16 %v3776, %v3768
        %v5177 = vpack.c.b16 %v3777, %v3769
        %v5178 = vpack.c.b16 %v3778, %v3770
        %v5179 = vpack.c.b16 %v3779, %v3771
        %v5180 = vpack.c.b16 %v3788, %v3780
        %v5181 = vpack.c.b16 %v3789, %v3781
        %v5182 = vpack.c.b16 %v3790, %v3782
        %v5183 = vpack.c.b16 %v3791, %v3783
        %v5184 = vpack.c.b16 %v3792, %v3784
        %v5185 = vpack.c.b16 %v3793, %v3785
        %v5186 = vpack.c.b16 %v3794, %v3786
        %v5187 = vpack.c.b16 %v3795, %v3787
        %v5188 = vpack.c.b16 %v3804, %v3796
        %v5189 = vpack.c.b16 %v3805, %v3797
        %v5190 = vpack.c.b16 %v3806, %v3798
        %v5191 = vpack.c.b16 %v3807, %v3799
        %v5192 = vpack.c.b16 %v3808, %v3800
        %v5193 = vpack.c.b16 %v3809, %v3801
        %v5194 = vpack.c.b16 %v3810, %v3802
        %v5195 = vpack.c.b16 %v3811, %v3803
        %v5196 = vpack.c.b16 %v3820, %v3812
        %v5197 = vpack.c.b16 %v3821, %v3813
        %v5198 = vpack.c.b16 %v3822, %v3814
        %v5199 = vpack.c.b16 %v3823, %v3815
        %v5200 = vpack.c.b16 %v3824, %v3816
        %v5201 = vpack.c.b16 %v3825, %v3817
        %v5202 = vpack.c.b16 %v3826, %v3818
        %v5203 = vpack.c.b16 %v3827, %v3819
        %v5204 = vpack.c.b16 %v3836, %v3828
        %v5205 = vpack.c.b16 %v3837, %v3829
        %v5206 = vpack.c.b16 %v3838, %v3830
        %v5207 = vpack.c.b16 %v3839, %v3831
        %v5208 = vpack.c.b16 %v3840, %v3832
        %v5209 = vpack.c.b16 %v3841, %v3833
        %v5210 = vpack.c.b16 %v3842, %v3834
        %v5211 = vpack.c.b16 %v3843, %v3835
        %v5212 = vpack.c.b16 %v3852, %v3844
        %v5213 = vpack.c.b16 %v3853, %v3845
        %v5214 = vpack.c.b16 %v3854, %v3846
        %v5215 = vpack.c.b16 %v3855, %v3847
        %v5216 = vpack.c.b16 %v3856, %v3848
        %v5217 = vpack.c.b16 %v3857, %v3849
        %v5218 = vpack.c.b16 %v3858, %v3850
        %v5219 = vpack.c.b16 %v3859, %v3851
        %v5220 = vpack.c.b16 %v3868, %v3860
        %v5221 = vpack.c.b16 %v3869, %v3861
        %v5222 = vpack.c.b16 %v3870, %v3862
        %v5223 = vpack.c.b16 %v3871, %v3863
        %v5224 = vpack.c.b16 %v3872, %v3864
        %v5225 = vpack.c.b16 %v3873, %v3865
        %v5226 = vpack.c.b16 %v3874, %v3866
        %v5227 = vpack.c.b16 %v3875, %v3867
        %v5228 = vpack.c.b16 %v3884, %v3876
        %v5229 = vpack.c.b16 %v3885, %v3877
        %v5230 = vpack.c.b16 %v3886, %v3878
        %v5231 = vpack.c.b16 %v3887, %v3879
        %v5232 = vpack.c.b16 %v3888, %v3880
        %v5233 = vpack.c.b16 %v3889, %v3881
        %v5234 = vpack.c.b16 %v3890, %v3882
        %v5235 = vpack.c.b16 %v3891, %v3883
        %v5236 = vpack.c.b16 %v3900, %v3892
        %v5237 = vpack.c.b16 %v3901, %v3893
        %v5238 = vpack.c.b16 %v3902, %v3894
        %v5239 = vpack.c.b16 %v3903, %v3895
        %v5240 = vpack.c.b16 %v3904, %v3896
        %v5241 = vpack.c.b16 %v3905, %v3897
        %v5242 = vpack.c.b16 %v3906, %v3898
        %v5243 = vpack.c.b16 %v3907, %v3899
        %v5244 = vpack.c.b16 %v3916, %v3908
        %v5245 = vpack.c.b16 %v3917, %v3909
        %v5246 = vpack.c.b16 %v3918, %v3910
        %v5247 = vpack.c.b16 %v3919, %v3911
        %v5248 = vpack.c.b16 %v3920, %v3912
        %v5249 = vpack.c.b16 %v3921, %v3913
        %v5250 = vpack.c.b16 %v3922, %v3914
        %v5251 = vpack.c.b16 %v3923, %v3915
        %v5252 = vpack.c.b16 %v3932, %v3924
        %v5253 = vpack.c.b16 %v3933, %v3925
        %v5254 = vpack.c.b16 %v3934, %v3926
        %v5255 = vpack.c.b16 %v3935, %v3927
        %v5256 = vpack.c.b16 %v3936, %v3928
        %v5257 = vpack.c.b16 %v3937, %v3929
        %v5258 = vpack.c.b16 %v3938, %v3930
        %v5259 = vpack.c.b16 %v3939, %v3931
        %v5260 = vpack.c.b16 %v3948, %v3940
        %v5261 = vpack.c.b16 %v3949, %v3941
        %v5262 = vpack.c.b16 %v3950, %v3942
        %v5263 = vpack.c.b16 %v3951, %v3943
        %v5264 = vpack.c.b16 %v3952, %v3944
        %v5265 = vpack.c.b16 %v3953, %v3945
        %v5266 = vpack.c.b16 %v3954, %v3946
        %v5267 = vpack.c.b16 %v3955, %v3947
        %v5268 = vpack.c.b16 %v3964, %v3956
        %v5269 = vpack.c.b16 %v3965, %v3957
        %v5270 = vpack.c.b16 %v3966, %v3958
        %v5271 = vpack.c.b16 %v3967, %v3959
        %v5272 = vpack.c.b16 %v3968, %v3960
        %v5273 = vpack.c.b16 %v3969, %v3961
        %v5274 = vpack.c.b16 %v3970, %v3962
        %v5275 = vpack.c.b16 %v3971, %v3963
        %v5276 = vpack.c.b16 %v3980, %v3972
        %v5277 = vpack.c.b16 %v3981, %v3973
        %v5278 = vpack.c.b16 %v3982, %v3974
        %v5279 = vpack.c.b16 %v3983, %v3975
        %v5280 = vpack.c.b16 %v3984, %v3976
        %v5281 = vpack.c.b16 %v3985, %v3977
        %v5282 = vpack.c.b16 %v3986, %v3978
        %v5283 = vpack.c.b16 %v3987, %v3979
        %v5284 = vpack.c.b16 %v3996, %v3988
        %v5285 = vpack.c.b16 %v3997, %v3989
        %v5286 = vpack.c.b16 %v3998, %v3990
        %v5287 = vpack.c.b16 %v3999, %v3991
        %v5288 = vpack.c.b16 %v4000, %v3992
        %v5289 = vpack.c.b16 %v4001, %v3993
        %v5290 = vpack.c.b16 %v4002, %v3994
        %v5291 = vpack.c.b16 %v4003, %v3995
        %v5292 = vpack.c.b16 %v4012, %v4004
        %v5293 = vpack.c.b16 %v4013, %v4005
        %v5294 = vpack.c.b16 %v4014, %v4006
        %v5295 = vpack.c.b16 %v4015, %v4007
        %v5296 = vpack.c.b16 %v4016, %v4008
        %v5297 = vpack.c.b16 %v4017, %v4009
        %v5298 = vpack.c.b16 %v4018, %v4010
        %v5299 = vpack.c.b16 %v4019, %v4011
        %v5300 = vpack.c.b16 %v4028, %v4020
        %v5301 = vpack.c.b16 %v4029, %v4021
        %v5302 = vpack.c.b16 %v4030, %v4022
        %v5303 = vpack.c.b16 %v4031, %v4023
        %v5304 = vpack.c.b16 %v4032, %v4024
        %v5305 = vpack.c.b16 %v4033, %v4025
        %v5306 = vpack.c.b16 %v4034, %v4026
        %v5307 = vpack.c.b16 %v4035, %v4027
        %v5308 = vpack.c.b16 %v4044, %v4036
        %v5309 = vpack.c.b16 %v4045, %v4037
        %v5310 = vpack.c.b16 %v4046, %v4038
        %v5311 = vpack.c.b16 %v4047, %v4039
        %v5312 = vpack.c.b16 %v4048, %v4040
        %v5313 = vpack.c.b16 %v4049, %v4041
        %v5314 = vpack.c.b16 %v4050, %v4042
        %v5315 = vpack.c.b16 %v4051, %v4043
        %v5316 = vpack.c.b16 %v4060, %v4052
        %v5317 = vpack.c.b16 %v4061, %v4053
        %v5318 = vpack.c.b16 %v4062, %v4054
        %v5319 = vpack.c.b16 %v4063, %v4055
        %v5320 = vpack.c.b16 %v4064, %v4056
        %v5321 = vpack.c.b16 %v4065, %v4057
        %v5322 = vpack.c.b16 %v4066, %v4058
        %v5323 = vpack.c.b16 %v4067, %v4059
        %v5324 = vpack.c.b16 %v4076, %v4068
        %v5325 = vpack.c.b16 %v4077, %v4069
        %v5326 = vpack.c.b16 %v4078, %v4070
        %v5327 = vpack.c.b16 %v4079, %v4071
        %v5328 = vpack.c.b16 %v4080, %v4072
        %v5329 = vpack.c.b16 %v4081, %v4073
        %v5330 = vpack.c.b16 %v4082, %v4074
        %v5331 = vpack.c.b16 %v4083, %v4075
        %v5332 = vpack.c.b16 %v4092, %v4084
        %v5333 = vpack.c.b16 %v4093, %v4085
        %v5334 = vpack.c.b16 %v4094, %v4086
        %v5335 = vpack.c.b16 %v4095, %v4087
        %v5336 = vpack.c.b16 %v4096, %v4088
        %v5337 = vpack.c.b16 %v4097, %v4089
        %v5338 = vpack.c.b16 %v4098, %v4090
        %v5339 = vpack.c.b16 %v4099, %v4091
        %v5340 = vpack.c.b16 %v4108, %v4100
        %v5341 = vpack.c.b16 %v4109, %v4101
        %v5342 = vpack.c.b16 %v4110, %v4102
        %v5343 = vpack.c.b16 %v4111, %v4103
        %v5344 = vpack.c.b16 %v4112, %v4104
        %v5345 = vpack.c.b16 %v4113, %v4105
        %v5346 = vpack.c.b16 %v4114, %v4106
        %v5347 = vpack.c.b16 %v4115, %v4107
        %v5348 = vpack.c.b16 %v4124, %v4116
        %v5349 = vpack.c.b16 %v4125, %v4117
        %v5350 = vpack.c.b16 %v4126, %v4118
        %v5351 = vpack.c.b16 %v4127, %v4119
        %v5352 = vpack.c.b16 %v4128, %v4120
        %v5353 = vpack.c.b16 %v4129, %v4121
        %v5354 = vpack.c.b16 %v4130, %v4122
        %v5355 = vpack.c.b16 %v4131, %v4123
        %v5356 = vpack.c.b16 %v4140, %v4132
        %v5357 = vpack.c.b16 %v4141, %v4133
        %v5358 = vpack.c.b16 %v4142, %v4134
        %v5359 = vpack.c.b16 %v4143, %v4135
        %v5360 = vpack.c.b16 %v4144, %v4136
        %v5361 = vpack.c.b16 %v4145, %v4137
        %v5362 = vpack.c.b16 %v4146, %v4138
        %v5363 = vpack.c.b16 %v4147, %v4139
        %v5364 = vpack.c.b16 %v4156, %v4148
        %v5365 = vpack.c.b16 %v4157, %v4149
        %v5366 = vpack.c.b16 %v4158, %v4150
        %v5367 = vpack.c.b16 %v4159, %v4151
        %v5368 = vpack.c.b16 %v4160, %v4152
        %v5369 = vpack.c.b16 %v4161, %v4153
        %v5370 = vpack.c.b16 %v4162, %v4154
        %v5371 = vpack.c.b16 %v4163, %v4155
        %v5372 = vpack.c.b16 %v4172, %v4164
        %v5373 = vpack.c.b16 %v4173, %v4165
        %v5374 = vpack.c.b16 %v4174, %v4166
        %v5375 = vpack.c.b16 %v4175, %v4167
        %v5376 = vpack.c.b16 %v4176, %v4168
        %v5377 = vpack.c.b16 %v4177, %v4169
        %v5378 = vpack.c.b16 %v4178, %v4170
        %v5379 = vpack.c.b16 %v4179, %v4171
        %v5380 = vpack.c.b16 %v4188, %v4180
        %v5381 = vpack.c.b16 %v4189, %v4181
        %v5382 = vpack.c.b16 %v4190, %v4182
        %v5383 = vpack.c.b16 %v4191, %v4183
        %v5384 = vpack.c.b16 %v4192, %v4184
        %v5385 = vpack.c.b16 %v4193, %v4185
        %v5386 = vpack.c.b16 %v4194, %v4186
        %v5387 = vpack.c.b16 %v4195, %v4187
        %v5388 = vpack.c.b16 %v4204, %v4196
        %v5389 = vpack.c.b16 %v4205, %v4197
        %v5390 = vpack.c.b16 %v4206, %v4198
        %v5391 = vpack.c.b16 %v4207, %v4199
        %v5392 = vpack.c.b16 %v4208, %v4200
        %v5393 = vpack.c.b16 %v4209, %v4201
        %v5394 = vpack.c.b16 %v4210, %v4202
        %v5395 = vpack.c.b16 %v4211, %v4203
        %v5396 = vpack.c.b16 %v4220, %v4212
        %v5397 = vpack.c.b16 %v4221, %v4213
        %v5398 = vpack.c.b16 %v4222, %v4214
        %v5399 = vpack.c.b16 %v4223, %v4215
        %v5400 = vpack.c.b16 %v4224, %v4216
        %v5401 = vpack.c.b16 %v4225, %v4217
        %v5402 = vpack.c.b16 %v4226, %v4218
        %v5403 = vpack.c.b16 %v4227, %v4219
        %v5404 = vpack.c.b16 %v4236, %v4228
        %v5405 = vpack.c.b16 %v4237, %v4229
        %v5406 = vpack.c.b16 %v4238, %v4230
        %v5407 = vpack.c.b16 %v4239, %v4231
        %v5408 = vpack.c.b16 %v4240, %v4232
        %v5409 = vpack.c.b16 %v4241, %v4233
        %v5410 = vpack.c.b16 %v4242, %v4234
        %v5411 = vpack.c.b16 %v4243, %v4235
        %v5412 = vpack.c.b16 %v4252, %v4244
        %v5413 = vpack.c.b16 %v4253, %v4245
        %v5414 = vpack.c.b16 %v4254, %v4246
        %v5415 = vpack.c.b16 %v4255, %v4247
        %v5416 = vpack.c.b16 %v4256, %v4248
        %v5417 = vpack.c.b16 %v4257, %v4249
        %v5418 = vpack.c.b16 %v4258, %v4250
        %v5419 = vpack.c.b16 %v4259, %v4251
        %v5420 = vpack.c.b16 %v4268, %v4260
        %v5421 = vpack.c.b16 %v4269, %v4261
        %v5422 = vpack.c.b16 %v4270, %v4262
        %v5423 = vpack.c.b16 %v4271, %v4263
        %v5424 = vpack.c.b16 %v4272, %v4264
        %v5425 = vpack.c.b16 %v4273, %v4265
        %v5426 = vpack.c.b16 %v4274, %v4266
        %v5427 = vpack.c.b16 %v4275, %v4267
        %v5428 = vpack.c.b16 %v4284, %v4276
        %v5429 = vpack.c.b16 %v4285, %v4277
        %v5430 = vpack.c.b16 %v4286, %v4278
        %v5431 = vpack.c.b16 %v4287, %v4279
        %v5432 = vpack.c.b16 %v4288, %v4280
        %v5433 = vpack.c.b16 %v4289, %v4281
        %v5434 = vpack.c.b16 %v4290, %v4282
        %v5435 = vpack.c.b16 %v4291, %v4283
        %v5436 = vpack.c.b16 %v4300, %v4292
        %v5437 = vpack.c.b16 %v4301, %v4293
        %v5438 = vpack.c.b16 %v4302, %v4294
        %v5439 = vpack.c.b16 %v4303, %v4295
        %v5440 = vpack.c.b16 %v4304, %v4296
        %v5441 = vpack.c.b16 %v4305, %v4297
        %v5442 = vpack.c.b16 %v4306, %v4298
        %v5443 = vpack.c.b16 %v4307, %v4299
        %v5444 = vpack.c.b16 %v4316, %v4308
        %v5445 = vpack.c.b16 %v4317, %v4309
        %v5446 = vpack.c.b16 %v4318, %v4310
        %v5447 = vpack.c.b16 %v4319, %v4311
        %v5448 = vpack.c.b16 %v4320, %v4312
        %v5449 = vpack.c.b16 %v4321, %v4313
        %v5450 = vpack.c.b16 %v4322, %v4314
        %v5451 = vpack.c.b16 %v4323, %v4315
        %v5452 = vpack.c.b16 %v4332, %v4324
        %v5453 = vpack.c.b16 %v4333, %v4325
        %v5454 = vpack.c.b16 %v4334, %v4326
        %v5455 = vpack.c.b16 %v4335, %v4327
        %v5456 = vpack.c.b16 %v4336, %v4328
        %v5457 = vpack.c.b16 %v4337, %v4329
        %v5458 = vpack.c.b16 %v4338, %v4330
        %v5459 = vpack.c.b16 %v4339, %v4331
        %v5460 = vpack.c.b16 %v4348, %v4340
        %v5461 = vpack.c.b16 %v4349, %v4341
        %v5462 = vpack.c.b16 %v4350, %v4342
        %v5463 = vpack.c.b16 %v4351, %v4343
        %v5464 = vpack.c.b16 %v4352, %v4344
        %v5465 = vpack.c.b16 %v4353, %v4345
        %v5466 = vpack.c.b16 %v4354, %v4346
        %v5467 = vpack.c.b16 %v4355, %v4347
        %v5468 = vpack.c.b16 %v4364, %v4356
        %v5469 = vpack.c.b16 %v4365, %v4357
        %v5470 = vpack.c.b16 %v4366, %v4358
        %v5471 = vpack.c.b16 %v4367, %v4359
        %v5472 = vpack.c.b16 %v4368, %v4360
        %v5473 = vpack.c.b16 %v4369, %v4361
        %v5474 = vpack.c.b16 %v4370, %v4362
        %v5475 = vpack.c.b16 %v4371, %v4363
        %v5476 = vpack.c.b16 %v4380, %v4372
        %v5477 = vpack.c.b16 %v4381, %v4373
        %v5478 = vpack.c.b16 %v4382, %v4374
        %v5479 = vpack.c.b16 %v4383, %v4375
        %v5480 = vpack.c.b16 %v4384, %v4376
        %v5481 = vpack.c.b16 %v4385, %v4377
        %v5482 = vpack.c.b16 %v4386, %v4378
        %v5483 = vpack.c.b16 %v4387, %v4379
        %v5484 = vpack.c.b16 %v4396, %v4388
        %v5485 = vpack.c.b16 %v4397, %v4389
        %v5486 = vpack.c.b16 %v4398, %v4390
        %v5487 = vpack.c.b16 %v4399, %v4391
        %v5488 = vpack.c.b16 %v4400, %v4392
        %v5489 = vpack.c.b16 %v4401, %v4393
        %v5490 = vpack.c.b16 %v4402, %v4394
        %v5491 = vpack.c.b16 %v4403, %v4395
        %v5492 = vpack.c.b16 %v4412, %v4404
        %v5493 = vpack.c.b16 %v4413, %v4405
        %v5494 = vpack.c.b16 %v4414, %v4406
        %v5495 = vpack.c.b16 %v4415, %v4407
        %v5496 = vpack.c.b16 %v4416, %v4408
        %v5497 = vpack.c.b16 %v4417, %v4409
        %v5498 = vpack.c.b16 %v4418, %v4410
        %v5499 = vpack.c.b16 %v4419, %v4411
        %v5500 = vpack.c.b16 %v4428, %v4420
        %v5501 = vpack.c.b16 %v4429, %v4421
        %v5502 = vpack.c.b16 %v4430, %v4422
        %v5503 = vpack.c.b16 %v4431, %v4423
        %v5504 = vpack.c.b16 %v4432, %v4424
        %v5505 = vpack.c.b16 %v4433, %v4425
        %v5506 = vpack.c.b16 %v4434, %v4426
        %v5507 = vpack.c.b16 %v4435, %v4427
        %v5508 = vpack.c.b16 %v4444, %v4436
        %v5509 = vpack.c.b16 %v4445, %v4437
        %v5510 = vpack.c.b16 %v4446, %v4438
        %v5511 = vpack.c.b16 %v4447, %v4439
        %v5512 = vpack.c.b16 %v4448, %v4440
        %v5513 = vpack.c.b16 %v4449, %v4441
        %v5514 = vpack.c.b16 %v4450, %v4442
        %v5515 = vpack.c.b16 %v4451, %v4443
        %v5516 = vpack.c.b16 %v4460, %v4452
        %v5517 = vpack.c.b16 %v4461, %v4453
        %v5518 = vpack.c.b16 %v4462, %v4454
        %v5519 = vpack.c.b16 %v4463, %v4455
        %v5520 = vpack.c.b16 %v4464, %v4456
        %v5521 = vpack.c.b16 %v4465, %v4457
        %v5522 = vpack.c.b16 %v4466, %v4458
        %v5523 = vpack.c.b16 %v4467, %v4459
        %v5524 = vpack.c.b16 %v4476, %v4468
        %v5525 = vpack.c.b16 %v4477, %v4469
        %v5526 = vpack.c.b16 %v4478, %v4470
        %v5527 = vpack.c.b16 %v4479, %v4471
        %v5528 = vpack.c.b16 %v4480, %v4472
        %v5529 = vpack.c.b16 %v4481, %v4473
        %v5530 = vpack.c.b16 %v4482, %v4474
        %v5531 = vpack.c.b16 %v4483, %v4475
        %v5532 = vpack.c.b16 %v4492, %v4484
        %v5533 = vpack.c.b16 %v4493, %v4485
        %v5534 = vpack.c.b16 %v4494, %v4486
        %v5535 = vpack.c.b16 %v4495, %v4487
        %v5536 = vpack.c.b16 %v4496, %v4488
        %v5537 = vpack.c.b16 %v4497, %v4489
        %v5538 = vpack.c.b16 %v4498, %v4490
        %v5539 = vpack.c.b16 %v4499, %v4491
        %v5540 = vpack.c.b16 %v4508, %v4500
        %v5541 = vpack.c.b16 %v4509, %v4501
        %v5542 = vpack.c.b16 %v4510, %v4502
        %v5543 = vpack.c.b16 %v4511, %v4503
        %v5544 = vpack.c.b16 %v4512, %v4504
        %v5545 = vpack.c.b16 %v4513, %v4505
        %v5546 = vpack.c.b16 %v4514, %v4506
        %v5547 = vpack.c.b16 %v4515, %v4507
        %v5548 = vpack.c.b16 %v4524, %v4516
        %v5549 = vpack.c.b16 %v4525, %v4517
        %v5550 = vpack.c.b16 %v4526, %v4518
        %v5551 = vpack.c.b16 %v4527, %v4519
        %v5552 = vpack.c.b16 %v4528, %v4520
        %v5553 = vpack.c.b16 %v4529, %v4521
        %v5554 = vpack.c.b16 %v4530, %v4522
        %v5555 = vpack.c.b16 %v4531, %v4523
        %6580 = vmatprep.subr.bf16.mxu0 %v4533
        %6581 = vmatpush1.bf16.msra.mxu0 %v4532
        %6582 = vmatprep.subr.bf16.mxu0 %v4541
        %6583 = vmatpush1.bf16.msra.mxu0 %v4540
        %6584 = vmatprep.subr.bf16.mxu0 %v4549
        %6585 = vmatpush1.bf16.msra.mxu0 %v4548
        %6586 = vmatprep.subr.bf16.mxu0 %v4557
        %6587 = vmatpush1.bf16.msra.mxu0 %v4556
        %6588 = vmatprep.subr.bf16.mxu0 %v4565
        %6589 = vmatpush1.bf16.msra.mxu0 %v4564
        %6590 = vmatprep.subr.bf16.mxu0 %v4573
        %6591 = vmatpush1.bf16.msra.mxu0 %v4572
        %6592 = vmatprep.subr.bf16.mxu0 %v4581
        %6593 = vmatpush1.bf16.msra.mxu0 %v4580
        %6594 = vmatprep.subr.bf16.mxu0 %v4589
        %6595 = vmatpush1.bf16.msra.mxu0 %v4588
        %6596 = vmatprep.subr.bf16.mxu0 %v4597
        %6597 = vmatpush1.bf16.msra.mxu0 %v4596
        %6598 = vmatprep.subr.bf16.mxu0 %v4605
        %6599 = vmatpush1.bf16.msra.mxu0 %v4604
        %6600 = vmatprep.subr.bf16.mxu0 %v4613
        %6601 = vmatpush1.bf16.msra.mxu0 %v4612
        %6602 = vmatprep.subr.bf16.mxu0 %v4621
        %6603 = vmatpush1.bf16.msra.mxu0 %v4620
        %6604 = vmatprep.subr.bf16.mxu0 %v4629
        %6605 = vmatpush1.bf16.msra.mxu0 %v4628
        %6606 = vmatprep.subr.bf16.mxu0 %v4637
        %6607 = vmatpush1.bf16.msra.mxu0 %v4636
        %6608 = vmatprep.subr.bf16.mxu0 %v4645
        %6609 = vmatpush1.bf16.msra.mxu0 %v4644
        %6610 = vmatprep.subr.bf16.mxu0 %v4653
        %6611 = vmatpush1.bf16.msra.mxu0 %v4652
        %6612 = vmatprep.mubr.bf16.mxu0 %v421
        %6613 = vmatmul.mubr.bf16.gmra.mrb[0].mxu0 %v420
        %v6614 = vpop.f32.mrb[0].mxu0
        %v6615 = vadd.f32 0.0, %v6614
        %v6616 = vpop.f32.mrb[0].mxu0
        %v6617 = vadd.f32 0.0, %v6616
        %v6618 = vpop.f32.mrb[0].mxu0
        %v6619 = vpop.f32.mrb[0].mxu0
        %6620 = vdwg.mxu0
        %6621 = vmatprep.subr.bf16.mxu0 %v4661
        %6622 = vmatpush1.bf16.msra.mxu0 %v4660
        %6623 = vmatprep.subr.bf16.mxu0 %v4669
        %6624 = vmatpush1.bf16.msra.mxu0 %v4668
        %6625 = vmatprep.subr.bf16.mxu0 %v4677
        %6626 = vmatpush1.bf16.msra.mxu0 %v4676
        %6627 = vmatprep.subr.bf16.mxu0 %v4685
        %6628 = vmatpush1.bf16.msra.mxu0 %v4684
        %6629 = vmatprep.subr.bf16.mxu0 %v4693
        %6630 = vmatpush1.bf16.msra.mxu0 %v4692
        %6631 = vmatprep.subr.bf16.mxu0 %v4701
        %6632 = vmatpush1.bf16.msra.mxu0 %v4700
        %6633 = vmatprep.subr.bf16.mxu0 %v4709
        %6634 = vmatpush1.bf16.msra.mxu0 %v4708
        %6635 = vmatprep.subr.bf16.mxu0 %v4717
        %6636 = vmatpush1.bf16.msra.mxu0 %v4716
        %6637 = vmatprep.subr.bf16.mxu0 %v4725
        %6638 = vmatpush1.bf16.msra.mxu0 %v4724
        %6639 = vmatprep.subr.bf16.mxu0 %v4733
        %6640 = vmatpush1.bf16.msra.mxu0 %v4732
        %6641 = vmatprep.subr.bf16.mxu0 %v4741
        %6642 = vmatpush1.bf16.msra.mxu0 %v4740
        %6643 = vmatprep.subr.bf16.mxu0 %v4749
        %6644 = vmatpush1.bf16.msra.mxu0 %v4748
        %6645 = vmatprep.subr.bf16.mxu0 %v4757
        %6646 = vmatpush1.bf16.msra.mxu0 %v4756
        %6647 = vmatprep.subr.bf16.mxu0 %v4765
        %6648 = vmatpush1.bf16.msra.mxu0 %v4764
        %6649 = vmatprep.subr.bf16.mxu0 %v4773
        %6650 = vmatpush1.bf16.msra.mxu0 %v4772
        %6651 = vmatprep.subr.bf16.mxu0 %v4781
        %6652 = vmatpush1.bf16.msra.mxu0 %v4780
        %6653 = vmatprep.mubr.bf16.mxu0 %v423
        %6654 = vmatmul.mubr.bf16.gmra.mrb[0].mxu0 %v422
        %v6655 = vpop.f32.mrb[0].mxu0
        %v6656 = vadd.f32 %v6615, %v6655
        %v6657 = vpop.f32.mrb[0].mxu0
        %v6658 = vadd.f32 %v6617, %v6657
        %v6659 = vpop.f32.mrb[0].mxu0
        %v6660 = vpop.f32.mrb[0].mxu0
        %6661 = vdwg.mxu0
        %6662 = vmatprep.subr.bf16.mxu0 %v4789
        %6663 = vmatpush1.bf16.msra.mxu0 %v4788
        %6664 = vmatprep.subr.bf16.mxu0 %v4797
        %6665 = vmatpush1.bf16.msra.mxu0 %v4796
        %6666 = vmatprep.subr.bf16.mxu0 %v4805
        %6667 = vmatpush1.bf16.msra.mxu0 %v4804
        %6668 = vmatprep.subr.bf16.mxu0 %v4813
        %6669 = vmatpush1.bf16.msra.mxu0 %v4812
        %6670 = vmatprep.subr.bf16.mxu0 %v4821
        %6671 = vmatpush1.bf16.msra.mxu0 %v4820
        %6672 = vmatprep.subr.bf16.mxu0 %v4829
        %6673 = vmatpush1.bf16.msra.mxu0 %v4828
        %6674 = vmatprep.subr.bf16.mxu0 %v4837
        %6675 = vmatpush1.bf16.msra.mxu0 %v4836
        %6676 = vmatprep.subr.bf16.mxu0 %v4845
        %6677 = vmatpush1.bf16.msra.mxu0 %v4844
        %6678 = vmatprep.subr.bf16.mxu0 %v4853
        %6679 = vmatpush1.bf16.msra.mxu0 %v4852
        %6680 = vmatprep.subr.bf16.mxu0 %v4861
        %6681 = vmatpush1.bf16.msra.mxu0 %v4860
        %6682 = vmatprep.subr.bf16.mxu0 %v4869
        %6683 = vmatpush1.bf16.msra.mxu0 %v4868
        %6684 = vmatprep.subr.bf16.mxu0 %v4877
        %6685 = vmatpush1.bf16.msra.mxu0 %v4876
        %6686 = vmatprep.subr.bf16.mxu0 %v4885
        %6687 = vmatpush1.bf16.msra.mxu0 %v4884
        %6688 = vmatprep.subr.bf16.mxu0 %v4893
        %6689 = vmatpush1.bf16.msra.mxu0 %v4892
        %6690 = vmatprep.subr.bf16.mxu0 %v4901
        %6691 = vmatpush1.bf16.msra.mxu0 %v4900
        %6692 = vmatprep.subr.bf16.mxu0 %v4909
        %6693 = vmatpush1.bf16.msra.mxu0 %v4908
        %6694 = vmatprep.mubr.bf16.mxu0 %v425
        %6695 = vmatmul.mubr.bf16.gmra.mrb[0].mxu0 %v424
        %v6696 = vpop.f32.mrb[0].mxu0
        %v6697 = vadd.f32 %v6656, %v6696
        %v6698 = vpop.f32.mrb[0].mxu0
        %v6699 = vadd.f32 %v6658, %v6698
        %v6700 = vpop.f32.mrb[0].mxu0
        %v6701 = vpop.f32.mrb[0].mxu0
        %6702 = vdwg.mxu0
        %6703 = vmatprep.subr.bf16.mxu0 %v4917
        %6704 = vmatpush1.bf16.msra.mxu0 %v4916
        %6705 = vmatprep.subr.bf16.mxu0 %v4925
        %6706 = vmatpush1.bf16.msra.mxu0 %v4924
        %6707 = vmatprep.subr.bf16.mxu0 %v4933
        %6708 = vmatpush1.bf16.msra.mxu0 %v4932
        %6709 = vmatprep.subr.bf16.mxu0 %v4941
        %6710 = vmatpush1.bf16.msra.mxu0 %v4940
        %6711 = vmatprep.subr.bf16.mxu0 %v4949
        %6712 = vmatpush1.bf16.msra.mxu0 %v4948
        %6713 = vmatprep.subr.bf16.mxu0 %v4957
        %6714 = vmatpush1.bf16.msra.mxu0 %v4956
        %6715 = vmatprep.subr.bf16.mxu0 %v4965
        %6716 = vmatpush1.bf16.msra.mxu0 %v4964
        %6717 = vmatprep.subr.bf16.mxu0 %v4973
        %6718 = vmatpush1.bf16.msra.mxu0 %v4972
        %6719 = vmatprep.subr.bf16.mxu0 %v4981
        %6720 = vmatpush1.bf16.msra.mxu0 %v4980
        %6721 = vmatprep.subr.bf16.mxu0 %v4989
        %6722 = vmatpush1.bf16.msra.mxu0 %v4988
        %6723 = vmatprep.subr.bf16.mxu0 %v4997
        %6724 = vmatpush1.bf16.msra.mxu0 %v4996
        %6725 = vmatprep.subr.bf16.mxu0 %v5005
        %6726 = vmatpush1.bf16.msra.mxu0 %v5004
        %6727 = vmatprep.subr.bf16.mxu0 %v5013
        %6728 = vmatpush1.bf16.msra.mxu0 %v5012
        %6729 = vmatprep.subr.bf16.mxu0 %v5021
        %6730 = vmatpush1.bf16.msra.mxu0 %v5020
        %6731 = vmatprep.subr.bf16.mxu0 %v5029
        %6732 = vmatpush1.bf16.msra.mxu0 %v5028
        %6733 = vmatprep.subr.bf16.mxu0 %v5037
        %6734 = vmatpush1.bf16.msra.mxu0 %v5036
        %6735 = vmatprep.mubr.bf16.mxu0 %v427
        %6736 = vmatmul.mubr.bf16.gmra.mrb[0].mxu0 %v426
        %v6737 = vpop.f32.mrb[0].mxu0
        %v6738 = vadd.f32 %v6697, %v6737
        %v6739 = vpop.f32.mrb[0].mxu0
        %v6740 = vadd.f32 %v6699, %v6739
        %v6741 = vpop.f32.mrb[0].mxu0
        %v6742 = vpop.f32.mrb[0].mxu0
        %6743 = vdwg.mxu0
        %6744 = vmatprep.subr.bf16.mxu0 %v5045
        %6745 = vmatpush1.bf16.msra.mxu0 %v5044
        %6746 = vmatprep.subr.bf16.mxu0 %v5053
        %6747 = vmatpush1.bf16.msra.mxu0 %v5052
        %6748 = vmatprep.subr.bf16.mxu0 %v5061
        %6749 = vmatpush1.bf16.msra.mxu0 %v5060
        %6750 = vmatprep.subr.bf16.mxu0 %v5069
        %6751 = vmatpush1.bf16.msra.mxu0 %v5068
        %6752 = vmatprep.subr.bf16.mxu0 %v5077
        %6753 = vmatpush1.bf16.msra.mxu0 %v5076
        %6754 = vmatprep.subr.bf16.mxu0 %v5085
        %6755 = vmatpush1.bf16.msra.mxu0 %v5084
        %6756 = vmatprep.subr.bf16.mxu0 %v5093
        %6757 = vmatpush1.bf16.msra.mxu0 %v5092
        %6758 = vmatprep.subr.bf16.mxu0 %v5101
        %6759 = vmatpush1.bf16.msra.mxu0 %v5100
        %6760 = vmatprep.subr.bf16.mxu0 %v5109
        %6761 = vmatpush1.bf16.msra.mxu0 %v5108
        %6762 = vmatprep.subr.bf16.mxu0 %v5117
        %6763 = vmatpush1.bf16.msra.mxu0 %v5116
        %6764 = vmatprep.subr.bf16.mxu0 %v5125
        %6765 = vmatpush1.bf16.msra.mxu0 %v5124
        %6766 = vmatprep.subr.bf16.mxu0 %v5133
        %6767 = vmatpush1.bf16.msra.mxu0 %v5132
        %6768 = vmatprep.subr.bf16.mxu0 %v5141
        %6769 = vmatpush1.bf16.msra.mxu0 %v5140
        %6770 = vmatprep.subr.bf16.mxu0 %v5149
        %6771 = vmatpush1.bf16.msra.mxu0 %v5148
        %6772 = vmatprep.subr.bf16.mxu0 %v5157
        %6773 = vmatpush1.bf16.msra.mxu0 %v5156
        %6774 = vmatprep.subr.bf16.mxu0 %v5165
        %6775 = vmatpush1.bf16.msra.mxu0 %v5164
        %6776 = vmatprep.mubr.bf16.mxu0 %v429
        %6777 = vmatmul.mubr.bf16.gmra.mrb[0].mxu0 %v428
        %v6778 = vpop.f32.mrb[0].mxu0
        %v6779 = vadd.f32 %v6738, %v6778
        %v6780 = vpop.f32.mrb[0].mxu0
        %v6781 = vadd.f32 %v6740, %v6780
        %v6782 = vpop.f32.mrb[0].mxu0
        %v6783 = vpop.f32.mrb[0].mxu0
        %6784 = vdwg.mxu0
        %6785 = vmatprep.subr.bf16.mxu0 %v5173
        %6786 = vmatpush1.bf16.msra.mxu0 %v5172
        %6787 = vmatprep.subr.bf16.mxu0 %v5181
        %6788 = vmatpush1.bf16.msra.mxu0 %v5180
        %6789 = vmatprep.subr.bf16.mxu0 %v5189
        %6790 = vmatpush1.bf16.msra.mxu0 %v5188
        %6791 = vmatprep.subr.bf16.mxu0 %v5197
        %6792 = vmatpush1.bf16.msra.mxu0 %v5196
        %6793 = vmatprep.subr.bf16.mxu0 %v5205
        %6794 = vmatpush1.bf16.msra.mxu0 %v5204
        %6795 = vmatprep.subr.bf16.mxu0 %v5213
        %6796 = vmatpush1.bf16.msra.mxu0 %v5212
        %6797 = vmatprep.subr.bf16.mxu0 %v5221
        %6798 = vmatpush1.bf16.msra.mxu0 %v5220
        %6799 = vmatprep.subr.bf16.mxu0 %v5229
        %6800 = vmatpush1.bf16.msra.mxu0 %v5228
        %6801 = vmatprep.subr.bf16.mxu0 %v5237
        %6802 = vmatpush1.bf16.msra.mxu0 %v5236
        %6803 = vmatprep.subr.bf16.mxu0 %v5245
        %6804 = vmatpush1.bf16.msra.mxu0 %v5244
        %6805 = vmatprep.subr.bf16.mxu0 %v5253
        %6806 = vmatpush1.bf16.msra.mxu0 %v5252
        %6807 = vmatprep.subr.bf16.mxu0 %v5261
        %6808 = vmatpush1.bf16.msra.mxu0 %v5260
        %6809 = vmatprep.subr.bf16.mxu0 %v5269
        %6810 = vmatpush1.bf16.msra.mxu0 %v5268
        %6811 = vmatprep.subr.bf16.mxu0 %v5277
        %6812 = vmatpush1.bf16.msra.mxu0 %v5276
        %6813 = vmatprep.subr.bf16.mxu0 %v5285
        %6814 = vmatpush1.bf16.msra.mxu0 %v5284
        %6815 = vmatprep.subr.bf16.mxu0 %v5293
        %6816 = vmatpush1.bf16.msra.mxu0 %v5292
        %6817 = vmatprep.mubr.bf16.mxu0 %v431
        %6818 = vmatmul.mubr.bf16.gmra.mrb[0].mxu0 %v430
        %v6819 = vpop.f32.mrb[0].mxu0
        %v6820 = vadd.f32 %v6779, %v6819
        %v6821 = vpop.f32.mrb[0].mxu0
        %v6822 = vadd.f32 %v6781, %v6821
        %v6823 = vpop.f32.mrb[0].mxu0
        %v6824 = vpop.f32.mrb[0].mxu0
        %6825 = vdwg.mxu0
        %6826 = vmatprep.subr.bf16.mxu0 %v5301
        %6827 = vmatpush1.bf16.msra.mxu0 %v5300
        %6828 = vmatprep.subr.bf16.mxu0 %v5309
        %6829 = vmatpush1.bf16.msra.mxu0 %v5308
        %6830 = vmatprep.subr.bf16.mxu0 %v5317
        %6831 = vmatpush1.bf16.msra.mxu0 %v5316
        %6832 = vmatprep.subr.bf16.mxu0 %v5325
        %6833 = vmatpush1.bf16.msra.mxu0 %v5324
        %6834 = vmatprep.subr.bf16.mxu0 %v5333
        %6835 = vmatpush1.bf16.msra.mxu0 %v5332
        %6836 = vmatprep.subr.bf16.mxu0 %v5341
        %6837 = vmatpush1.bf16.msra.mxu0 %v5340
        %6838 = vmatprep.subr.bf16.mxu0 %v5349
        %6839 = vmatpush1.bf16.msra.mxu0 %v5348
        %6840 = vmatprep.subr.bf16.mxu0 %v5357
        %6841 = vmatpush1.bf16.msra.mxu0 %v5356
        %6842 = vmatprep.subr.bf16.mxu0 %v5365
        %6843 = vmatpush1.bf16.msra.mxu0 %v5364
        %6844 = vmatprep.subr.bf16.mxu0 %v5373
        %6845 = vmatpush1.bf16.msra.mxu0 %v5372
        %6846 = vmatprep.subr.bf16.mxu0 %v5381
        %6847 = vmatpush1.bf16.msra.mxu0 %v5380
        %6848 = vmatprep.subr.bf16.mxu0 %v5389
        %6849 = vmatpush1.bf16.msra.mxu0 %v5388
        %6850 = vmatprep.subr.bf16.mxu0 %v5397
        %6851 = vmatpush1.bf16.msra.mxu0 %v5396
        %6852 = vmatprep.subr.bf16.mxu0 %v5405
        %6853 = vmatpush1.bf16.msra.mxu0 %v5404
        %6854 = vmatprep.subr.bf16.mxu0 %v5413
        %6855 = vmatpush1.bf16.msra.mxu0 %v5412
        %6856 = vmatprep.subr.bf16.mxu0 %v5421
        %6857 = vmatpush1.bf16.msra.mxu0 %v5420
        %6858 = vmatprep.mubr.bf16.mxu0 %v433
        %6859 = vmatmul.mubr.bf16.gmra.mrb[0].mxu0 %v432
        %v6860 = vpop.f32.mrb[0].mxu0
        %v6861 = vadd.f32 %v6820, %v6860
        %v6862 = vpop.f32.mrb[0].mxu0
        %v6863 = vadd.f32 %v6822, %v6862
        %v6864 = vpop.f32.mrb[0].mxu0
        %v6865 = vpop.f32.mrb[0].mxu0
        %6866 = vdwg.mxu0
        %6867 = vmatprep.subr.bf16.mxu0 %v5429
        %6868 = vmatpush1.bf16.msra.mxu0 %v5428
        %6869 = vmatprep.subr.bf16.mxu0 %v5437
        %6870 = vmatpush1.bf16.msra.mxu0 %v5436
        %6871 = vmatprep.subr.bf16.mxu0 %v5445
        %6872 = vmatpush1.bf16.msra.mxu0 %v5444
        %6873 = vmatprep.subr.bf16.mxu0 %v5453
        %6874 = vmatpush1.bf16.msra.mxu0 %v5452
        %6875 = vmatprep.subr.bf16.mxu0 %v5461
        %6876 = vmatpush1.bf16.msra.mxu0 %v5460
        %6877 = vmatprep.subr.bf16.mxu0 %v5469
        %6878 = vmatpush1.bf16.msra.mxu0 %v5468
        %6879 = vmatprep.subr.bf16.mxu0 %v5477
        %6880 = vmatpush1.bf16.msra.mxu0 %v5476
        %6881 = vmatprep.subr.bf16.mxu0 %v5485
        %6882 = vmatpush1.bf16.msra.mxu0 %v5484
        %6883 = vmatprep.subr.bf16.mxu0 %v5493
        %6884 = vmatpush1.bf16.msra.mxu0 %v5492
        %6885 = vmatprep.subr.bf16.mxu0 %v5501
        %6886 = vmatpush1.bf16.msra.mxu0 %v5500
        %6887 = vmatprep.subr.bf16.mxu0 %v5509
        %6888 = vmatpush1.bf16.msra.mxu0 %v5508
        %6889 = vmatprep.subr.bf16.mxu0 %v5517
        %6890 = vmatpush1.bf16.msra.mxu0 %v5516
        %6891 = vmatprep.subr.bf16.mxu0 %v5525
        %6892 = vmatpush1.bf16.msra.mxu0 %v5524
        %6893 = vmatprep.subr.bf16.mxu0 %v5533
        %6894 = vmatpush1.bf16.msra.mxu0 %v5532
        %6895 = vmatprep.subr.bf16.mxu0 %v5541
        %6896 = vmatpush1.bf16.msra.mxu0 %v5540
        %6897 = vmatprep.subr.bf16.mxu0 %v5549
        %6898 = vmatpush1.bf16.msra.mxu0 %v5548
        %6899 = vmatprep.mubr.bf16.mxu0 %v435
        %6900 = vmatmul.mubr.bf16.gmra.mrb[0].mxu0 %v434
        %v6901 = vpop.f32.mrb[0].mxu0
        %v6902 = vadd.f32 %v6861, %v6901
        %v6903 = vpop.f32.mrb[0].mxu0
        %v6904 = vadd.f32 %v6863, %v6903
        %v6905 = vpop.f32.mrb[0].mxu0
        %v6906 = vpop.f32.mrb[0].mxu0
        %6907 = vdwg.mxu0
        %6908 = vmatprep.subr.bf16.mxu0 %v4535
        %6909 = vmatpush1.bf16.msra.mxu0 %v4534
        %6910 = vmatprep.subr.bf16.mxu0 %v4543
        %6911 = vmatpush1.bf16.msra.mxu0 %v4542
        %6912 = vmatprep.subr.bf16.mxu0 %v4551
        %6913 = vmatpush1.bf16.msra.mxu0 %v4550
        %6914 = vmatprep.subr.bf16.mxu0 %v4559
        %6915 = vmatpush1.bf16.msra.mxu0 %v4558
        %6916 = vmatprep.subr.bf16.mxu0 %v4567
        %6917 = vmatpush1.bf16.msra.mxu0 %v4566
        %6918 = vmatprep.subr.bf16.mxu0 %v4575
        %6919 = vmatpush1.bf16.msra.mxu0 %v4574
        %6920 = vmatprep.subr.bf16.mxu0 %v4583
        %6921 = vmatpush1.bf16.msra.mxu0 %v4582
        %6922 = vmatprep.subr.bf16.mxu0 %v4591
        %6923 = vmatpush1.bf16.msra.mxu0 %v4590
        %6924 = vmatprep.subr.bf16.mxu0 %v4599
        %6925 = vmatpush1.bf16.msra.mxu0 %v4598
        %6926 = vmatprep.subr.bf16.mxu0 %v4607
        %6927 = vmatpush1.bf16.msra.mxu0 %v4606
        %6928 = vmatprep.subr.bf16.mxu0 %v4615
        %6929 = vmatpush1.bf16.msra.mxu0 %v4614
        %6930 = vmatprep.subr.bf16.mxu0 %v4623
        %6931 = vmatpush1.bf16.msra.mxu0 %v4622
        %6932 = vmatprep.subr.bf16.mxu0 %v4631
        %6933 = vmatpush1.bf16.msra.mxu0 %v4630
        %6934 = vmatprep.subr.bf16.mxu0 %v4639
        %6935 = vmatpush1.bf16.msra.mxu0 %v4638
        %6936 = vmatprep.subr.bf16.mxu0 %v4647
        %6937 = vmatpush1.bf16.msra.mxu0 %v4646
        %6938 = vmatprep.subr.bf16.mxu0 %v4655
        %6939 = vmatpush1.bf16.msra.mxu0 %v4654
        %6940 = vmatprep.mubr.bf16.mxu0 %v421
        %6941 = vmatmul.mubr.bf16.gmra.mrb[0].mxu0 %v420
        %v6942 = vpop.f32.mrb[0].mxu0
        %v6943 = vadd.f32 0.0, %v6942
        %v6944 = vpop.f32.mrb[0].mxu0
        %v6945 = vadd.f32 0.0, %v6944
        %v6946 = vpop.f32.mrb[0].mxu0
        %v6947 = vpop.f32.mrb[0].mxu0
        %6948 = vdwg.mxu0
        %6949 = vmatprep.subr.bf16.mxu0 %v4663
        %6950 = vmatpush1.bf16.msra.mxu0 %v4662
        %6951 = vmatprep.subr.bf16.mxu0 %v4671
        %6952 = vmatpush1.bf16.msra.mxu0 %v4670
        %6953 = vmatprep.subr.bf16.mxu0 %v4679
        %6954 = vmatpush1.bf16.msra.mxu0 %v4678
        %6955 = vmatprep.subr.bf16.mxu0 %v4687
        %6956 = vmatpush1.bf16.msra.mxu0 %v4686
        %6957 = vmatprep.subr.bf16.mxu0 %v4695
        %6958 = vmatpush1.bf16.msra.mxu0 %v4694
        %6959 = vmatprep.subr.bf16.mxu0 %v4703
        %6960 = vmatpush1.bf16.msra.mxu0 %v4702
        %6961 = vmatprep.subr.bf16.mxu0 %v4711
        %6962 = vmatpush1.bf16.msra.mxu0 %v4710
        %6963 = vmatprep.subr.bf16.mxu0 %v4719
        %6964 = vmatpush1.bf16.msra.mxu0 %v4718
        %6965 = vmatprep.subr.bf16.mxu0 %v4727
        %6966 = vmatpush1.bf16.msra.mxu0 %v4726
        %6967 = vmatprep.subr.bf16.mxu0 %v4735
        %6968 = vmatpush1.bf16.msra.mxu0 %v4734
        %6969 = vmatprep.subr.bf16.mxu0 %v4743
        %6970 = vmatpush1.bf16.msra.mxu0 %v4742
        %6971 = vmatprep.subr.bf16.mxu0 %v4751
        %6972 = vmatpush1.bf16.msra.mxu0 %v4750
        %6973 = vmatprep.subr.bf16.mxu0 %v4759
        %6974 = vmatpush1.bf16.msra.mxu0 %v4758
        %6975 = vmatprep.subr.bf16.mxu0 %v4767
        %6976 = vmatpush1.bf16.msra.mxu0 %v4766
        %6977 = vmatprep.subr.bf16.mxu0 %v4775
        %6978 = vmatpush1.bf16.msra.mxu0 %v4774
        %6979 = vmatprep.subr.bf16.mxu0 %v4783
        %6980 = vmatpush1.bf16.msra.mxu0 %v4782
        %6981 = vmatprep.mubr.bf16.mxu0 %v423
        %6982 = vmatmul.mubr.bf16.gmra.mrb[0].mxu0 %v422
        %v6983 = vpop.f32.mrb[0].mxu0
        %v6984 = vadd.f32 %v6943, %v6983
        %v6985 = vpop.f32.mrb[0].mxu0
        %v6986 = vadd.f32 %v6945, %v6985
        %v6987 = vpop.f32.mrb[0].mxu0
        %v6988 = vpop.f32.mrb[0].mxu0
        %6989 = vdwg.mxu0
        %6990 = vmatprep.subr.bf16.mxu0 %v4791
        %6991 = vmatpush1.bf16.msra.mxu0 %v4790
        %6992 = vmatprep.subr.bf16.mxu0 %v4799
        %6993 = vmatpush1.bf16.msra.mxu0 %v4798
        %6994 = vmatprep.subr.bf16.mxu0 %v4807
        %6995 = vmatpush1.bf16.msra.mxu0 %v4806
        %6996 = vmatprep.subr.bf16.mxu0 %v4815
        %6997 = vmatpush1.bf16.msra.mxu0 %v4814
        %6998 = vmatprep.subr.bf16.mxu0 %v4823
        %6999 = vmatpush1.bf16.msra.mxu0 %v4822
        %7000 = vmatprep.subr.bf16.mxu0 %v4831
        %7001 = vmatpush1.bf16.msra.mxu0 %v4830
        %7002 = vmatprep.subr.bf16.mxu0 %v4839
        %7003 = vmatpush1.bf16.msra.mxu0 %v4838
        %7004 = vmatprep.subr.bf16.mxu0 %v4847
        %7005 = vmatpush1.bf16.msra.mxu0 %v4846
        %7006 = vmatprep.subr.bf16.mxu0 %v4855
        %7007 = vmatpush1.bf16.msra.mxu0 %v4854
        %7008 = vmatprep.subr.bf16.mxu0 %v4863
        %7009 = vmatpush1.bf16.msra.mxu0 %v4862
        %7010 = vmatprep.subr.bf16.mxu0 %v4871
        %7011 = vmatpush1.bf16.msra.mxu0 %v4870
        %7012 = vmatprep.subr.bf16.mxu0 %v4879
        %7013 = vmatpush1.bf16.msra.mxu0 %v4878
        %7014 = vmatprep.subr.bf16.mxu0 %v4887
        %7015 = vmatpush1.bf16.msra.mxu0 %v4886
        %7016 = vmatprep.subr.bf16.mxu0 %v4895
        %7017 = vmatpush1.bf16.msra.mxu0 %v4894
        %7018 = vmatprep.subr.bf16.mxu0 %v4903
        %7019 = vmatpush1.bf16.msra.mxu0 %v4902
        %7020 = vmatprep.subr.bf16.mxu0 %v4911
        %7021 = vmatpush1.bf16.msra.mxu0 %v4910
        %7022 = vmatprep.mubr.bf16.mxu0 %v425
        %7023 = vmatmul.mubr.bf16.gmra.mrb[0].mxu0 %v424
        %v7024 = vpop.f32.mrb[0].mxu0
        %v7025 = vadd.f32 %v6984, %v7024
        %v7026 = vpop.f32.mrb[0].mxu0
        %v7027 = vadd.f32 %v6986, %v7026
        %v7028 = vpop.f32.mrb[0].mxu0
        %v7029 = vpop.f32.mrb[0].mxu0
        %7030 = vdwg.mxu0
        %7031 = vmatprep.subr.bf16.mxu0 %v4919
        %7032 = vmatpush1.bf16.msra.mxu0 %v4918
        %7033 = vmatprep.subr.bf16.mxu0 %v4927
        %7034 = vmatpush1.bf16.msra.mxu0 %v4926
        %7035 = vmatprep.subr.bf16.mxu0 %v4935
        %7036 = vmatpush1.bf16.msra.mxu0 %v4934
        %7037 = vmatprep.subr.bf16.mxu0 %v4943
        %7038 = vmatpush1.bf16.msra.mxu0 %v4942
        %7039 = vmatprep.subr.bf16.mxu0 %v4951
        %7040 = vmatpush1.bf16.msra.mxu0 %v4950
        %7041 = vmatprep.subr.bf16.mxu0 %v4959
        %7042 = vmatpush1.bf16.msra.mxu0 %v4958
        %7043 = vmatprep.subr.bf16.mxu0 %v4967
        %7044 = vmatpush1.bf16.msra.mxu0 %v4966
        %7045 = vmatprep.subr.bf16.mxu0 %v4975
        %7046 = vmatpush1.bf16.msra.mxu0 %v4974
        %7047 = vmatprep.subr.bf16.mxu0 %v4983
        %7048 = vmatpush1.bf16.msra.mxu0 %v4982
        %7049 = vmatprep.subr.bf16.mxu0 %v4991
        %7050 = vmatpush1.bf16.msra.mxu0 %v4990
        %7051 = vmatprep.subr.bf16.mxu0 %v4999
        %7052 = vmatpush1.bf16.msra.mxu0 %v4998
        %7053 = vmatprep.subr.bf16.mxu0 %v5007
        %7054 = vmatpush1.bf16.msra.mxu0 %v5006
        %7055 = vmatprep.subr.bf16.mxu0 %v5015
        %7056 = vmatpush1.bf16.msra.mxu0 %v5014
        %7057 = vmatprep.subr.bf16.mxu0 %v5023
        %7058 = vmatpush1.bf16.msra.mxu0 %v5022
        %7059 = vmatprep.subr.bf16.mxu0 %v5031
        %7060 = vmatpush1.bf16.msra.mxu0 %v5030
        %7061 = vmatprep.subr.bf16.mxu0 %v5039
        %7062 = vmatpush1.bf16.msra.mxu0 %v5038
        %7063 = vmatprep.mubr.bf16.mxu0 %v427
        %7064 = vmatmul.mubr.bf16.gmra.mrb[0].mxu0 %v426
        %v7065 = vpop.f32.mrb[0].mxu0
        %v7066 = vadd.f32 %v7025, %v7065
        %v7067 = vpop.f32.mrb[0].mxu0
        %v7068 = vadd.f32 %v7027, %v7067
        %v7069 = vpop.f32.mrb[0].mxu0
        %v7070 = vpop.f32.mrb[0].mxu0
        %7071 = vdwg.mxu0
        %7072 = vmatprep.subr.bf16.mxu0 %v5047
        %7073 = vmatpush1.bf16.msra.mxu0 %v5046
        %7074 = vmatprep.subr.bf16.mxu0 %v5055
        %7075 = vmatpush1.bf16.msra.mxu0 %v5054
        %7076 = vmatprep.subr.bf16.mxu0 %v5063
        %7077 = vmatpush1.bf16.msra.mxu0 %v5062
        %7078 = vmatprep.subr.bf16.mxu0 %v5071
        %7079 = vmatpush1.bf16.msra.mxu0 %v5070
        %7080 = vmatprep.subr.bf16.mxu0 %v5079
        %7081 = vmatpush1.bf16.msra.mxu0 %v5078
        %7082 = vmatprep.subr.bf16.mxu0 %v5087
        %7083 = vmatpush1.bf16.msra.mxu0 %v5086
        %7084 = vmatprep.subr.bf16.mxu0 %v5095
        %7085 = vmatpush1.bf16.msra.mxu0 %v5094
        %7086 = vmatprep.subr.bf16.mxu0 %v5103
        %7087 = vmatpush1.bf16.msra.mxu0 %v5102
        %7088 = vmatprep.subr.bf16.mxu0 %v5111
        %7089 = vmatpush1.bf16.msra.mxu0 %v5110
        %7090 = vmatprep.subr.bf16.mxu0 %v5119
        %7091 = vmatpush1.bf16.msra.mxu0 %v5118
        %7092 = vmatprep.subr.bf16.mxu0 %v5127
        %7093 = vmatpush1.bf16.msra.mxu0 %v5126
        %7094 = vmatprep.subr.bf16.mxu0 %v5135
        %7095 = vmatpush1.bf16.msra.mxu0 %v5134
        %7096 = vmatprep.subr.bf16.mxu0 %v5143
        %7097 = vmatpush1.bf16.msra.mxu0 %v5142
        %7098 = vmatprep.subr.bf16.mxu0 %v5151
        %7099 = vmatpush1.bf16.msra.mxu0 %v5150
        %7100 = vmatprep.subr.bf16.mxu0 %v5159
        %7101 = vmatpush1.bf16.msra.mxu0 %v5158
        %7102 = vmatprep.subr.bf16.mxu0 %v5167
        %7103 = vmatpush1.bf16.msra.mxu0 %v5166
        %7104 = vmatprep.mubr.bf16.mxu0 %v429
        %7105 = vmatmul.mubr.bf16.gmra.mrb[0].mxu0 %v428
        %v7106 = vpop.f32.mrb[0].mxu0
        %v7107 = vadd.f32 %v7066, %v7106
        %v7108 = vpop.f32.mrb[0].mxu0
        %v7109 = vadd.f32 %v7068, %v7108
        %v7110 = vpop.f32.mrb[0].mxu0
        %v7111 = vpop.f32.mrb[0].mxu0
        %7112 = vdwg.mxu0
        %7113 = vmatprep.subr.bf16.mxu0 %v5175
        %7114 = vmatpush1.bf16.msra.mxu0 %v5174
        %7115 = vmatprep.subr.bf16.mxu0 %v5183
        %7116 = vmatpush1.bf16.msra.mxu0 %v5182
        %7117 = vmatprep.subr.bf16.mxu0 %v5191
        %7118 = vmatpush1.bf16.msra.mxu0 %v5190
        %7119 = vmatprep.subr.bf16.mxu0 %v5199
        %7120 = vmatpush1.bf16.msra.mxu0 %v5198
        %7121 = vmatprep.subr.bf16.mxu0 %v5207
        %7122 = vmatpush1.bf16.msra.mxu0 %v5206
        %7123 = vmatprep.subr.bf16.mxu0 %v5215
        %7124 = vmatpush1.bf16.msra.mxu0 %v5214
        %7125 = vmatprep.subr.bf16.mxu0 %v5223
        %7126 = vmatpush1.bf16.msra.mxu0 %v5222
        %7127 = vmatprep.subr.bf16.mxu0 %v5231
        %7128 = vmatpush1.bf16.msra.mxu0 %v5230
        %7129 = vmatprep.subr.bf16.mxu0 %v5239
        %7130 = vmatpush1.bf16.msra.mxu0 %v5238
        %7131 = vmatprep.subr.bf16.mxu0 %v5247
        %7132 = vmatpush1.bf16.msra.mxu0 %v5246
        %7133 = vmatprep.subr.bf16.mxu0 %v5255
        %7134 = vmatpush1.bf16.msra.mxu0 %v5254
        %7135 = vmatprep.subr.bf16.mxu0 %v5263
        %7136 = vmatpush1.bf16.msra.mxu0 %v5262
        %7137 = vmatprep.subr.bf16.mxu0 %v5271
        %7138 = vmatpush1.bf16.msra.mxu0 %v5270
        %7139 = vmatprep.subr.bf16.mxu0 %v5279
        %7140 = vmatpush1.bf16.msra.mxu0 %v5278
        %7141 = vmatprep.subr.bf16.mxu0 %v5287
        %7142 = vmatpush1.bf16.msra.mxu0 %v5286
        %7143 = vmatprep.subr.bf16.mxu0 %v5295
        %7144 = vmatpush1.bf16.msra.mxu0 %v5294
        %7145 = vmatprep.mubr.bf16.mxu0 %v431
        %7146 = vmatmul.mubr.bf16.gmra.mrb[0].mxu0 %v430
        %v7147 = vpop.f32.mrb[0].mxu0
        %v7148 = vadd.f32 %v7107, %v7147
        %v7149 = vpop.f32.mrb[0].mxu0
        %v7150 = vadd.f32 %v7109, %v7149
        %v7151 = vpop.f32.mrb[0].mxu0
        %v7152 = vpop.f32.mrb[0].mxu0
        %7153 = vdwg.mxu0
        %7154 = vmatprep.subr.bf16.mxu0 %v5303
        %7155 = vmatpush1.bf16.msra.mxu0 %v5302
        %7156 = vmatprep.subr.bf16.mxu0 %v5311
        %7157 = vmatpush1.bf16.msra.mxu0 %v5310
        %7158 = vmatprep.subr.bf16.mxu0 %v5319
        %7159 = vmatpush1.bf16.msra.mxu0 %v5318
        %7160 = vmatprep.subr.bf16.mxu0 %v5327
        %7161 = vmatpush1.bf16.msra.mxu0 %v5326
        %7162 = vmatprep.subr.bf16.mxu0 %v5335
        %7163 = vmatpush1.bf16.msra.mxu0 %v5334
        %7164 = vmatprep.subr.bf16.mxu0 %v5343
        %7165 = vmatpush1.bf16.msra.mxu0 %v5342
        %7166 = vmatprep.subr.bf16.mxu0 %v5351
        %7167 = vmatpush1.bf16.msra.mxu0 %v5350
        %7168 = vmatprep.subr.bf16.mxu0 %v5359
        %7169 = vmatpush1.bf16.msra.mxu0 %v5358
        %7170 = vmatprep.subr.bf16.mxu0 %v5367
        %7171 = vmatpush1.bf16.msra.mxu0 %v5366
        %7172 = vmatprep.subr.bf16.mxu0 %v5375
        %7173 = vmatpush1.bf16.msra.mxu0 %v5374
        %7174 = vmatprep.subr.bf16.mxu0 %v5383
        %7175 = vmatpush1.bf16.msra.mxu0 %v5382
        %7176 = vmatprep.subr.bf16.mxu0 %v5391
        %7177 = vmatpush1.bf16.msra.mxu0 %v5390
        %7178 = vmatprep.subr.bf16.mxu0 %v5399
        %7179 = vmatpush1.bf16.msra.mxu0 %v5398
        %7180 = vmatprep.subr.bf16.mxu0 %v5407
        %7181 = vmatpush1.bf16.msra.mxu0 %v5406
        %7182 = vmatprep.subr.bf16.mxu0 %v5415
        %7183 = vmatpush1.bf16.msra.mxu0 %v5414
        %7184 = vmatprep.subr.bf16.mxu0 %v5423
        %7185 = vmatpush1.bf16.msra.mxu0 %v5422
        %7186 = vmatprep.mubr.bf16.mxu0 %v433
        %7187 = vmatmul.mubr.bf16.gmra.mrb[0].mxu0 %v432
        %v7188 = vpop.f32.mrb[0].mxu0
        %v7189 = vadd.f32 %v7148, %v7188
        %v7190 = vpop.f32.mrb[0].mxu0
        %v7191 = vadd.f32 %v7150, %v7190
        %v7192 = vpop.f32.mrb[0].mxu0
        %v7193 = vpop.f32.mrb[0].mxu0
        %7194 = vdwg.mxu0
        %7195 = vmatprep.subr.bf16.mxu0 %v5431
        %7196 = vmatpush1.bf16.msra.mxu0 %v5430
        %7197 = vmatprep.subr.bf16.mxu0 %v5439
        %7198 = vmatpush1.bf16.msra.mxu0 %v5438
        %7199 = vmatprep.subr.bf16.mxu0 %v5447
        %7200 = vmatpush1.bf16.msra.mxu0 %v5446
        %7201 = vmatprep.subr.bf16.mxu0 %v5455
        %7202 = vmatpush1.bf16.msra.mxu0 %v5454
        %7203 = vmatprep.subr.bf16.mxu0 %v5463
        %7204 = vmatpush1.bf16.msra.mxu0 %v5462
        %7205 = vmatprep.subr.bf16.mxu0 %v5471
        %7206 = vmatpush1.bf16.msra.mxu0 %v5470
        %7207 = vmatprep.subr.bf16.mxu0 %v5479
        %7208 = vmatpush1.bf16.msra.mxu0 %v5478
        %7209 = vmatprep.subr.bf16.mxu0 %v5487
        %7210 = vmatpush1.bf16.msra.mxu0 %v5486
        %7211 = vmatprep.subr.bf16.mxu0 %v5495
        %7212 = vmatpush1.bf16.msra.mxu0 %v5494
        %7213 = vmatprep.subr.bf16.mxu0 %v5503
        %7214 = vmatpush1.bf16.msra.mxu0 %v5502
        %7215 = vmatprep.subr.bf16.mxu0 %v5511
        %7216 = vmatpush1.bf16.msra.mxu0 %v5510
        %7217 = vmatprep.subr.bf16.mxu0 %v5519
        %7218 = vmatpush1.bf16.msra.mxu0 %v5518
        %7219 = vmatprep.subr.bf16.mxu0 %v5527
        %7220 = vmatpush1.bf16.msra.mxu0 %v5526
        %7221 = vmatprep.subr.bf16.mxu0 %v5535
        %7222 = vmatpush1.bf16.msra.mxu0 %v5534
        %7223 = vmatprep.subr.bf16.mxu0 %v5543
        %7224 = vmatpush1.bf16.msra.mxu0 %v5542
        %7225 = vmatprep.subr.bf16.mxu0 %v5551
        %7226 = vmatpush1.bf16.msra.mxu0 %v5550
        %7227 = vmatprep.mubr.bf16.mxu0 %v435
        %7228 = vmatmul.mubr.bf16.gmra.mrb[0].mxu0 %v434
        %v7229 = vpop.f32.mrb[0].mxu0
        %v7230 = vadd.f32 %v7189, %v7229
        %v7231 = vpop.f32.mrb[0].mxu0
        %v7232 = vadd.f32 %v7191, %v7231
        %v7233 = vpop.f32.mrb[0].mxu0
        %v7234 = vpop.f32.mrb[0].mxu0
        %7235 = vdwg.mxu0
        %7236 = vmatprep.subr.bf16.mxu0 %v4537
        %7237 = vmatpush1.bf16.msra.mxu0 %v4536
        %7238 = vmatprep.subr.bf16.mxu0 %v4545
        %7239 = vmatpush1.bf16.msra.mxu0 %v4544
        %7240 = vmatprep.subr.bf16.mxu0 %v4553
        %7241 = vmatpush1.bf16.msra.mxu0 %v4552
        %7242 = vmatprep.subr.bf16.mxu0 %v4561
        %7243 = vmatpush1.bf16.msra.mxu0 %v4560
        %7244 = vmatprep.subr.bf16.mxu0 %v4569
        %7245 = vmatpush1.bf16.msra.mxu0 %v4568
        %7246 = vmatprep.subr.bf16.mxu0 %v4577
        %7247 = vmatpush1.bf16.msra.mxu0 %v4576
        %7248 = vmatprep.subr.bf16.mxu0 %v4585
        %7249 = vmatpush1.bf16.msra.mxu0 %v4584
        %7250 = vmatprep.subr.bf16.mxu0 %v4593
        %7251 = vmatpush1.bf16.msra.mxu0 %v4592
        %7252 = vmatprep.subr.bf16.mxu0 %v4601
        %7253 = vmatpush1.bf16.msra.mxu0 %v4600
        %7254 = vmatprep.subr.bf16.mxu0 %v4609
        %7255 = vmatpush1.bf16.msra.mxu0 %v4608
        %7256 = vmatprep.subr.bf16.mxu0 %v4617
        %7257 = vmatpush1.bf16.msra.mxu0 %v4616
        %7258 = vmatprep.subr.bf16.mxu0 %v4625
        %7259 = vmatpush1.bf16.msra.mxu0 %v4624
        %7260 = vmatprep.subr.bf16.mxu0 %v4633
        %7261 = vmatpush1.bf16.msra.mxu0 %v4632
        %7262 = vmatprep.subr.bf16.mxu0 %v4641
        %7263 = vmatpush1.bf16.msra.mxu0 %v4640
        %7264 = vmatprep.subr.bf16.mxu0 %v4649
        %7265 = vmatpush1.bf16.msra.mxu0 %v4648
        %7266 = vmatprep.subr.bf16.mxu0 %v4657
        %7267 = vmatpush1.bf16.msra.mxu0 %v4656
        %7268 = vmatprep.mubr.bf16.mxu0 %v421
        %7269 = vmatmul.mubr.bf16.gmra.mrb[0].mxu0 %v420
        %v7270 = vpop.f32.mrb[0].mxu0
        %v7271 = vadd.f32 0.0, %v7270
        %v7272 = vpop.f32.mrb[0].mxu0
        %v7273 = vadd.f32 0.0, %v7272
        %v7274 = vpop.f32.mrb[0].mxu0
        %v7275 = vpop.f32.mrb[0].mxu0
        %7276 = vdwg.mxu0
        %7277 = vmatprep.subr.bf16.mxu0 %v4665
        %7278 = vmatpush1.bf16.msra.mxu0 %v4664
        %7279 = vmatprep.subr.bf16.mxu0 %v4673
        %7280 = vmatpush1.bf16.msra.mxu0 %v4672
        %7281 = vmatprep.subr.bf16.mxu0 %v4681
        %7282 = vmatpush1.bf16.msra.mxu0 %v4680
        %7283 = vmatprep.subr.bf16.mxu0 %v4689
        %7284 = vmatpush1.bf16.msra.mxu0 %v4688
        %7285 = vmatprep.subr.bf16.mxu0 %v4697
        %7286 = vmatpush1.bf16.msra.mxu0 %v4696
        %7287 = vmatprep.subr.bf16.mxu0 %v4705
        %7288 = vmatpush1.bf16.msra.mxu0 %v4704
        %7289 = vmatprep.subr.bf16.mxu0 %v4713
        %7290 = vmatpush1.bf16.msra.mxu0 %v4712
        %7291 = vmatprep.subr.bf16.mxu0 %v4721
        %7292 = vmatpush1.bf16.msra.mxu0 %v4720
        %7293 = vmatprep.subr.bf16.mxu0 %v4729
        %7294 = vmatpush1.bf16.msra.mxu0 %v4728
        %7295 = vmatprep.subr.bf16.mxu0 %v4737
        %7296 = vmatpush1.bf16.msra.mxu0 %v4736
        %7297 = vmatprep.subr.bf16.mxu0 %v4745
        %7298 = vmatpush1.bf16.msra.mxu0 %v4744
        %7299 = vmatprep.subr.bf16.mxu0 %v4753
        %7300 = vmatpush1.bf16.msra.mxu0 %v4752
        %7301 = vmatprep.subr.bf16.mxu0 %v4761
        %7302 = vmatpush1.bf16.msra.mxu0 %v4760
        %7303 = vmatprep.subr.bf16.mxu0 %v4769
        %7304 = vmatpush1.bf16.msra.mxu0 %v4768
        %7305 = vmatprep.subr.bf16.mxu0 %v4777
        %7306 = vmatpush1.bf16.msra.mxu0 %v4776
        %7307 = vmatprep.subr.bf16.mxu0 %v4785
        %7308 = vmatpush1.bf16.msra.mxu0 %v4784
        %7309 = vmatprep.mubr.bf16.mxu0 %v423
        %7310 = vmatmul.mubr.bf16.gmra.mrb[0].mxu0 %v422
        %v7311 = vpop.f32.mrb[0].mxu0
        %v7312 = vadd.f32 %v7271, %v7311
        %v7313 = vpop.f32.mrb[0].mxu0
        %v7314 = vadd.f32 %v7273, %v7313
        %v7315 = vpop.f32.mrb[0].mxu0
        %v7316 = vpop.f32.mrb[0].mxu0
        %7317 = vdwg.mxu0
        %7318 = vmatprep.subr.bf16.mxu0 %v4793
        %7319 = vmatpush1.bf16.msra.mxu0 %v4792
        %7320 = vmatprep.subr.bf16.mxu0 %v4801
        %7321 = vmatpush1.bf16.msra.mxu0 %v4800
        %7322 = vmatprep.subr.bf16.mxu0 %v4809
        %7323 = vmatpush1.bf16.msra.mxu0 %v4808
        %7324 = vmatprep.subr.bf16.mxu0 %v4817
        %7325 = vmatpush1.bf16.msra.mxu0 %v4816
        %7326 = vmatprep.subr.bf16.mxu0 %v4825
        %7327 = vmatpush1.bf16.msra.mxu0 %v4824
        %7328 = vmatprep.subr.bf16.mxu0 %v4833
        %7329 = vmatpush1.bf16.msra.mxu0 %v4832
        %7330 = vmatprep.subr.bf16.mxu0 %v4841
        %7331 = vmatpush1.bf16.msra.mxu0 %v4840
        %7332 = vmatprep.subr.bf16.mxu0 %v4849
        %7333 = vmatpush1.bf16.msra.mxu0 %v4848
        %7334 = vmatprep.subr.bf16.mxu0 %v4857
        %7335 = vmatpush1.bf16.msra.mxu0 %v4856
        %7336 = vmatprep.subr.bf16.mxu0 %v4865
        %7337 = vmatpush1.bf16.msra.mxu0 %v4864
        %7338 = vmatprep.subr.bf16.mxu0 %v4873
        %7339 = vmatpush1.bf16.msra.mxu0 %v4872
        %7340 = vmatprep.subr.bf16.mxu0 %v4881
        %7341 = vmatpush1.bf16.msra.mxu0 %v4880
        %7342 = vmatprep.subr.bf16.mxu0 %v4889
        %7343 = vmatpush1.bf16.msra.mxu0 %v4888
        %7344 = vmatprep.subr.bf16.mxu0 %v4897
        %7345 = vmatpush1.bf16.msra.mxu0 %v4896
        %7346 = vmatprep.subr.bf16.mxu0 %v4905
        %7347 = vmatpush1.bf16.msra.mxu0 %v4904
        %7348 = vmatprep.subr.bf16.mxu0 %v4913
        %7349 = vmatpush1.bf16.msra.mxu0 %v4912
        %7350 = vmatprep.mubr.bf16.mxu0 %v425
        %7351 = vmatmul.mubr.bf16.gmra.mrb[0].mxu0 %v424
        %v7352 = vpop.f32.mrb[0].mxu0
        %v7353 = vadd.f32 %v7312, %v7352
        %v7354 = vpop.f32.mrb[0].mxu0
        %v7355 = vadd.f32 %v7314, %v7354
        %v7356 = vpop.f32.mrb[0].mxu0
        %v7357 = vpop.f32.mrb[0].mxu0
        %7358 = vdwg.mxu0
        %7359 = vmatprep.subr.bf16.mxu0 %v4921
        %7360 = vmatpush1.bf16.msra.mxu0 %v4920
        %7361 = vmatprep.subr.bf16.mxu0 %v4929
        %7362 = vmatpush1.bf16.msra.mxu0 %v4928
        %7363 = vmatprep.subr.bf16.mxu0 %v4937
        %7364 = vmatpush1.bf16.msra.mxu0 %v4936
        %7365 = vmatprep.subr.bf16.mxu0 %v4945
        %7366 = vmatpush1.bf16.msra.mxu0 %v4944
        %7367 = vmatprep.subr.bf16.mxu0 %v4953
        %7368 = vmatpush1.bf16.msra.mxu0 %v4952
        %7369 = vmatprep.subr.bf16.mxu0 %v4961
        %7370 = vmatpush1.bf16.msra.mxu0 %v4960
        %7371 = vmatprep.subr.bf16.mxu0 %v4969
        %7372 = vmatpush1.bf16.msra.mxu0 %v4968
        %7373 = vmatprep.subr.bf16.mxu0 %v4977
        %7374 = vmatpush1.bf16.msra.mxu0 %v4976
        %7375 = vmatprep.subr.bf16.mxu0 %v4985
        %7376 = vmatpush1.bf16.msra.mxu0 %v4984
        %7377 = vmatprep.subr.bf16.mxu0 %v4993
        %7378 = vmatpush1.bf16.msra.mxu0 %v4992
        %7379 = vmatprep.subr.bf16.mxu0 %v5001
        %7380 = vmatpush1.bf16.msra.mxu0 %v5000
        %7381 = vmatprep.subr.bf16.mxu0 %v5009
        %7382 = vmatpush1.bf16.msra.mxu0 %v5008
        %7383 = vmatprep.subr.bf16.mxu0 %v5017
        %7384 = vmatpush1.bf16.msra.mxu0 %v5016
        %7385 = vmatprep.subr.bf16.mxu0 %v5025
        %7386 = vmatpush1.bf16.msra.mxu0 %v5024
        %7387 = vmatprep.subr.bf16.mxu0 %v5033
        %7388 = vmatpush1.bf16.msra.mxu0 %v5032
        %7389 = vmatprep.subr.bf16.mxu0 %v5041
        %7390 = vmatpush1.bf16.msra.mxu0 %v5040
        %7391 = vmatprep.mubr.bf16.mxu0 %v427
        %7392 = vmatmul.mubr.bf16.gmra.mrb[0].mxu0 %v426
        %v7393 = vpop.f32.mrb[0].mxu0
        %v7394 = vadd.f32 %v7353, %v7393
        %v7395 = vpop.f32.mrb[0].mxu0
        %v7396 = vadd.f32 %v7355, %v7395
        %v7397 = vpop.f32.mrb[0].mxu0
        %v7398 = vpop.f32.mrb[0].mxu0
        %7399 = vdwg.mxu0
        %7400 = vmatprep.subr.bf16.mxu0 %v5049
        %7401 = vmatpush1.bf16.msra.mxu0 %v5048
        %7402 = vmatprep.subr.bf16.mxu0 %v5057
        %7403 = vmatpush1.bf16.msra.mxu0 %v5056
        %7404 = vmatprep.subr.bf16.mxu0 %v5065
        %7405 = vmatpush1.bf16.msra.mxu0 %v5064
        %7406 = vmatprep.subr.bf16.mxu0 %v5073
        %7407 = vmatpush1.bf16.msra.mxu0 %v5072
        %7408 = vmatprep.subr.bf16.mxu0 %v5081
        %7409 = vmatpush1.bf16.msra.mxu0 %v5080
        %7410 = vmatprep.subr.bf16.mxu0 %v5089
        %7411 = vmatpush1.bf16.msra.mxu0 %v5088
        %7412 = vmatprep.subr.bf16.mxu0 %v5097
        %7413 = vmatpush1.bf16.msra.mxu0 %v5096
        %7414 = vmatprep.subr.bf16.mxu0 %v5105
        %7415 = vmatpush1.bf16.msra.mxu0 %v5104
        %7416 = vmatprep.subr.bf16.mxu0 %v5113
        %7417 = vmatpush1.bf16.msra.mxu0 %v5112
        %7418 = vmatprep.subr.bf16.mxu0 %v5121
        %7419 = vmatpush1.bf16.msra.mxu0 %v5120
        %7420 = vmatprep.subr.bf16.mxu0 %v5129
        %7421 = vmatpush1.bf16.msra.mxu0 %v5128
        %7422 = vmatprep.subr.bf16.mxu0 %v5137
        %7423 = vmatpush1.bf16.msra.mxu0 %v5136
        %7424 = vmatprep.subr.bf16.mxu0 %v5145
        %7425 = vmatpush1.bf16.msra.mxu0 %v5144
        %7426 = vmatprep.subr.bf16.mxu0 %v5153
        %7427 = vmatpush1.bf16.msra.mxu0 %v5152
        %7428 = vmatprep.subr.bf16.mxu0 %v5161
        %7429 = vmatpush1.bf16.msra.mxu0 %v5160
        %7430 = vmatprep.subr.bf16.mxu0 %v5169
        %7431 = vmatpush1.bf16.msra.mxu0 %v5168
        %7432 = vmatprep.mubr.bf16.mxu0 %v429
        %7433 = vmatmul.mubr.bf16.gmra.mrb[0].mxu0 %v428
        %v7434 = vpop.f32.mrb[0].mxu0
        %v7435 = vadd.f32 %v7394, %v7434
        %v7436 = vpop.f32.mrb[0].mxu0
        %v7437 = vadd.f32 %v7396, %v7436
        %v7438 = vpop.f32.mrb[0].mxu0
        %v7439 = vpop.f32.mrb[0].mxu0
        %7440 = vdwg.mxu0
        %7441 = vmatprep.subr.bf16.mxu0 %v5177
        %7442 = vmatpush1.bf16.msra.mxu0 %v5176
        %7443 = vmatprep.subr.bf16.mxu0 %v5185
        %7444 = vmatpush1.bf16.msra.mxu0 %v5184
        %7445 = vmatprep.subr.bf16.mxu0 %v5193
        %7446 = vmatpush1.bf16.msra.mxu0 %v5192
        %7447 = vmatprep.subr.bf16.mxu0 %v5201
        %7448 = vmatpush1.bf16.msra.mxu0 %v5200
        %7449 = vmatprep.subr.bf16.mxu0 %v5209
        %7450 = vmatpush1.bf16.msra.mxu0 %v5208
        %7451 = vmatprep.subr.bf16.mxu0 %v5217
        %7452 = vmatpush1.bf16.msra.mxu0 %v5216
        %7453 = vmatprep.subr.bf16.mxu0 %v5225
        %7454 = vmatpush1.bf16.msra.mxu0 %v5224
        %7455 = vmatprep.subr.bf16.mxu0 %v5233
        %7456 = vmatpush1.bf16.msra.mxu0 %v5232
        %7457 = vmatprep.subr.bf16.mxu0 %v5241
        %7458 = vmatpush1.bf16.msra.mxu0 %v5240
        %7459 = vmatprep.subr.bf16.mxu0 %v5249
        %7460 = vmatpush1.bf16.msra.mxu0 %v5248
        %7461 = vmatprep.subr.bf16.mxu0 %v5257
        %7462 = vmatpush1.bf16.msra.mxu0 %v5256
        %7463 = vmatprep.subr.bf16.mxu0 %v5265
        %7464 = vmatpush1.bf16.msra.mxu0 %v5264
        %7465 = vmatprep.subr.bf16.mxu0 %v5273
        %7466 = vmatpush1.bf16.msra.mxu0 %v5272
        %7467 = vmatprep.subr.bf16.mxu0 %v5281
        %7468 = vmatpush1.bf16.msra.mxu0 %v5280
        %7469 = vmatprep.subr.bf16.mxu0 %v5289
        %7470 = vmatpush1.bf16.msra.mxu0 %v5288
        %7471 = vmatprep.subr.bf16.mxu0 %v5297
        %7472 = vmatpush1.bf16.msra.mxu0 %v5296
        %7473 = vmatprep.mubr.bf16.mxu0 %v431
        %7474 = vmatmul.mubr.bf16.gmra.mrb[0].mxu0 %v430
        %v7475 = vpop.f32.mrb[0].mxu0
        %v7476 = vadd.f32 %v7435, %v7475
        %v7477 = vpop.f32.mrb[0].mxu0
        %v7478 = vadd.f32 %v7437, %v7477
        %v7479 = vpop.f32.mrb[0].mxu0
        %v7480 = vpop.f32.mrb[0].mxu0
        %7481 = vdwg.mxu0
        %7482 = vmatprep.subr.bf16.mxu0 %v5305
        %7483 = vmatpush1.bf16.msra.mxu0 %v5304
        %7484 = vmatprep.subr.bf16.mxu0 %v5313
        %7485 = vmatpush1.bf16.msra.mxu0 %v5312
        %7486 = vmatprep.subr.bf16.mxu0 %v5321
        %7487 = vmatpush1.bf16.msra.mxu0 %v5320
        %7488 = vmatprep.subr.bf16.mxu0 %v5329
        %7489 = vmatpush1.bf16.msra.mxu0 %v5328
        %7490 = vmatprep.subr.bf16.mxu0 %v5337
        %7491 = vmatpush1.bf16.msra.mxu0 %v5336
        %7492 = vmatprep.subr.bf16.mxu0 %v5345
        %7493 = vmatpush1.bf16.msra.mxu0 %v5344
        %7494 = vmatprep.subr.bf16.mxu0 %v5353
        %7495 = vmatpush1.bf16.msra.mxu0 %v5352
        %7496 = vmatprep.subr.bf16.mxu0 %v5361
        %7497 = vmatpush1.bf16.msra.mxu0 %v5360
        %7498 = vmatprep.subr.bf16.mxu0 %v5369
        %7499 = vmatpush1.bf16.msra.mxu0 %v5368
        %7500 = vmatprep.subr.bf16.mxu0 %v5377
        %7501 = vmatpush1.bf16.msra.mxu0 %v5376
        %7502 = vmatprep.subr.bf16.mxu0 %v5385
        %7503 = vmatpush1.bf16.msra.mxu0 %v5384
        %7504 = vmatprep.subr.bf16.mxu0 %v5393
        %7505 = vmatpush1.bf16.msra.mxu0 %v5392
        %7506 = vmatprep.subr.bf16.mxu0 %v5401
        %7507 = vmatpush1.bf16.msra.mxu0 %v5400
        %7508 = vmatprep.subr.bf16.mxu0 %v5409
        %7509 = vmatpush1.bf16.msra.mxu0 %v5408
        %7510 = vmatprep.subr.bf16.mxu0 %v5417
        %7511 = vmatpush1.bf16.msra.mxu0 %v5416
        %7512 = vmatprep.subr.bf16.mxu0 %v5425
        %7513 = vmatpush1.bf16.msra.mxu0 %v5424
        %7514 = vmatprep.mubr.bf16.mxu0 %v433
        %7515 = vmatmul.mubr.bf16.gmra.mrb[0].mxu0 %v432
        %v7516 = vpop.f32.mrb[0].mxu0
        %v7517 = vadd.f32 %v7476, %v7516
        %v7518 = vpop.f32.mrb[0].mxu0
        %v7519 = vadd.f32 %v7478, %v7518
        %v7520 = vpop.f32.mrb[0].mxu0
        %v7521 = vpop.f32.mrb[0].mxu0
        %7522 = vdwg.mxu0
        %7523 = vmatprep.subr.bf16.mxu0 %v5433
        %7524 = vmatpush1.bf16.msra.mxu0 %v5432
        %7525 = vmatprep.subr.bf16.mxu0 %v5441
        %7526 = vmatpush1.bf16.msra.mxu0 %v5440
        %7527 = vmatprep.subr.bf16.mxu0 %v5449
        %7528 = vmatpush1.bf16.msra.mxu0 %v5448
        %7529 = vmatprep.subr.bf16.mxu0 %v5457
        %7530 = vmatpush1.bf16.msra.mxu0 %v5456
        %7531 = vmatprep.subr.bf16.mxu0 %v5465
        %7532 = vmatpush1.bf16.msra.mxu0 %v5464
        %7533 = vmatprep.subr.bf16.mxu0 %v5473
        %7534 = vmatpush1.bf16.msra.mxu0 %v5472
        %7535 = vmatprep.subr.bf16.mxu0 %v5481
        %7536 = vmatpush1.bf16.msra.mxu0 %v5480
        %7537 = vmatprep.subr.bf16.mxu0 %v5489
        %7538 = vmatpush1.bf16.msra.mxu0 %v5488
        %7539 = vmatprep.subr.bf16.mxu0 %v5497
        %7540 = vmatpush1.bf16.msra.mxu0 %v5496
        %7541 = vmatprep.subr.bf16.mxu0 %v5505
        %7542 = vmatpush1.bf16.msra.mxu0 %v5504
        %7543 = vmatprep.subr.bf16.mxu0 %v5513
        %7544 = vmatpush1.bf16.msra.mxu0 %v5512
        %7545 = vmatprep.subr.bf16.mxu0 %v5521
        %7546 = vmatpush1.bf16.msra.mxu0 %v5520
        %7547 = vmatprep.subr.bf16.mxu0 %v5529
        %7548 = vmatpush1.bf16.msra.mxu0 %v5528
        %7549 = vmatprep.subr.bf16.mxu0 %v5537
        %7550 = vmatpush1.bf16.msra.mxu0 %v5536
        %7551 = vmatprep.subr.bf16.mxu0 %v5545
        %7552 = vmatpush1.bf16.msra.mxu0 %v5544
        %7553 = vmatprep.subr.bf16.mxu0 %v5553
        %7554 = vmatpush1.bf16.msra.mxu0 %v5552
        %7555 = vmatprep.mubr.bf16.mxu0 %v435
        %7556 = vmatmul.mubr.bf16.gmra.mrb[0].mxu0 %v434
        %v7557 = vpop.f32.mrb[0].mxu0
        %v7558 = vadd.f32 %v7517, %v7557
        %v7559 = vpop.f32.mrb[0].mxu0
        %v7560 = vadd.f32 %v7519, %v7559
        %v7561 = vpop.f32.mrb[0].mxu0
        %v7562 = vpop.f32.mrb[0].mxu0
        %7563 = vdwg.mxu0
        %7564 = vmatprep.subr.bf16.mxu0 %v4539
        %7565 = vmatpush1.bf16.msra.mxu0 %v4538
        %7566 = vmatprep.subr.bf16.mxu0 %v4547
        %7567 = vmatpush1.bf16.msra.mxu0 %v4546
        %7568 = vmatprep.subr.bf16.mxu0 %v4555
        %7569 = vmatpush1.bf16.msra.mxu0 %v4554
        %7570 = vmatprep.subr.bf16.mxu0 %v4563
        %7571 = vmatpush1.bf16.msra.mxu0 %v4562
        %7572 = vmatprep.subr.bf16.mxu0 %v4571
        %7573 = vmatpush1.bf16.msra.mxu0 %v4570
        %7574 = vmatprep.subr.bf16.mxu0 %v4579
        %7575 = vmatpush1.bf16.msra.mxu0 %v4578
        %7576 = vmatprep.subr.bf16.mxu0 %v4587
        %7577 = vmatpush1.bf16.msra.mxu0 %v4586
        %7578 = vmatprep.subr.bf16.mxu0 %v4595
        %7579 = vmatpush1.bf16.msra.mxu0 %v4594
        %7580 = vmatprep.subr.bf16.mxu0 %v4603
        %7581 = vmatpush1.bf16.msra.mxu0 %v4602
        %7582 = vmatprep.subr.bf16.mxu0 %v4611
        %7583 = vmatpush1.bf16.msra.mxu0 %v4610
        %7584 = vmatprep.subr.bf16.mxu0 %v4619
        %7585 = vmatpush1.bf16.msra.mxu0 %v4618
        %7586 = vmatprep.subr.bf16.mxu0 %v4627
        %7587 = vmatpush1.bf16.msra.mxu0 %v4626
        %7588 = vmatprep.subr.bf16.mxu0 %v4635
        %7589 = vmatpush1.bf16.msra.mxu0 %v4634
        %7590 = vmatprep.subr.bf16.mxu0 %v4643
        %7591 = vmatpush1.bf16.msra.mxu0 %v4642
        %7592 = vmatprep.subr.bf16.mxu0 %v4651
        %7593 = vmatpush1.bf16.msra.mxu0 %v4650
        %7594 = vmatprep.subr.bf16.mxu0 %v4659
        %7595 = vmatpush1.bf16.msra.mxu0 %v4658
        %7596 = vmatprep.mubr.bf16.mxu0 %v421
        %7597 = vmatmul.mubr.bf16.gmra.mrb[0].mxu0 %v420
        %v7598 = vpop.f32.mrb[0].mxu0
        %v7599 = vadd.f32 0.0, %v7598
        %v7600 = vpop.f32.mrb[0].mxu0
        %v7601 = vadd.f32 0.0, %v7600
        %v7602 = vpop.f32.mrb[0].mxu0
        %v7603 = vpop.f32.mrb[0].mxu0
        %7604 = vdwg.mxu0
        %7605 = vmatprep.subr.bf16.mxu0 %v4667
        %7606 = vmatpush1.bf16.msra.mxu0 %v4666
        %7607 = vmatprep.subr.bf16.mxu0 %v4675
        %7608 = vmatpush1.bf16.msra.mxu0 %v4674
        %7609 = vmatprep.subr.bf16.mxu0 %v4683
        %7610 = vmatpush1.bf16.msra.mxu0 %v4682
        %7611 = vmatprep.subr.bf16.mxu0 %v4691
        %7612 = vmatpush1.bf16.msra.mxu0 %v4690
        %7613 = vmatprep.subr.bf16.mxu0 %v4699
        %7614 = vmatpush1.bf16.msra.mxu0 %v4698
        %7615 = vmatprep.subr.bf16.mxu0 %v4707
        %7616 = vmatpush1.bf16.msra.mxu0 %v4706
        %7617 = vmatprep.subr.bf16.mxu0 %v4715
        %7618 = vmatpush1.bf16.msra.mxu0 %v4714
        %7619 = vmatprep.subr.bf16.mxu0 %v4723
        %7620 = vmatpush1.bf16.msra.mxu0 %v4722
        %7621 = vmatprep.subr.bf16.mxu0 %v4731
        %7622 = vmatpush1.bf16.msra.mxu0 %v4730
        %7623 = vmatprep.subr.bf16.mxu0 %v4739
        %7624 = vmatpush1.bf16.msra.mxu0 %v4738
        %7625 = vmatprep.subr.bf16.mxu0 %v4747
        %7626 = vmatpush1.bf16.msra.mxu0 %v4746
        %7627 = vmatprep.subr.bf16.mxu0 %v4755
        %7628 = vmatpush1.bf16.msra.mxu0 %v4754
        %7629 = vmatprep.subr.bf16.mxu0 %v4763
        %7630 = vmatpush1.bf16.msra.mxu0 %v4762
        %7631 = vmatprep.subr.bf16.mxu0 %v4771
        %7632 = vmatpush1.bf16.msra.mxu0 %v4770
        %7633 = vmatprep.subr.bf16.mxu0 %v4779
        %7634 = vmatpush1.bf16.msra.mxu0 %v4778
        %7635 = vmatprep.subr.bf16.mxu0 %v4787
        %7636 = vmatpush1.bf16.msra.mxu0 %v4786
        %7637 = vmatprep.mubr.bf16.mxu0 %v423
        %7638 = vmatmul.mubr.bf16.gmra.mrb[0].mxu0 %v422
        %v7639 = vpop.f32.mrb[0].mxu0
        %v7640 = vadd.f32 %v7599, %v7639
        %v7641 = vpop.f32.mrb[0].mxu0
        %v7642 = vadd.f32 %v7601, %v7641
        %v7643 = vpop.f32.mrb[0].mxu0
        %v7644 = vpop.f32.mrb[0].mxu0
        %7645 = vdwg.mxu0
        %7646 = vmatprep.subr.bf16.mxu0 %v4795
        %7647 = vmatpush1.bf16.msra.mxu0 %v4794
        %7648 = vmatprep.subr.bf16.mxu0 %v4803
        %7649 = vmatpush1.bf16.msra.mxu0 %v4802
        %7650 = vmatprep.subr.bf16.mxu0 %v4811
        %7651 = vmatpush1.bf16.msra.mxu0 %v4810
        %7652 = vmatprep.subr.bf16.mxu0 %v4819
        %7653 = vmatpush1.bf16.msra.mxu0 %v4818
        %7654 = vmatprep.subr.bf16.mxu0 %v4827
        %7655 = vmatpush1.bf16.msra.mxu0 %v4826
        %7656 = vmatprep.subr.bf16.mxu0 %v4835
        %7657 = vmatpush1.bf16.msra.mxu0 %v4834
        %7658 = vmatprep.subr.bf16.mxu0 %v4843
        %7659 = vmatpush1.bf16.msra.mxu0 %v4842
        %7660 = vmatprep.subr.bf16.mxu0 %v4851
        %7661 = vmatpush1.bf16.msra.mxu0 %v4850
        %7662 = vmatprep.subr.bf16.mxu0 %v4859
        %7663 = vmatpush1.bf16.msra.mxu0 %v4858
        %7664 = vmatprep.subr.bf16.mxu0 %v4867
        %7665 = vmatpush1.bf16.msra.mxu0 %v4866
        %7666 = vmatprep.subr.bf16.mxu0 %v4875
        %7667 = vmatpush1.bf16.msra.mxu0 %v4874
        %7668 = vmatprep.subr.bf16.mxu0 %v4883
        %7669 = vmatpush1.bf16.msra.mxu0 %v4882
        %7670 = vmatprep.subr.bf16.mxu0 %v4891
        %7671 = vmatpush1.bf16.msra.mxu0 %v4890
        %7672 = vmatprep.subr.bf16.mxu0 %v4899
        %7673 = vmatpush1.bf16.msra.mxu0 %v4898
        %7674 = vmatprep.subr.bf16.mxu0 %v4907
        %7675 = vmatpush1.bf16.msra.mxu0 %v4906
        %7676 = vmatprep.subr.bf16.mxu0 %v4915
        %7677 = vmatpush1.bf16.msra.mxu0 %v4914
        %7678 = vmatprep.mubr.bf16.mxu0 %v425
        %7679 = vmatmul.mubr.bf16.gmra.mrb[0].mxu0 %v424
        %v7680 = vpop.f32.mrb[0].mxu0
        %v7681 = vadd.f32 %v7640, %v7680
        %v7682 = vpop.f32.mrb[0].mxu0
        %v7683 = vadd.f32 %v7642, %v7682
        %v7684 = vpop.f32.mrb[0].mxu0
        %v7685 = vpop.f32.mrb[0].mxu0
        %7686 = vdwg.mxu0
        %7687 = vmatprep.subr.bf16.mxu0 %v4923
        %7688 = vmatpush1.bf16.msra.mxu0 %v4922
        %7689 = vmatprep.subr.bf16.mxu0 %v4931
        %7690 = vmatpush1.bf16.msra.mxu0 %v4930
        %7691 = vmatprep.subr.bf16.mxu0 %v4939
        %7692 = vmatpush1.bf16.msra.mxu0 %v4938
        %7693 = vmatprep.subr.bf16.mxu0 %v4947
        %7694 = vmatpush1.bf16.msra.mxu0 %v4946
        %7695 = vmatprep.subr.bf16.mxu0 %v4955
        %7696 = vmatpush1.bf16.msra.mxu0 %v4954
        %7697 = vmatprep.subr.bf16.mxu0 %v4963
        %7698 = vmatpush1.bf16.msra.mxu0 %v4962
        %7699 = vmatprep.subr.bf16.mxu0 %v4971
        %7700 = vmatpush1.bf16.msra.mxu0 %v4970
        %7701 = vmatprep.subr.bf16.mxu0 %v4979
        %7702 = vmatpush1.bf16.msra.mxu0 %v4978
        %7703 = vmatprep.subr.bf16.mxu0 %v4987
        %7704 = vmatpush1.bf16.msra.mxu0 %v4986
        %7705 = vmatprep.subr.bf16.mxu0 %v4995
        %7706 = vmatpush1.bf16.msra.mxu0 %v4994
        %7707 = vmatprep.subr.bf16.mxu0 %v5003
        %7708 = vmatpush1.bf16.msra.mxu0 %v5002
        %7709 = vmatprep.subr.bf16.mxu0 %v5011
        %7710 = vmatpush1.bf16.msra.mxu0 %v5010
        %7711 = vmatprep.subr.bf16.mxu0 %v5019
        %7712 = vmatpush1.bf16.msra.mxu0 %v5018
        %7713 = vmatprep.subr.bf16.mxu0 %v5027
        %7714 = vmatpush1.bf16.msra.mxu0 %v5026
        %7715 = vmatprep.subr.bf16.mxu0 %v5035
        %7716 = vmatpush1.bf16.msra.mxu0 %v5034
        %7717 = vmatprep.subr.bf16.mxu0 %v5043
        %7718 = vmatpush1.bf16.msra.mxu0 %v5042
        %7719 = vmatprep.mubr.bf16.mxu0 %v427
        %7720 = vmatmul.mubr.bf16.gmra.mrb[0].mxu0 %v426
        %v7721 = vpop.f32.mrb[0].mxu0
        %v7722 = vadd.f32 %v7681, %v7721
        %v7723 = vpop.f32.mrb[0].mxu0
        %v7724 = vadd.f32 %v7683, %v7723
        %v7725 = vpop.f32.mrb[0].mxu0
        %v7726 = vpop.f32.mrb[0].mxu0
        %7727 = vdwg.mxu0
        %7728 = vmatprep.subr.bf16.mxu0 %v5051
        %7729 = vmatpush1.bf16.msra.mxu0 %v5050
        %7730 = vmatprep.subr.bf16.mxu0 %v5059
        %7731 = vmatpush1.bf16.msra.mxu0 %v5058
        %7732 = vmatprep.subr.bf16.mxu0 %v5067
        %7733 = vmatpush1.bf16.msra.mxu0 %v5066
        %7734 = vmatprep.subr.bf16.mxu0 %v5075
        %7735 = vmatpush1.bf16.msra.mxu0 %v5074
        %7736 = vmatprep.subr.bf16.mxu0 %v5083
        %7737 = vmatpush1.bf16.msra.mxu0 %v5082
        %7738 = vmatprep.subr.bf16.mxu0 %v5091
        %7739 = vmatpush1.bf16.msra.mxu0 %v5090
        %7740 = vmatprep.subr.bf16.mxu0 %v5099
        %7741 = vmatpush1.bf16.msra.mxu0 %v5098
        %7742 = vmatprep.subr.bf16.mxu0 %v5107
        %7743 = vmatpush1.bf16.msra.mxu0 %v5106
        %7744 = vmatprep.subr.bf16.mxu0 %v5115
        %7745 = vmatpush1.bf16.msra.mxu0 %v5114
        %7746 = vmatprep.subr.bf16.mxu0 %v5123
        %7747 = vmatpush1.bf16.msra.mxu0 %v5122
        %7748 = vmatprep.subr.bf16.mxu0 %v5131
        %7749 = vmatpush1.bf16.msra.mxu0 %v5130
        %7750 = vmatprep.subr.bf16.mxu0 %v5139
        %7751 = vmatpush1.bf16.msra.mxu0 %v5138
        %7752 = vmatprep.subr.bf16.mxu0 %v5147
        %7753 = vmatpush1.bf16.msra.mxu0 %v5146
        %7754 = vmatprep.subr.bf16.mxu0 %v5155
        %7755 = vmatpush1.bf16.msra.mxu0 %v5154
        %7756 = vmatprep.subr.bf16.mxu0 %v5163
        %7757 = vmatpush1.bf16.msra.mxu0 %v5162
        %7758 = vmatprep.subr.bf16.mxu0 %v5171
        %7759 = vmatpush1.bf16.msra.mxu0 %v5170
        %7760 = vmatprep.mubr.bf16.mxu0 %v429
        %7761 = vmatmul.mubr.bf16.gmra.mrb[0].mxu0 %v428
        %v7762 = vpop.f32.mrb[0].mxu0
        %v7763 = vadd.f32 %v7722, %v7762
        %v7764 = vpop.f32.mrb[0].mxu0
        %v7765 = vadd.f32 %v7724, %v7764
        %v7766 = vpop.f32.mrb[0].mxu0
        %v7767 = vpop.f32.mrb[0].mxu0
        %7768 = vdwg.mxu0
        %7769 = vmatprep.subr.bf16.mxu0 %v5179
        %7770 = vmatpush1.bf16.msra.mxu0 %v5178
        %7771 = vmatprep.subr.bf16.mxu0 %v5187
        %7772 = vmatpush1.bf16.msra.mxu0 %v5186
        %7773 = vmatprep.subr.bf16.mxu0 %v5195
        %7774 = vmatpush1.bf16.msra.mxu0 %v5194
        %7775 = vmatprep.subr.bf16.mxu0 %v5203
        %7776 = vmatpush1.bf16.msra.mxu0 %v5202
        %7777 = vmatprep.subr.bf16.mxu0 %v5211
        %7778 = vmatpush1.bf16.msra.mxu0 %v5210
        %7779 = vmatprep.subr.bf16.mxu0 %v5219
        %7780 = vmatpush1.bf16.msra.mxu0 %v5218
        %7781 = vmatprep.subr.bf16.mxu0 %v5227
        %7782 = vmatpush1.bf16.msra.mxu0 %v5226
        %7783 = vmatprep.subr.bf16.mxu0 %v5235
        %7784 = vmatpush1.bf16.msra.mxu0 %v5234
        %7785 = vmatprep.subr.bf16.mxu0 %v5243
        %7786 = vmatpush1.bf16.msra.mxu0 %v5242
        %7787 = vmatprep.subr.bf16.mxu0 %v5251
        %7788 = vmatpush1.bf16.msra.mxu0 %v5250
        %7789 = vmatprep.subr.bf16.mxu0 %v5259
        %7790 = vmatpush1.bf16.msra.mxu0 %v5258
        %7791 = vmatprep.subr.bf16.mxu0 %v5267
        %7792 = vmatpush1.bf16.msra.mxu0 %v5266
        %7793 = vmatprep.subr.bf16.mxu0 %v5275
        %7794 = vmatpush1.bf16.msra.mxu0 %v5274
        %7795 = vmatprep.subr.bf16.mxu0 %v5283
        %7796 = vmatpush1.bf16.msra.mxu0 %v5282
        %7797 = vmatprep.subr.bf16.mxu0 %v5291
        %7798 = vmatpush1.bf16.msra.mxu0 %v5290
        %7799 = vmatprep.subr.bf16.mxu0 %v5299
        %7800 = vmatpush1.bf16.msra.mxu0 %v5298
        %7801 = vmatprep.mubr.bf16.mxu0 %v431
        %7802 = vmatmul.mubr.bf16.gmra.mrb[0].mxu0 %v430
        %v7803 = vpop.f32.mrb[0].mxu0
        %v7804 = vadd.f32 %v7763, %v7803
        %v7805 = vpop.f32.mrb[0].mxu0
        %v7806 = vadd.f32 %v7765, %v7805
        %v7807 = vpop.f32.mrb[0].mxu0
        %v7808 = vpop.f32.mrb[0].mxu0
        %7809 = vdwg.mxu0
        %7810 = vmatprep.subr.bf16.mxu0 %v5307
        %7811 = vmatpush1.bf16.msra.mxu0 %v5306
        %7812 = vmatprep.subr.bf16.mxu0 %v5315
        %7813 = vmatpush1.bf16.msra.mxu0 %v5314
        %7814 = vmatprep.subr.bf16.mxu0 %v5323
        %7815 = vmatpush1.bf16.msra.mxu0 %v5322
        %7816 = vmatprep.subr.bf16.mxu0 %v5331
        %7817 = vmatpush1.bf16.msra.mxu0 %v5330
        %7818 = vmatprep.subr.bf16.mxu0 %v5339
        %7819 = vmatpush1.bf16.msra.mxu0 %v5338
        %7820 = vmatprep.subr.bf16.mxu0 %v5347
        %7821 = vmatpush1.bf16.msra.mxu0 %v5346
        %7822 = vmatprep.subr.bf16.mxu0 %v5355
        %7823 = vmatpush1.bf16.msra.mxu0 %v5354
        %7824 = vmatprep.subr.bf16.mxu0 %v5363
        %7825 = vmatpush1.bf16.msra.mxu0 %v5362
        %7826 = vmatprep.subr.bf16.mxu0 %v5371
        %7827 = vmatpush1.bf16.msra.mxu0 %v5370
        %7828 = vmatprep.subr.bf16.mxu0 %v5379
        %7829 = vmatpush1.bf16.msra.mxu0 %v5378
        %7830 = vmatprep.subr.bf16.mxu0 %v5387
        %7831 = vmatpush1.bf16.msra.mxu0 %v5386
        %7832 = vmatprep.subr.bf16.mxu0 %v5395
        %7833 = vmatpush1.bf16.msra.mxu0 %v5394
        %7834 = vmatprep.subr.bf16.mxu0 %v5403
        %7835 = vmatpush1.bf16.msra.mxu0 %v5402
        %7836 = vmatprep.subr.bf16.mxu0 %v5411
        %7837 = vmatpush1.bf16.msra.mxu0 %v5410
        %7838 = vmatprep.subr.bf16.mxu0 %v5419
        %7839 = vmatpush1.bf16.msra.mxu0 %v5418
        %7840 = vmatprep.subr.bf16.mxu0 %v5427
        %7841 = vmatpush1.bf16.msra.mxu0 %v5426
        %7842 = vmatprep.mubr.bf16.mxu0 %v433
        %7843 = vmatmul.mubr.bf16.gmra.mrb[0].mxu0 %v432
        %v7844 = vpop.f32.mrb[0].mxu0
        %v7845 = vadd.f32 %v7804, %v7844
        %v7846 = vpop.f32.mrb[0].mxu0
        %v7847 = vadd.f32 %v7806, %v7846
        %v7848 = vpop.f32.mrb[0].mxu0
        %v7849 = vpop.f32.mrb[0].mxu0
        %7850 = vdwg.mxu0
        %7851 = vmatprep.subr.bf16.mxu0 %v5435
        %7852 = vmatpush1.bf16.msra.mxu0 %v5434
        %7853 = vmatprep.subr.bf16.mxu0 %v5443
        %7854 = vmatpush1.bf16.msra.mxu0 %v5442
        %7855 = vmatprep.subr.bf16.mxu0 %v5451
        %7856 = vmatpush1.bf16.msra.mxu0 %v5450
        %7857 = vmatprep.subr.bf16.mxu0 %v5459
        %7858 = vmatpush1.bf16.msra.mxu0 %v5458
        %7859 = vmatprep.subr.bf16.mxu0 %v5467
        %7860 = vmatpush1.bf16.msra.mxu0 %v5466
        %7861 = vmatprep.subr.bf16.mxu0 %v5475
        %7862 = vmatpush1.bf16.msra.mxu0 %v5474
        %7863 = vmatprep.subr.bf16.mxu0 %v5483
        %7864 = vmatpush1.bf16.msra.mxu0 %v5482
        %7865 = vmatprep.subr.bf16.mxu0 %v5491
        %7866 = vmatpush1.bf16.msra.mxu0 %v5490
        %7867 = vmatprep.subr.bf16.mxu0 %v5499
        %7868 = vmatpush1.bf16.msra.mxu0 %v5498
        %7869 = vmatprep.subr.bf16.mxu0 %v5507
        %7870 = vmatpush1.bf16.msra.mxu0 %v5506
        %7871 = vmatprep.subr.bf16.mxu0 %v5515
        %7872 = vmatpush1.bf16.msra.mxu0 %v5514
        %7873 = vmatprep.subr.bf16.mxu0 %v5523
        %7874 = vmatpush1.bf16.msra.mxu0 %v5522
        %7875 = vmatprep.subr.bf16.mxu0 %v5531
        %7876 = vmatpush1.bf16.msra.mxu0 %v5530
        %7877 = vmatprep.subr.bf16.mxu0 %v5539
        %7878 = vmatpush1.bf16.msra.mxu0 %v5538
        %7879 = vmatprep.subr.bf16.mxu0 %v5547
        %7880 = vmatpush1.bf16.msra.mxu0 %v5546
        %7881 = vmatprep.subr.bf16.mxu0 %v5555
        %7882 = vmatpush1.bf16.msra.mxu0 %v5554
        %7883 = vmatprep.mubr.bf16.mxu0 %v435
        %7884 = vmatmul.mubr.bf16.gmra.mrb[0].mxu0 %v434
        %v7885 = vpop.f32.mrb[0].mxu0
        %v7886 = vadd.f32 %v7845, %v7885
        %v7887 = vpop.f32.mrb[0].mxu0
        %v7888 = vadd.f32 %v7847, %v7887
        %v7889 = vpop.f32.mrb[0].mxu0
        %v7890 = vpop.f32.mrb[0].mxu0
        %7891 = vdwg.mxu0
        %v7892 = vrot.slane %v6902, 4
        %v7893 = vadd.f32 %v6902, %v7892
        %v7894 = vrot.slane %v7893, 2
        %v7895 = vadd.f32 %v7893, %v7894
        %v7896 = vrot.slane %v7895, 1
        %v7897 = vadd.f32 %v7895, %v7896
        %v7898 = vrot.slane %v6904, 4
        %v7899 = vadd.f32 %v6904, %v7898
        %v7900 = vrot.slane %v7899, 2
        %v7901 = vadd.f32 %v7899, %v7900
        %v7902 = vrot.slane %v7901, 1
        %v7903 = vadd.f32 %v7901, %v7902
        %v7904 = vrot.slane %v7230, 4
        %v7905 = vadd.f32 %v7230, %v7904
        %v7906 = vrot.slane %v7905, 2
        %v7907 = vadd.f32 %v7905, %v7906
        %v7908 = vrot.slane %v7907, 1
        %v7909 = vadd.f32 %v7907, %v7908
        %v7910 = vrot.slane %v7232, 4
        %v7911 = vadd.f32 %v7232, %v7910
        %v7912 = vrot.slane %v7911, 2
        %v7913 = vadd.f32 %v7911, %v7912
        %v7914 = vrot.slane %v7913, 1
        %v7915 = vadd.f32 %v7913, %v7914
        %v7916 = vrot.slane %v7558, 4
        %v7917 = vadd.f32 %v7558, %v7916
        %v7918 = vrot.slane %v7917, 2
        %v7919 = vadd.f32 %v7917, %v7918
        %v7920 = vrot.slane %v7919, 1
        %v7921 = vadd.f32 %v7919, %v7920
        %v7922 = vrot.slane %v7560, 4
        %v7923 = vadd.f32 %v7560, %v7922
        %v7924 = vrot.slane %v7923, 2
        %v7925 = vadd.f32 %v7923, %v7924
        %v7926 = vrot.slane %v7925, 1
        %v7927 = vadd.f32 %v7925, %v7926
        %v7928 = vrot.slane %v7886, 4
        %v7929 = vadd.f32 %v7886, %v7928
        %v7930 = vrot.slane %v7929, 2
        %v7931 = vadd.f32 %v7929, %v7930
        %v7932 = vrot.slane %v7931, 1
        %v7933 = vadd.f32 %v7931, %v7932
        %v7934 = vrot.slane %v7888, 4
        %v7935 = vadd.f32 %v7888, %v7934
        %v7936 = vrot.slane %v7935, 2
        %v7937 = vadd.f32 %v7935, %v7936
        %v7938 = vrot.slane %v7937, 1
        %v7939 = vadd.f32 %v7937, %v7938
        %v7940 = vrcp.pop 8.0
        %v7941 = vmul.f32 %v7897, %v7940
        %v7942 = vmul.f32 %v7903, %v7940
        %v7943 = vmul.f32 %v7909, %v7940
        %v7944 = vmul.f32 %v7915, %v7940
        %v7945 = vmul.f32 %v7921, %v7940
        %v7946 = vmul.f32 %v7927, %v7940
        %v7947 = vmul.f32 %v7933, %v7940
        %v7948 = vmul.f32 %v7939, %v7940
        %v7949 = vsub.f32 %v6902, %v7941
        %v7950 = vsub.f32 %v6904, %v7942
        %v7951 = vsub.f32 %v7230, %v7943
        %v7952 = vsub.f32 %v7232, %v7944
        %v7953 = vsub.f32 %v7558, %v7945
        %v7954 = vsub.f32 %v7560, %v7946
        %v7955 = vsub.f32 %v7886, %v7947
        %v7956 = vsub.f32 %v7888, %v7948
        %v7957 = vmul.f32 %v7949, %v7949
        %v7958 = vmul.f32 %v7950, %v7950
        %v7959 = vmul.f32 %v7951, %v7951
        %v7960 = vmul.f32 %v7952, %v7952
        %v7961 = vmul.f32 %v7953, %v7953
        %v7962 = vmul.f32 %v7954, %v7954
        %v7963 = vmul.f32 %v7955, %v7955
        %v7964 = vmul.f32 %v7956, %v7956
        %v7965 = vrot.slane %v7957, 4
        %v7966 = vadd.f32 %v7957, %v7965
        %v7967 = vrot.slane %v7966, 2
        %v7968 = vadd.f32 %v7966, %v7967
        %v7969 = vrot.slane %v7968, 1
        %v7970 = vadd.f32 %v7968, %v7969
        %v7971 = vrot.slane %v7958, 4
        %v7972 = vadd.f32 %v7958, %v7971
        %v7973 = vrot.slane %v7972, 2
        %v7974 = vadd.f32 %v7972, %v7973
        %v7975 = vrot.slane %v7974, 1
        %v7976 = vadd.f32 %v7974, %v7975
        %v7977 = vrot.slane %v7959, 4
        %v7978 = vadd.f32 %v7959, %v7977
        %v7979 = vrot.slane %v7978, 2
        %v7980 = vadd.f32 %v7978, %v7979
        %v7981 = vrot.slane %v7980, 1
        %v7982 = vadd.f32 %v7980, %v7981
        %v7983 = vrot.slane %v7960, 4
        %v7984 = vadd.f32 %v7960, %v7983
        %v7985 = vrot.slane %v7984, 2
        %v7986 = vadd.f32 %v7984, %v7985
        %v7987 = vrot.slane %v7986, 1
        %v7988 = vadd.f32 %v7986, %v7987
        %v7989 = vrot.slane %v7961, 4
        %v7990 = vadd.f32 %v7961, %v7989
        %v7991 = vrot.slane %v7990, 2
        %v7992 = vadd.f32 %v7990, %v7991
        %v7993 = vrot.slane %v7992, 1
        %v7994 = vadd.f32 %v7992, %v7993
        %v7995 = vrot.slane %v7962, 4
        %v7996 = vadd.f32 %v7962, %v7995
        %v7997 = vrot.slane %v7996, 2
        %v7998 = vadd.f32 %v7996, %v7997
        %v7999 = vrot.slane %v7998, 1
        %v8000 = vadd.f32 %v7998, %v7999
        %v8001 = vrot.slane %v7963, 4
        %v8002 = vadd.f32 %v7963, %v8001
        %v8003 = vrot.slane %v8002, 2
        %v8004 = vadd.f32 %v8002, %v8003
        %v8005 = vrot.slane %v8004, 1
        %v8006 = vadd.f32 %v8004, %v8005
        %v8007 = vrot.slane %v7964, 4
        %v8008 = vadd.f32 %v7964, %v8007
        %v8009 = vrot.slane %v8008, 2
        %v8010 = vadd.f32 %v8008, %v8009
        %v8011 = vrot.slane %v8010, 1
        %v8012 = vadd.f32 %v8010, %v8011
        %v8013 = vmul.f32 %v7970, %v7940
        %v8014 = vmul.f32 %v7976, %v7940
        %v8015 = vmul.f32 %v7982, %v7940
        %v8016 = vmul.f32 %v7988, %v7940
        %v8017 = vmul.f32 %v7994, %v7940
        %v8018 = vmul.f32 %v8000, %v7940
        %v8019 = vmul.f32 %v8006, %v7940
        %v8020 = vmul.f32 %v8012, %v7940
        %v8021 = vadd.f32 %v8013, 1e-05
        %v8022 = vadd.f32 %v8014, 1e-05
        %v8023 = vadd.f32 %v8015, 1e-05
        %v8024 = vadd.f32 %v8016, 1e-05
        %v8025 = vadd.f32 %v8017, 1e-05
        %v8026 = vadd.f32 %v8018, 1e-05
        %v8027 = vadd.f32 %v8019, 1e-05
        %v8028 = vadd.f32 %v8020, 1e-05
        %v8029 = vrsqrt.pop %v8021
        %v8030 = vrsqrt.pop %v8022
        %v8031 = vrsqrt.pop %v8023
        %v8032 = vrsqrt.pop %v8024
        %v8033 = vrsqrt.pop %v8025
        %v8034 = vrsqrt.pop %v8026
        %v8035 = vrsqrt.pop %v8027
        %v8036 = vrsqrt.pop %v8028
        %v8037 = vmul.f32 %v7949, %v8029
        %v8038 = vmul.f32 %v7950, %v8030
        %v8039 = vmul.f32 %v7951, %v8031
        %v8040 = vmul.f32 %v7952, %v8032
        %v8041 = vmul.f32 %v7953, %v8033
        %v8042 = vmul.f32 %v7954, %v8034
        %v8043 = vmul.f32 %v7955, %v8035
        %v8044 = vmul.f32 %v7956, %v8036
        %v8045 = vld [vmem:[%s334] sm:$0xff]
        %v8047 = vlaneseq
        %v8048 = vshrl.u32 %v8047, 7
        %v8049 = vsub.s32 0, %v8048
        %v8050 = vrot.slane %v8045, %v8049
        %v8051 = vlaneseq
        %v8052 = vshrl.u32 %v8051, 7
        %v8053 = vsub.s32 1, %v8052
        %v8054 = vrot.slane %v8045, %v8053
        %v8055 = vlaneseq
        %v8056 = vshrl.u32 %v8055, 7
        %v8057 = vsub.s32 2, %v8056
        %v8058 = vrot.slane %v8045, %v8057
        %v8059 = vlaneseq
        %v8060 = vshrl.u32 %v8059, 7
        %v8061 = vsub.s32 3, %v8060
        %v8062 = vrot.slane %v8045, %v8061
        %v8063 = vlaneseq
        %v8064 = vshrl.u32 %v8063, 7
        %v8065 = vsub.s32 4, %v8064
        %v8066 = vrot.slane %v8045, %v8065
        %v8067 = vlaneseq
        %v8068 = vshrl.u32 %v8067, 7
        %v8069 = vsub.s32 5, %v8068
        %v8070 = vrot.slane %v8045, %v8069
        %v8071 = vlaneseq
        %v8072 = vshrl.u32 %v8071, 7
        %v8073 = vsub.s32 6, %v8072
        %v8074 = vrot.slane %v8045, %v8073
        %v8075 = vlaneseq
        %v8076 = vshrl.u32 %v8075, 7
        %v8077 = vsub.s32 7, %v8076
        %v8078 = vrot.slane %v8045, %v8077
        %v8087 = vmul.f32 %v8037, %v8050
        %v8088 = vmul.f32 %v8038, %v8054
        %v8089 = vmul.f32 %v8039, %v8058
        %v8090 = vmul.f32 %v8040, %v8062
        %v8091 = vmul.f32 %v8041, %v8066
        %v8092 = vmul.f32 %v8042, %v8070
        %v8093 = vmul.f32 %v8043, %v8074
        %v8094 = vmul.f32 %v8044, %v8078
        %v8095 = vld [vmem:[%s343] sm:$0xff]
        %v8097 = vlaneseq
        %v8098 = vshrl.u32 %v8097, 7
        %v8099 = vsub.s32 0, %v8098
        %v8100 = vrot.slane %v8095, %v8099
        %v8101 = vlaneseq
        %v8102 = vshrl.u32 %v8101, 7
        %v8103 = vsub.s32 1, %v8102
        %v8104 = vrot.slane %v8095, %v8103
        %v8105 = vlaneseq
        %v8106 = vshrl.u32 %v8105, 7
        %v8107 = vsub.s32 2, %v8106
        %v8108 = vrot.slane %v8095, %v8107
        %v8109 = vlaneseq
        %v8110 = vshrl.u32 %v8109, 7
        %v8111 = vsub.s32 3, %v8110
        %v8112 = vrot.slane %v8095, %v8111
        %v8113 = vlaneseq
        %v8114 = vshrl.u32 %v8113, 7
        %v8115 = vsub.s32 4, %v8114
        %v8116 = vrot.slane %v8095, %v8115
        %v8117 = vlaneseq
        %v8118 = vshrl.u32 %v8117, 7
        %v8119 = vsub.s32 5, %v8118
        %v8120 = vrot.slane %v8095, %v8119
        %v8121 = vlaneseq
        %v8122 = vshrl.u32 %v8121, 7
        %v8123 = vsub.s32 6, %v8122
        %v8124 = vrot.slane %v8095, %v8123
        %v8125 = vlaneseq
        %v8126 = vshrl.u32 %v8125, 7
        %v8127 = vsub.s32 7, %v8126
        %v8128 = vrot.slane %v8095, %v8127
        %v8137 = vadd.f32 %v8087, %v8100
        %v8138 = vadd.f32 %v8088, %v8104
        %v8139 = vadd.f32 %v8089, %v8108
        %v8140 = vadd.f32 %v8090, %v8112
        %v8141 = vadd.f32 %v8091, %v8116
        %v8142 = vadd.f32 %v8092, %v8120
        %v8143 = vadd.f32 %v8093, %v8124
        %v8144 = vadd.f32 %v8094, %v8128
        %v8145 = vmax.f32 %v8137, 0.0
        %v8146 = vmax.f32 %v8138, 0.0
        %v8147 = vmax.f32 %v8139, 0.0
        %v8148 = vmax.f32 %v8140, 0.0
        %v8149 = vmax.f32 %v8141, 0.0
        %v8150 = vmax.f32 %v8142, 0.0
        %v8151 = vmax.f32 %v8143, 0.0
        %v8152 = vmax.f32 %v8144, 0.0
        %v8153 = vpack.c.bf16 %v8145, %v8145
        %v8154 = vpack.c.bf16 %v8146, %v8146
        %v8155 = vpack.c.bf16 %v8147, %v8147
        %v8156 = vpack.c.bf16 %v8148, %v8148
        %v8157 = vpack.c.bf16 %v8149, %v8149
        %v8158 = vpack.c.bf16 %v8150, %v8150
        %v8159 = vpack.c.bf16 %v8151, %v8151
        %v8160 = vpack.c.bf16 %v8152, %v8152
        %v8161 = vld [vmem:[#allocation13] sm:$0xff]
        %v8162 = vld [vmem:[#allocation13 + $0x8] sm:$0xff]
        %v8163 = vld [vmem:[%s352] sm:$0xff]
        %v8164 = vld [vmem:[%s352 + $0x8] sm:$0xff]
        %v8165 = vld [vmem:[%s352 + $0x10] sm:$0xff]
        %v8166 = vld [vmem:[%s352 + $0x18] sm:$0xff]
        %v8167 = vld [vmem:[%s352 + $0x20] sm:$0xff]
        %v8168 = vld [vmem:[%s352 + $0x28] sm:$0xff]
        %v8169 = vld [vmem:[%s352 + $0x30] sm:$0xff]
        %v8170 = vld [vmem:[%s352 + $0x38] sm:$0xff]
        %v8171 = vld [vmem:[%s352 + $0x40] sm:$0xff]
        %v8172 = vld [vmem:[%s352 + $0x48] sm:$0xff]
        %v8173 = vld [vmem:[%s352 + $0x50] sm:$0xff]
        %v8174 = vld [vmem:[%s352 + $0x58] sm:$0xff]
        %v8175 = vld [vmem:[%s352 + $0x60] sm:$0xff]
        %v8176 = vld [vmem:[%s352 + $0x68] sm:$0xff]
        %v8177 = vld [vmem:[%s352 + $0x70] sm:$0xff]
        %v8178 = vld [vmem:[%s352 + $0x78] sm:$0xff]
        %v8179 = vld [vmem:[%s352 + $0x80] sm:$0xff]
        %v8180 = vld [vmem:[%s352 + $0x88] sm:$0xff]
        %v8181 = vld [vmem:[%s352 + $0x90] sm:$0xff]
        %v8182 = vld [vmem:[%s352 + $0x98] sm:$0xff]
        %v8183 = vld [vmem:[%s352 + $0xa0] sm:$0xff]
        %v8184 = vld [vmem:[%s352 + $0xa8] sm:$0xff]
        %v8185 = vld [vmem:[%s352 + $0xb0] sm:$0xff]
        %v8186 = vld [vmem:[%s352 + $0xb8] sm:$0xff]
        %v8187 = vld [vmem:[%s352 + $0xc0] sm:$0xff]
        %v8188 = vld [vmem:[%s352 + $0xc8] sm:$0xff]
        %v8189 = vld [vmem:[%s352 + $0xd0] sm:$0xff]
        %v8190 = vld [vmem:[%s352 + $0xd8] sm:$0xff]
        %v8191 = vld [vmem:[%s352 + $0xe0] sm:$0xff]
        %v8192 = vld [vmem:[%s352 + $0xe8] sm:$0xff]
        %v8193 = vld [vmem:[%s352 + $0xf0] sm:$0xff]
        %v8194 = vld [vmem:[%s352 + $0xf8] sm:$0xff]
        %v8195 = vld [vmem:[%s352 + $0x100] sm:$0xff]
        %v8196 = vld [vmem:[%s352 + $0x108] sm:$0xff]
        %v8197 = vld [vmem:[%s352 + $0x110] sm:$0xff]
        %v8198 = vld [vmem:[%s352 + $0x118] sm:$0xff]
        %v8199 = vld [vmem:[%s352 + $0x120] sm:$0xff]
        %v8200 = vld [vmem:[%s352 + $0x128] sm:$0xff]
        %v8201 = vld [vmem:[%s352 + $0x130] sm:$0xff]
        %v8202 = vld [vmem:[%s352 + $0x138] sm:$0xff]
        %v8203 = vld [vmem:[%s352 + $0x140] sm:$0xff]
        %v8204 = vld [vmem:[%s352 + $0x148] sm:$0xff]
        %v8205 = vld [vmem:[%s352 + $0x150] sm:$0xff]
        %v8206 = vld [vmem:[%s352 + $0x158] sm:$0xff]
        %v8207 = vld [vmem:[%s352 + $0x160] sm:$0xff]
        %v8208 = vld [vmem:[%s352 + $0x168] sm:$0xff]
        %v8209 = vld [vmem:[%s352 + $0x170] sm:$0xff]
        %v8210 = vld [vmem:[%s352 + $0x178] sm:$0xff]
        %v8211 = vld [vmem:[%s352 + $0x180] sm:$0xff]
        %v8212 = vld [vmem:[%s352 + $0x188] sm:$0xff]
        %v8213 = vld [vmem:[%s352 + $0x190] sm:$0xff]
        %v8214 = vld [vmem:[%s352 + $0x198] sm:$0xff]
        %v8215 = vld [vmem:[%s352 + $0x1a0] sm:$0xff]
        %v8216 = vld [vmem:[%s352 + $0x1a8] sm:$0xff]
        %v8217 = vld [vmem:[%s352 + $0x1b0] sm:$0xff]
        %v8218 = vld [vmem:[%s352 + $0x1b8] sm:$0xff]
        %v8219 = vld [vmem:[%s352 + $0x1c0] sm:$0xff]
        %v8220 = vld [vmem:[%s352 + $0x1c8] sm:$0xff]
        %v8221 = vld [vmem:[%s352 + $0x1d0] sm:$0xff]
        %v8222 = vld [vmem:[%s352 + $0x1d8] sm:$0xff]
        %v8223 = vld [vmem:[%s352 + $0x1e0] sm:$0xff]
        %v8224 = vld [vmem:[%s352 + $0x1e8] sm:$0xff]
        %v8225 = vld [vmem:[%s352 + $0x1f0] sm:$0xff]
        %v8226 = vld [vmem:[%s352 + $0x1f8] sm:$0xff]
        %v8227 = vld [vmem:[%s352 + $0x200] sm:$0xff]
        %v8228 = vld [vmem:[%s352 + $0x208] sm:$0xff]
        %v8229 = vld [vmem:[%s352 + $0x210] sm:$0xff]
        %v8230 = vld [vmem:[%s352 + $0x218] sm:$0xff]
        %v8231 = vld [vmem:[%s352 + $0x220] sm:$0xff]
        %v8232 = vld [vmem:[%s352 + $0x228] sm:$0xff]
        %v8233 = vld [vmem:[%s352 + $0x230] sm:$0xff]
        %v8234 = vld [vmem:[%s352 + $0x238] sm:$0xff]
        %v8235 = vld [vmem:[%s352 + $0x240] sm:$0xff]
        %v8236 = vld [vmem:[%s352 + $0x248] sm:$0xff]
        %v8237 = vld [vmem:[%s352 + $0x250] sm:$0xff]
        %v8238 = vld [vmem:[%s352 + $0x258] sm:$0xff]
        %v8239 = vld [vmem:[%s352 + $0x260] sm:$0xff]
        %v8240 = vld [vmem:[%s352 + $0x268] sm:$0xff]
        %v8241 = vld [vmem:[%s352 + $0x270] sm:$0xff]
        %v8242 = vld [vmem:[%s352 + $0x278] sm:$0xff]
        %v8243 = vld [vmem:[%s352 + $0x280] sm:$0xff]
        %v8244 = vld [vmem:[%s352 + $0x288] sm:$0xff]
        %v8245 = vld [vmem:[%s352 + $0x290] sm:$0xff]
        %v8246 = vld [vmem:[%s352 + $0x298] sm:$0xff]
        %v8247 = vld [vmem:[%s352 + $0x2a0] sm:$0xff]
        %v8248 = vld [vmem:[%s352 + $0x2a8] sm:$0xff]
        %v8249 = vld [vmem:[%s352 + $0x2b0] sm:$0xff]
        %v8250 = vld [vmem:[%s352 + $0x2b8] sm:$0xff]
        %v8251 = vld [vmem:[%s352 + $0x2c0] sm:$0xff]
        %v8252 = vld [vmem:[%s352 + $0x2c8] sm:$0xff]
        %v8253 = vld [vmem:[%s352 + $0x2d0] sm:$0xff]
        %v8254 = vld [vmem:[%s352 + $0x2d8] sm:$0xff]
        %v8255 = vld [vmem:[%s352 + $0x2e0] sm:$0xff]
        %v8256 = vld [vmem:[%s352 + $0x2e8] sm:$0xff]
        %v8257 = vld [vmem:[%s352 + $0x2f0] sm:$0xff]
        %v8258 = vld [vmem:[%s352 + $0x2f8] sm:$0xff]
        %v8259 = vld [vmem:[%s352 + $0x300] sm:$0xff]
        %v8260 = vld [vmem:[%s352 + $0x308] sm:$0xff]
        %v8261 = vld [vmem:[%s352 + $0x310] sm:$0xff]
        %v8262 = vld [vmem:[%s352 + $0x318] sm:$0xff]
        %v8263 = vld [vmem:[%s352 + $0x320] sm:$0xff]
        %v8264 = vld [vmem:[%s352 + $0x328] sm:$0xff]
        %v8265 = vld [vmem:[%s352 + $0x330] sm:$0xff]
        %v8266 = vld [vmem:[%s352 + $0x338] sm:$0xff]
        %v8267 = vld [vmem:[%s352 + $0x340] sm:$0xff]
        %v8268 = vld [vmem:[%s352 + $0x348] sm:$0xff]
        %v8269 = vld [vmem:[%s352 + $0x350] sm:$0xff]
        %v8270 = vld [vmem:[%s352 + $0x358] sm:$0xff]
        %v8271 = vld [vmem:[%s352 + $0x360] sm:$0xff]
        %v8272 = vld [vmem:[%s352 + $0x368] sm:$0xff]
        %v8273 = vld [vmem:[%s352 + $0x370] sm:$0xff]
        %v8274 = vld [vmem:[%s352 + $0x378] sm:$0xff]
        %v8275 = vld [vmem:[%s352 + $0x380] sm:$0xff]
        %v8276 = vld [vmem:[%s352 + $0x388] sm:$0xff]
        %v8277 = vld [vmem:[%s352 + $0x390] sm:$0xff]
        %v8278 = vld [vmem:[%s352 + $0x398] sm:$0xff]
        %v8279 = vld [vmem:[%s352 + $0x3a0] sm:$0xff]
        %v8280 = vld [vmem:[%s352 + $0x3a8] sm:$0xff]
        %v8281 = vld [vmem:[%s352 + $0x3b0] sm:$0xff]
        %v8282 = vld [vmem:[%s352 + $0x3b8] sm:$0xff]
        %v8283 = vld [vmem:[%s352 + $0x3c0] sm:$0xff]
        %v8284 = vld [vmem:[%s352 + $0x3c8] sm:$0xff]
        %v8285 = vld [vmem:[%s352 + $0x3d0] sm:$0xff]
        %v8286 = vld [vmem:[%s352 + $0x3d8] sm:$0xff]
        %v8287 = vld [vmem:[%s352 + $0x3e0] sm:$0xff]
        %v8288 = vld [vmem:[%s352 + $0x3e8] sm:$0xff]
        %v8289 = vld [vmem:[%s352 + $0x3f0] sm:$0xff]
        %v8290 = vld [vmem:[%s352 + $0x3f8] sm:$0xff]
        %v8419 = vunpack.c.l.b16 %v8163
        %v8420 = vunpack.c.h.b16 %v8163
        %v8421 = vunpack.c.l.b16 %v8164
        %v8422 = vunpack.c.h.b16 %v8164
        %v8423 = vunpack.c.l.b16 %v8165
        %v8424 = vunpack.c.h.b16 %v8165
        %v8425 = vunpack.c.l.b16 %v8166
        %v8426 = vunpack.c.h.b16 %v8166
        %v8427 = vunpack.c.l.b16 %v8167
        %v8428 = vunpack.c.h.b16 %v8167
        %v8429 = vunpack.c.l.b16 %v8168
        %v8430 = vunpack.c.h.b16 %v8168
        %v8431 = vunpack.c.l.b16 %v8169
        %v8432 = vunpack.c.h.b16 %v8169
        %v8433 = vunpack.c.l.b16 %v8170
        %v8434 = vunpack.c.h.b16 %v8170
        %v8435 = vunpack.c.l.b16 %v8171
        %v8436 = vunpack.c.h.b16 %v8171
        %v8437 = vunpack.c.l.b16 %v8172
        %v8438 = vunpack.c.h.b16 %v8172
        %v8439 = vunpack.c.l.b16 %v8173
        %v8440 = vunpack.c.h.b16 %v8173
        %v8441 = vunpack.c.l.b16 %v8174
        %v8442 = vunpack.c.h.b16 %v8174
        %v8443 = vunpack.c.l.b16 %v8175
        %v8444 = vunpack.c.h.b16 %v8175
        %v8445 = vunpack.c.l.b16 %v8176
        %v8446 = vunpack.c.h.b16 %v8176
        %v8447 = vunpack.c.l.b16 %v8177
        %v8448 = vunpack.c.h.b16 %v8177
        %v8449 = vunpack.c.l.b16 %v8178
        %v8450 = vunpack.c.h.b16 %v8178
        %v8451 = vunpack.c.l.b16 %v8179
        %v8452 = vunpack.c.h.b16 %v8179
        %v8453 = vunpack.c.l.b16 %v8180
        %v8454 = vunpack.c.h.b16 %v8180
        %v8455 = vunpack.c.l.b16 %v8181
        %v8456 = vunpack.c.h.b16 %v8181
        %v8457 = vunpack.c.l.b16 %v8182
        %v8458 = vunpack.c.h.b16 %v8182
        %v8459 = vunpack.c.l.b16 %v8183
        %v8460 = vunpack.c.h.b16 %v8183
        %v8461 = vunpack.c.l.b16 %v8184
        %v8462 = vunpack.c.h.b16 %v8184
        %v8463 = vunpack.c.l.b16 %v8185
        %v8464 = vunpack.c.h.b16 %v8185
        %v8465 = vunpack.c.l.b16 %v8186
        %v8466 = vunpack.c.h.b16 %v8186
        %v8467 = vunpack.c.l.b16 %v8187
        %v8468 = vunpack.c.h.b16 %v8187
        %v8469 = vunpack.c.l.b16 %v8188
        %v8470 = vunpack.c.h.b16 %v8188
        %v8471 = vunpack.c.l.b16 %v8189
        %v8472 = vunpack.c.h.b16 %v8189
        %v8473 = vunpack.c.l.b16 %v8190
        %v8474 = vunpack.c.h.b16 %v8190
        %v8475 = vunpack.c.l.b16 %v8191
        %v8476 = vunpack.c.h.b16 %v8191
        %v8477 = vunpack.c.l.b16 %v8192
        %v8478 = vunpack.c.h.b16 %v8192
        %v8479 = vunpack.c.l.b16 %v8193
        %v8480 = vunpack.c.h.b16 %v8193
        %v8481 = vunpack.c.l.b16 %v8194
        %v8482 = vunpack.c.h.b16 %v8194
        %v8483 = vunpack.c.l.b16 %v8195
        %v8484 = vunpack.c.h.b16 %v8195
        %v8485 = vunpack.c.l.b16 %v8196
        %v8486 = vunpack.c.h.b16 %v8196
        %v8487 = vunpack.c.l.b16 %v8197
        %v8488 = vunpack.c.h.b16 %v8197
        %v8489 = vunpack.c.l.b16 %v8198
        %v8490 = vunpack.c.h.b16 %v8198
        %v8491 = vunpack.c.l.b16 %v8199
        %v8492 = vunpack.c.h.b16 %v8199
        %v8493 = vunpack.c.l.b16 %v8200
        %v8494 = vunpack.c.h.b16 %v8200
        %v8495 = vunpack.c.l.b16 %v8201
        %v8496 = vunpack.c.h.b16 %v8201
        %v8497 = vunpack.c.l.b16 %v8202
        %v8498 = vunpack.c.h.b16 %v8202
        %v8499 = vunpack.c.l.b16 %v8203
        %v8500 = vunpack.c.h.b16 %v8203
        %v8501 = vunpack.c.l.b16 %v8204
        %v8502 = vunpack.c.h.b16 %v8204
        %v8503 = vunpack.c.l.b16 %v8205
        %v8504 = vunpack.c.h.b16 %v8205
        %v8505 = vunpack.c.l.b16 %v8206
        %v8506 = vunpack.c.h.b16 %v8206
        %v8507 = vunpack.c.l.b16 %v8207
        %v8508 = vunpack.c.h.b16 %v8207
        %v8509 = vunpack.c.l.b16 %v8208
        %v8510 = vunpack.c.h.b16 %v8208
        %v8511 = vunpack.c.l.b16 %v8209
        %v8512 = vunpack.c.h.b16 %v8209
        %v8513 = vunpack.c.l.b16 %v8210
        %v8514 = vunpack.c.h.b16 %v8210
        %v8515 = vunpack.c.l.b16 %v8211
        %v8516 = vunpack.c.h.b16 %v8211
        %v8517 = vunpack.c.l.b16 %v8212
        %v8518 = vunpack.c.h.b16 %v8212
        %v8519 = vunpack.c.l.b16 %v8213
        %v8520 = vunpack.c.h.b16 %v8213
        %v8521 = vunpack.c.l.b16 %v8214
        %v8522 = vunpack.c.h.b16 %v8214
        %v8523 = vunpack.c.l.b16 %v8215
        %v8524 = vunpack.c.h.b16 %v8215
        %v8525 = vunpack.c.l.b16 %v8216
        %v8526 = vunpack.c.h.b16 %v8216
        %v8527 = vunpack.c.l.b16 %v8217
        %v8528 = vunpack.c.h.b16 %v8217
        %v8529 = vunpack.c.l.b16 %v8218
        %v8530 = vunpack.c.h.b16 %v8218
        %v8531 = vunpack.c.l.b16 %v8219
        %v8532 = vunpack.c.h.b16 %v8219
        %v8533 = vunpack.c.l.b16 %v8220
        %v8534 = vunpack.c.h.b16 %v8220
        %v8535 = vunpack.c.l.b16 %v8221
        %v8536 = vunpack.c.h.b16 %v8221
        %v8537 = vunpack.c.l.b16 %v8222
        %v8538 = vunpack.c.h.b16 %v8222
        %v8539 = vunpack.c.l.b16 %v8223
        %v8540 = vunpack.c.h.b16 %v8223
        %v8541 = vunpack.c.l.b16 %v8224
        %v8542 = vunpack.c.h.b16 %v8224
        %v8543 = vunpack.c.l.b16 %v8225
        %v8544 = vunpack.c.h.b16 %v8225
        %v8545 = vunpack.c.l.b16 %v8226
        %v8546 = vunpack.c.h.b16 %v8226
        %v8547 = vunpack.c.l.b16 %v8227
        %v8548 = vunpack.c.h.b16 %v8227
        %v8549 = vunpack.c.l.b16 %v8228
        %v8550 = vunpack.c.h.b16 %v8228
        %v8551 = vunpack.c.l.b16 %v8229
        %v8552 = vunpack.c.h.b16 %v8229
        %v8553 = vunpack.c.l.b16 %v8230
        %v8554 = vunpack.c.h.b16 %v8230
        %v8555 = vunpack.c.l.b16 %v8231
        %v8556 = vunpack.c.h.b16 %v8231
        %v8557 = vunpack.c.l.b16 %v8232
        %v8558 = vunpack.c.h.b16 %v8232
        %v8559 = vunpack.c.l.b16 %v8233
        %v8560 = vunpack.c.h.b16 %v8233
        %v8561 = vunpack.c.l.b16 %v8234
        %v8562 = vunpack.c.h.b16 %v8234
        %v8563 = vunpack.c.l.b16 %v8235
        %v8564 = vunpack.c.h.b16 %v8235
        %v8565 = vunpack.c.l.b16 %v8236
        %v8566 = vunpack.c.h.b16 %v8236
        %v8567 = vunpack.c.l.b16 %v8237
        %v8568 = vunpack.c.h.b16 %v8237
        %v8569 = vunpack.c.l.b16 %v8238
        %v8570 = vunpack.c.h.b16 %v8238
        %v8571 = vunpack.c.l.b16 %v8239
        %v8572 = vunpack.c.h.b16 %v8239
        %v8573 = vunpack.c.l.b16 %v8240
        %v8574 = vunpack.c.h.b16 %v8240
        %v8575 = vunpack.c.l.b16 %v8241
        %v8576 = vunpack.c.h.b16 %v8241
        %v8577 = vunpack.c.l.b16 %v8242
        %v8578 = vunpack.c.h.b16 %v8242
        %v8579 = vunpack.c.l.b16 %v8243
        %v8580 = vunpack.c.h.b16 %v8243
        %v8581 = vunpack.c.l.b16 %v8244
        %v8582 = vunpack.c.h.b16 %v8244
        %v8583 = vunpack.c.l.b16 %v8245
        %v8584 = vunpack.c.h.b16 %v8245
        %v8585 = vunpack.c.l.b16 %v8246
        %v8586 = vunpack.c.h.b16 %v8246
        %v8587 = vunpack.c.l.b16 %v8247
        %v8588 = vunpack.c.h.b16 %v8247
        %v8589 = vunpack.c.l.b16 %v8248
        %v8590 = vunpack.c.h.b16 %v8248
        %v8591 = vunpack.c.l.b16 %v8249
        %v8592 = vunpack.c.h.b16 %v8249
        %v8593 = vunpack.c.l.b16 %v8250
        %v8594 = vunpack.c.h.b16 %v8250
        %v8595 = vunpack.c.l.b16 %v8251
        %v8596 = vunpack.c.h.b16 %v8251
        %v8597 = vunpack.c.l.b16 %v8252
        %v8598 = vunpack.c.h.b16 %v8252
        %v8599 = vunpack.c.l.b16 %v8253
        %v8600 = vunpack.c.h.b16 %v8253
        %v8601 = vunpack.c.l.b16 %v8254
        %v8602 = vunpack.c.h.b16 %v8254
        %v8603 = vunpack.c.l.b16 %v8255
        %v8604 = vunpack.c.h.b16 %v8255
        %v8605 = vunpack.c.l.b16 %v8256
        %v8606 = vunpack.c.h.b16 %v8256
        %v8607 = vunpack.c.l.b16 %v8257
        %v8608 = vunpack.c.h.b16 %v8257
        %v8609 = vunpack.c.l.b16 %v8258
        %v8610 = vunpack.c.h.b16 %v8258
        %v8611 = vunpack.c.l.b16 %v8259
        %v8612 = vunpack.c.h.b16 %v8259
        %v8613 = vunpack.c.l.b16 %v8260
        %v8614 = vunpack.c.h.b16 %v8260
        %v8615 = vunpack.c.l.b16 %v8261
        %v8616 = vunpack.c.h.b16 %v8261
        %v8617 = vunpack.c.l.b16 %v8262
        %v8618 = vunpack.c.h.b16 %v8262
        %v8619 = vunpack.c.l.b16 %v8263
        %v8620 = vunpack.c.h.b16 %v8263
        %v8621 = vunpack.c.l.b16 %v8264
        %v8622 = vunpack.c.h.b16 %v8264
        %v8623 = vunpack.c.l.b16 %v8265
        %v8624 = vunpack.c.h.b16 %v8265
        %v8625 = vunpack.c.l.b16 %v8266
        %v8626 = vunpack.c.h.b16 %v8266
        %v8627 = vunpack.c.l.b16 %v8267
        %v8628 = vunpack.c.h.b16 %v8267
        %v8629 = vunpack.c.l.b16 %v8268
        %v8630 = vunpack.c.h.b16 %v8268
        %v8631 = vunpack.c.l.b16 %v8269
        %v8632 = vunpack.c.h.b16 %v8269
        %v8633 = vunpack.c.l.b16 %v8270
        %v8634 = vunpack.c.h.b16 %v8270
        %v8635 = vunpack.c.l.b16 %v8271
        %v8636 = vunpack.c.h.b16 %v8271
        %v8637 = vunpack.c.l.b16 %v8272
        %v8638 = vunpack.c.h.b16 %v8272
        %v8639 = vunpack.c.l.b16 %v8273
        %v8640 = vunpack.c.h.b16 %v8273
        %v8641 = vunpack.c.l.b16 %v8274
        %v8642 = vunpack.c.h.b16 %v8274
        %v8643 = vunpack.c.l.b16 %v8275
        %v8644 = vunpack.c.h.b16 %v8275
        %v8645 = vunpack.c.l.b16 %v8276
        %v8646 = vunpack.c.h.b16 %v8276
        %v8647 = vunpack.c.l.b16 %v8277
        %v8648 = vunpack.c.h.b16 %v8277
        %v8649 = vunpack.c.l.b16 %v8278
        %v8650 = vunpack.c.h.b16 %v8278
        %v8651 = vunpack.c.l.b16 %v8279
        %v8652 = vunpack.c.h.b16 %v8279
        %v8653 = vunpack.c.l.b16 %v8280
        %v8654 = vunpack.c.h.b16 %v8280
        %v8655 = vunpack.c.l.b16 %v8281
        %v8656 = vunpack.c.h.b16 %v8281
        %v8657 = vunpack.c.l.b16 %v8282
        %v8658 = vunpack.c.h.b16 %v8282
        %v8659 = vunpack.c.l.b16 %v8283
        %v8660 = vunpack.c.h.b16 %v8283
        %v8661 = vunpack.c.l.b16 %v8284
        %v8662 = vunpack.c.h.b16 %v8284
        %v8663 = vunpack.c.l.b16 %v8285
        %v8664 = vunpack.c.h.b16 %v8285
        %v8665 = vunpack.c.l.b16 %v8286
        %v8666 = vunpack.c.h.b16 %v8286
        %v8667 = vunpack.c.l.b16 %v8287
        %v8668 = vunpack.c.h.b16 %v8287
        %v8669 = vunpack.c.l.b16 %v8288
        %v8670 = vunpack.c.h.b16 %v8288
        %v8671 = vunpack.c.l.b16 %v8289
        %v8672 = vunpack.c.h.b16 %v8289
        %v8673 = vunpack.c.l.b16 %v8290
        %v8674 = vunpack.c.h.b16 %v8290
        %v8675 = vpack.c.b16 %v8421, %v8419
        %v8676 = vpack.c.b16 %v8422, %v8420
        %v8677 = vpack.c.b16 %v8425, %v8423
        %v8678 = vpack.c.b16 %v8426, %v8424
        %v8679 = vpack.c.b16 %v8429, %v8427
        %v8680 = vpack.c.b16 %v8430, %v8428
        %v8681 = vpack.c.b16 %v8433, %v8431
        %v8682 = vpack.c.b16 %v8434, %v8432
        %v8683 = vpack.c.b16 %v8437, %v8435
        %v8684 = vpack.c.b16 %v8438, %v8436
        %v8685 = vpack.c.b16 %v8441, %v8439
        %v8686 = vpack.c.b16 %v8442, %v8440
        %v8687 = vpack.c.b16 %v8445, %v8443
        %v8688 = vpack.c.b16 %v8446, %v8444
        %v8689 = vpack.c.b16 %v8449, %v8447
        %v8690 = vpack.c.b16 %v8450, %v8448
        %v8691 = vpack.c.b16 %v8453, %v8451
        %v8692 = vpack.c.b16 %v8454, %v8452
        %v8693 = vpack.c.b16 %v8457, %v8455
        %v8694 = vpack.c.b16 %v8458, %v8456
        %v8695 = vpack.c.b16 %v8461, %v8459
        %v8696 = vpack.c.b16 %v8462, %v8460
        %v8697 = vpack.c.b16 %v8465, %v8463
        %v8698 = vpack.c.b16 %v8466, %v8464
        %v8699 = vpack.c.b16 %v8469, %v8467
        %v8700 = vpack.c.b16 %v8470, %v8468
        %v8701 = vpack.c.b16 %v8473, %v8471
        %v8702 = vpack.c.b16 %v8474, %v8472
        %v8703 = vpack.c.b16 %v8477, %v8475
        %v8704 = vpack.c.b16 %v8478, %v8476
        %v8705 = vpack.c.b16 %v8481, %v8479
        %v8706 = vpack.c.b16 %v8482, %v8480
        %v8707 = vpack.c.b16 %v8485, %v8483
        %v8708 = vpack.c.b16 %v8486, %v8484
        %v8709 = vpack.c.b16 %v8489, %v8487
        %v8710 = vpack.c.b16 %v8490, %v8488
        %v8711 = vpack.c.b16 %v8493, %v8491
        %v8712 = vpack.c.b16 %v8494, %v8492
        %v8713 = vpack.c.b16 %v8497, %v8495
        %v8714 = vpack.c.b16 %v8498, %v8496
        %v8715 = vpack.c.b16 %v8501, %v8499
        %v8716 = vpack.c.b16 %v8502, %v8500
        %v8717 = vpack.c.b16 %v8505, %v8503
        %v8718 = vpack.c.b16 %v8506, %v8504
        %v8719 = vpack.c.b16 %v8509, %v8507
        %v8720 = vpack.c.b16 %v8510, %v8508
        %v8721 = vpack.c.b16 %v8513, %v8511
        %v8722 = vpack.c.b16 %v8514, %v8512
        %v8723 = vpack.c.b16 %v8517, %v8515
        %v8724 = vpack.c.b16 %v8518, %v8516
        %v8725 = vpack.c.b16 %v8521, %v8519
        %v8726 = vpack.c.b16 %v8522, %v8520
        %v8727 = vpack.c.b16 %v8525, %v8523
        %v8728 = vpack.c.b16 %v8526, %v8524
        %v8729 = vpack.c.b16 %v8529, %v8527
        %v8730 = vpack.c.b16 %v8530, %v8528
        %v8731 = vpack.c.b16 %v8533, %v8531
        %v8732 = vpack.c.b16 %v8534, %v8532
        %v8733 = vpack.c.b16 %v8537, %v8535
        %v8734 = vpack.c.b16 %v8538, %v8536
        %v8735 = vpack.c.b16 %v8541, %v8539
        %v8736 = vpack.c.b16 %v8542, %v8540
        %v8737 = vpack.c.b16 %v8545, %v8543
        %v8738 = vpack.c.b16 %v8546, %v8544
        %v8739 = vpack.c.b16 %v8549, %v8547
        %v8740 = vpack.c.b16 %v8550, %v8548
        %v8741 = vpack.c.b16 %v8553, %v8551
        %v8742 = vpack.c.b16 %v8554, %v8552
        %v8743 = vpack.c.b16 %v8557, %v8555
        %v8744 = vpack.c.b16 %v8558, %v8556
        %v8745 = vpack.c.b16 %v8561, %v8559
        %v8746 = vpack.c.b16 %v8562, %v8560
        %v8747 = vpack.c.b16 %v8565, %v8563
        %v8748 = vpack.c.b16 %v8566, %v8564
        %v8749 = vpack.c.b16 %v8569, %v8567
        %v8750 = vpack.c.b16 %v8570, %v8568
        %v8751 = vpack.c.b16 %v8573, %v8571
        %v8752 = vpack.c.b16 %v8574, %v8572
        %v8753 = vpack.c.b16 %v8577, %v8575
        %v8754 = vpack.c.b16 %v8578, %v8576
        %v8755 = vpack.c.b16 %v8581, %v8579
        %v8756 = vpack.c.b16 %v8582, %v8580
        %v8757 = vpack.c.b16 %v8585, %v8583
        %v8758 = vpack.c.b16 %v8586, %v8584
        %v8759 = vpack.c.b16 %v8589, %v8587
        %v8760 = vpack.c.b16 %v8590, %v8588
        %v8761 = vpack.c.b16 %v8593, %v8591
        %v8762 = vpack.c.b16 %v8594, %v8592
        %v8763 = vpack.c.b16 %v8597, %v8595
        %v8764 = vpack.c.b16 %v8598, %v8596
        %v8765 = vpack.c.b16 %v8601, %v8599
        %v8766 = vpack.c.b16 %v8602, %v8600
        %v8767 = vpack.c.b16 %v8605, %v8603
        %v8768 = vpack.c.b16 %v8606, %v8604
        %v8769 = vpack.c.b16 %v8609, %v8607
        %v8770 = vpack.c.b16 %v8610, %v8608
        %v8771 = vpack.c.b16 %v8613, %v8611
        %v8772 = vpack.c.b16 %v8614, %v8612
        %v8773 = vpack.c.b16 %v8617, %v8615
        %v8774 = vpack.c.b16 %v8618, %v8616
        %v8775 = vpack.c.b16 %v8621, %v8619
        %v8776 = vpack.c.b16 %v8622, %v8620
        %v8777 = vpack.c.b16 %v8625, %v8623
        %v8778 = vpack.c.b16 %v8626, %v8624
        %v8779 = vpack.c.b16 %v8629, %v8627
        %v8780 = vpack.c.b16 %v8630, %v8628
        %v8781 = vpack.c.b16 %v8633, %v8631
        %v8782 = vpack.c.b16 %v8634, %v8632
        %v8783 = vpack.c.b16 %v8637, %v8635
        %v8784 = vpack.c.b16 %v8638, %v8636
        %v8785 = vpack.c.b16 %v8641, %v8639
        %v8786 = vpack.c.b16 %v8642, %v8640
        %v8787 = vpack.c.b16 %v8645, %v8643
        %v8788 = vpack.c.b16 %v8646, %v8644
        %v8789 = vpack.c.b16 %v8649, %v8647
        %v8790 = vpack.c.b16 %v8650, %v8648
        %v8791 = vpack.c.b16 %v8653, %v8651
        %v8792 = vpack.c.b16 %v8654, %v8652
        %v8793 = vpack.c.b16 %v8657, %v8655
        %v8794 = vpack.c.b16 %v8658, %v8656
        %v8795 = vpack.c.b16 %v8661, %v8659
        %v8796 = vpack.c.b16 %v8662, %v8660
        %v8797 = vpack.c.b16 %v8665, %v8663
        %v8798 = vpack.c.b16 %v8666, %v8664
        %v8799 = vpack.c.b16 %v8669, %v8667
        %v8800 = vpack.c.b16 %v8670, %v8668
        %v8801 = vpack.c.b16 %v8673, %v8671
        %v8802 = vpack.c.b16 %v8674, %v8672
        %8931 = vmatprep.subr.bf16.mxu0 %v8676
        %8932 = vmatpush1.bf16.msra.mxu0 %v8675
        %8933 = vmatprep.subr.bf16.mxu0 %v8678
        %8934 = vmatpush1.bf16.msra.mxu0 %v8677
        %8935 = vmatprep.subr.bf16.mxu0 %v8680
        %8936 = vmatpush1.bf16.msra.mxu0 %v8679
        %8937 = vmatprep.subr.bf16.mxu0 %v8682
        %8938 = vmatpush1.bf16.msra.mxu0 %v8681
        %8939 = vmatprep.subr.bf16.mxu0 %v8684
        %8940 = vmatpush1.bf16.msra.mxu0 %v8683
        %8941 = vmatprep.subr.bf16.mxu0 %v8686
        %8942 = vmatpush1.bf16.msra.mxu0 %v8685
        %8943 = vmatprep.subr.bf16.mxu0 %v8688
        %8944 = vmatpush1.bf16.msra.mxu0 %v8687
        %8945 = vmatprep.subr.bf16.mxu0 %v8690
        %8946 = vmatpush1.bf16.msra.mxu0 %v8689
        %8947 = vmatprep.subr.bf16.mxu0 %v8692
        %8948 = vmatpush1.bf16.msra.mxu0 %v8691
        %8949 = vmatprep.subr.bf16.mxu0 %v8694
        %8950 = vmatpush1.bf16.msra.mxu0 %v8693
        %8951 = vmatprep.subr.bf16.mxu0 %v8696
        %8952 = vmatpush1.bf16.msra.mxu0 %v8695
        %8953 = vmatprep.subr.bf16.mxu0 %v8698
        %8954 = vmatpush1.bf16.msra.mxu0 %v8697
        %8955 = vmatprep.subr.bf16.mxu0 %v8700
        %8956 = vmatpush1.bf16.msra.mxu0 %v8699
        %8957 = vmatprep.subr.bf16.mxu0 %v8702
        %8958 = vmatpush1.bf16.msra.mxu0 %v8701
        %8959 = vmatprep.subr.bf16.mxu0 %v8704
        %8960 = vmatpush1.bf16.msra.mxu0 %v8703
        %8961 = vmatprep.subr.bf16.mxu0 %v8706
        %8962 = vmatpush1.bf16.msra.mxu0 %v8705
        %8963 = vmatprep.mubr.bf16.mxu0 %v8154
        %8964 = vmatmul.mubr.bf16.gmra.mrb[0].mxu0 %v8153
        %v8965 = vpop.f32.mrb[0].mxu0
        %v8966 = vadd.f32 0.0, %v8965
        %v8967 = vpop.f32.mrb[0].mxu0
        %v8968 = vadd.f32 0.0, %v8967
        %v8969 = vpop.f32.mrb[0].mxu0
        %v8970 = vpop.f32.mrb[0].mxu0
        %8971 = vdwg.mxu0
        %8972 = vmatprep.subr.bf16.mxu0 %v8708
        %8973 = vmatpush1.bf16.msra.mxu0 %v8707
        %8974 = vmatprep.subr.bf16.mxu0 %v8710
        %8975 = vmatpush1.bf16.msra.mxu0 %v8709
        %8976 = vmatprep.subr.bf16.mxu0 %v8712
        %8977 = vmatpush1.bf16.msra.mxu0 %v8711
        %8978 = vmatprep.subr.bf16.mxu0 %v8714
        %8979 = vmatpush1.bf16.msra.mxu0 %v8713
        %8980 = vmatprep.subr.bf16.mxu0 %v8716
        %8981 = vmatpush1.bf16.msra.mxu0 %v8715
        %8982 = vmatprep.subr.bf16.mxu0 %v8718
        %8983 = vmatpush1.bf16.msra.mxu0 %v8717
        %8984 = vmatprep.subr.bf16.mxu0 %v8720
        %8985 = vmatpush1.bf16.msra.mxu0 %v8719
        %8986 = vmatprep.subr.bf16.mxu0 %v8722
        %8987 = vmatpush1.bf16.msra.mxu0 %v8721
        %8988 = vmatprep.subr.bf16.mxu0 %v8724
        %8989 = vmatpush1.bf16.msra.mxu0 %v8723
        %8990 = vmatprep.subr.bf16.mxu0 %v8726
        %8991 = vmatpush1.bf16.msra.mxu0 %v8725
        %8992 = vmatprep.subr.bf16.mxu0 %v8728
        %8993 = vmatpush1.bf16.msra.mxu0 %v8727
        %8994 = vmatprep.subr.bf16.mxu0 %v8730
        %8995 = vmatpush1.bf16.msra.mxu0 %v8729
        %8996 = vmatprep.subr.bf16.mxu0 %v8732
        %8997 = vmatpush1.bf16.msra.mxu0 %v8731
        %8998 = vmatprep.subr.bf16.mxu0 %v8734
        %8999 = vmatpush1.bf16.msra.mxu0 %v8733
        %9000 = vmatprep.subr.bf16.mxu0 %v8736
        %9001 = vmatpush1.bf16.msra.mxu0 %v8735
        %9002 = vmatprep.subr.bf16.mxu0 %v8738
        %9003 = vmatpush1.bf16.msra.mxu0 %v8737
        %9004 = vmatprep.mubr.bf16.mxu0 %v8156
        %9005 = vmatmul.mubr.bf16.gmra.mrb[0].mxu0 %v8155
        %v9006 = vpop.f32.mrb[0].mxu0
        %v9007 = vadd.f32 %v8966, %v9006
        %v9008 = vpop.f32.mrb[0].mxu0
        %v9009 = vadd.f32 %v8968, %v9008
        %v9010 = vpop.f32.mrb[0].mxu0
        %v9011 = vpop.f32.mrb[0].mxu0
        %9012 = vdwg.mxu0
        %9013 = vmatprep.subr.bf16.mxu0 %v8740
        %9014 = vmatpush1.bf16.msra.mxu0 %v8739
        %9015 = vmatprep.subr.bf16.mxu0 %v8742
        %9016 = vmatpush1.bf16.msra.mxu0 %v8741
        %9017 = vmatprep.subr.bf16.mxu0 %v8744
        %9018 = vmatpush1.bf16.msra.mxu0 %v8743
        %9019 = vmatprep.subr.bf16.mxu0 %v8746
        %9020 = vmatpush1.bf16.msra.mxu0 %v8745
        %9021 = vmatprep.subr.bf16.mxu0 %v8748
        %9022 = vmatpush1.bf16.msra.mxu0 %v8747
        %9023 = vmatprep.subr.bf16.mxu0 %v8750
        %9024 = vmatpush1.bf16.msra.mxu0 %v8749
        %9025 = vmatprep.subr.bf16.mxu0 %v8752
        %9026 = vmatpush1.bf16.msra.mxu0 %v8751
        %9027 = vmatprep.subr.bf16.mxu0 %v8754
        %9028 = vmatpush1.bf16.msra.mxu0 %v8753
        %9029 = vmatprep.subr.bf16.mxu0 %v8756
        %9030 = vmatpush1.bf16.msra.mxu0 %v8755
        %9031 = vmatprep.subr.bf16.mxu0 %v8758
        %9032 = vmatpush1.bf16.msra.mxu0 %v8757
        %9033 = vmatprep.subr.bf16.mxu0 %v8760
        %9034 = vmatpush1.bf16.msra.mxu0 %v8759
        %9035 = vmatprep.subr.bf16.mxu0 %v8762
        %9036 = vmatpush1.bf16.msra.mxu0 %v8761
        %9037 = vmatprep.subr.bf16.mxu0 %v8764
        %9038 = vmatpush1.bf16.msra.mxu0 %v8763
        %9039 = vmatprep.subr.bf16.mxu0 %v8766
        %9040 = vmatpush1.bf16.msra.mxu0 %v8765
        %9041 = vmatprep.subr.bf16.mxu0 %v8768
        %9042 = vmatpush1.bf16.msra.mxu0 %v8767
        %9043 = vmatprep.subr.bf16.mxu0 %v8770
        %9044 = vmatpush1.bf16.msra.mxu0 %v8769
        %9045 = vmatprep.mubr.bf16.mxu0 %v8158
        %9046 = vmatmul.mubr.bf16.gmra.mrb[0].mxu0 %v8157
        %v9047 = vpop.f32.mrb[0].mxu0
        %v9048 = vadd.f32 %v9007, %v9047
        %v9049 = vpop.f32.mrb[0].mxu0
        %v9050 = vadd.f32 %v9009, %v9049
        %v9051 = vpop.f32.mrb[0].mxu0
        %v9052 = vpop.f32.mrb[0].mxu0
        %9053 = vdwg.mxu0
        %9054 = vmatprep.subr.bf16.mxu0 %v8772
        %9055 = vmatpush1.bf16.msra.mxu0 %v8771
        %9056 = vmatprep.subr.bf16.mxu0 %v8774
        %9057 = vmatpush1.bf16.msra.mxu0 %v8773
        %9058 = vmatprep.subr.bf16.mxu0 %v8776
        %9059 = vmatpush1.bf16.msra.mxu0 %v8775
        %9060 = vmatprep.subr.bf16.mxu0 %v8778
        %9061 = vmatpush1.bf16.msra.mxu0 %v8777
        %9062 = vmatprep.subr.bf16.mxu0 %v8780
        %9063 = vmatpush1.bf16.msra.mxu0 %v8779
        %9064 = vmatprep.subr.bf16.mxu0 %v8782
        %9065 = vmatpush1.bf16.msra.mxu0 %v8781
        %9066 = vmatprep.subr.bf16.mxu0 %v8784
        %9067 = vmatpush1.bf16.msra.mxu0 %v8783
        %9068 = vmatprep.subr.bf16.mxu0 %v8786
        %9069 = vmatpush1.bf16.msra.mxu0 %v8785
        %9070 = vmatprep.subr.bf16.mxu0 %v8788
        %9071 = vmatpush1.bf16.msra.mxu0 %v8787
        %9072 = vmatprep.subr.bf16.mxu0 %v8790
        %9073 = vmatpush1.bf16.msra.mxu0 %v8789
        %9074 = vmatprep.subr.bf16.mxu0 %v8792
        %9075 = vmatpush1.bf16.msra.mxu0 %v8791
        %9076 = vmatprep.subr.bf16.mxu0 %v8794
        %9077 = vmatpush1.bf16.msra.mxu0 %v8793
        %9078 = vmatprep.subr.bf16.mxu0 %v8796
        %9079 = vmatpush1.bf16.msra.mxu0 %v8795
        %9080 = vmatprep.subr.bf16.mxu0 %v8798
        %9081 = vmatpush1.bf16.msra.mxu0 %v8797
        %9082 = vmatprep.subr.bf16.mxu0 %v8800
        %9083 = vmatpush1.bf16.msra.mxu0 %v8799
        %9084 = vmatprep.subr.bf16.mxu0 %v8802
        %9085 = vmatpush1.bf16.msra.mxu0 %v8801
        %9086 = vmatprep.mubr.bf16.mxu0 %v8160
        %9087 = vmatmul.mubr.bf16.gmra.mrb[0].mxu0 %v8159
        %v9088 = vpop.f32.mrb[0].mxu0
        %v9089 = vadd.f32 %v9048, %v9088
        %v9090 = vpop.f32.mrb[0].mxu0
        %v9091 = vadd.f32 %v9050, %v9090
        %v9092 = vpop.f32.mrb[0].mxu0
        %v9093 = vpop.f32.mrb[0].mxu0
        %9094 = vdwg.mxu0
        %v9095 = vadd.f32 %v8161, %v9089
        %v9096 = vadd.f32 %v8162, %v9091
        %9097 = vst [vmem:[#allocation13] sm:$0xff] %v9095
        %9098 = vst [vmem:[#allocation13 + $0x8] sm:$0xff] %v9096
        %p9099 = scmp.eq.s32.totalorder %s26, 3
        // Predicated region
        $region73: #{proj_mlp.1} parent=43 // pred_check
          %p9100 = pneg %p9099
        $region74: #{proj_mlp.1} parent=43 // pred_check_branch
          %9102 = sbr.rel (%p9100) target = $region76
        $region75: #{proj_mlp.1} parent=43 // pred_region
          %v9103 = vld [vmem:[#allocation13] sm:$0xff]
          %v9104 = vld [vmem:[#allocation13 + $0x8] sm:$0xff]
          %v9105 = vld [vmem:[#allocation11] sm:$0x3]
          %v9107 = vlaneseq
          %v9108 = vshrl.u32 %v9107, 7
          %v9109 = vsub.s32 0, %v9108
          %v9110 = vrot.slane %v9105, %v9109
          %v9111 = vlaneseq
          %v9112 = vshrl.u32 %v9111, 7
          %v9113 = vsub.s32 1, %v9112
          %v9114 = vrot.slane %v9105, %v9113
          %v9117 = vadd.f32 %v9103, %v9110
          %v9118 = vadd.f32 %v9104, %v9114
          %9119 = vst [vmem:[#allocation13] sm:$0xff] %v9117
          %9120 = vst [vmem:[#allocation13 + $0x8] sm:$0xff] %v9118
        $region76: #{proj_mlp.1} parent=43 // pred_fallthru
          _
        // Predicated region
        $region77: #{proj_mlp.1} parent=43 // pred_check
          %p9121 = pneg %p185
        $region78: #{proj_mlp.1} parent=43 // pred_check_branch
          %9123 = sbr.rel (%p9121) target = $region80
        $region79: #{proj_mlp.1} parent=43 // pred_region
          %s9125 = ssub.s32 256, 256
          %9126 = vsyncadd [#allocation4], %s9125
          %s9128 = sshll.u32 [#allocation13], 4
          %s9129 = int_to_ptr.vmem [resolvable:$true] %s9128
          %9131 = dma.vmem_to_hbm [thread:$0]  %s9129, 256, %s6, [#allocation4]
        $region80: #{proj_mlp.1} parent=43 // pred_fallthru
          _
        // Predicated region
        $region81: #{proj_mlp.1} parent=43 // pred_check
          %p9132 = pneg %p185
        $region82: #{proj_mlp.1} parent=43 // pred_check_branch
          %9134 = sbr.rel (%p9132) target = $region84
        $region83: #{proj_mlp.1} parent=43 // pred_region
          %9135 = dma.done [#allocation4], 256
        $region84: #{proj_mlp.1} parent=43 // pred_fallthru
          _
      $region44: #{proj_mlp.1} parent=5 // pred_fallthru
        _
      %p9136 = scmp.le.s32.totalorder 2, %s21
      // Predicated region
      $region85: #{proj_mlp.1} parent=5 // pred_check
        %p9137 = pneg %p9136
      $region86: #{proj_mlp.1} parent=5 // pred_check_branch
        %9139 = sbr.rel (%p9137) target = $region88
      $region87: #{proj_mlp.1} parent=5 // pred_region
        %s9140 = ssub.s32 %s21, 2
      $region88: #{proj_mlp.1} parent=5 // pred_fallthru
        _
    $region6: #{proj_mlp.1} parent=1 // loop_footer
      %s25 = sadd.s32 1, %s21
    $region7: #{proj_mlp.1} parent=1 // loop_footer_branch
      %20 = sbr.rel target = $region3
    $region8: #{proj_mlp.1} parent=1 // loop_exit
      _
    %9141 = vsyncpa [#allocation3], 1
    %s9142 = scalar_lea.sflag [#allocation3], 1
    %9143 = vsyncpa %s9142, 1
    %9144 = vsyncpa [#allocation6], 1
    %s9145 = scalar_lea.sflag [#allocation6], 1
    %9146 = vsyncpa %s9145, 1
    %9147 = vsyncpa [#allocation9], 1
    %s9148 = scalar_lea.sflag [#allocation9], 1
    %9149 = vsyncpa %s9148, 1
    %9150 = vsyncpa [#allocation12], 1
    %9151 = vsyncpa [#allocation4], 1
    %s9152 = scalar_lea.sflag [#allocation4], 1
    %9153 = vsyncpa %s9152, 1

</llo_original>
